<compile_context>
chip_gen: v7x
topology: tpu7x:2x2x1
jax: 0.10.0
libtpu: 0.0.40
codegen_flags: <defaults>
</compile_context>

<pallas_src>
import numpy as np
import jax
import jax.numpy as jnp
from jax.experimental import pallas as pl
from jax.experimental.pallas import tpu as pltpu


_TAPS = tuple((ky, kx) for ky in range(3) for kx in range(3))   # matches (9, Ci, Co) slab order


def _down_kernel(x_ref, w1_ref, w2_ref, gamma_ref, beta_ref, out_ref, pad_ref, pool_ref):
    # x_ref:      (B, H+2, W+2, Cin)   bf16  (spatially zero-padded in the wrapper)
    # w1_ref:     (9, Cin, Cop)        bf16  (per-tap slabs, Cout zero-padded to Cop)
    # w2_ref:     (9, Cop, Cop)        bf16
    # gamma/beta: (1, Cop)             f32   (shared InstanceNorm2d affine, zero-padded)
    # out_ref:    (B, H*W//4, Cop)     f32   (lane-dense output block)
    # pad_ref:    (B, H+2, W+2, Cop)   bf16  scratch: zero-bordered conv2 input
    # pool_ref:   (B*(H//2)*W, Cop)    f32   scratch: W-direction pooling staging
    B, Hp, Wp, Cin = x_ref.shape
    H, W = Hp - 2, Wp - 2
    Cop = w1_ref.shape[2]
    HW = H * W

    gamma = gamma_ref[...].reshape(1, 1, Cop)
    beta = beta_ref[...].reshape(1, 1, Cop)

    def conv3x3(src_ref, ci, w_ref):
        # 9 accumulating per-tap matmuls: bf16 operands, f32 accumulation on the MXU.
        acc = None
        for t, (ky, kx) in enumerate(_TAPS):
            lhs = src_ref[:, ky:ky + H, kx:kx + W, :].reshape(B * HW, ci)
            part = jnp.dot(lhs, w_ref[t], preferred_element_type=jnp.float32)
            acc = part if acc is None else acc + part
        return acc                                              # (B*HW, Cop) f32

    def inorm_relu(y):
        # InstanceNorm2d: per-image, per-channel stats over spatial dims, biased var,
        # eps=1e-5, affine folded into one scale/shift; then ReLU.  All in f32.
        yb = y.reshape(B, HW, Cop)
        mean = jnp.mean(yb, axis=1, keepdims=True)
        var = jnp.mean((yb - mean) * (yb - mean), axis=1, keepdims=True)
        scale = gamma * jax.lax.rsqrt(var + 1e-5)
        shift = beta - mean * scale
        return jnp.maximum(yb * scale + shift, 0.0)              # (B, HW, Cop) f32

    # ---- conv1 -> InstanceNorm -> ReLU -------------------------------------------------
    y1 = inorm_relu(conv3x3(x_ref, Cin, w1_ref))                 # (B, HW, Cop) f32

    # ---- stage conv2 input: zero only the border (not the whole scratch), every step ---
    zrow = jnp.zeros((B, 1, Wp, Cop), jnp.bfloat16)
    zcol = jnp.zeros((B, Hp, 1, Cop), jnp.bfloat16)
    pad_ref[:, 0:1, :, :] = zrow
    pad_ref[:, Hp - 1:Hp, :, :] = zrow
    pad_ref[:, :, 0:1, :] = zcol
    pad_ref[:, :, Wp - 1:Wp, :] = zcol
    # TODO(synk): the offset-1 interior store is still a masked sublane store; an aligned
    # full-width write needs a sublane concat that is riskier to lower -- revisit if it
    # ever shows up on the store slot.
    pad_ref[:, 1:H + 1, 1:W + 1, :] = y1.reshape(B, H, W, Cop).astype(jnp.bfloat16)

    # ---- conv2 -> InstanceNorm -> ReLU -------------------------------------------------
    y2 = inorm_relu(conv3x3(pad_ref, Cop, w2_ref))               # (B, HW, Cop) f32

    # ---- MaxPool2d(2) -------------------------------------------------------------------
    # H direction: pairwise max fully in-register (aligned value slices, no relayout).
    y2r = y2.reshape(B * (H // 2), 2 * W, Cop)
    h2 = jnp.maximum(y2r[:, 0:W, :], y2r[:, W:2 * W, :])         # (B*(H//2), W, Cop)
    # W direction: stride-2 sublane reads from a small staging scratch (half the size of
    # the old full-HW buffer since H was already reduced in-register).
    pool_ref[...] = h2.reshape(B * (H // 2) * W, Cop)
    half = (B * (H // 2) * W) // 2
    wmax = jnp.maximum(pool_ref[pl.ds(0, half, stride=2), :],
                       pool_ref[pl.ds(1, half, stride=2), :])    # (B*(H//2)*(W//2), Cop)
    out_ref[...] = wmax.reshape(B, (H // 2) * (W // 2), Cop)


def down_pallas(x_nchw, w1, w2, gamma, beta):
    """x_nchw: (N, Cin, H, W); w1/w2 in HWIO layout. Returns (N, Cout, H//2, W//2)."""
    N, Cin, H, W = x_nchw.shape
    Cout = w1.shape[-1]
    assert H % 2 == 0 and W % 2 == 0
    Cop = ((Cout + 127) // 128) * 128        # lane-dense channel dimension
    HW4 = (H * W) // 4

    # ---- wrapper-side layout plumbing: NHWC, spatial halo, bf16, padded channel slabs ---
    x_nhwc = jnp.transpose(x_nchw, (0, 2, 3, 1)).astype(jnp.float32)
    x_pad = jnp.pad(x_nhwc, ((0, 0), (1, 1), (1, 1), (0, 0))).astype(jnp.bfloat16)

    w1_t = jnp.pad(w1.reshape(9, Cin, Cout).astype(jnp.bfloat16),
                   ((0, 0), (0, 0), (0, Cop - Cout)))            # (9, Cin, Cop)
    w2_t = jnp.pad(w2.reshape(9, Cout, Cout).astype(jnp.bfloat16),
                   ((0, 0), (0, Cop - Cout), (0, Cop - Cout)))   # (9, Cop, Cop)
    gamma2 = jnp.pad(gamma.reshape(1, Cout).astype(jnp.float32), ((0, 0), (0, Cop - Cout)))
    beta2 = jnp.pad(beta.reshape(1, Cout).astype(jnp.float32), ((0, 0), (0, Cop - Cout)))

    # ---- batch blocking: fold Bblk images into the matmul M dimension --------------------
    per_img_bytes = (2 * ((H + 2) * (W + 2) * Cin * 2 + HW4 * Cop * 4)   # dbl-buffered in/out
                     + (H + 2) * (W + 2) * Cop * 2                       # pad scratch (bf16)
                     + (H // 2) * W * Cop * 4)                           # pool scratch (f32)
    budget = 20 << 20   # keep well under the v7x per-core scoped default
    bblk = 1
    for d in range(1, N + 1):
        if N % d == 0 and (N == 1 or N // d >= 2) and d * per_img_bytes <= budget:
            bblk = d
    nb = N // bblk

    w_bytes = (9 * Cin * Cop + 9 * Cop * Cop) * 2 + 2 * Cop * 4 * 2
    est = bblk * per_img_bytes + 2 * w_bytes
    vmem_limit = int(min(max(2 * est, 16 << 20), 40 << 20))

    out = pl.pallas_call(
        _down_kernel,
        out_shape=jax.ShapeDtypeStruct((N, HW4, Cop), jnp.float32),
        grid=(nb,),
        in_specs=[
            pl.BlockSpec((bblk, H + 2, W + 2, Cin), lambda n: (n, 0, 0, 0)),
            pl.BlockSpec((9, Cin, Cop), lambda n: (0, 0, 0)),
            pl.BlockSpec((9, Cop, Cop), lambda n: (0, 0, 0)),
            pl.BlockSpec((1, Cop), lambda n: (0, 0)),
            pl.BlockSpec((1, Cop), lambda n: (0, 0)),
        ],
        out_specs=pl.BlockSpec((bblk, HW4, Cop), lambda n: (n, 0, 0)),
        scratch_shapes=[
            pltpu.VMEM((bblk, H + 2, W + 2, Cop), jnp.bfloat16),   # zero-bordered conv2 input
            pltpu.VMEM((bblk * (H // 2) * W, Cop), jnp.float32),   # W-pooling staging
        ],
        compiler_params=pltpu.CompilerParams(
            dimension_semantics=("parallel",),
            vmem_limit_bytes=vmem_limit),
    )(x_pad, w1_t, w2_t, gamma2, beta2)

    out = out.reshape(N, H // 2, W // 2, Cop)[..., :Cout]
    return jnp.transpose(out, (0, 3, 1, 2))    # back to NCHW


def down_reference(x_nchw, w1, w2, gamma, beta):
    """Pure-JAX f32 reference mirroring the PyTorch forward (NCHW in/out)."""
    x = jnp.transpose(x_nchw, (0, 2, 3, 1)).astype(jnp.float32)

    def conv(x, w):
        return jax.lax.conv_general_dilated(
            x, w, window_strides=(1, 1), padding=((1, 1), (1, 1)),
            dimension_numbers=('NHWC', 'HWIO', 'NHWC'))

    def inorm_relu(y):
        mean = jnp.mean(y, axis=(1, 2), keepdims=True)
        var = jnp.mean((y - mean) ** 2, axis=(1, 2), keepdims=True)
        yn = (y - mean) * jax.lax.rsqrt(var + 1e-5)
        yn = yn * gamma.reshape(1, 1, 1, -1) + beta.reshape(1, 1, 1, -1)
        return jnp.maximum(yn, 0.0)

    y = inorm_relu(conv(x, w1))
    y = inorm_relu(conv(y, w2))
    N, H, W, C = y.shape
    y = y.reshape(N, H // 2, 2, W // 2, 2, C).max(axis=(2, 4))
    return jnp.transpose(y, (0, 3, 1, 2))


if __name__ == "__main__":
    N, Cin, Cout, H, W = 2, 4, 8, 16, 16
    key = jax.random.PRNGKey(0)
    kx, k1, k2, kg, kb = jax.random.split(key, 5)

    x = jax.random.normal(kx, (N, Cin, H, W), jnp.float32)
    # Conv2d weights, bias=False; stored directly in HWIO = (ky, kx, in, out) layout.
    w1 = 0.3 * jax.random.normal(k1, (3, 3, Cin, Cout), jnp.float32)
    w2 = 0.3 * jax.random.normal(k2, (3, 3, Cout, Cout), jnp.float32)
    # InstanceNorm2d(affine=True) params (single module reused for both norms).
    gamma = 1.0 + 0.1 * jax.random.normal(kg, (Cout,), jnp.float32)
    beta = 0.1 * jax.random.normal(kb, (Cout,), jnp.float32)

    out = jax.block_until_ready(down_pallas(x, w1, w2, gamma, beta))
    ref = jax.block_until_ready(down_reference(x, w1, w2, gamma, beta))

    assert out.shape == (N, Cout, H // 2, W // 2)
    # MXU operands are bf16 (f32 accumulation), hence the slightly widened tolerance.
    np.testing.assert_allclose(np.asarray(out), np.asarray(ref), rtol=2e-2, atol=2e-2)

    print("KERNEL_OK")
</pallas_src>

<mosaic_0001>
module attributes {stable_mosaic.version = 11 : i64} {
  func.func @_down_kernel(%arg0: i32, %arg1: memref<1x18x18x4xbf16, #tpu.memory_space<vmem>>, %arg2: memref<9x4x128xbf16, #tpu.memory_space<vmem>>, %arg3: memref<9x128x128xbf16, #tpu.memory_space<vmem>>, %arg4: memref<1x128xf32, #tpu.memory_space<vmem>>, %arg5: memref<1x128xf32, #tpu.memory_space<vmem>>, %arg6: memref<1x64x128xf32, #tpu.memory_space<vmem>>, %arg7: memref<1x18x18x128xbf16, #tpu.memory_space<vmem>>, %arg8: memref<128x128xf32, #tpu.memory_space<vmem>>) attributes {dimension_semantics = [#tpu.dimension_semantics<parallel>], iteration_bounds = array<i64: 2>, scalar_prefetch = 0 : i64, scratch_operands = 2 : i64, tpu.core_type = #tpu.core_type<tc>, window_params = [{transform_indices = @transform_0, window_bounds = array<i64: 1, 18, 18, 4>}, {pipeline_mode = #tpu.pipeline_mode<synchronous>, transform_indices = @transform_1, window_bounds = array<i64: 9, 4, 128>}, {pipeline_mode = #tpu.pipeline_mode<synchronous>, transform_indices = @transform_2, window_bounds = array<i64: 9, 128, 128>}, {pipeline_mode = #tpu.pipeline_mode<synchronous>, transform_indices = @transform_3, window_bounds = array<i64: 1, 128>}, {pipeline_mode = #tpu.pipeline_mode<synchronous>, transform_indices = @transform_4, window_bounds = array<i64: 1, 128>}, {transform_indices = @transform_5, window_bounds = array<i64: 1, 64, 128>}]} {
    %c0 = arith.constant 0 : index
    %c0_0 = arith.constant 0 : index
    %0 = vector.load %arg4[%c0, %c0_0] : memref<1x128xf32, #tpu.memory_space<vmem>>, vector<1x128xf32>
    %1 = vector.shape_cast %0 : vector<1x128xf32> to vector<1x1x128xf32>
    %c0_1 = arith.constant 0 : index
    %c0_2 = arith.constant 0 : index
    %2 = vector.load %arg5[%c0_1, %c0_2] : memref<1x128xf32, #tpu.memory_space<vmem>>, vector<1x128xf32>
    %3 = vector.shape_cast %2 : vector<1x128xf32> to vector<1x1x128xf32>
    %c0_3 = arith.constant 0 : index
    %c0_4 = arith.constant 0 : index
    %c0_5 = arith.constant 0 : index
    %c0_6 = arith.constant 0 : index
    %4 = vector.load %arg1[%c0_3, %c0_4, %c0_5, %c0_6] : memref<1x18x18x4xbf16, #tpu.memory_space<vmem>>, vector<1x16x16x4xbf16>
    %5 = vector.shape_cast %4 : vector<1x16x16x4xbf16> to vector<256x4xbf16>
    %c0_7 = arith.constant 0 : index
    %c0_8 = arith.constant 0 : index
    %c0_9 = arith.constant 0 : index
    %6 = vector.load %arg2[%c0_7, %c0_8, %c0_9] : memref<9x4x128xbf16, #tpu.memory_space<vmem>>, vector<1x4x128xbf16>
    %7 = vector.shape_cast %6 : vector<1x4x128xbf16> to vector<4x128xbf16>
    %cst = arith.constant dense<0.000000e+00> : vector<256x128xf32>
    %8 = tpu.matmul %5, %7, %cst {dimension_numbers = #tpu.dot_dimension_numbers<[1], [0], [0], [1], [0, 0, 1, 1], [], []>} : vector<256x4xbf16>, vector<4x128xbf16>, vector<256x128xf32> -> vector<256x128xf32>
    %c0_10 = arith.constant 0 : index
    %c0_11 = arith.constant 0 : index
    %c1 = arith.constant 1 : index
    %c0_12 = arith.constant 0 : index
    %9 = vector.load %arg1[%c0_10, %c0_11, %c1, %c0_12] : memref<1x18x18x4xbf16, #tpu.memory_space<vmem>>, vector<1x16x16x4xbf16>
    %10 = vector.shape_cast %9 : vector<1x16x16x4xbf16> to vector<256x4xbf16>
    %c1_13 = arith.constant 1 : index
    %c0_14 = arith.constant 0 : index
    %c0_15 = arith.constant 0 : index
    %11 = vector.load %arg2[%c1_13, %c0_14, %c0_15] : memref<9x4x128xbf16, #tpu.memory_space<vmem>>, vector<1x4x128xbf16>
    %12 = vector.shape_cast %11 : vector<1x4x128xbf16> to vector<4x128xbf16>
    %cst_16 = arith.constant dense<0.000000e+00> : vector<256x128xf32>
    %13 = tpu.matmul %10, %12, %cst_16 {dimension_numbers = #tpu.dot_dimension_numbers<[1], [0], [0], [1], [0, 0, 1, 1], [], []>} : vector<256x4xbf16>, vector<4x128xbf16>, vector<256x128xf32> -> vector<256x128xf32>
    %14 = arith.addf %8, %13 : vector<256x128xf32>
    %c0_17 = arith.constant 0 : index
    %c0_18 = arith.constant 0 : index
    %c2 = arith.constant 2 : index
    %c0_19 = arith.constant 0 : index
    %15 = vector.load %arg1[%c0_17, %c0_18, %c2, %c0_19] : memref<1x18x18x4xbf16, #tpu.memory_space<vmem>>, vector<1x16x16x4xbf16>
    %16 = vector.shape_cast %15 : vector<1x16x16x4xbf16> to vector<256x4xbf16>
    %c2_20 = arith.constant 2 : index
    %c0_21 = arith.constant 0 : index
    %c0_22 = arith.constant 0 : index
    %17 = vector.load %arg2[%c2_20, %c0_21, %c0_22] : memref<9x4x128xbf16, #tpu.memory_space<vmem>>, vector<1x4x128xbf16>
    %18 = vector.shape_cast %17 : vector<1x4x128xbf16> to vector<4x128xbf16>
    %cst_23 = arith.constant dense<0.000000e+00> : vector<256x128xf32>
    %19 = tpu.matmul %16, %18, %cst_23 {dimension_numbers = #tpu.dot_dimension_numbers<[1], [0], [0], [1], [0, 0, 1, 1], [], []>} : vector<256x4xbf16>, vector<4x128xbf16>, vector<256x128xf32> -> vector<256x128xf32>
    %20 = arith.addf %14, %19 : vector<256x128xf32>
    %c0_24 = arith.constant 0 : index
    %c1_25 = arith.constant 1 : index
    %c0_26 = arith.constant 0 : index
    %c0_27 = arith.constant 0 : index
    %21 = vector.load %arg1[%c0_24, %c1_25, %c0_26, %c0_27] : memref<1x18x18x4xbf16, #tpu.memory_space<vmem>>, vector<1x16x16x4xbf16>
    %22 = vector.shape_cast %21 : vector<1x16x16x4xbf16> to vector<256x4xbf16>
    %c3 = arith.constant 3 : index
    %c0_28 = arith.constant 0 : index
    %c0_29 = arith.constant 0 : index
    %23 = vector.load %arg2[%c3, %c0_28, %c0_29] : memref<9x4x128xbf16, #tpu.memory_space<vmem>>, vector<1x4x128xbf16>
    %24 = vector.shape_cast %23 : vector<1x4x128xbf16> to vector<4x128xbf16>
    %cst_30 = arith.constant dense<0.000000e+00> : vector<256x128xf32>
    %25 = tpu.matmul %22, %24, %cst_30 {dimension_numbers = #tpu.dot_dimension_numbers<[1], [0], [0], [1], [0, 0, 1, 1], [], []>} : vector<256x4xbf16>, vector<4x128xbf16>, vector<256x128xf32> -> vector<256x128xf32>
    %26 = arith.addf %20, %25 : vector<256x128xf32>
    %c0_31 = arith.constant 0 : index
    %c1_32 = arith.constant 1 : index
    %c1_33 = arith.constant 1 : index
    %c0_34 = arith.constant 0 : index
    %27 = vector.load %arg1[%c0_31, %c1_32, %c1_33, %c0_34] : memref<1x18x18x4xbf16, #tpu.memory_space<vmem>>, vector<1x16x16x4xbf16>
    %28 = vector.shape_cast %27 : vector<1x16x16x4xbf16> to vector<256x4xbf16>
    %c4 = arith.constant 4 : index
    %c0_35 = arith.constant 0 : index
    %c0_36 = arith.constant 0 : index
    %29 = vector.load %arg2[%c4, %c0_35, %c0_36] : memref<9x4x128xbf16, #tpu.memory_space<vmem>>, vector<1x4x128xbf16>
    %30 = vector.shape_cast %29 : vector<1x4x128xbf16> to vector<4x128xbf16>
    %cst_37 = arith.constant dense<0.000000e+00> : vector<256x128xf32>
    %31 = tpu.matmul %28, %30, %cst_37 {dimension_numbers = #tpu.dot_dimension_numbers<[1], [0], [0], [1], [0, 0, 1, 1], [], []>} : vector<256x4xbf16>, vector<4x128xbf16>, vector<256x128xf32> -> vector<256x128xf32>
    %32 = arith.addf %26, %31 : vector<256x128xf32>
    %c0_38 = arith.constant 0 : index
    %c1_39 = arith.constant 1 : index
    %c2_40 = arith.constant 2 : index
    %c0_41 = arith.constant 0 : index
    %33 = vector.load %arg1[%c0_38, %c1_39, %c2_40, %c0_41] : memref<1x18x18x4xbf16, #tpu.memory_space<vmem>>, vector<1x16x16x4xbf16>
    %34 = vector.shape_cast %33 : vector<1x16x16x4xbf16> to vector<256x4xbf16>
    %c5 = arith.constant 5 : index
    %c0_42 = arith.constant 0 : index
    %c0_43 = arith.constant 0 : index
    %35 = vector.load %arg2[%c5, %c0_42, %c0_43] : memref<9x4x128xbf16, #tpu.memory_space<vmem>>, vector<1x4x128xbf16>
    %36 = vector.shape_cast %35 : vector<1x4x128xbf16> to vector<4x128xbf16>
    %cst_44 = arith.constant dense<0.000000e+00> : vector<256x128xf32>
    %37 = tpu.matmul %34, %36, %cst_44 {dimension_numbers = #tpu.dot_dimension_numbers<[1], [0], [0], [1], [0, 0, 1, 1], [], []>} : vector<256x4xbf16>, vector<4x128xbf16>, vector<256x128xf32> -> vector<256x128xf32>
    %38 = arith.addf %32, %37 : vector<256x128xf32>
    %c0_45 = arith.constant 0 : index
    %c2_46 = arith.constant 2 : index
    %c0_47 = arith.constant 0 : index
    %c0_48 = arith.constant 0 : index
    %39 = vector.load %arg1[%c0_45, %c2_46, %c0_47, %c0_48] : memref<1x18x18x4xbf16, #tpu.memory_space<vmem>>, vector<1x16x16x4xbf16>
    %40 = vector.shape_cast %39 : vector<1x16x16x4xbf16> to vector<256x4xbf16>
    %c6 = arith.constant 6 : index
    %c0_49 = arith.constant 0 : index
    %c0_50 = arith.constant 0 : index
    %41 = vector.load %arg2[%c6, %c0_49, %c0_50] : memref<9x4x128xbf16, #tpu.memory_space<vmem>>, vector<1x4x128xbf16>
    %42 = vector.shape_cast %41 : vector<1x4x128xbf16> to vector<4x128xbf16>
    %cst_51 = arith.constant dense<0.000000e+00> : vector<256x128xf32>
    %43 = tpu.matmul %40, %42, %cst_51 {dimension_numbers = #tpu.dot_dimension_numbers<[1], [0], [0], [1], [0, 0, 1, 1], [], []>} : vector<256x4xbf16>, vector<4x128xbf16>, vector<256x128xf32> -> vector<256x128xf32>
    %44 = arith.addf %38, %43 : vector<256x128xf32>
    %c0_52 = arith.constant 0 : index
    %c2_53 = arith.constant 2 : index
    %c1_54 = arith.constant 1 : index
    %c0_55 = arith.constant 0 : index
    %45 = vector.load %arg1[%c0_52, %c2_53, %c1_54, %c0_55] : memref<1x18x18x4xbf16, #tpu.memory_space<vmem>>, vector<1x16x16x4xbf16>
    %46 = vector.shape_cast %45 : vector<1x16x16x4xbf16> to vector<256x4xbf16>
    %c7 = arith.constant 7 : index
    %c0_56 = arith.constant 0 : index
    %c0_57 = arith.constant 0 : index
    %47 = vector.load %arg2[%c7, %c0_56, %c0_57] : memref<9x4x128xbf16, #tpu.memory_space<vmem>>, vector<1x4x128xbf16>
    %48 = vector.shape_cast %47 : vector<1x4x128xbf16> to vector<4x128xbf16>
    %cst_58 = arith.constant dense<0.000000e+00> : vector<256x128xf32>
    %49 = tpu.matmul %46, %48, %cst_58 {dimension_numbers = #tpu.dot_dimension_numbers<[1], [0], [0], [1], [0, 0, 1, 1], [], []>} : vector<256x4xbf16>, vector<4x128xbf16>, vector<256x128xf32> -> vector<256x128xf32>
    %50 = arith.addf %44, %49 : vector<256x128xf32>
    %c0_59 = arith.constant 0 : index
    %c2_60 = arith.constant 2 : index
    %c2_61 = arith.constant 2 : index
    %c0_62 = arith.constant 0 : index
    %51 = vector.load %arg1[%c0_59, %c2_60, %c2_61, %c0_62] : memref<1x18x18x4xbf16, #tpu.memory_space<vmem>>, vector<1x16x16x4xbf16>
    %52 = vector.shape_cast %51 : vector<1x16x16x4xbf16> to vector<256x4xbf16>
    %c8 = arith.constant 8 : index
    %c0_63 = arith.constant 0 : index
    %c0_64 = arith.constant 0 : index
    %53 = vector.load %arg2[%c8, %c0_63, %c0_64] : memref<9x4x128xbf16, #tpu.memory_space<vmem>>, vector<1x4x128xbf16>
    %54 = vector.shape_cast %53 : vector<1x4x128xbf16> to vector<4x128xbf16>
    %cst_65 = arith.constant dense<0.000000e+00> : vector<256x128xf32>
    %55 = tpu.matmul %52, %54, %cst_65 {dimension_numbers = #tpu.dot_dimension_numbers<[1], [0], [0], [1], [0, 0, 1, 1], [], []>} : vector<256x4xbf16>, vector<4x128xbf16>, vector<256x128xf32> -> vector<256x128xf32>
    %56 = arith.addf %50, %55 : vector<256x128xf32>
    %57 = vector.shape_cast %56 : vector<256x128xf32> to vector<1x256x128xf32>
    %cst_66 = arith.constant dense<0.000000e+00> : vector<1x128xf32>
    %58 = vector.multi_reduction <add>, %57, %cst_66 [1] : vector<1x256x128xf32> to vector<1x128xf32>
    %59 = vector.shape_cast %58 : vector<1x128xf32> to vector<1x1x128xf32>
    %cst_67 = arith.constant 2.560000e+02 : f32
    %60 = vector.broadcast %cst_67 : f32 to vector<1x1x128xf32>
    %61 = arith.divf %59, %60 : vector<1x1x128xf32>
    %62 = vector.broadcast %61 : vector<1x1x128xf32> to vector<1x256x128xf32>
    %63 = arith.subf %57, %62 : vector<1x256x128xf32>
    %64 = vector.broadcast %61 : vector<1x1x128xf32> to vector<1x256x128xf32>
    %65 = arith.subf %57, %64 : vector<1x256x128xf32>
    %66 = arith.mulf %63, %65 : vector<1x256x128xf32>
    %cst_68 = arith.constant dense<0.000000e+00> : vector<1x128xf32>
    %67 = vector.multi_reduction <add>, %66, %cst_68 [1] : vector<1x256x128xf32> to vector<1x128xf32>
    %68 = vector.shape_cast %67 : vector<1x128xf32> to vector<1x1x128xf32>
    %cst_69 = arith.constant 2.560000e+02 : f32
    %69 = vector.broadcast %cst_69 : f32 to vector<1x1x128xf32>
    %70 = arith.divf %68, %69 : vector<1x1x128xf32>
    %cst_70 = arith.constant 9.99999974E-6 : f32
    %71 = vector.broadcast %cst_70 : f32 to vector<1x1x128xf32>
    %72 = arith.addf %70, %71 : vector<1x1x128xf32>
    %73 = math.rsqrt %72 : vector<1x1x128xf32>
    %74 = arith.mulf %1, %73 : vector<1x1x128xf32>
    %75 = arith.mulf %61, %74 : vector<1x1x128xf32>
    %76 = arith.subf %3, %75 : vector<1x1x128xf32>
    %77 = vector.broadcast %74 : vector<1x1x128xf32> to vector<1x256x128xf32>
    %78 = arith.mulf %57, %77 : vector<1x256x128xf32>
    %79 = vector.broadcast %76 : vector<1x1x128xf32> to vector<1x256x128xf32>
    %80 = arith.addf %78, %79 : vector<1x256x128xf32>
    %cst_71 = arith.constant 0.000000e+00 : f32
    %81 = vector.broadcast %cst_71 : f32 to vector<1x256x128xf32>
    %82 = arith.maximumf %80, %81 : vector<1x256x128xf32>
    %cst_72 = arith.constant 0.000000e+00 : bf16
    %83 = vector.broadcast %cst_72 : bf16 to vector<1x1x18x128xbf16>
    %cst_73 = arith.constant 0.000000e+00 : bf16
    %84 = vector.broadcast %cst_73 : bf16 to vector<1x18x1x128xbf16>
    %c0_74 = arith.constant 0 : index
    %c0_75 = arith.constant 0 : index
    %c0_76 = arith.constant 0 : index
    %c0_77 = arith.constant 0 : index
    %85 = vector.load %arg7[%c0_74, %c0_75, %c0_76, %c0_77] : memref<1x18x18x128xbf16, #tpu.memory_space<vmem>>, vector<1x1x18x128xbf16>
    tpu.vector_store %arg7[%c0_74, %c0_75, %c0_76, %c0_77], %83 {strides = array<i32>} : memref<1x18x18x128xbf16, #tpu.memory_space<vmem>>, vector<1x1x18x128xbf16>,
    %c0_78 = arith.constant 0 : index
    %c17 = arith.constant 17 : index
    %c0_79 = arith.constant 0 : index
    %c0_80 = arith.constant 0 : index
    %86 = vector.load %arg7[%c0_78, %c17, %c0_79, %c0_80] : memref<1x18x18x128xbf16, #tpu.memory_space<vmem>>, vector<1x1x18x128xbf16>
    tpu.vector_store %arg7[%c0_78, %c17, %c0_79, %c0_80], %83 {strides = array<i32>} : memref<1x18x18x128xbf16, #tpu.memory_space<vmem>>, vector<1x1x18x128xbf16>,
    %c0_81 = arith.constant 0 : index
    %c0_82 = arith.constant 0 : index
    %c0_83 = arith.constant 0 : index
    %c0_84 = arith.constant 0 : index
    %87 = vector.load %arg7[%c0_81, %c0_82, %c0_83, %c0_84] : memref<1x18x18x128xbf16, #tpu.memory_space<vmem>>, vector<1x18x1x128xbf16>
    tpu.vector_store %arg7[%c0_81, %c0_82, %c0_83, %c0_84], %84 {strides = array<i32>} : memref<1x18x18x128xbf16, #tpu.memory_space<vmem>>, vector<1x18x1x128xbf16>,
    %c0_85 = arith.constant 0 : index
    %c0_86 = arith.constant 0 : index
    %c17_87 = arith.constant 17 : index
    %c0_88 = arith.constant 0 : index
    %88 = vector.load %arg7[%c0_85, %c0_86, %c17_87, %c0_88] : memref<1x18x18x128xbf16, #tpu.memory_space<vmem>>, vector<1x18x1x128xbf16>
    tpu.vector_store %arg7[%c0_85, %c0_86, %c17_87, %c0_88], %84 {strides = array<i32>} : memref<1x18x18x128xbf16, #tpu.memory_space<vmem>>, vector<1x18x1x128xbf16>,
    %89 = vector.shape_cast %82 : vector<1x256x128xf32> to vector<1x16x16x128xf32>
    %90 = arith.truncf %89 : vector<1x16x16x128xf32> to vector<1x16x16x128xbf16>
    %c0_89 = arith.constant 0 : index
    %c1_90 = arith.constant 1 : index
    %c1_91 = arith.constant 1 : index
    %c0_92 = arith.constant 0 : index
    %91 = vector.load %arg7[%c0_89, %c1_90, %c1_91, %c0_92] : memref<1x18x18x128xbf16, #tpu.memory_space<vmem>>, vector<1x16x16x128xbf16>
    tpu.vector_store %arg7[%c0_89, %c1_90, %c1_91, %c0_92], %90 {strides = array<i32>} : memref<1x18x18x128xbf16, #tpu.memory_space<vmem>>, vector<1x16x16x128xbf16>,
    %c0_93 = arith.constant 0 : index
    %c0_94 = arith.constant 0 : index
    %c0_95 = arith.constant 0 : index
    %c0_96 = arith.constant 0 : index
    %92 = vector.load %arg7[%c0_93, %c0_94, %c0_95, %c0_96] : memref<1x18x18x128xbf16, #tpu.memory_space<vmem>>, vector<1x16x16x128xbf16>
    %93 = vector.shape_cast %92 : vector<1x16x16x128xbf16> to vector<256x128xbf16>
    %c0_97 = arith.constant 0 : index
    %c0_98 = arith.constant 0 : index
    %c0_99 = arith.constant 0 : index
    %94 = vector.load %arg3[%c0_97, %c0_98, %c0_99] : memref<9x128x128xbf16, #tpu.memory_space<vmem>>, vector<1x128x128xbf16>
    %95 = vector.shape_cast %94 : vector<1x128x128xbf16> to vector<128x128xbf16>
    %cst_100 = arith.constant dense<0.000000e+00> : vector<256x128xf32>
    %96 = tpu.matmul %93, %95, %cst_100 {dimension_numbers = #tpu.dot_dimension_numbers<[1], [0], [0], [1], [0, 0, 1, 1], [], []>} : vector<256x128xbf16>, vector<128x128xbf16>, vector<256x128xf32> -> vector<256x128xf32>
    %c0_101 = arith.constant 0 : index
    %c0_102 = arith.constant 0 : index
    %c1_103 = arith.constant 1 : index
    %c0_104 = arith.constant 0 : index
    %97 = vector.load %arg7[%c0_101, %c0_102, %c1_103, %c0_104] : memref<1x18x18x128xbf16, #tpu.memory_space<vmem>>, vector<1x16x16x128xbf16>
    %98 = vector.shape_cast %97 : vector<1x16x16x128xbf16> to vector<256x128xbf16>
    %c1_105 = arith.constant 1 : index
    %c0_106 = arith.constant 0 : index
    %c0_107 = arith.constant 0 : index
    %99 = vector.load %arg3[%c1_105, %c0_106, %c0_107] : memref<9x128x128xbf16, #tpu.memory_space<vmem>>, vector<1x128x128xbf16>
    %100 = vector.shape_cast %99 : vector<1x128x128xbf16> to vector<128x128xbf16>
    %cst_108 = arith.constant dense<0.000000e+00> : vector<256x128xf32>
    %101 = tpu.matmul %98, %100, %cst_108 {dimension_numbers = #tpu.dot_dimension_numbers<[1], [0], [0], [1], [0, 0, 1, 1], [], []>} : vector<256x128xbf16>, vector<128x128xbf16>, vector<256x128xf32> -> vector<256x128xf32>
    %102 = arith.addf %96, %101 : vector<256x128xf32>
    %c0_109 = arith.constant 0 : index
    %c0_110 = arith.constant 0 : index
    %c2_111 = arith.constant 2 : index
    %c0_112 = arith.constant 0 : index
    %103 = vector.load %arg7[%c0_109, %c0_110, %c2_111, %c0_112] : memref<1x18x18x128xbf16, #tpu.memory_space<vmem>>, vector<1x16x16x128xbf16>
    %104 = vector.shape_cast %103 : vector<1x16x16x128xbf16> to vector<256x128xbf16>
    %c2_113 = arith.constant 2 : index
    %c0_114 = arith.constant 0 : index
    %c0_115 = arith.constant 0 : index
    %105 = vector.load %arg3[%c2_113, %c0_114, %c0_115] : memref<9x128x128xbf16, #tpu.memory_space<vmem>>, vector<1x128x128xbf16>
    %106 = vector.shape_cast %105 : vector<1x128x128xbf16> to vector<128x128xbf16>
    %cst_116 = arith.constant dense<0.000000e+00> : vector<256x128xf32>
    %107 = tpu.matmul %104, %106, %cst_116 {dimension_numbers = #tpu.dot_dimension_numbers<[1], [0], [0], [1], [0, 0, 1, 1], [], []>} : vector<256x128xbf16>, vector<128x128xbf16>, vector<256x128xf32> -> vector<256x128xf32>
    %108 = arith.addf %102, %107 : vector<256x128xf32>
    %c0_117 = arith.constant 0 : index
    %c1_118 = arith.constant 1 : index
    %c0_119 = arith.constant 0 : index
    %c0_120 = arith.constant 0 : index
    %109 = vector.load %arg7[%c0_117, %c1_118, %c0_119, %c0_120] : memref<1x18x18x128xbf16, #tpu.memory_space<vmem>>, vector<1x16x16x128xbf16>
    %110 = vector.shape_cast %109 : vector<1x16x16x128xbf16> to vector<256x128xbf16>
    %c3_121 = arith.constant 3 : index
    %c0_122 = arith.constant 0 : index
    %c0_123 = arith.constant 0 : index
    %111 = vector.load %arg3[%c3_121, %c0_122, %c0_123] : memref<9x128x128xbf16, #tpu.memory_space<vmem>>, vector<1x128x128xbf16>
    %112 = vector.shape_cast %111 : vector<1x128x128xbf16> to vector<128x128xbf16>
    %cst_124 = arith.constant dense<0.000000e+00> : vector<256x128xf32>
    %113 = tpu.matmul %110, %112, %cst_124 {dimension_numbers = #tpu.dot_dimension_numbers<[1], [0], [0], [1], [0, 0, 1, 1], [], []>} : vector<256x128xbf16>, vector<128x128xbf16>, vector<256x128xf32> -> vector<256x128xf32>
    %114 = arith.addf %108, %113 : vector<256x128xf32>
    %c0_125 = arith.constant 0 : index
    %c1_126 = arith.constant 1 : index
    %c1_127 = arith.constant 1 : index
    %c0_128 = arith.constant 0 : index
    %115 = vector.load %arg7[%c0_125, %c1_126, %c1_127, %c0_128] : memref<1x18x18x128xbf16, #tpu.memory_space<vmem>>, vector<1x16x16x128xbf16>
    %116 = vector.shape_cast %115 : vector<1x16x16x128xbf16> to vector<256x128xbf16>
    %c4_129 = arith.constant 4 : index
    %c0_130 = arith.constant 0 : index
    %c0_131 = arith.constant 0 : index
    %117 = vector.load %arg3[%c4_129, %c0_130, %c0_131] : memref<9x128x128xbf16, #tpu.memory_space<vmem>>, vector<1x128x128xbf16>
    %118 = vector.shape_cast %117 : vector<1x128x128xbf16> to vector<128x128xbf16>
    %cst_132 = arith.constant dense<0.000000e+00> : vector<256x128xf32>
    %119 = tpu.matmul %116, %118, %cst_132 {dimension_numbers = #tpu.dot_dimension_numbers<[1], [0], [0], [1], [0, 0, 1, 1], [], []>} : vector<256x128xbf16>, vector<128x128xbf16>, vector<256x128xf32> -> vector<256x128xf32>
    %120 = arith.addf %114, %119 : vector<256x128xf32>
    %c0_133 = arith.constant 0 : index
    %c1_134 = arith.constant 1 : index
    %c2_135 = arith.constant 2 : index
    %c0_136 = arith.constant 0 : index
    %121 = vector.load %arg7[%c0_133, %c1_134, %c2_135, %c0_136] : memref<1x18x18x128xbf16, #tpu.memory_space<vmem>>, vector<1x16x16x128xbf16>
    %122 = vector.shape_cast %121 : vector<1x16x16x128xbf16> to vector<256x128xbf16>
    %c5_137 = arith.constant 5 : index
    %c0_138 = arith.constant 0 : index
    %c0_139 = arith.constant 0 : index
    %123 = vector.load %arg3[%c5_137, %c0_138, %c0_139] : memref<9x128x128xbf16, #tpu.memory_space<vmem>>, vector<1x128x128xbf16>
    %124 = vector.shape_cast %123 : vector<1x128x128xbf16> to vector<128x128xbf16>
    %cst_140 = arith.constant dense<0.000000e+00> : vector<256x128xf32>
    %125 = tpu.matmul %122, %124, %cst_140 {dimension_numbers = #tpu.dot_dimension_numbers<[1], [0], [0], [1], [0, 0, 1, 1], [], []>} : vector<256x128xbf16>, vector<128x128xbf16>, vector<256x128xf32> -> vector<256x128xf32>
    %126 = arith.addf %120, %125 : vector<256x128xf32>
    %c0_141 = arith.constant 0 : index
    %c2_142 = arith.constant 2 : index
    %c0_143 = arith.constant 0 : index
    %c0_144 = arith.constant 0 : index
    %127 = vector.load %arg7[%c0_141, %c2_142, %c0_143, %c0_144] : memref<1x18x18x128xbf16, #tpu.memory_space<vmem>>, vector<1x16x16x128xbf16>
    %128 = vector.shape_cast %127 : vector<1x16x16x128xbf16> to vector<256x128xbf16>
    %c6_145 = arith.constant 6 : index
    %c0_146 = arith.constant 0 : index
    %c0_147 = arith.constant 0 : index
    %129 = vector.load %arg3[%c6_145, %c0_146, %c0_147] : memref<9x128x128xbf16, #tpu.memory_space<vmem>>, vector<1x128x128xbf16>
    %130 = vector.shape_cast %129 : vector<1x128x128xbf16> to vector<128x128xbf16>
    %cst_148 = arith.constant dense<0.000000e+00> : vector<256x128xf32>
    %131 = tpu.matmul %128, %130, %cst_148 {dimension_numbers = #tpu.dot_dimension_numbers<[1], [0], [0], [1], [0, 0, 1, 1], [], []>} : vector<256x128xbf16>, vector<128x128xbf16>, vector<256x128xf32> -> vector<256x128xf32>
    %132 = arith.addf %126, %131 : vector<256x128xf32>
    %c0_149 = arith.constant 0 : index
    %c2_150 = arith.constant 2 : index
    %c1_151 = arith.constant 1 : index
    %c0_152 = arith.constant 0 : index
    %133 = vector.load %arg7[%c0_149, %c2_150, %c1_151, %c0_152] : memref<1x18x18x128xbf16, #tpu.memory_space<vmem>>, vector<1x16x16x128xbf16>
    %134 = vector.shape_cast %133 : vector<1x16x16x128xbf16> to vector<256x128xbf16>
    %c7_153 = arith.constant 7 : index
    %c0_154 = arith.constant 0 : index
    %c0_155 = arith.constant 0 : index
    %135 = vector.load %arg3[%c7_153, %c0_154, %c0_155] : memref<9x128x128xbf16, #tpu.memory_space<vmem>>, vector<1x128x128xbf16>
    %136 = vector.shape_cast %135 : vector<1x128x128xbf16> to vector<128x128xbf16>
    %cst_156 = arith.constant dense<0.000000e+00> : vector<256x128xf32>
    %137 = tpu.matmul %134, %136, %cst_156 {dimension_numbers = #tpu.dot_dimension_numbers<[1], [0], [0], [1], [0, 0, 1, 1], [], []>} : vector<256x128xbf16>, vector<128x128xbf16>, vector<256x128xf32> -> vector<256x128xf32>
    %138 = arith.addf %132, %137 : vector<256x128xf32>
    %c0_157 = arith.constant 0 : index
    %c2_158 = arith.constant 2 : index
    %c2_159 = arith.constant 2 : index
    %c0_160 = arith.constant 0 : index
    %139 = vector.load %arg7[%c0_157, %c2_158, %c2_159, %c0_160] : memref<1x18x18x128xbf16, #tpu.memory_space<vmem>>, vector<1x16x16x128xbf16>
    %140 = vector.shape_cast %139 : vector<1x16x16x128xbf16> to vector<256x128xbf16>
    %c8_161 = arith.constant 8 : index
    %c0_162 = arith.constant 0 : index
    %c0_163 = arith.constant 0 : index
    %141 = vector.load %arg3[%c8_161, %c0_162, %c0_163] : memref<9x128x128xbf16, #tpu.memory_space<vmem>>, vector<1x128x128xbf16>
    %142 = vector.shape_cast %141 : vector<1x128x128xbf16> to vector<128x128xbf16>
    %cst_164 = arith.constant dense<0.000000e+00> : vector<256x128xf32>
    %143 = tpu.matmul %140, %142, %cst_164 {dimension_numbers = #tpu.dot_dimension_numbers<[1], [0], [0], [1], [0, 0, 1, 1], [], []>} : vector<256x128xbf16>, vector<128x128xbf16>, vector<256x128xf32> -> vector<256x128xf32>
    %144 = arith.addf %138, %143 : vector<256x128xf32>
    %145 = vector.shape_cast %144 : vector<256x128xf32> to vector<1x256x128xf32>
    %cst_165 = arith.constant dense<0.000000e+00> : vector<1x128xf32>
    %146 = vector.multi_reduction <add>, %145, %cst_165 [1] : vector<1x256x128xf32> to vector<1x128xf32>
    %147 = vector.shape_cast %146 : vector<1x128xf32> to vector<1x1x128xf32>
    %cst_166 = arith.constant 2.560000e+02 : f32
    %148 = vector.broadcast %cst_166 : f32 to vector<1x1x128xf32>
    %149 = arith.divf %147, %148 : vector<1x1x128xf32>
    %150 = vector.broadcast %149 : vector<1x1x128xf32> to vector<1x256x128xf32>
    %151 = arith.subf %145, %150 : vector<1x256x128xf32>
    %152 = vector.broadcast %149 : vector<1x1x128xf32> to vector<1x256x128xf32>
    %153 = arith.subf %145, %152 : vector<1x256x128xf32>
    %154 = arith.mulf %151, %153 : vector<1x256x128xf32>
    %cst_167 = arith.constant dense<0.000000e+00> : vector<1x128xf32>
    %155 = vector.multi_reduction <add>, %154, %cst_167 [1] : vector<1x256x128xf32> to vector<1x128xf32>
    %156 = vector.shape_cast %155 : vector<1x128xf32> to vector<1x1x128xf32>
    %cst_168 = arith.constant 2.560000e+02 : f32
    %157 = vector.broadcast %cst_168 : f32 to vector<1x1x128xf32>
    %158 = arith.divf %156, %157 : vector<1x1x128xf32>
    %cst_169 = arith.constant 9.99999974E-6 : f32
    %159 = vector.broadcast %cst_169 : f32 to vector<1x1x128xf32>
    %160 = arith.addf %158, %159 : vector<1x1x128xf32>
    %161 = math.rsqrt %160 : vector<1x1x128xf32>
    %162 = arith.mulf %1, %161 : vector<1x1x128xf32>
    %163 = arith.mulf %149, %162 : vector<1x1x128xf32>
    %164 = arith.subf %3, %163 : vector<1x1x128xf32>
    %165 = vector.broadcast %162 : vector<1x1x128xf32> to vector<1x256x128xf32>
    %166 = arith.mulf %145, %165 : vector<1x256x128xf32>
    %167 = vector.broadcast %164 : vector<1x1x128xf32> to vector<1x256x128xf32>
    %168 = arith.addf %166, %167 : vector<1x256x128xf32>
    %cst_170 = arith.constant 0.000000e+00 : f32
    %169 = vector.broadcast %cst_170 : f32 to vector<1x256x128xf32>
    %170 = arith.maximumf %168, %169 : vector<1x256x128xf32>
    %171 = vector.shape_cast %170 : vector<1x256x128xf32> to vector<8x32x128xf32>
    %172 = vector.extract_strided_slice %171 {offsets = [0, 0, 0], sizes = [8, 16, 128], strides = [1, 1, 1]} : vector<8x32x128xf32> to vector<8x16x128xf32>
    %173 = vector.extract_strided_slice %171 {offsets = [0, 16, 0], sizes = [8, 16, 128], strides = [1, 1, 1]} : vector<8x32x128xf32> to vector<8x16x128xf32>
    %174 = arith.maximumf %172, %173 : vector<8x16x128xf32>
    %175 = vector.shape_cast %174 : vector<8x16x128xf32> to vector<128x128xf32>
    %c0_171 = arith.constant 0 : index
    %c0_172 = arith.constant 0 : index
    %176 = vector.load %arg8[%c0_171, %c0_172] : memref<128x128xf32, #tpu.memory_space<vmem>>, vector<128x128xf32>
    tpu.vector_store %arg8[%c0_171, %c0_172], %175 {strides = array<i32>} : memref<128x128xf32, #tpu.memory_space<vmem>>, vector<128x128xf32>,
    %c0_173 = arith.constant 0 : index
    %c0_174 = arith.constant 0 : index
    %177 = tpu.strided_load %arg8[%c0_173, %c0_174] {strides = array<i32: 2, 1>} : memref<128x128xf32, #tpu.memory_space<vmem>>, vector<64x128xf32>
    %c1_175 = arith.constant 1 : index
    %c0_176 = arith.constant 0 : index
    %178 = tpu.strided_load %arg8[%c1_175, %c0_176] {strides = array<i32: 2, 1>} : memref<128x128xf32, #tpu.memory_space<vmem>>, vector<64x128xf32>
    %179 = arith.maximumf %177, %178 : vector<64x128xf32>
    %180 = vector.shape_cast %179 : vector<64x128xf32> to vector<1x64x128xf32>
    %c0_177 = arith.constant 0 : index
    %c0_178 = arith.constant 0 : index
    %c0_179 = arith.constant 0 : index
    %181 = vector.load %arg6[%c0_177, %c0_178, %c0_179] : memref<1x64x128xf32, #tpu.memory_space<vmem>>, vector<1x64x128xf32>
    tpu.vector_store %arg6[%c0_177, %c0_178, %c0_179], %180 {strides = array<i32>} : memref<1x64x128xf32, #tpu.memory_space<vmem>>, vector<1x64x128xf32>,
    return
  }
  func.func @transform_0(%arg0: i32) -> (i32, i32, i32, i32) {
    %c0_i32 = arith.constant 0 : i32
    %c0_i32_0 = arith.constant 0 : i32
    %c0_i32_1 = arith.constant 0 : i32
    %c0_i32_2 = arith.constant 0 : i32
    return %arg0, %c0_i32, %c0_i32_0, %c0_i32_1 : i32, i32, i32, i32
  }
  func.func @transform_1(%arg0: i32) -> (i32, i32, i32) {
    %c0_i32 = arith.constant 0 : i32
    %c0_i32_0 = arith.constant 0 : i32
    %c0_i32_1 = arith.constant 0 : i32
    %c0_i32_2 = arith.constant 0 : i32
    return %c0_i32, %c0_i32_0, %c0_i32_1 : i32, i32, i32
  }
  func.func @transform_2(%arg0: i32) -> (i32, i32, i32) {
    %c0_i32 = arith.constant 0 : i32
    %c0_i32_0 = arith.constant 0 : i32
    %c0_i32_1 = arith.constant 0 : i32
    %c0_i32_2 = arith.constant 0 : i32
    return %c0_i32, %c0_i32_0, %c0_i32_1 : i32, i32, i32
  }
  func.func @transform_3(%arg0: i32) -> (i32, i32) {
    %c0_i32 = arith.constant 0 : i32
    %c0_i32_0 = arith.constant 0 : i32
    %c0_i32_1 = arith.constant 0 : i32
    return %c0_i32, %c0_i32_0 : i32, i32
  }
  func.func @transform_4(%arg0: i32) -> (i32, i32) {
    %c0_i32 = arith.constant 0 : i32
    %c0_i32_0 = arith.constant 0 : i32
    %c0_i32_1 = arith.constant 0 : i32
    return %c0_i32, %c0_i32_0 : i32, i32
  }
  func.func @transform_5(%arg0: i32) -> (i32, i32, i32) {
    %c0_i32 = arith.constant 0 : i32
    %c0_i32_0 = arith.constant 0 : i32
    %c0_i32_1 = arith.constant 0 : i32
    return %arg0, %c0_i32, %c0_i32_0 : i32, i32, i32
  }
}

</mosaic_0001>

<llo_original>
// kernel: tpu_custom_call.1
$region0: #{tpu_custom_call.1}
  #allocation0 [shape = 'u32[]', space=smem, size = 0x4, offset = 0x4, fixed_abs, tag = 'smem constant byte address 0x4 - core index']
  #allocation1 [shape = 'u32[144,128]{1,0:T(1,128)}', space=vmem, size = 0x12000, scoped, tag = 'internal scratch']
  #allocation2 [shape = 'bf16[1,18,18,128]{3,2,1,0:T(8,128)(2,1)}', space=vmem, size = 0x1b000, scoped, tag = 'scratch operand']
  #allocation3 [shape = 'f32[128,128]{1,0:T(8,128)}', space=vmem, size = 0x10000, scoped, tag = 'scratch operand']
  %s0 = inlined_call_operand.vmem [shape: bf16[2,18,18,4], index: 0, kind: input, shape index: {}]
  %s1 = inlined_call_operand.vmem [shape: bf16[9,4,128], index: 1, kind: input, shape index: {}]
  %s2 = inlined_call_operand.hbm [shape: bf16[9,128,128], index: 2, kind: input, shape index: {}]
  %s3 = inlined_call_operand.vmem [shape: f32[1,128], index: 3, kind: input, shape index: {}]
  %s4 = inlined_call_operand.vmem [shape: f32[1,128], index: 4, kind: input, shape index: {}]
  %s5 = inlined_call_operand.hbm [shape: f32[2,64,128], index: 5, kind: output, shape index: {}]
  %s6 = sld [smem:[#allocation0]]
  $region57: #{tpu_custom_call.1} parent=0
    _
  %s8 = ssub.s32 1, %s6
  %s9 = scalar_select 0, %s8, %s6
  $region1: #{tpu_custom_call.1} parent=0
    #allocation4 [shape = 'u8[294912]{0}', space=vmem, size = 0x48000, scoped, tag = 'input window, operand 2, single buffered']
    #allocation5 [shape = 's32[2]{0}', space=sflag, size = 0x8, scoped, tag = 'scoped memory for tpu_custom_call.1']
    #allocation6 [shape = 's32[2]{0}', space=sflag, size = 0x8, scoped, tag = 'scoped memory for tpu_custom_call.1']
    #allocation7 [shape = 'u8[65536]{0}', space=vmem, size = 0x10000, scoped, tag = 'output window, operand 0']
    %10 = vsyncpa [#allocation5], 0
    %11 = vsyncpa [#allocation6], 0
    %s12 = scalar_lea.sflag [#allocation6], 1
    %13 = vsyncpa %s12, 0
    loop: start=0, step=1, limit=4
    $region2: #{tpu_custom_call.1} parent=1 // loop_pre_header
      _
    $region3: #{tpu_custom_call.1} parent=1 // loop_header
      %s15 = sphi 0, %s19
      %p16 = scmp.ge.s32.totalorder %s15, 4
      %s25 = sphi 0, %s27
      %s28 = sphi 0, %s25
      %s29 = sphi 0, %s28
      %s45 = sphi 0, %s29
      %s49 = sphi 0, %s49
      %s51 = sphi 0, %s49
      %s52 = sphi 0, %s51
      %s66 = sphi 0, %s52
      %s70 = sphi 0, %s70
      %s72 = sphi 0, %s70
      %s73 = sphi 0, %s72
      %s87 = sphi 0, %s73
      %s91 = sphi 0, %s91
      %s93 = sphi 0, %s91
      %s94 = sphi 0, %s93
      %s108 = sphi 0, %s94
      %s112 = sphi 0, %s112
      %s114 = sphi 0, %s112
      %s115 = sphi 0, %s114
      %s129 = sphi 0, %s115
      %s135 = sphi 0, %s137
      %s138 = sphi 0, %s135
      %s139 = sphi 0, %s138
      %s155 = sphi 0, %s139
    $region4: #{tpu_custom_call.1} parent=1 // loop_header_branch
      %18 = sbr.rel (%p16) target = $region8
    $region5: #{tpu_custom_call.1} parent=1 // loop_body
      %s20 = ssub.s32 %s15, 1
      %s21 = ssub.s32 %s15, 2
      %s22 = sadd.s32 %s15, 1
      %s23 = ssub.s32 %s15, %s22
      %p24 = scmp.eq.s32.totalorder %s23, 0
      %s26 = sadd.s32 %s25, 1
      %s27 = scalar_select %p24, %s25, %s26
      %p30 = pneg %p24
      %p31 = scmp.eq.s32.totalorder %s15, 1
      %p32 = por %p30, %p31
      %p33 = scmp.ne.s32.totalorder %s25, %s28
      %p34 = scmp.eq.s32.totalorder %s15, 0
      %p35 = por %p33, %p34
      %p36 = scmp.ne.s32.totalorder %s25, %s28
      %p37 = scmp.eq.s32.totalorder %s20, 1
      %p38 = por %p36, %p37
      %p39 = scmp.ne.s32.totalorder %s28, %s29
      %p40 = scmp.eq.s32.totalorder %s20, 0
      %p41 = por %p39, %p40
      %p42 = scmp.ne.s32.totalorder %s28, %s29
      %p43 = scmp.eq.s32.totalorder %s21, 1
      %p44 = por %p42, %p43
      %p46 = scmp.ne.s32.totalorder %s29, %s45
      %p47 = scmp.eq.s32.totalorder %s21, 0
      %p48 = por %p46, %p47
      %s50 = sadd.s32 %s49, 1
      %p53 = scmp.eq.s32.totalorder %s15, 1
      %p54 = scmp.ne.s32.totalorder %s49, %s51
      %p55 = scmp.eq.s32.totalorder %s15, 0
      %p56 = por %p54, %p55
      %p57 = scmp.ne.s32.totalorder %s49, %s51
      %p58 = scmp.eq.s32.totalorder %s20, 1
      %p59 = por %p57, %p58
      %p60 = scmp.ne.s32.totalorder %s51, %s52
      %p61 = scmp.eq.s32.totalorder %s20, 0
      %p62 = por %p60, %p61
      %p63 = scmp.ne.s32.totalorder %s51, %s52
      %p64 = scmp.eq.s32.totalorder %s21, 1
      %p65 = por %p63, %p64
      %p67 = scmp.ne.s32.totalorder %s52, %s66
      %p68 = scmp.eq.s32.totalorder %s21, 0
      %p69 = por %p67, %p68
      %s71 = sadd.s32 %s70, 1
      %p74 = scmp.eq.s32.totalorder %s15, 1
      %p75 = scmp.ne.s32.totalorder %s70, %s72
      %p76 = scmp.eq.s32.totalorder %s15, 0
      %p77 = por %p75, %p76
      %p78 = scmp.ne.s32.totalorder %s70, %s72
      %p79 = scmp.eq.s32.totalorder %s20, 1
      %p80 = por %p78, %p79
      %p81 = scmp.ne.s32.totalorder %s72, %s73
      %p82 = scmp.eq.s32.totalorder %s20, 0
      %p83 = por %p81, %p82
      %p84 = scmp.ne.s32.totalorder %s72, %s73
      %p85 = scmp.eq.s32.totalorder %s21, 1
      %p86 = por %p84, %p85
      %p88 = scmp.ne.s32.totalorder %s73, %s87
      %p89 = scmp.eq.s32.totalorder %s21, 0
      %p90 = por %p88, %p89
      %s92 = sadd.s32 %s91, 1
      %p95 = scmp.eq.s32.totalorder %s15, 1
      %p96 = scmp.ne.s32.totalorder %s91, %s93
      %p97 = scmp.eq.s32.totalorder %s15, 0
      %p98 = por %p96, %p97
      %p99 = scmp.ne.s32.totalorder %s91, %s93
      %p100 = scmp.eq.s32.totalorder %s20, 1
      %p101 = por %p99, %p100
      %p102 = scmp.ne.s32.totalorder %s93, %s94
      %p103 = scmp.eq.s32.totalorder %s20, 0
      %p104 = por %p102, %p103
      %p105 = scmp.ne.s32.totalorder %s93, %s94
      %p106 = scmp.eq.s32.totalorder %s21, 1
      %p107 = por %p105, %p106
      %p109 = scmp.ne.s32.totalorder %s94, %s108
      %p110 = scmp.eq.s32.totalorder %s21, 0
      %p111 = por %p109, %p110
      %s113 = sadd.s32 %s112, 1
      %p116 = scmp.eq.s32.totalorder %s15, 1
      %p117 = scmp.ne.s32.totalorder %s112, %s114
      %p118 = scmp.eq.s32.totalorder %s15, 0
      %p119 = por %p117, %p118
      %p120 = scmp.ne.s32.totalorder %s112, %s114
      %p121 = scmp.eq.s32.totalorder %s20, 1
      %p122 = por %p120, %p121
      %p123 = scmp.ne.s32.totalorder %s114, %s115
      %p124 = scmp.eq.s32.totalorder %s20, 0
      %p125 = por %p123, %p124
      %p126 = scmp.ne.s32.totalorder %s114, %s115
      %p127 = scmp.eq.s32.totalorder %s21, 1
      %p128 = por %p126, %p127
      %p130 = scmp.ne.s32.totalorder %s115, %s129
      %p131 = scmp.eq.s32.totalorder %s21, 0
      %p132 = por %p130, %p131
      %s133 = ssub.s32 %s15, %s22
      %p134 = scmp.eq.s32.totalorder %s133, 0
      %s136 = sadd.s32 %s135, 1
      %s137 = scalar_select %p134, %s135, %s136
      %p140 = pneg %p134
      %p141 = scmp.eq.s32.totalorder %s15, 1
      %p142 = por %p140, %p141
      %p143 = scmp.ne.s32.totalorder %s135, %s138
      %p144 = scmp.eq.s32.totalorder %s15, 0
      %p145 = por %p143, %p144
      %p146 = scmp.ne.s32.totalorder %s135, %s138
      %p147 = scmp.eq.s32.totalorder %s20, 1
      %p148 = por %p146, %p147
      %p149 = scmp.ne.s32.totalorder %s138, %s139
      %p150 = scmp.eq.s32.totalorder %s20, 0
      %p151 = por %p149, %p150
      %p152 = scmp.ne.s32.totalorder %s138, %s139
      %p153 = scmp.eq.s32.totalorder %s21, 1
      %p154 = por %p152, %p153
      %p156 = scmp.ne.s32.totalorder %s139, %s155
      %p157 = scmp.eq.s32.totalorder %s21, 0
      %p158 = por %p156, %p157
      %p159 = scmp.le.s32.totalorder 1, %s15
      %p160 = scmp.lt.s32.totalorder %s15, 3
      %p161 = pnand %p159, %p160
      %p162 = pneg %p161
      // Predicated region
      $region9: #{tpu_custom_call.1} parent=5 // pred_check
        _
      $region10: #{tpu_custom_call.1} parent=5 // pred_check_branch
        %164 = sbr.rel (%p161) target = $region12
      $region11: #{tpu_custom_call.1} parent=5 // pred_region
        %s165 = ssub.s32 %s15, 1
        // Predicated region
        $region13: #{tpu_custom_call.1} parent=11 // pred_check
          %p166 = pneg %p62
        $region14: #{tpu_custom_call.1} parent=11 // pred_check_branch
          %168 = sbr.rel (%p166) target = $region16
        $region15: #{tpu_custom_call.1} parent=11 // pred_region
          _
        $region16: #{tpu_custom_call.1} parent=11 // pred_fallthru
          _
        // Predicated region
        $region17: #{tpu_custom_call.1} parent=11 // pred_check
          %p169 = pneg %p83
        $region18: #{tpu_custom_call.1} parent=11 // pred_check_branch
          %171 = sbr.rel (%p169) target = $region20
        $region19: #{tpu_custom_call.1} parent=11 // pred_region
          %s173 = ssub.s32 9216, 9216
          %174 = vsyncadd [#allocation5], %s173
          %s175 = sshll.u32 [#allocation4], 4
          %s176 = int_to_ptr.vmem [resolvable:$true] %s175
          %181 = dma.hbm_to_vmem [thread:$0]  %s2, 9216, %s176, [#allocation5], 64, 64, 4
        $region20: #{tpu_custom_call.1} parent=11 // pred_fallthru
          _
        // Predicated region
        $region21: #{tpu_custom_call.1} parent=11 // pred_check
          %p182 = pneg %p104
        $region22: #{tpu_custom_call.1} parent=11 // pred_check_branch
          %184 = sbr.rel (%p182) target = $region24
        $region23: #{tpu_custom_call.1} parent=11 // pred_region
          _
        $region24: #{tpu_custom_call.1} parent=11 // pred_fallthru
          _
        // Predicated region
        $region25: #{tpu_custom_call.1} parent=11 // pred_check
          %p185 = pneg %p125
        $region26: #{tpu_custom_call.1} parent=11 // pred_check_branch
          %187 = sbr.rel (%p185) target = $region28
        $region27: #{tpu_custom_call.1} parent=11 // pred_region
          _
        $region28: #{tpu_custom_call.1} parent=11 // pred_fallthru
          _
      $region12: #{tpu_custom_call.1} parent=5 // pred_fallthru
        _
      %p188 = scmp.lt.s32.totalorder %s15, 2
      // Predicated region
      $region29: #{tpu_custom_call.1} parent=5 // pred_check
        %p189 = pneg %p188
      $region30: #{tpu_custom_call.1} parent=5 // pred_check_branch
        %191 = sbr.rel (%p189) target = $region32
      $region31: #{tpu_custom_call.1} parent=5 // pred_region
        // Predicated region
        $region33: #{tpu_custom_call.1} parent=31 // pred_check
          %p192 = pneg %p35
        $region34: #{tpu_custom_call.1} parent=31 // pred_check_branch
          %194 = sbr.rel (%p192) target = $region36
        $region35: #{tpu_custom_call.1} parent=31 // pred_region
          %p195 = scmp.lt.s32.totalorder %s15, 1
          %s196 = scalar_select %p195, %s15, 1
          %s197 = smul.addr %s196, 54
          %s198 = smul.addr %s197, 4
          %s199 = scalar_lea.vmem %s0, %s198
        $region36: #{tpu_custom_call.1} parent=31 // pred_fallthru
          _
      $region32: #{tpu_custom_call.1} parent=5 // pred_fallthru
        _
      %p200 = scmp.le.s32.totalorder 1, %s15
      %p201 = scmp.lt.s32.totalorder %s15, 3
      %p202 = pnand %p200, %p201
      %p203 = pneg %p202
      // Predicated region
      $region37: #{tpu_custom_call.1} parent=5 // pred_check
        _
      $region38: #{tpu_custom_call.1} parent=5 // pred_check_branch
        %205 = sbr.rel (%p202) target = $region40
      $region39: #{tpu_custom_call.1} parent=5 // pred_region
        %s206 = ssub.s32 %s15, 1
        // Predicated region
        $region41: #{tpu_custom_call.1} parent=39 // pred_check
          %p207 = pneg %p83
        $region42: #{tpu_custom_call.1} parent=39 // pred_check_branch
          %209 = sbr.rel (%p207) target = $region44
        $region43: #{tpu_custom_call.1} parent=39 // pred_region
          %210 = dma.done [#allocation5], 9216
        $region44: #{tpu_custom_call.1} parent=39 // pred_fallthru
          _
        %p211 = scmp.lt.s32.totalorder %s20, 1
        %s212 = scalar_select %p211, %s20, 1
        %s213 = smul.addr %s212, 54
        %s214 = smul.addr %s213, 4
        %s215 = scalar_lea.vmem %s0, %s214
        %p216 = pneg %p41
        %p217 = pneg %p38
        %p218 = pneg %p62
        %p219 = pneg %p59
        %p220 = pneg %p83
        %p221 = pneg %p80
        %p222 = pneg %p104
        %p223 = pneg %p101
        %p224 = pneg %p125
        %p225 = pneg %p122
        %p226 = pneg %p151
        %p227 = pneg %p148
        %s228 = sand.u32 %s138, 1
        %s229 = scalar_lea.sflag [#allocation6], %s228
        %s230 = sand.u32 %s138, 1
        %s231 = smul.addr %s230, 64
        %s232 = scalar_lea.vmem [#allocation7], %s231
        %p233 = scmp.lt.s32.totalorder %s20, 1
        %s234 = scalar_select %p233, %s20, 1
        %s235 = smul.addr %s234, 54
        %s236 = smul.addr %s235, 4
        %s237 = scalar_lea.vmem %s0, %s236
        %v239 = vld [vmem:[%s3] sm:$0x1]
        %v240 = vld [vmem:[%s4] sm:$0x1]
        %v241 = vld [vmem:[%s237] sm:$0xf]
        %v242 = vld [vmem:[%s237 + $0x4] sm:$0xf]
        %v243 = vld [vmem:[%s237 + $0xc] sm:$0xf]
        %v244 = vld [vmem:[%s237 + $0x10] sm:$0xf]
        %v245 = vld [vmem:[%s237 + $0x18] sm:$0xf]
        %v246 = vld [vmem:[%s237 + $0x1c] sm:$0xf]
        %v247 = vld [vmem:[%s237 + $0x24] sm:$0xf]
        %v248 = vld [vmem:[%s237 + $0x28] sm:$0xf]
        %v249 = vld [vmem:[%s237 + $0x30] sm:$0xf]
        %v250 = vld [vmem:[%s237 + $0x34] sm:$0xf]
        %v251 = vld [vmem:[%s237 + $0x3c] sm:$0xf]
        %v252 = vld [vmem:[%s237 + $0x40] sm:$0xf]
        %v253 = vld [vmem:[%s237 + $0x48] sm:$0xf]
        %v254 = vld [vmem:[%s237 + $0x4c] sm:$0xf]
        %v255 = vld [vmem:[%s237 + $0x54] sm:$0xf]
        %v256 = vld [vmem:[%s237 + $0x58] sm:$0xf]
        %v257 = vld [vmem:[%s237 + $0x60] sm:$0xf]
        %v258 = vld [vmem:[%s237 + $0x64] sm:$0xf]
        %v259 = vld [vmem:[%s237 + $0x6c] sm:$0xf]
        %v260 = vld [vmem:[%s237 + $0x70] sm:$0xf]
        %v261 = vld [vmem:[%s237 + $0x78] sm:$0xf]
        %v262 = vld [vmem:[%s237 + $0x7c] sm:$0xf]
        %v263 = vld [vmem:[%s237 + $0x84] sm:$0xf]
        %v264 = vld [vmem:[%s237 + $0x88] sm:$0xf]
        %v265 = vld [vmem:[%s237 + $0x90] sm:$0xf]
        %v266 = vld [vmem:[%s237 + $0x94] sm:$0xf]
        %v267 = vld [vmem:[%s237 + $0x9c] sm:$0xf]
        %v268 = vld [vmem:[%s237 + $0xa0] sm:$0xf]
        %v269 = vld [vmem:[%s237 + $0xa8] sm:$0xf]
        %v270 = vld [vmem:[%s237 + $0xac] sm:$0xf]
        %v271 = vld [vmem:[%s237 + $0xb4] sm:$0xf]
        %v272 = vld [vmem:[%s237 + $0xb8] sm:$0xf]
        %v273 = vld [vmem:[%s1] sm:$0x3]
        %v274 = vld [vmem:[%s237 + $0x8] sm:$0x1]
        %v275 = vld [vmem:[%s237 + $0x14] sm:$0x1]
        %v276 = vld [vmem:[%s237 + $0x20] sm:$0x1]
        %v277 = vld [vmem:[%s237 + $0x2c] sm:$0x1]
        %v278 = vld [vmem:[%s237 + $0x38] sm:$0x1]
        %v279 = vld [vmem:[%s237 + $0x44] sm:$0x1]
        %v280 = vld [vmem:[%s237 + $0x50] sm:$0x1]
        %v281 = vld [vmem:[%s237 + $0x5c] sm:$0x1]
        %v282 = vld [vmem:[%s237 + $0x68] sm:$0x1]
        %v283 = vld [vmem:[%s237 + $0x74] sm:$0x1]
        %v284 = vld [vmem:[%s237 + $0x80] sm:$0x1]
        %v285 = vld [vmem:[%s237 + $0x8c] sm:$0x1]
        %v286 = vld [vmem:[%s237 + $0x98] sm:$0x1]
        %v287 = vld [vmem:[%s237 + $0xa4] sm:$0x1]
        %v288 = vld [vmem:[%s237 + $0xb0] sm:$0x1]
        %v289 = vld [vmem:[%s237 + $0xbc] sm:$0x1]
        %vm290 = vsmask.f32 3328
        %vm291 = vsmask.f32 7440
        %vm292 = vmor %vm290, %vm291
        %v294 = vshrl.u32 %v241, 16
        %v296 = vrot.slane %v294, 4
        %v297 = vshll.u32 %v241, 16
        %v299 = vrot.slane %v297, 5
        %v300 = vor.u32 %v296, %v299
        %v301 = vrot.slane %v300, 4
        %v303 = vshll.u32 %v242, 16
        %v305 = vrot.slane %v303, 5
        %v306 = vsel %vm292, %v301, %v305
        %v307 = vshrl.u32 %v242, 16
        %v309 = vrot.slane %v307, 4
        %v310 = vor.u32 %v309, %v305
        %v311 = vrot.slane %v310, 4
        %v313 = vshll.u32 %v274, 16
        %v315 = vrot.slane %v313, 5
        %v316 = vsel %vm292, %v311, %v315
        %v318 = vshrl.u32 %v243, 16
        %v320 = vrot.slane %v318, 4
        %v321 = vshll.u32 %v243, 16
        %v323 = vrot.slane %v321, 5
        %v324 = vor.u32 %v320, %v323
        %v325 = vrot.slane %v324, 4
        %v327 = vshll.u32 %v244, 16
        %v329 = vrot.slane %v327, 5
        %v330 = vsel %vm292, %v325, %v329
        %v331 = vshrl.u32 %v244, 16
        %v333 = vrot.slane %v331, 4
        %v334 = vor.u32 %v333, %v329
        %v335 = vrot.slane %v334, 4
        %v337 = vshll.u32 %v275, 16
        %v339 = vrot.slane %v337, 5
        %v340 = vsel %vm292, %v335, %v339
        %v342 = vshrl.u32 %v245, 16
        %v344 = vrot.slane %v342, 4
        %v345 = vshll.u32 %v245, 16
        %v347 = vrot.slane %v345, 5
        %v348 = vor.u32 %v344, %v347
        %v349 = vrot.slane %v348, 4
        %v351 = vshll.u32 %v246, 16
        %v353 = vrot.slane %v351, 5
        %v354 = vsel %vm292, %v349, %v353
        %v355 = vshrl.u32 %v246, 16
        %v357 = vrot.slane %v355, 4
        %v358 = vor.u32 %v357, %v353
        %v359 = vrot.slane %v358, 4
        %v361 = vshll.u32 %v276, 16
        %v363 = vrot.slane %v361, 5
        %v364 = vsel %vm292, %v359, %v363
        %v366 = vshrl.u32 %v247, 16
        %v368 = vrot.slane %v366, 4
        %v369 = vshll.u32 %v247, 16
        %v371 = vrot.slane %v369, 5
        %v372 = vor.u32 %v368, %v371
        %v373 = vrot.slane %v372, 4
        %v375 = vshll.u32 %v248, 16
        %v377 = vrot.slane %v375, 5
        %v378 = vsel %vm292, %v373, %v377
        %v379 = vshrl.u32 %v248, 16
        %v381 = vrot.slane %v379, 4
        %v382 = vor.u32 %v381, %v377
        %v383 = vrot.slane %v382, 4
        %v385 = vshll.u32 %v277, 16
        %v387 = vrot.slane %v385, 5
        %v388 = vsel %vm292, %v383, %v387
        %v390 = vshrl.u32 %v249, 16
        %v392 = vrot.slane %v390, 4
        %v393 = vshll.u32 %v249, 16
        %v395 = vrot.slane %v393, 5
        %v396 = vor.u32 %v392, %v395
        %v397 = vrot.slane %v396, 4
        %v399 = vshll.u32 %v250, 16
        %v401 = vrot.slane %v399, 5
        %v402 = vsel %vm292, %v397, %v401
        %v403 = vshrl.u32 %v250, 16
        %v405 = vrot.slane %v403, 4
        %v406 = vor.u32 %v405, %v401
        %v407 = vrot.slane %v406, 4
        %v409 = vshll.u32 %v278, 16
        %v411 = vrot.slane %v409, 5
        %v412 = vsel %vm292, %v407, %v411
        %v414 = vshrl.u32 %v251, 16
        %v416 = vrot.slane %v414, 4
        %v417 = vshll.u32 %v251, 16
        %v419 = vrot.slane %v417, 5
        %v420 = vor.u32 %v416, %v419
        %v421 = vrot.slane %v420, 4
        %v423 = vshll.u32 %v252, 16
        %v425 = vrot.slane %v423, 5
        %v426 = vsel %vm292, %v421, %v425
        %v427 = vshrl.u32 %v252, 16
        %v429 = vrot.slane %v427, 4
        %v430 = vor.u32 %v429, %v425
        %v431 = vrot.slane %v430, 4
        %v433 = vshll.u32 %v279, 16
        %v435 = vrot.slane %v433, 5
        %v436 = vsel %vm292, %v431, %v435
        %v438 = vshrl.u32 %v253, 16
        %v440 = vrot.slane %v438, 4
        %v441 = vshll.u32 %v253, 16
        %v443 = vrot.slane %v441, 5
        %v444 = vor.u32 %v440, %v443
        %v445 = vrot.slane %v444, 4
        %v447 = vshll.u32 %v254, 16
        %v449 = vrot.slane %v447, 5
        %v450 = vsel %vm292, %v445, %v449
        %v451 = vshrl.u32 %v254, 16
        %v453 = vrot.slane %v451, 4
        %v454 = vor.u32 %v453, %v449
        %v455 = vrot.slane %v454, 4
        %v457 = vshll.u32 %v280, 16
        %v459 = vrot.slane %v457, 5
        %v460 = vsel %vm292, %v455, %v459
        %v462 = vshrl.u32 %v255, 16
        %v464 = vrot.slane %v462, 4
        %v465 = vshll.u32 %v255, 16
        %v467 = vrot.slane %v465, 5
        %v468 = vor.u32 %v464, %v467
        %v469 = vrot.slane %v468, 4
        %v471 = vshll.u32 %v256, 16
        %v473 = vrot.slane %v471, 5
        %v474 = vsel %vm292, %v469, %v473
        %v475 = vshrl.u32 %v256, 16
        %v477 = vrot.slane %v475, 4
        %v478 = vor.u32 %v477, %v473
        %v479 = vrot.slane %v478, 4
        %v481 = vshll.u32 %v281, 16
        %v483 = vrot.slane %v481, 5
        %v484 = vsel %vm292, %v479, %v483
        %v486 = vshrl.u32 %v257, 16
        %v488 = vrot.slane %v486, 4
        %v489 = vshll.u32 %v257, 16
        %v491 = vrot.slane %v489, 5
        %v492 = vor.u32 %v488, %v491
        %v493 = vrot.slane %v492, 4
        %v495 = vshll.u32 %v258, 16
        %v497 = vrot.slane %v495, 5
        %v498 = vsel %vm292, %v493, %v497
        %v499 = vshrl.u32 %v258, 16
        %v501 = vrot.slane %v499, 4
        %v502 = vor.u32 %v501, %v497
        %v503 = vrot.slane %v502, 4
        %v505 = vshll.u32 %v282, 16
        %v507 = vrot.slane %v505, 5
        %v508 = vsel %vm292, %v503, %v507
        %v510 = vshrl.u32 %v259, 16
        %v512 = vrot.slane %v510, 4
        %v513 = vshll.u32 %v259, 16
        %v515 = vrot.slane %v513, 5
        %v516 = vor.u32 %v512, %v515
        %v517 = vrot.slane %v516, 4
        %v519 = vshll.u32 %v260, 16
        %v521 = vrot.slane %v519, 5
        %v522 = vsel %vm292, %v517, %v521
        %v523 = vshrl.u32 %v260, 16
        %v525 = vrot.slane %v523, 4
        %v526 = vor.u32 %v525, %v521
        %v527 = vrot.slane %v526, 4
        %v529 = vshll.u32 %v283, 16
        %v531 = vrot.slane %v529, 5
        %v532 = vsel %vm292, %v527, %v531
        %v534 = vshrl.u32 %v261, 16
        %v536 = vrot.slane %v534, 4
        %v537 = vshll.u32 %v261, 16
        %v539 = vrot.slane %v537, 5
        %v540 = vor.u32 %v536, %v539
        %v541 = vrot.slane %v540, 4
        %v543 = vshll.u32 %v262, 16
        %v545 = vrot.slane %v543, 5
        %v546 = vsel %vm292, %v541, %v545
        %v547 = vshrl.u32 %v262, 16
        %v549 = vrot.slane %v547, 4
        %v550 = vor.u32 %v549, %v545
        %v551 = vrot.slane %v550, 4
        %v553 = vshll.u32 %v284, 16
        %v555 = vrot.slane %v553, 5
        %v556 = vsel %vm292, %v551, %v555
        %v558 = vshrl.u32 %v263, 16
        %v560 = vrot.slane %v558, 4
        %v561 = vshll.u32 %v263, 16
        %v563 = vrot.slane %v561, 5
        %v564 = vor.u32 %v560, %v563
        %v565 = vrot.slane %v564, 4
        %v567 = vshll.u32 %v264, 16
        %v569 = vrot.slane %v567, 5
        %v570 = vsel %vm292, %v565, %v569
        %v571 = vshrl.u32 %v264, 16
        %v573 = vrot.slane %v571, 4
        %v574 = vor.u32 %v573, %v569
        %v575 = vrot.slane %v574, 4
        %v577 = vshll.u32 %v285, 16
        %v579 = vrot.slane %v577, 5
        %v580 = vsel %vm292, %v575, %v579
        %v582 = vshrl.u32 %v265, 16
        %v584 = vrot.slane %v582, 4
        %v585 = vshll.u32 %v265, 16
        %v587 = vrot.slane %v585, 5
        %v588 = vor.u32 %v584, %v587
        %v589 = vrot.slane %v588, 4
        %v591 = vshll.u32 %v266, 16
        %v593 = vrot.slane %v591, 5
        %v594 = vsel %vm292, %v589, %v593
        %v595 = vshrl.u32 %v266, 16
        %v597 = vrot.slane %v595, 4
        %v598 = vor.u32 %v597, %v593
        %v599 = vrot.slane %v598, 4
        %v601 = vshll.u32 %v286, 16
        %v603 = vrot.slane %v601, 5
        %v604 = vsel %vm292, %v599, %v603
        %v606 = vshrl.u32 %v267, 16
        %v608 = vrot.slane %v606, 4
        %v609 = vshll.u32 %v267, 16
        %v611 = vrot.slane %v609, 5
        %v612 = vor.u32 %v608, %v611
        %v613 = vrot.slane %v612, 4
        %v615 = vshll.u32 %v268, 16
        %v617 = vrot.slane %v615, 5
        %v618 = vsel %vm292, %v613, %v617
        %v619 = vshrl.u32 %v268, 16
        %v621 = vrot.slane %v619, 4
        %v622 = vor.u32 %v621, %v617
        %v623 = vrot.slane %v622, 4
        %v625 = vshll.u32 %v287, 16
        %v627 = vrot.slane %v625, 5
        %v628 = vsel %vm292, %v623, %v627
        %v630 = vshrl.u32 %v269, 16
        %v632 = vrot.slane %v630, 4
        %v633 = vshll.u32 %v269, 16
        %v635 = vrot.slane %v633, 5
        %v636 = vor.u32 %v632, %v635
        %v637 = vrot.slane %v636, 4
        %v639 = vshll.u32 %v270, 16
        %v641 = vrot.slane %v639, 5
        %v642 = vsel %vm292, %v637, %v641
        %v643 = vshrl.u32 %v270, 16
        %v645 = vrot.slane %v643, 4
        %v646 = vor.u32 %v645, %v641
        %v647 = vrot.slane %v646, 4
        %v649 = vshll.u32 %v288, 16
        %v651 = vrot.slane %v649, 5
        %v652 = vsel %vm292, %v647, %v651
        %v654 = vshrl.u32 %v271, 16
        %v656 = vrot.slane %v654, 4
        %v657 = vshll.u32 %v271, 16
        %v659 = vrot.slane %v657, 5
        %v660 = vor.u32 %v656, %v659
        %v661 = vrot.slane %v660, 4
        %v663 = vshll.u32 %v272, 16
        %v665 = vrot.slane %v663, 5
        %v666 = vsel %vm292, %v661, %v665
        %v667 = vshrl.u32 %v272, 16
        %v669 = vrot.slane %v667, 4
        %v670 = vor.u32 %v669, %v665
        %v671 = vrot.slane %v670, 4
        %v673 = vshll.u32 %v289, 16
        %v675 = vrot.slane %v673, 5
        %v676 = vsel %vm292, %v671, %v675
        %s677 = scalar_lea.vmem %s1, 2
        %v678 = vld [vmem:[%s677] sm:$0x3]
        %v679 = vunpack.c.l.b16 %v306
        %v680 = vunpack.c.l.b16 %v316
        %v681 = vunpack.c.l.b16 %v330
        %v682 = vunpack.c.l.b16 %v340
        %v683 = vunpack.c.l.b16 %v354
        %v684 = vunpack.c.l.b16 %v364
        %v685 = vunpack.c.l.b16 %v378
        %v686 = vunpack.c.l.b16 %v388
        %v687 = vunpack.c.l.b16 %v402
        %v688 = vunpack.c.l.b16 %v412
        %v689 = vunpack.c.l.b16 %v426
        %v690 = vunpack.c.l.b16 %v436
        %v691 = vunpack.c.l.b16 %v450
        %v692 = vunpack.c.l.b16 %v460
        %v693 = vunpack.c.l.b16 %v474
        %v694 = vunpack.c.l.b16 %v484
        %v695 = vunpack.c.l.b16 %v498
        %v696 = vunpack.c.l.b16 %v508
        %v697 = vunpack.c.l.b16 %v522
        %v698 = vunpack.c.l.b16 %v532
        %v699 = vunpack.c.l.b16 %v546
        %v700 = vunpack.c.l.b16 %v556
        %v701 = vunpack.c.l.b16 %v570
        %v702 = vunpack.c.l.b16 %v580
        %v703 = vunpack.c.l.b16 %v594
        %v704 = vunpack.c.l.b16 %v604
        %v705 = vunpack.c.l.b16 %v618
        %v706 = vunpack.c.l.b16 %v628
        %v707 = vunpack.c.l.b16 %v642
        %v708 = vunpack.c.l.b16 %v652
        %v709 = vunpack.c.l.b16 %v666
        %v710 = vunpack.c.l.b16 %v676
        %v711 = vpack.c.b16 %v680, %v679
        %v712 = vpack.c.b16 %v682, %v681
        %v713 = vpack.c.b16 %v684, %v683
        %v714 = vpack.c.b16 %v686, %v685
        %v715 = vpack.c.b16 %v688, %v687
        %v716 = vpack.c.b16 %v690, %v689
        %v717 = vpack.c.b16 %v692, %v691
        %v718 = vpack.c.b16 %v694, %v693
        %v719 = vpack.c.b16 %v696, %v695
        %v720 = vpack.c.b16 %v698, %v697
        %v721 = vpack.c.b16 %v700, %v699
        %v722 = vpack.c.b16 %v702, %v701
        %v723 = vpack.c.b16 %v704, %v703
        %v724 = vpack.c.b16 %v706, %v705
        %v725 = vpack.c.b16 %v708, %v707
        %v726 = vpack.c.b16 %v710, %v709
        %vm727 = vcmask 31744
        %v729 = vsel %vm727, %v711, 0
        %v732 = vsel %vm727, %v712, 0
        %v735 = vsel %vm727, %v713, 0
        %v738 = vsel %vm727, %v714, 0
        %v741 = vsel %vm727, %v715, 0
        %v744 = vsel %vm727, %v716, 0
        %v747 = vsel %vm727, %v717, 0
        %v750 = vsel %vm727, %v718, 0
        %v753 = vsel %vm727, %v719, 0
        %v756 = vsel %vm727, %v720, 0
        %v759 = vsel %vm727, %v721, 0
        %v762 = vsel %vm727, %v722, 0
        %v765 = vsel %vm727, %v723, 0
        %v768 = vsel %vm727, %v724, 0
        %v771 = vsel %vm727, %v725, 0
        %v774 = vsel %vm727, %v726, 0
        %vm776 = vcmask 1041408
        %v778 = vsel %vm776, %v678, 0
        %780 = vmatprep.subr.bf16.mxu0 0
        %781 = vmatpush1.bf16.msra.mxu0 %v778
        %782 = vmatprep.subr.bf16.mxu0 0
        %783 = vmatpush1.bf16.msra.mxu0 0
        %784 = vmatprep.subr.bf16.mxu0 0
        %785 = vmatpush1.bf16.msra.mxu0 0
        %786 = vmatprep.subr.bf16.mxu0 0
        %787 = vmatpush1.bf16.msra.mxu0 0
        %788 = vmatprep.subr.bf16.mxu0 0
        %789 = vmatpush1.bf16.msra.mxu0 0
        %790 = vmatprep.subr.bf16.mxu0 0
        %791 = vmatpush1.bf16.msra.mxu0 0
        %792 = vmatprep.subr.bf16.mxu0 0
        %793 = vmatpush1.bf16.msra.mxu0 0
        %794 = vmatprep.subr.bf16.mxu0 0
        %795 = vmatpush1.bf16.msra.mxu0 0
        %796 = vmatprep.subr.bf16.mxu0 0
        %797 = vmatpush1.bf16.msra.mxu0 0
        %798 = vmatprep.subr.bf16.mxu0 0
        %799 = vmatpush1.bf16.msra.mxu0 0
        %800 = vmatprep.subr.bf16.mxu0 0
        %801 = vmatpush1.bf16.msra.mxu0 0
        %802 = vmatprep.subr.bf16.mxu0 0
        %803 = vmatpush1.bf16.msra.mxu0 0
        %804 = vmatprep.subr.bf16.mxu0 0
        %805 = vmatpush1.bf16.msra.mxu0 0
        %806 = vmatprep.subr.bf16.mxu0 0
        %807 = vmatpush1.bf16.msra.mxu0 0
        %808 = vmatprep.subr.bf16.mxu0 0
        %809 = vmatpush1.bf16.msra.mxu0 0
        %810 = vmatprep.subr.bf16.mxu0 0
        %811 = vmatpush1.bf16.msra.mxu0 0
        %812 = vmatprep.mubr.bf16.mxu0 0
        %813 = vmatmul.mubr.bf16.gmra.mrb[0].mxu0 %v729
        %v814 = vpop.f32.mrb[0].mxu0
        %v815 = vadd.f32 0.0, %v814
        %v816 = vpop.f32.mrb[0].mxu0
        %v817 = vpop.f32.mrb[0].mxu0
        %v818 = vadd.f32 0.0, %v817
        %v819 = vpop.f32.mrb[0].mxu0
        %820 = vmatprep.mubr.bf16.mxu0 0
        %821 = vmatmul.mubr.bf16.gmra.mrb[0].mxu0 %v732
        %v822 = vpop.f32.mrb[0].mxu0
        %v823 = vadd.f32 0.0, %v822
        %v824 = vpop.f32.mrb[0].mxu0
        %v825 = vpop.f32.mrb[0].mxu0
        %v826 = vadd.f32 0.0, %v825
        %v827 = vpop.f32.mrb[0].mxu0
        %828 = vmatprep.mubr.bf16.mxu0 0
        %829 = vmatmul.mubr.bf16.gmra.mrb[0].mxu0 %v735
        %v830 = vpop.f32.mrb[0].mxu0
        %v831 = vadd.f32 0.0, %v830
        %v832 = vpop.f32.mrb[0].mxu0
        %v833 = vpop.f32.mrb[0].mxu0
        %v834 = vadd.f32 0.0, %v833
        %v835 = vpop.f32.mrb[0].mxu0
        %836 = vmatprep.mubr.bf16.mxu0 0
        %837 = vmatmul.mubr.bf16.gmra.mrb[0].mxu0 %v738
        %v838 = vpop.f32.mrb[0].mxu0
        %v839 = vadd.f32 0.0, %v838
        %v840 = vpop.f32.mrb[0].mxu0
        %v841 = vpop.f32.mrb[0].mxu0
        %v842 = vadd.f32 0.0, %v841
        %v843 = vpop.f32.mrb[0].mxu0
        %844 = vmatprep.mubr.bf16.mxu0 0
        %845 = vmatmul.mubr.bf16.gmra.mrb[0].mxu0 %v741
        %v846 = vpop.f32.mrb[0].mxu0
        %v847 = vadd.f32 0.0, %v846
        %v848 = vpop.f32.mrb[0].mxu0
        %v849 = vpop.f32.mrb[0].mxu0
        %v850 = vadd.f32 0.0, %v849
        %v851 = vpop.f32.mrb[0].mxu0
        %852 = vmatprep.mubr.bf16.mxu0 0
        %853 = vmatmul.mubr.bf16.gmra.mrb[0].mxu0 %v744
        %v854 = vpop.f32.mrb[0].mxu0
        %v855 = vadd.f32 0.0, %v854
        %v856 = vpop.f32.mrb[0].mxu0
        %v857 = vpop.f32.mrb[0].mxu0
        %v858 = vadd.f32 0.0, %v857
        %v859 = vpop.f32.mrb[0].mxu0
        %860 = vmatprep.mubr.bf16.mxu0 0
        %861 = vmatmul.mubr.bf16.gmra.mrb[0].mxu0 %v747
        %v862 = vpop.f32.mrb[0].mxu0
        %v863 = vadd.f32 0.0, %v862
        %v864 = vpop.f32.mrb[0].mxu0
        %v865 = vpop.f32.mrb[0].mxu0
        %v866 = vadd.f32 0.0, %v865
        %v867 = vpop.f32.mrb[0].mxu0
        %868 = vmatprep.mubr.bf16.mxu0 0
        %869 = vmatmul.mubr.bf16.gmra.mrb[0].mxu0 %v750
        %v870 = vpop.f32.mrb[0].mxu0
        %v871 = vadd.f32 0.0, %v870
        %v872 = vpop.f32.mrb[0].mxu0
        %v873 = vpop.f32.mrb[0].mxu0
        %v874 = vadd.f32 0.0, %v873
        %v875 = vpop.f32.mrb[0].mxu0
        %876 = vmatprep.mubr.bf16.mxu0 0
        %877 = vmatmul.mubr.bf16.gmra.mrb[0].mxu0 %v753
        %v878 = vpop.f32.mrb[0].mxu0
        %v879 = vadd.f32 0.0, %v878
        %v880 = vpop.f32.mrb[0].mxu0
        %v881 = vpop.f32.mrb[0].mxu0
        %v882 = vadd.f32 0.0, %v881
        %v883 = vpop.f32.mrb[0].mxu0
        %884 = vmatprep.mubr.bf16.mxu0 0
        %885 = vmatmul.mubr.bf16.gmra.mrb[0].mxu0 %v756
        %v886 = vpop.f32.mrb[0].mxu0
        %v887 = vadd.f32 0.0, %v886
        %v888 = vpop.f32.mrb[0].mxu0
        %v889 = vpop.f32.mrb[0].mxu0
        %v890 = vadd.f32 0.0, %v889
        %v891 = vpop.f32.mrb[0].mxu0
        %892 = vmatprep.mubr.bf16.mxu0 0
        %893 = vmatmul.mubr.bf16.gmra.mrb[0].mxu0 %v759
        %v894 = vpop.f32.mrb[0].mxu0
        %v895 = vadd.f32 0.0, %v894
        %v896 = vpop.f32.mrb[0].mxu0
        %v897 = vpop.f32.mrb[0].mxu0
        %v898 = vadd.f32 0.0, %v897
        %v899 = vpop.f32.mrb[0].mxu0
        %900 = vmatprep.mubr.bf16.mxu0 0
        %901 = vmatmul.mubr.bf16.gmra.mrb[0].mxu0 %v762
        %v902 = vpop.f32.mrb[0].mxu0
        %v903 = vadd.f32 0.0, %v902
        %v904 = vpop.f32.mrb[0].mxu0
        %v905 = vpop.f32.mrb[0].mxu0
        %v906 = vadd.f32 0.0, %v905
        %v907 = vpop.f32.mrb[0].mxu0
        %908 = vmatprep.mubr.bf16.mxu0 0
        %909 = vmatmul.mubr.bf16.gmra.mrb[0].mxu0 %v765
        %v910 = vpop.f32.mrb[0].mxu0
        %v911 = vadd.f32 0.0, %v910
        %v912 = vpop.f32.mrb[0].mxu0
        %v913 = vpop.f32.mrb[0].mxu0
        %v914 = vadd.f32 0.0, %v913
        %v915 = vpop.f32.mrb[0].mxu0
        %916 = vmatprep.mubr.bf16.mxu0 0
        %917 = vmatmul.mubr.bf16.gmra.mrb[0].mxu0 %v768
        %v918 = vpop.f32.mrb[0].mxu0
        %v919 = vadd.f32 0.0, %v918
        %v920 = vpop.f32.mrb[0].mxu0
        %v921 = vpop.f32.mrb[0].mxu0
        %v922 = vadd.f32 0.0, %v921
        %v923 = vpop.f32.mrb[0].mxu0
        %924 = vmatprep.mubr.bf16.mxu0 0
        %925 = vmatmul.mubr.bf16.gmra.mrb[0].mxu0 %v771
        %v926 = vpop.f32.mrb[0].mxu0
        %v927 = vadd.f32 0.0, %v926
        %v928 = vpop.f32.mrb[0].mxu0
        %v929 = vpop.f32.mrb[0].mxu0
        %v930 = vadd.f32 0.0, %v929
        %v931 = vpop.f32.mrb[0].mxu0
        %932 = vmatprep.mubr.bf16.mxu0 0
        %933 = vmatmul.mubr.bf16.gmra.mrb[0].mxu0 %v774
        %v934 = vpop.f32.mrb[0].mxu0
        %v935 = vadd.f32 0.0, %v934
        %v936 = vpop.f32.mrb[0].mxu0
        %v937 = vpop.f32.mrb[0].mxu0
        %v938 = vadd.f32 0.0, %v937
        %v939 = vpop.f32.mrb[0].mxu0
        %940 = vdwg.mxu0
        %v973 = vunpack.c.l.b16 %v241
        %v974 = vunpack.c.l.b16 %v242
        %v975 = vunpack.c.l.b16 %v243
        %v976 = vunpack.c.l.b16 %v244
        %v977 = vunpack.c.l.b16 %v245
        %v978 = vunpack.c.l.b16 %v246
        %v979 = vunpack.c.l.b16 %v247
        %v980 = vunpack.c.l.b16 %v248
        %v981 = vunpack.c.l.b16 %v249
        %v982 = vunpack.c.l.b16 %v250
        %v983 = vunpack.c.l.b16 %v251
        %v984 = vunpack.c.l.b16 %v252
        %v985 = vunpack.c.l.b16 %v253
        %v986 = vunpack.c.l.b16 %v254
        %v987 = vunpack.c.l.b16 %v255
        %v988 = vunpack.c.l.b16 %v256
        %v989 = vunpack.c.l.b16 %v257
        %v990 = vunpack.c.l.b16 %v258
        %v991 = vunpack.c.l.b16 %v259
        %v992 = vunpack.c.l.b16 %v260
        %v993 = vunpack.c.l.b16 %v261
        %v994 = vunpack.c.l.b16 %v262
        %v995 = vunpack.c.l.b16 %v263
        %v996 = vunpack.c.l.b16 %v264
        %v997 = vunpack.c.l.b16 %v265
        %v998 = vunpack.c.l.b16 %v266
        %v999 = vunpack.c.l.b16 %v267
        %v1000 = vunpack.c.l.b16 %v268
        %v1001 = vunpack.c.l.b16 %v269
        %v1002 = vunpack.c.l.b16 %v270
        %v1003 = vunpack.c.l.b16 %v271
        %v1004 = vunpack.c.l.b16 %v272
        %v1005 = vpack.c.b16 %v974, %v973
        %v1006 = vpack.c.b16 %v976, %v975
        %v1007 = vpack.c.b16 %v978, %v977
        %v1008 = vpack.c.b16 %v980, %v979
        %v1009 = vpack.c.b16 %v982, %v981
        %v1010 = vpack.c.b16 %v984, %v983
        %v1011 = vpack.c.b16 %v986, %v985
        %v1012 = vpack.c.b16 %v988, %v987
        %v1013 = vpack.c.b16 %v990, %v989
        %v1014 = vpack.c.b16 %v992, %v991
        %v1015 = vpack.c.b16 %v994, %v993
        %v1016 = vpack.c.b16 %v996, %v995
        %v1017 = vpack.c.b16 %v998, %v997
        %v1018 = vpack.c.b16 %v1000, %v999
        %v1019 = vpack.c.b16 %v1002, %v1001
        %v1020 = vpack.c.b16 %v1004, %v1003
        %v1022 = vsel %vm727, %v1005, 0
        %v1025 = vsel %vm727, %v1006, 0
        %v1028 = vsel %vm727, %v1007, 0
        %v1031 = vsel %vm727, %v1008, 0
        %v1034 = vsel %vm727, %v1009, 0
        %v1037 = vsel %vm727, %v1010, 0
        %v1040 = vsel %vm727, %v1011, 0
        %v1043 = vsel %vm727, %v1012, 0
        %v1046 = vsel %vm727, %v1013, 0
        %v1049 = vsel %vm727, %v1014, 0
        %v1052 = vsel %vm727, %v1015, 0
        %v1055 = vsel %vm727, %v1016, 0
        %v1058 = vsel %vm727, %v1017, 0
        %v1061 = vsel %vm727, %v1018, 0
        %v1064 = vsel %vm727, %v1019, 0
        %v1067 = vsel %vm727, %v1020, 0
        %v1070 = vsel %vm776, %v273, 0
        %1072 = vmatprep.subr.bf16.mxu0 0
        %1073 = vmatpush1.bf16.msra.mxu0 %v1070
        %1074 = vmatprep.subr.bf16.mxu0 0
        %1075 = vmatpush1.bf16.msra.mxu0 0
        %1076 = vmatprep.subr.bf16.mxu0 0
        %1077 = vmatpush1.bf16.msra.mxu0 0
        %1078 = vmatprep.subr.bf16.mxu0 0
        %1079 = vmatpush1.bf16.msra.mxu0 0
        %1080 = vmatprep.subr.bf16.mxu0 0
        %1081 = vmatpush1.bf16.msra.mxu0 0
        %1082 = vmatprep.subr.bf16.mxu0 0
        %1083 = vmatpush1.bf16.msra.mxu0 0
        %1084 = vmatprep.subr.bf16.mxu0 0
        %1085 = vmatpush1.bf16.msra.mxu0 0
        %1086 = vmatprep.subr.bf16.mxu0 0
        %1087 = vmatpush1.bf16.msra.mxu0 0
        %1088 = vmatprep.subr.bf16.mxu0 0
        %1089 = vmatpush1.bf16.msra.mxu0 0
        %1090 = vmatprep.subr.bf16.mxu0 0
        %1091 = vmatpush1.bf16.msra.mxu0 0
        %1092 = vmatprep.subr.bf16.mxu0 0
        %1093 = vmatpush1.bf16.msra.mxu0 0
        %1094 = vmatprep.subr.bf16.mxu0 0
        %1095 = vmatpush1.bf16.msra.mxu0 0
        %1096 = vmatprep.subr.bf16.mxu0 0
        %1097 = vmatpush1.bf16.msra.mxu0 0
        %1098 = vmatprep.subr.bf16.mxu0 0
        %1099 = vmatpush1.bf16.msra.mxu0 0
        %1100 = vmatprep.subr.bf16.mxu0 0
        %1101 = vmatpush1.bf16.msra.mxu0 0
        %1102 = vmatprep.subr.bf16.mxu0 0
        %1103 = vmatpush1.bf16.msra.mxu0 0
        %1104 = vmatprep.mubr.bf16.mxu0 0
        %1105 = vmatmul.mubr.bf16.gmra.mrb[0].mxu0 %v1022
        %v1106 = vpop.f32.mrb[0].mxu0
        %v1107 = vadd.f32 %v815, %v1106
        %v1108 = vpop.f32.mrb[0].mxu0
        %v1109 = vpop.f32.mrb[0].mxu0
        %v1110 = vadd.f32 %v818, %v1109
        %v1111 = vpop.f32.mrb[0].mxu0
        %1112 = vmatprep.mubr.bf16.mxu0 0
        %1113 = vmatmul.mubr.bf16.gmra.mrb[0].mxu0 %v1025
        %v1114 = vpop.f32.mrb[0].mxu0
        %v1115 = vadd.f32 %v823, %v1114
        %v1116 = vpop.f32.mrb[0].mxu0
        %v1117 = vpop.f32.mrb[0].mxu0
        %v1118 = vadd.f32 %v826, %v1117
        %v1119 = vpop.f32.mrb[0].mxu0
        %1120 = vmatprep.mubr.bf16.mxu0 0
        %1121 = vmatmul.mubr.bf16.gmra.mrb[0].mxu0 %v1028
        %v1122 = vpop.f32.mrb[0].mxu0
        %v1123 = vadd.f32 %v831, %v1122
        %v1124 = vpop.f32.mrb[0].mxu0
        %v1125 = vpop.f32.mrb[0].mxu0
        %v1126 = vadd.f32 %v834, %v1125
        %v1127 = vpop.f32.mrb[0].mxu0
        %1128 = vmatprep.mubr.bf16.mxu0 0
        %1129 = vmatmul.mubr.bf16.gmra.mrb[0].mxu0 %v1031
        %v1130 = vpop.f32.mrb[0].mxu0
        %v1131 = vadd.f32 %v839, %v1130
        %v1132 = vpop.f32.mrb[0].mxu0
        %v1133 = vpop.f32.mrb[0].mxu0
        %v1134 = vadd.f32 %v842, %v1133
        %v1135 = vpop.f32.mrb[0].mxu0
        %1136 = vmatprep.mubr.bf16.mxu0 0
        %1137 = vmatmul.mubr.bf16.gmra.mrb[0].mxu0 %v1034
        %v1138 = vpop.f32.mrb[0].mxu0
        %v1139 = vadd.f32 %v847, %v1138
        %v1140 = vpop.f32.mrb[0].mxu0
        %v1141 = vpop.f32.mrb[0].mxu0
        %v1142 = vadd.f32 %v850, %v1141
        %v1143 = vpop.f32.mrb[0].mxu0
        %1144 = vmatprep.mubr.bf16.mxu0 0
        %1145 = vmatmul.mubr.bf16.gmra.mrb[0].mxu0 %v1037
        %v1146 = vpop.f32.mrb[0].mxu0
        %v1147 = vadd.f32 %v855, %v1146
        %v1148 = vpop.f32.mrb[0].mxu0
        %v1149 = vpop.f32.mrb[0].mxu0
        %v1150 = vadd.f32 %v858, %v1149
        %v1151 = vpop.f32.mrb[0].mxu0
        %1152 = vmatprep.mubr.bf16.mxu0 0
        %1153 = vmatmul.mubr.bf16.gmra.mrb[0].mxu0 %v1040
        %v1154 = vpop.f32.mrb[0].mxu0
        %v1155 = vadd.f32 %v863, %v1154
        %v1156 = vpop.f32.mrb[0].mxu0
        %v1157 = vpop.f32.mrb[0].mxu0
        %v1158 = vadd.f32 %v866, %v1157
        %v1159 = vpop.f32.mrb[0].mxu0
        %1160 = vmatprep.mubr.bf16.mxu0 0
        %1161 = vmatmul.mubr.bf16.gmra.mrb[0].mxu0 %v1043
        %v1162 = vpop.f32.mrb[0].mxu0
        %v1163 = vadd.f32 %v871, %v1162
        %v1164 = vpop.f32.mrb[0].mxu0
        %v1165 = vpop.f32.mrb[0].mxu0
        %v1166 = vadd.f32 %v874, %v1165
        %v1167 = vpop.f32.mrb[0].mxu0
        %1168 = vmatprep.mubr.bf16.mxu0 0
        %1169 = vmatmul.mubr.bf16.gmra.mrb[0].mxu0 %v1046
        %v1170 = vpop.f32.mrb[0].mxu0
        %v1171 = vadd.f32 %v879, %v1170
        %v1172 = vpop.f32.mrb[0].mxu0
        %v1173 = vpop.f32.mrb[0].mxu0
        %v1174 = vadd.f32 %v882, %v1173
        %v1175 = vpop.f32.mrb[0].mxu0
        %1176 = vmatprep.mubr.bf16.mxu0 0
        %1177 = vmatmul.mubr.bf16.gmra.mrb[0].mxu0 %v1049
        %v1178 = vpop.f32.mrb[0].mxu0
        %v1179 = vadd.f32 %v887, %v1178
        %v1180 = vpop.f32.mrb[0].mxu0
        %v1181 = vpop.f32.mrb[0].mxu0
        %v1182 = vadd.f32 %v890, %v1181
        %v1183 = vpop.f32.mrb[0].mxu0
        %1184 = vmatprep.mubr.bf16.mxu0 0
        %1185 = vmatmul.mubr.bf16.gmra.mrb[0].mxu0 %v1052
        %v1186 = vpop.f32.mrb[0].mxu0
        %v1187 = vadd.f32 %v895, %v1186
        %v1188 = vpop.f32.mrb[0].mxu0
        %v1189 = vpop.f32.mrb[0].mxu0
        %v1190 = vadd.f32 %v898, %v1189
        %v1191 = vpop.f32.mrb[0].mxu0
        %1192 = vmatprep.mubr.bf16.mxu0 0
        %1193 = vmatmul.mubr.bf16.gmra.mrb[0].mxu0 %v1055
        %v1194 = vpop.f32.mrb[0].mxu0
        %v1195 = vadd.f32 %v903, %v1194
        %v1196 = vpop.f32.mrb[0].mxu0
        %v1197 = vpop.f32.mrb[0].mxu0
        %v1198 = vadd.f32 %v906, %v1197
        %v1199 = vpop.f32.mrb[0].mxu0
        %1200 = vmatprep.mubr.bf16.mxu0 0
        %1201 = vmatmul.mubr.bf16.gmra.mrb[0].mxu0 %v1058
        %v1202 = vpop.f32.mrb[0].mxu0
        %v1203 = vadd.f32 %v911, %v1202
        %v1204 = vpop.f32.mrb[0].mxu0
        %v1205 = vpop.f32.mrb[0].mxu0
        %v1206 = vadd.f32 %v914, %v1205
        %v1207 = vpop.f32.mrb[0].mxu0
        %1208 = vmatprep.mubr.bf16.mxu0 0
        %1209 = vmatmul.mubr.bf16.gmra.mrb[0].mxu0 %v1061
        %v1210 = vpop.f32.mrb[0].mxu0
        %v1211 = vadd.f32 %v919, %v1210
        %v1212 = vpop.f32.mrb[0].mxu0
        %v1213 = vpop.f32.mrb[0].mxu0
        %v1214 = vadd.f32 %v922, %v1213
        %v1215 = vpop.f32.mrb[0].mxu0
        %1216 = vmatprep.mubr.bf16.mxu0 0
        %1217 = vmatmul.mubr.bf16.gmra.mrb[0].mxu0 %v1064
        %v1218 = vpop.f32.mrb[0].mxu0
        %v1219 = vadd.f32 %v927, %v1218
        %v1220 = vpop.f32.mrb[0].mxu0
        %v1221 = vpop.f32.mrb[0].mxu0
        %v1222 = vadd.f32 %v930, %v1221
        %v1223 = vpop.f32.mrb[0].mxu0
        %1224 = vmatprep.mubr.bf16.mxu0 0
        %1225 = vmatmul.mubr.bf16.gmra.mrb[0].mxu0 %v1067
        %v1226 = vpop.f32.mrb[0].mxu0
        %v1227 = vadd.f32 %v935, %v1226
        %v1228 = vpop.f32.mrb[0].mxu0
        %v1229 = vpop.f32.mrb[0].mxu0
        %v1230 = vadd.f32 %v938, %v1229
        %v1231 = vpop.f32.mrb[0].mxu0
        %1232 = vdwg.mxu0
        %v1233 = vld [vmem:[%s237] sm:$0xe]
        %v1234 = vld [vmem:[%s237 + $0xc] sm:$0xe]
        %v1235 = vld [vmem:[%s237 + $0x18] sm:$0xe]
        %v1236 = vld [vmem:[%s237 + $0x24] sm:$0xe]
        %v1237 = vld [vmem:[%s237 + $0x30] sm:$0xe]
        %v1238 = vld [vmem:[%s237 + $0x3c] sm:$0xe]
        %v1239 = vld [vmem:[%s237 + $0x48] sm:$0xe]
        %v1240 = vld [vmem:[%s237 + $0x54] sm:$0xe]
        %v1241 = vld [vmem:[%s237 + $0x60] sm:$0xe]
        %v1242 = vld [vmem:[%s237 + $0x6c] sm:$0xe]
        %v1243 = vld [vmem:[%s237 + $0x78] sm:$0xe]
        %v1244 = vld [vmem:[%s237 + $0x84] sm:$0xe]
        %v1245 = vld [vmem:[%s237 + $0x90] sm:$0xe]
        %v1246 = vld [vmem:[%s237 + $0x9c] sm:$0xe]
        %v1247 = vld [vmem:[%s237 + $0xa8] sm:$0xe]
        %v1248 = vld [vmem:[%s237 + $0xb4] sm:$0xe]
        %vm1281 = vcmask 1042432
        %vm1282 = vcmask 1046532
        %vm1283 = vmor %vm1281, %vm1282
        %v1284 = vrot.slane %v1233, 5
        %v1285 = vrot.slane %v1284, 4
        %v1286 = vrot.slane %v242, 5
        %v1287 = vsel %vm1283, %v1285, %v1286
        %v1288 = vrot.slane %v1286, 4
        %v1289 = vrot.slane %v274, 5
        %v1290 = vsel %vm1283, %v1288, %v1289
        %v1291 = vrot.slane %v1234, 5
        %v1292 = vrot.slane %v1291, 4
        %v1293 = vrot.slane %v244, 5
        %v1294 = vsel %vm1283, %v1292, %v1293
        %v1295 = vrot.slane %v1293, 4
        %v1296 = vrot.slane %v275, 5
        %v1297 = vsel %vm1283, %v1295, %v1296
        %v1298 = vrot.slane %v1235, 5
        %v1299 = vrot.slane %v1298, 4
        %v1300 = vrot.slane %v246, 5
        %v1301 = vsel %vm1283, %v1299, %v1300
        %v1302 = vrot.slane %v1300, 4
        %v1303 = vrot.slane %v276, 5
        %v1304 = vsel %vm1283, %v1302, %v1303
        %v1305 = vrot.slane %v1236, 5
        %v1306 = vrot.slane %v1305, 4
        %v1307 = vrot.slane %v248, 5
        %v1308 = vsel %vm1283, %v1306, %v1307
        %v1309 = vrot.slane %v1307, 4
        %v1310 = vrot.slane %v277, 5
        %v1311 = vsel %vm1283, %v1309, %v1310
        %v1312 = vrot.slane %v1237, 5
        %v1313 = vrot.slane %v1312, 4
        %v1314 = vrot.slane %v250, 5
        %v1315 = vsel %vm1283, %v1313, %v1314
        %v1316 = vrot.slane %v1314, 4
        %v1317 = vrot.slane %v278, 5
        %v1318 = vsel %vm1283, %v1316, %v1317
        %v1319 = vrot.slane %v1238, 5
        %v1320 = vrot.slane %v1319, 4
        %v1321 = vrot.slane %v252, 5
        %v1322 = vsel %vm1283, %v1320, %v1321
        %v1323 = vrot.slane %v1321, 4
        %v1324 = vrot.slane %v279, 5
        %v1325 = vsel %vm1283, %v1323, %v1324
        %v1326 = vrot.slane %v1239, 5
        %v1327 = vrot.slane %v1326, 4
        %v1328 = vrot.slane %v254, 5
        %v1329 = vsel %vm1283, %v1327, %v1328
        %v1330 = vrot.slane %v1328, 4
        %v1331 = vrot.slane %v280, 5
        %v1332 = vsel %vm1283, %v1330, %v1331
        %v1333 = vrot.slane %v1240, 5
        %v1334 = vrot.slane %v1333, 4
        %v1335 = vrot.slane %v256, 5
        %v1336 = vsel %vm1283, %v1334, %v1335
        %v1337 = vrot.slane %v1335, 4
        %v1338 = vrot.slane %v281, 5
        %v1339 = vsel %vm1283, %v1337, %v1338
        %v1340 = vrot.slane %v1241, 5
        %v1341 = vrot.slane %v1340, 4
        %v1342 = vrot.slane %v258, 5
        %v1343 = vsel %vm1283, %v1341, %v1342
        %v1344 = vrot.slane %v1342, 4
        %v1345 = vrot.slane %v282, 5
        %v1346 = vsel %vm1283, %v1344, %v1345
        %v1347 = vrot.slane %v1242, 5
        %v1348 = vrot.slane %v1347, 4
        %v1349 = vrot.slane %v260, 5
        %v1350 = vsel %vm1283, %v1348, %v1349
        %v1351 = vrot.slane %v1349, 4
        %v1352 = vrot.slane %v283, 5
        %v1353 = vsel %vm1283, %v1351, %v1352
        %v1354 = vrot.slane %v1243, 5
        %v1355 = vrot.slane %v1354, 4
        %v1356 = vrot.slane %v262, 5
        %v1357 = vsel %vm1283, %v1355, %v1356
        %v1358 = vrot.slane %v1356, 4
        %v1359 = vrot.slane %v284, 5
        %v1360 = vsel %vm1283, %v1358, %v1359
        %v1361 = vrot.slane %v1244, 5
        %v1362 = vrot.slane %v1361, 4
        %v1363 = vrot.slane %v264, 5
        %v1364 = vsel %vm1283, %v1362, %v1363
        %v1365 = vrot.slane %v1363, 4
        %v1366 = vrot.slane %v285, 5
        %v1367 = vsel %vm1283, %v1365, %v1366
        %v1368 = vrot.slane %v1245, 5
        %v1369 = vrot.slane %v1368, 4
        %v1370 = vrot.slane %v266, 5
        %v1371 = vsel %vm1283, %v1369, %v1370
        %v1372 = vrot.slane %v1370, 4
        %v1373 = vrot.slane %v286, 5
        %v1374 = vsel %vm1283, %v1372, %v1373
        %v1375 = vrot.slane %v1246, 5
        %v1376 = vrot.slane %v1375, 4
        %v1377 = vrot.slane %v268, 5
        %v1378 = vsel %vm1283, %v1376, %v1377
        %v1379 = vrot.slane %v1377, 4
        %v1380 = vrot.slane %v287, 5
        %v1381 = vsel %vm1283, %v1379, %v1380
        %v1382 = vrot.slane %v1247, 5
        %v1383 = vrot.slane %v1382, 4
        %v1384 = vrot.slane %v270, 5
        %v1385 = vsel %vm1283, %v1383, %v1384
        %v1386 = vrot.slane %v1384, 4
        %v1387 = vrot.slane %v288, 5
        %v1388 = vsel %vm1283, %v1386, %v1387
        %v1389 = vrot.slane %v1248, 5
        %v1390 = vrot.slane %v1389, 4
        %v1391 = vrot.slane %v272, 5
        %v1392 = vsel %vm1283, %v1390, %v1391
        %v1393 = vrot.slane %v1391, 4
        %v1394 = vrot.slane %v289, 5
        %v1395 = vsel %vm1283, %v1393, %v1394
        %s1396 = scalar_lea.vmem %s1, 4
        %v1397 = vld [vmem:[%s1396] sm:$0x3]
        %v1398 = vunpack.c.l.b16 %v1287
        %v1399 = vunpack.c.l.b16 %v1290
        %v1400 = vunpack.c.l.b16 %v1294
        %v1401 = vunpack.c.l.b16 %v1297
        %v1402 = vunpack.c.l.b16 %v1301
        %v1403 = vunpack.c.l.b16 %v1304
        %v1404 = vunpack.c.l.b16 %v1308
        %v1405 = vunpack.c.l.b16 %v1311
        %v1406 = vunpack.c.l.b16 %v1315
        %v1407 = vunpack.c.l.b16 %v1318
        %v1408 = vunpack.c.l.b16 %v1322
        %v1409 = vunpack.c.l.b16 %v1325
        %v1410 = vunpack.c.l.b16 %v1329
        %v1411 = vunpack.c.l.b16 %v1332
        %v1412 = vunpack.c.l.b16 %v1336
        %v1413 = vunpack.c.l.b16 %v1339
        %v1414 = vunpack.c.l.b16 %v1343
        %v1415 = vunpack.c.l.b16 %v1346
        %v1416 = vunpack.c.l.b16 %v1350
        %v1417 = vunpack.c.l.b16 %v1353
        %v1418 = vunpack.c.l.b16 %v1357
        %v1419 = vunpack.c.l.b16 %v1360
        %v1420 = vunpack.c.l.b16 %v1364
        %v1421 = vunpack.c.l.b16 %v1367
        %v1422 = vunpack.c.l.b16 %v1371
        %v1423 = vunpack.c.l.b16 %v1374
        %v1424 = vunpack.c.l.b16 %v1378
        %v1425 = vunpack.c.l.b16 %v1381
        %v1426 = vunpack.c.l.b16 %v1385
        %v1427 = vunpack.c.l.b16 %v1388
        %v1428 = vunpack.c.l.b16 %v1392
        %v1429 = vunpack.c.l.b16 %v1395
        %v1430 = vpack.c.b16 %v1399, %v1398
        %v1431 = vpack.c.b16 %v1401, %v1400
        %v1432 = vpack.c.b16 %v1403, %v1402
        %v1433 = vpack.c.b16 %v1405, %v1404
        %v1434 = vpack.c.b16 %v1407, %v1406
        %v1435 = vpack.c.b16 %v1409, %v1408
        %v1436 = vpack.c.b16 %v1411, %v1410
        %v1437 = vpack.c.b16 %v1413, %v1412
        %v1438 = vpack.c.b16 %v1415, %v1414
        %v1439 = vpack.c.b16 %v1417, %v1416
        %v1440 = vpack.c.b16 %v1419, %v1418
        %v1441 = vpack.c.b16 %v1421, %v1420
        %v1442 = vpack.c.b16 %v1423, %v1422
        %v1443 = vpack.c.b16 %v1425, %v1424
        %v1444 = vpack.c.b16 %v1427, %v1426
        %v1445 = vpack.c.b16 %v1429, %v1428
        %v1447 = vsel %vm727, %v1430, 0
        %v1450 = vsel %vm727, %v1431, 0
        %v1453 = vsel %vm727, %v1432, 0
        %v1456 = vsel %vm727, %v1433, 0
        %v1459 = vsel %vm727, %v1434, 0
        %v1462 = vsel %vm727, %v1435, 0
        %v1465 = vsel %vm727, %v1436, 0
        %v1468 = vsel %vm727, %v1437, 0
        %v1471 = vsel %vm727, %v1438, 0
        %v1474 = vsel %vm727, %v1439, 0
        %v1477 = vsel %vm727, %v1440, 0
        %v1480 = vsel %vm727, %v1441, 0
        %v1483 = vsel %vm727, %v1442, 0
        %v1486 = vsel %vm727, %v1443, 0
        %v1489 = vsel %vm727, %v1444, 0
        %v1492 = vsel %vm727, %v1445, 0
        %v1495 = vsel %vm776, %v1397, 0
        %1497 = vmatprep.subr.bf16.mxu0 0
        %1498 = vmatpush1.bf16.msra.mxu0 %v1495
        %1499 = vmatprep.subr.bf16.mxu0 0
        %1500 = vmatpush1.bf16.msra.mxu0 0
        %1501 = vmatprep.subr.bf16.mxu0 0
        %1502 = vmatpush1.bf16.msra.mxu0 0
        %1503 = vmatprep.subr.bf16.mxu0 0
        %1504 = vmatpush1.bf16.msra.mxu0 0
        %1505 = vmatprep.subr.bf16.mxu0 0
        %1506 = vmatpush1.bf16.msra.mxu0 0
        %1507 = vmatprep.subr.bf16.mxu0 0
        %1508 = vmatpush1.bf16.msra.mxu0 0
        %1509 = vmatprep.subr.bf16.mxu0 0
        %1510 = vmatpush1.bf16.msra.mxu0 0
        %1511 = vmatprep.subr.bf16.mxu0 0
        %1512 = vmatpush1.bf16.msra.mxu0 0
        %1513 = vmatprep.subr.bf16.mxu0 0
        %1514 = vmatpush1.bf16.msra.mxu0 0
        %1515 = vmatprep.subr.bf16.mxu0 0
        %1516 = vmatpush1.bf16.msra.mxu0 0
        %1517 = vmatprep.subr.bf16.mxu0 0
        %1518 = vmatpush1.bf16.msra.mxu0 0
        %1519 = vmatprep.subr.bf16.mxu0 0
        %1520 = vmatpush1.bf16.msra.mxu0 0
        %1521 = vmatprep.subr.bf16.mxu0 0
        %1522 = vmatpush1.bf16.msra.mxu0 0
        %1523 = vmatprep.subr.bf16.mxu0 0
        %1524 = vmatpush1.bf16.msra.mxu0 0
        %1525 = vmatprep.subr.bf16.mxu0 0
        %1526 = vmatpush1.bf16.msra.mxu0 0
        %1527 = vmatprep.subr.bf16.mxu0 0
        %1528 = vmatpush1.bf16.msra.mxu0 0
        %1529 = vmatprep.mubr.bf16.mxu0 0
        %1530 = vmatmul.mubr.bf16.gmra.mrb[0].mxu0 %v1447
        %v1531 = vpop.f32.mrb[0].mxu0
        %v1532 = vadd.f32 0.0, %v1531
        %v1533 = vpop.f32.mrb[0].mxu0
        %v1534 = vpop.f32.mrb[0].mxu0
        %v1535 = vadd.f32 0.0, %v1534
        %v1536 = vpop.f32.mrb[0].mxu0
        %1537 = vmatprep.mubr.bf16.mxu0 0
        %1538 = vmatmul.mubr.bf16.gmra.mrb[0].mxu0 %v1450
        %v1539 = vpop.f32.mrb[0].mxu0
        %v1540 = vadd.f32 0.0, %v1539
        %v1541 = vpop.f32.mrb[0].mxu0
        %v1542 = vpop.f32.mrb[0].mxu0
        %v1543 = vadd.f32 0.0, %v1542
        %v1544 = vpop.f32.mrb[0].mxu0
        %1545 = vmatprep.mubr.bf16.mxu0 0
        %1546 = vmatmul.mubr.bf16.gmra.mrb[0].mxu0 %v1453
        %v1547 = vpop.f32.mrb[0].mxu0
        %v1548 = vadd.f32 0.0, %v1547
        %v1549 = vpop.f32.mrb[0].mxu0
        %v1550 = vpop.f32.mrb[0].mxu0
        %v1551 = vadd.f32 0.0, %v1550
        %v1552 = vpop.f32.mrb[0].mxu0
        %1553 = vmatprep.mubr.bf16.mxu0 0
        %1554 = vmatmul.mubr.bf16.gmra.mrb[0].mxu0 %v1456
        %v1555 = vpop.f32.mrb[0].mxu0
        %v1556 = vadd.f32 0.0, %v1555
        %v1557 = vpop.f32.mrb[0].mxu0
        %v1558 = vpop.f32.mrb[0].mxu0
        %v1559 = vadd.f32 0.0, %v1558
        %v1560 = vpop.f32.mrb[0].mxu0
        %1561 = vmatprep.mubr.bf16.mxu0 0
        %1562 = vmatmul.mubr.bf16.gmra.mrb[0].mxu0 %v1459
        %v1563 = vpop.f32.mrb[0].mxu0
        %v1564 = vadd.f32 0.0, %v1563
        %v1565 = vpop.f32.mrb[0].mxu0
        %v1566 = vpop.f32.mrb[0].mxu0
        %v1567 = vadd.f32 0.0, %v1566
        %v1568 = vpop.f32.mrb[0].mxu0
        %1569 = vmatprep.mubr.bf16.mxu0 0
        %1570 = vmatmul.mubr.bf16.gmra.mrb[0].mxu0 %v1462
        %v1571 = vpop.f32.mrb[0].mxu0
        %v1572 = vadd.f32 0.0, %v1571
        %v1573 = vpop.f32.mrb[0].mxu0
        %v1574 = vpop.f32.mrb[0].mxu0
        %v1575 = vadd.f32 0.0, %v1574
        %v1576 = vpop.f32.mrb[0].mxu0
        %1577 = vmatprep.mubr.bf16.mxu0 0
        %1578 = vmatmul.mubr.bf16.gmra.mrb[0].mxu0 %v1465
        %v1579 = vpop.f32.mrb[0].mxu0
        %v1580 = vadd.f32 0.0, %v1579
        %v1581 = vpop.f32.mrb[0].mxu0
        %v1582 = vpop.f32.mrb[0].mxu0
        %v1583 = vadd.f32 0.0, %v1582
        %v1584 = vpop.f32.mrb[0].mxu0
        %1585 = vmatprep.mubr.bf16.mxu0 0
        %1586 = vmatmul.mubr.bf16.gmra.mrb[0].mxu0 %v1468
        %v1587 = vpop.f32.mrb[0].mxu0
        %v1588 = vadd.f32 0.0, %v1587
        %v1589 = vpop.f32.mrb[0].mxu0
        %v1590 = vpop.f32.mrb[0].mxu0
        %v1591 = vadd.f32 0.0, %v1590
        %v1592 = vpop.f32.mrb[0].mxu0
        %1593 = vmatprep.mubr.bf16.mxu0 0
        %1594 = vmatmul.mubr.bf16.gmra.mrb[0].mxu0 %v1471
        %v1595 = vpop.f32.mrb[0].mxu0
        %v1596 = vadd.f32 0.0, %v1595
        %v1597 = vpop.f32.mrb[0].mxu0
        %v1598 = vpop.f32.mrb[0].mxu0
        %v1599 = vadd.f32 0.0, %v1598
        %v1600 = vpop.f32.mrb[0].mxu0
        %1601 = vmatprep.mubr.bf16.mxu0 0
        %1602 = vmatmul.mubr.bf16.gmra.mrb[0].mxu0 %v1474
        %v1603 = vpop.f32.mrb[0].mxu0
        %v1604 = vadd.f32 0.0, %v1603
        %v1605 = vpop.f32.mrb[0].mxu0
        %v1606 = vpop.f32.mrb[0].mxu0
        %v1607 = vadd.f32 0.0, %v1606
        %v1608 = vpop.f32.mrb[0].mxu0
        %1609 = vmatprep.mubr.bf16.mxu0 0
        %1610 = vmatmul.mubr.bf16.gmra.mrb[0].mxu0 %v1477
        %v1611 = vpop.f32.mrb[0].mxu0
        %v1612 = vadd.f32 0.0, %v1611
        %v1613 = vpop.f32.mrb[0].mxu0
        %v1614 = vpop.f32.mrb[0].mxu0
        %v1615 = vadd.f32 0.0, %v1614
        %v1616 = vpop.f32.mrb[0].mxu0
        %1617 = vmatprep.mubr.bf16.mxu0 0
        %1618 = vmatmul.mubr.bf16.gmra.mrb[0].mxu0 %v1480
        %v1619 = vpop.f32.mrb[0].mxu0
        %v1620 = vadd.f32 0.0, %v1619
        %v1621 = vpop.f32.mrb[0].mxu0
        %v1622 = vpop.f32.mrb[0].mxu0
        %v1623 = vadd.f32 0.0, %v1622
        %v1624 = vpop.f32.mrb[0].mxu0
        %1625 = vmatprep.mubr.bf16.mxu0 0
        %1626 = vmatmul.mubr.bf16.gmra.mrb[0].mxu0 %v1483
        %v1627 = vpop.f32.mrb[0].mxu0
        %v1628 = vadd.f32 0.0, %v1627
        %v1629 = vpop.f32.mrb[0].mxu0
        %v1630 = vpop.f32.mrb[0].mxu0
        %v1631 = vadd.f32 0.0, %v1630
        %v1632 = vpop.f32.mrb[0].mxu0
        %1633 = vmatprep.mubr.bf16.mxu0 0
        %1634 = vmatmul.mubr.bf16.gmra.mrb[0].mxu0 %v1486
        %v1635 = vpop.f32.mrb[0].mxu0
        %v1636 = vadd.f32 0.0, %v1635
        %v1637 = vpop.f32.mrb[0].mxu0
        %v1638 = vpop.f32.mrb[0].mxu0
        %v1639 = vadd.f32 0.0, %v1638
        %v1640 = vpop.f32.mrb[0].mxu0
        %1641 = vmatprep.mubr.bf16.mxu0 0
        %1642 = vmatmul.mubr.bf16.gmra.mrb[0].mxu0 %v1489
        %v1643 = vpop.f32.mrb[0].mxu0
        %v1644 = vadd.f32 0.0, %v1643
        %v1645 = vpop.f32.mrb[0].mxu0
        %v1646 = vpop.f32.mrb[0].mxu0
        %v1647 = vadd.f32 0.0, %v1646
        %v1648 = vpop.f32.mrb[0].mxu0
        %1649 = vmatprep.mubr.bf16.mxu0 0
        %1650 = vmatmul.mubr.bf16.gmra.mrb[0].mxu0 %v1492
        %v1651 = vpop.f32.mrb[0].mxu0
        %v1652 = vadd.f32 0.0, %v1651
        %v1653 = vpop.f32.mrb[0].mxu0
        %v1654 = vpop.f32.mrb[0].mxu0
        %v1655 = vadd.f32 0.0, %v1654
        %v1656 = vpop.f32.mrb[0].mxu0
        %1657 = vdwg.mxu0
        %v1658 = vadd.f32 %v1107, %v1532
        %v1659 = vadd.f32 %v1110, %v1535
        %v1660 = vadd.f32 %v1115, %v1540
        %v1661 = vadd.f32 %v1118, %v1543
        %v1662 = vadd.f32 %v1123, %v1548
        %v1663 = vadd.f32 %v1126, %v1551
        %v1664 = vadd.f32 %v1131, %v1556
        %v1665 = vadd.f32 %v1134, %v1559
        %v1666 = vadd.f32 %v1139, %v1564
        %v1667 = vadd.f32 %v1142, %v1567
        %v1668 = vadd.f32 %v1147, %v1572
        %v1669 = vadd.f32 %v1150, %v1575
        %v1670 = vadd.f32 %v1155, %v1580
        %v1671 = vadd.f32 %v1158, %v1583
        %v1672 = vadd.f32 %v1163, %v1588
        %v1673 = vadd.f32 %v1166, %v1591
        %v1674 = vadd.f32 %v1171, %v1596
        %v1675 = vadd.f32 %v1174, %v1599
        %v1676 = vadd.f32 %v1179, %v1604
        %v1677 = vadd.f32 %v1182, %v1607
        %v1678 = vadd.f32 %v1187, %v1612
        %v1679 = vadd.f32 %v1190, %v1615
        %v1680 = vadd.f32 %v1195, %v1620
        %v1681 = vadd.f32 %v1198, %v1623
        %v1682 = vadd.f32 %v1203, %v1628
        %v1683 = vadd.f32 %v1206, %v1631
        %v1684 = vadd.f32 %v1211, %v1636
        %v1685 = vadd.f32 %v1214, %v1639
        %v1686 = vadd.f32 %v1219, %v1644
        %v1687 = vadd.f32 %v1222, %v1647
        %v1688 = vadd.f32 %v1227, %v1652
        %v1689 = vadd.f32 %v1230, %v1655
        %s1690 = scalar_lea.vmem %s237, 12
        %v1691 = vld [vmem:[%s1690] sm:$0xf]
        %v1692 = vld [vmem:[%s1690 + $0x4] sm:$0xf]
        %v1693 = vld [vmem:[%s1690 + $0xc] sm:$0xf]
        %v1694 = vld [vmem:[%s1690 + $0x10] sm:$0xf]
        %v1695 = vld [vmem:[%s1690 + $0x18] sm:$0xf]
        %v1696 = vld [vmem:[%s1690 + $0x1c] sm:$0xf]
        %v1697 = vld [vmem:[%s1690 + $0x24] sm:$0xf]
        %v1698 = vld [vmem:[%s1690 + $0x28] sm:$0xf]
        %v1699 = vld [vmem:[%s1690 + $0x30] sm:$0xf]
        %v1700 = vld [vmem:[%s1690 + $0x34] sm:$0xf]
        %v1701 = vld [vmem:[%s1690 + $0x3c] sm:$0xf]
        %v1702 = vld [vmem:[%s1690 + $0x40] sm:$0xf]
        %v1703 = vld [vmem:[%s1690 + $0x48] sm:$0xf]
        %v1704 = vld [vmem:[%s1690 + $0x4c] sm:$0xf]
        %v1705 = vld [vmem:[%s1690 + $0x54] sm:$0xf]
        %v1706 = vld [vmem:[%s1690 + $0x58] sm:$0xf]
        %v1707 = vld [vmem:[%s1690 + $0x60] sm:$0xf]
        %v1708 = vld [vmem:[%s1690 + $0x64] sm:$0xf]
        %v1709 = vld [vmem:[%s1690 + $0x6c] sm:$0xf]
        %v1710 = vld [vmem:[%s1690 + $0x70] sm:$0xf]
        %v1711 = vld [vmem:[%s1690 + $0x78] sm:$0xf]
        %v1712 = vld [vmem:[%s1690 + $0x7c] sm:$0xf]
        %v1713 = vld [vmem:[%s1690 + $0x84] sm:$0xf]
        %v1714 = vld [vmem:[%s1690 + $0x88] sm:$0xf]
        %v1715 = vld [vmem:[%s1690 + $0x90] sm:$0xf]
        %v1716 = vld [vmem:[%s1690 + $0x94] sm:$0xf]
        %v1717 = vld [vmem:[%s1690 + $0x9c] sm:$0xf]
        %v1718 = vld [vmem:[%s1690 + $0xa0] sm:$0xf]
        %v1719 = vld [vmem:[%s1690 + $0xa8] sm:$0xf]
        %v1720 = vld [vmem:[%s1690 + $0xac] sm:$0xf]
        %v1721 = vld [vmem:[%s1690 + $0xb4] sm:$0xf]
        %v1722 = vld [vmem:[%s1690 + $0xb8] sm:$0xf]
        %s1723 = scalar_lea.vmem %s1, 6
        %v1724 = vld [vmem:[%s1723] sm:$0x3]
        %v1757 = vunpack.c.l.b16 %v1691
        %v1758 = vunpack.c.l.b16 %v1692
        %v1759 = vunpack.c.l.b16 %v1693
        %v1760 = vunpack.c.l.b16 %v1694
        %v1761 = vunpack.c.l.b16 %v1695
        %v1762 = vunpack.c.l.b16 %v1696
        %v1763 = vunpack.c.l.b16 %v1697
        %v1764 = vunpack.c.l.b16 %v1698
        %v1765 = vunpack.c.l.b16 %v1699
        %v1766 = vunpack.c.l.b16 %v1700
        %v1767 = vunpack.c.l.b16 %v1701
        %v1768 = vunpack.c.l.b16 %v1702
        %v1769 = vunpack.c.l.b16 %v1703
        %v1770 = vunpack.c.l.b16 %v1704
        %v1771 = vunpack.c.l.b16 %v1705
        %v1772 = vunpack.c.l.b16 %v1706
        %v1773 = vunpack.c.l.b16 %v1707
        %v1774 = vunpack.c.l.b16 %v1708
        %v1775 = vunpack.c.l.b16 %v1709
        %v1776 = vunpack.c.l.b16 %v1710
        %v1777 = vunpack.c.l.b16 %v1711
        %v1778 = vunpack.c.l.b16 %v1712
        %v1779 = vunpack.c.l.b16 %v1713
        %v1780 = vunpack.c.l.b16 %v1714
        %v1781 = vunpack.c.l.b16 %v1715
        %v1782 = vunpack.c.l.b16 %v1716
        %v1783 = vunpack.c.l.b16 %v1717
        %v1784 = vunpack.c.l.b16 %v1718
        %v1785 = vunpack.c.l.b16 %v1719
        %v1786 = vunpack.c.l.b16 %v1720
        %v1787 = vunpack.c.l.b16 %v1721
        %v1788 = vunpack.c.l.b16 %v1722
        %v1789 = vpack.c.b16 %v1758, %v1757
        %v1790 = vpack.c.b16 %v1760, %v1759
        %v1791 = vpack.c.b16 %v1762, %v1761
        %v1792 = vpack.c.b16 %v1764, %v1763
        %v1793 = vpack.c.b16 %v1766, %v1765
        %v1794 = vpack.c.b16 %v1768, %v1767
        %v1795 = vpack.c.b16 %v1770, %v1769
        %v1796 = vpack.c.b16 %v1772, %v1771
        %v1797 = vpack.c.b16 %v1774, %v1773
        %v1798 = vpack.c.b16 %v1776, %v1775
        %v1799 = vpack.c.b16 %v1778, %v1777
        %v1800 = vpack.c.b16 %v1780, %v1779
        %v1801 = vpack.c.b16 %v1782, %v1781
        %v1802 = vpack.c.b16 %v1784, %v1783
        %v1803 = vpack.c.b16 %v1786, %v1785
        %v1804 = vpack.c.b16 %v1788, %v1787
        %v1806 = vsel %vm727, %v1789, 0
        %v1809 = vsel %vm727, %v1790, 0
        %v1812 = vsel %vm727, %v1791, 0
        %v1815 = vsel %vm727, %v1792, 0
        %v1818 = vsel %vm727, %v1793, 0
        %v1821 = vsel %vm727, %v1794, 0
        %v1824 = vsel %vm727, %v1795, 0
        %v1827 = vsel %vm727, %v1796, 0
        %v1830 = vsel %vm727, %v1797, 0
        %v1833 = vsel %vm727, %v1798, 0
        %v1836 = vsel %vm727, %v1799, 0
        %v1839 = vsel %vm727, %v1800, 0
        %v1842 = vsel %vm727, %v1801, 0
        %v1845 = vsel %vm727, %v1802, 0
        %v1848 = vsel %vm727, %v1803, 0
        %v1851 = vsel %vm727, %v1804, 0
        %v1854 = vsel %vm776, %v1724, 0
        %1856 = vmatprep.subr.bf16.mxu0 0
        %1857 = vmatpush1.bf16.msra.mxu0 %v1854
        %1858 = vmatprep.subr.bf16.mxu0 0
        %1859 = vmatpush1.bf16.msra.mxu0 0
        %1860 = vmatprep.subr.bf16.mxu0 0
        %1861 = vmatpush1.bf16.msra.mxu0 0
        %1862 = vmatprep.subr.bf16.mxu0 0
        %1863 = vmatpush1.bf16.msra.mxu0 0
        %1864 = vmatprep.subr.bf16.mxu0 0
        %1865 = vmatpush1.bf16.msra.mxu0 0
        %1866 = vmatprep.subr.bf16.mxu0 0
        %1867 = vmatpush1.bf16.msra.mxu0 0
        %1868 = vmatprep.subr.bf16.mxu0 0
        %1869 = vmatpush1.bf16.msra.mxu0 0
        %1870 = vmatprep.subr.bf16.mxu0 0
        %1871 = vmatpush1.bf16.msra.mxu0 0
        %1872 = vmatprep.subr.bf16.mxu0 0
        %1873 = vmatpush1.bf16.msra.mxu0 0
        %1874 = vmatprep.subr.bf16.mxu0 0
        %1875 = vmatpush1.bf16.msra.mxu0 0
        %1876 = vmatprep.subr.bf16.mxu0 0
        %1877 = vmatpush1.bf16.msra.mxu0 0
        %1878 = vmatprep.subr.bf16.mxu0 0
        %1879 = vmatpush1.bf16.msra.mxu0 0
        %1880 = vmatprep.subr.bf16.mxu0 0
        %1881 = vmatpush1.bf16.msra.mxu0 0
        %1882 = vmatprep.subr.bf16.mxu0 0
        %1883 = vmatpush1.bf16.msra.mxu0 0
        %1884 = vmatprep.subr.bf16.mxu0 0
        %1885 = vmatpush1.bf16.msra.mxu0 0
        %1886 = vmatprep.subr.bf16.mxu0 0
        %1887 = vmatpush1.bf16.msra.mxu0 0
        %1888 = vmatprep.mubr.bf16.mxu0 0
        %1889 = vmatmul.mubr.bf16.gmra.mrb[0].mxu0 %v1806
        %v1890 = vpop.f32.mrb[0].mxu0
        %v1891 = vadd.f32 0.0, %v1890
        %v1892 = vpop.f32.mrb[0].mxu0
        %v1893 = vpop.f32.mrb[0].mxu0
        %v1894 = vadd.f32 0.0, %v1893
        %v1895 = vpop.f32.mrb[0].mxu0
        %1896 = vmatprep.mubr.bf16.mxu0 0
        %1897 = vmatmul.mubr.bf16.gmra.mrb[0].mxu0 %v1809
        %v1898 = vpop.f32.mrb[0].mxu0
        %v1899 = vadd.f32 0.0, %v1898
        %v1900 = vpop.f32.mrb[0].mxu0
        %v1901 = vpop.f32.mrb[0].mxu0
        %v1902 = vadd.f32 0.0, %v1901
        %v1903 = vpop.f32.mrb[0].mxu0
        %1904 = vmatprep.mubr.bf16.mxu0 0
        %1905 = vmatmul.mubr.bf16.gmra.mrb[0].mxu0 %v1812
        %v1906 = vpop.f32.mrb[0].mxu0
        %v1907 = vadd.f32 0.0, %v1906
        %v1908 = vpop.f32.mrb[0].mxu0
        %v1909 = vpop.f32.mrb[0].mxu0
        %v1910 = vadd.f32 0.0, %v1909
        %v1911 = vpop.f32.mrb[0].mxu0
        %1912 = vmatprep.mubr.bf16.mxu0 0
        %1913 = vmatmul.mubr.bf16.gmra.mrb[0].mxu0 %v1815
        %v1914 = vpop.f32.mrb[0].mxu0
        %v1915 = vadd.f32 0.0, %v1914
        %v1916 = vpop.f32.mrb[0].mxu0
        %v1917 = vpop.f32.mrb[0].mxu0
        %v1918 = vadd.f32 0.0, %v1917
        %v1919 = vpop.f32.mrb[0].mxu0
        %1920 = vmatprep.mubr.bf16.mxu0 0
        %1921 = vmatmul.mubr.bf16.gmra.mrb[0].mxu0 %v1818
        %v1922 = vpop.f32.mrb[0].mxu0
        %v1923 = vadd.f32 0.0, %v1922
        %v1924 = vpop.f32.mrb[0].mxu0
        %v1925 = vpop.f32.mrb[0].mxu0
        %v1926 = vadd.f32 0.0, %v1925
        %v1927 = vpop.f32.mrb[0].mxu0
        %1928 = vmatprep.mubr.bf16.mxu0 0
        %1929 = vmatmul.mubr.bf16.gmra.mrb[0].mxu0 %v1821
        %v1930 = vpop.f32.mrb[0].mxu0
        %v1931 = vadd.f32 0.0, %v1930
        %v1932 = vpop.f32.mrb[0].mxu0
        %v1933 = vpop.f32.mrb[0].mxu0
        %v1934 = vadd.f32 0.0, %v1933
        %v1935 = vpop.f32.mrb[0].mxu0
        %1936 = vmatprep.mubr.bf16.mxu0 0
        %1937 = vmatmul.mubr.bf16.gmra.mrb[0].mxu0 %v1824
        %v1938 = vpop.f32.mrb[0].mxu0
        %v1939 = vadd.f32 0.0, %v1938
        %v1940 = vpop.f32.mrb[0].mxu0
        %v1941 = vpop.f32.mrb[0].mxu0
        %v1942 = vadd.f32 0.0, %v1941
        %v1943 = vpop.f32.mrb[0].mxu0
        %1944 = vmatprep.mubr.bf16.mxu0 0
        %1945 = vmatmul.mubr.bf16.gmra.mrb[0].mxu0 %v1827
        %v1946 = vpop.f32.mrb[0].mxu0
        %v1947 = vadd.f32 0.0, %v1946
        %v1948 = vpop.f32.mrb[0].mxu0
        %v1949 = vpop.f32.mrb[0].mxu0
        %v1950 = vadd.f32 0.0, %v1949
        %v1951 = vpop.f32.mrb[0].mxu0
        %1952 = vmatprep.mubr.bf16.mxu0 0
        %1953 = vmatmul.mubr.bf16.gmra.mrb[0].mxu0 %v1830
        %v1954 = vpop.f32.mrb[0].mxu0
        %v1955 = vadd.f32 0.0, %v1954
        %v1956 = vpop.f32.mrb[0].mxu0
        %v1957 = vpop.f32.mrb[0].mxu0
        %v1958 = vadd.f32 0.0, %v1957
        %v1959 = vpop.f32.mrb[0].mxu0
        %1960 = vmatprep.mubr.bf16.mxu0 0
        %1961 = vmatmul.mubr.bf16.gmra.mrb[0].mxu0 %v1833
        %v1962 = vpop.f32.mrb[0].mxu0
        %v1963 = vadd.f32 0.0, %v1962
        %v1964 = vpop.f32.mrb[0].mxu0
        %v1965 = vpop.f32.mrb[0].mxu0
        %v1966 = vadd.f32 0.0, %v1965
        %v1967 = vpop.f32.mrb[0].mxu0
        %1968 = vmatprep.mubr.bf16.mxu0 0
        %1969 = vmatmul.mubr.bf16.gmra.mrb[0].mxu0 %v1836
        %v1970 = vpop.f32.mrb[0].mxu0
        %v1971 = vadd.f32 0.0, %v1970
        %v1972 = vpop.f32.mrb[0].mxu0
        %v1973 = vpop.f32.mrb[0].mxu0
        %v1974 = vadd.f32 0.0, %v1973
        %v1975 = vpop.f32.mrb[0].mxu0
        %1976 = vmatprep.mubr.bf16.mxu0 0
        %1977 = vmatmul.mubr.bf16.gmra.mrb[0].mxu0 %v1839
        %v1978 = vpop.f32.mrb[0].mxu0
        %v1979 = vadd.f32 0.0, %v1978
        %v1980 = vpop.f32.mrb[0].mxu0
        %v1981 = vpop.f32.mrb[0].mxu0
        %v1982 = vadd.f32 0.0, %v1981
        %v1983 = vpop.f32.mrb[0].mxu0
        %1984 = vmatprep.mubr.bf16.mxu0 0
        %1985 = vmatmul.mubr.bf16.gmra.mrb[0].mxu0 %v1842
        %v1986 = vpop.f32.mrb[0].mxu0
        %v1987 = vadd.f32 0.0, %v1986
        %v1988 = vpop.f32.mrb[0].mxu0
        %v1989 = vpop.f32.mrb[0].mxu0
        %v1990 = vadd.f32 0.0, %v1989
        %v1991 = vpop.f32.mrb[0].mxu0
        %1992 = vmatprep.mubr.bf16.mxu0 0
        %1993 = vmatmul.mubr.bf16.gmra.mrb[0].mxu0 %v1845
        %v1994 = vpop.f32.mrb[0].mxu0
        %v1995 = vadd.f32 0.0, %v1994
        %v1996 = vpop.f32.mrb[0].mxu0
        %v1997 = vpop.f32.mrb[0].mxu0
        %v1998 = vadd.f32 0.0, %v1997
        %v1999 = vpop.f32.mrb[0].mxu0
        %2000 = vmatprep.mubr.bf16.mxu0 0
        %2001 = vmatmul.mubr.bf16.gmra.mrb[0].mxu0 %v1848
        %v2002 = vpop.f32.mrb[0].mxu0
        %v2003 = vadd.f32 0.0, %v2002
        %v2004 = vpop.f32.mrb[0].mxu0
        %v2005 = vpop.f32.mrb[0].mxu0
        %v2006 = vadd.f32 0.0, %v2005
        %v2007 = vpop.f32.mrb[0].mxu0
        %2008 = vmatprep.mubr.bf16.mxu0 0
        %2009 = vmatmul.mubr.bf16.gmra.mrb[0].mxu0 %v1851
        %v2010 = vpop.f32.mrb[0].mxu0
        %v2011 = vadd.f32 0.0, %v2010
        %v2012 = vpop.f32.mrb[0].mxu0
        %v2013 = vpop.f32.mrb[0].mxu0
        %v2014 = vadd.f32 0.0, %v2013
        %v2015 = vpop.f32.mrb[0].mxu0
        %2016 = vdwg.mxu0
        %v2017 = vadd.f32 %v1658, %v1891
        %v2018 = vadd.f32 %v1659, %v1894
        %v2019 = vadd.f32 %v1660, %v1899
        %v2020 = vadd.f32 %v1661, %v1902
        %v2021 = vadd.f32 %v1662, %v1907
        %v2022 = vadd.f32 %v1663, %v1910
        %v2023 = vadd.f32 %v1664, %v1915
        %v2024 = vadd.f32 %v1665, %v1918
        %v2025 = vadd.f32 %v1666, %v1923
        %v2026 = vadd.f32 %v1667, %v1926
        %v2027 = vadd.f32 %v1668, %v1931
        %v2028 = vadd.f32 %v1669, %v1934
        %v2029 = vadd.f32 %v1670, %v1939
        %v2030 = vadd.f32 %v1671, %v1942
        %v2031 = vadd.f32 %v1672, %v1947
        %v2032 = vadd.f32 %v1673, %v1950
        %v2033 = vadd.f32 %v1674, %v1955
        %v2034 = vadd.f32 %v1675, %v1958
        %v2035 = vadd.f32 %v1676, %v1963
        %v2036 = vadd.f32 %v1677, %v1966
        %v2037 = vadd.f32 %v1678, %v1971
        %v2038 = vadd.f32 %v1679, %v1974
        %v2039 = vadd.f32 %v1680, %v1979
        %v2040 = vadd.f32 %v1681, %v1982
        %v2041 = vadd.f32 %v1682, %v1987
        %v2042 = vadd.f32 %v1683, %v1990
        %v2043 = vadd.f32 %v1684, %v1995
        %v2044 = vadd.f32 %v1685, %v1998
        %v2045 = vadd.f32 %v1686, %v2003
        %v2046 = vadd.f32 %v1687, %v2006
        %v2047 = vadd.f32 %v1688, %v2011
        %v2048 = vadd.f32 %v1689, %v2014
        %v2049 = vld [vmem:[%s1690] sm:$0xf]
        %v2050 = vld [vmem:[%s1690 + $0x4] sm:$0xf]
        %v2051 = vld [vmem:[%s1690 + $0x8] sm:$0x1]
        %v2052 = vld [vmem:[%s1690 + $0xc] sm:$0xf]
        %v2053 = vld [vmem:[%s1690 + $0x10] sm:$0xf]
        %v2054 = vld [vmem:[%s1690 + $0x14] sm:$0x1]
        %v2055 = vld [vmem:[%s1690 + $0x18] sm:$0xf]
        %v2056 = vld [vmem:[%s1690 + $0x1c] sm:$0xf]
        %v2057 = vld [vmem:[%s1690 + $0x20] sm:$0x1]
        %v2058 = vld [vmem:[%s1690 + $0x24] sm:$0xf]
        %v2059 = vld [vmem:[%s1690 + $0x28] sm:$0xf]
        %v2060 = vld [vmem:[%s1690 + $0x2c] sm:$0x1]
        %v2061 = vld [vmem:[%s1690 + $0x30] sm:$0xf]
        %v2062 = vld [vmem:[%s1690 + $0x34] sm:$0xf]
        %v2063 = vld [vmem:[%s1690 + $0x38] sm:$0x1]
        %v2064 = vld [vmem:[%s1690 + $0x3c] sm:$0xf]
        %v2065 = vld [vmem:[%s1690 + $0x40] sm:$0xf]
        %v2066 = vld [vmem:[%s1690 + $0x44] sm:$0x1]
        %v2067 = vld [vmem:[%s1690 + $0x48] sm:$0xf]
        %v2068 = vld [vmem:[%s1690 + $0x4c] sm:$0xf]
        %v2069 = vld [vmem:[%s1690 + $0x50] sm:$0x1]
        %v2070 = vld [vmem:[%s1690 + $0x54] sm:$0xf]
        %v2071 = vld [vmem:[%s1690 + $0x58] sm:$0xf]
        %v2072 = vld [vmem:[%s1690 + $0x5c] sm:$0x1]
        %v2073 = vld [vmem:[%s1690 + $0x60] sm:$0xf]
        %v2074 = vld [vmem:[%s1690 + $0x64] sm:$0xf]
        %v2075 = vld [vmem:[%s1690 + $0x68] sm:$0x1]
        %v2076 = vld [vmem:[%s1690 + $0x6c] sm:$0xf]
        %v2077 = vld [vmem:[%s1690 + $0x70] sm:$0xf]
        %v2078 = vld [vmem:[%s1690 + $0x74] sm:$0x1]
        %v2079 = vld [vmem:[%s1690 + $0x78] sm:$0xf]
        %v2080 = vld [vmem:[%s1690 + $0x7c] sm:$0xf]
        %v2081 = vld [vmem:[%s1690 + $0x80] sm:$0x1]
        %v2082 = vld [vmem:[%s1690 + $0x84] sm:$0xf]
        %v2083 = vld [vmem:[%s1690 + $0x88] sm:$0xf]
        %v2084 = vld [vmem:[%s1690 + $0x8c] sm:$0x1]
        %v2085 = vld [vmem:[%s1690 + $0x90] sm:$0xf]
        %v2086 = vld [vmem:[%s1690 + $0x94] sm:$0xf]
        %v2087 = vld [vmem:[%s1690 + $0x98] sm:$0x1]
        %v2088 = vld [vmem:[%s1690 + $0x9c] sm:$0xf]
        %v2089 = vld [vmem:[%s1690 + $0xa0] sm:$0xf]
        %v2090 = vld [vmem:[%s1690 + $0xa4] sm:$0x1]
        %v2091 = vld [vmem:[%s1690 + $0xa8] sm:$0xf]
        %v2092 = vld [vmem:[%s1690 + $0xac] sm:$0xf]
        %v2093 = vld [vmem:[%s1690 + $0xb0] sm:$0x1]
        %v2094 = vld [vmem:[%s1690 + $0xb4] sm:$0xf]
        %v2095 = vld [vmem:[%s1690 + $0xb8] sm:$0xf]
        %v2096 = vld [vmem:[%s1690 + $0xbc] sm:$0x1]
        %v2098 = vshrl.u32 %v2049, 16
        %v2100 = vrot.slane %v2098, 4
        %v2101 = vshll.u32 %v2049, 16
        %v2103 = vrot.slane %v2101, 5
        %v2104 = vor.u32 %v2100, %v2103
        %v2105 = vrot.slane %v2104, 4
        %v2107 = vshll.u32 %v2050, 16
        %v2109 = vrot.slane %v2107, 5
        %v2110 = vsel %vm292, %v2105, %v2109
        %v2111 = vshrl.u32 %v2050, 16
        %v2113 = vrot.slane %v2111, 4
        %v2114 = vor.u32 %v2113, %v2109
        %v2115 = vrot.slane %v2114, 4
        %v2117 = vshll.u32 %v2051, 16
        %v2119 = vrot.slane %v2117, 5
        %v2120 = vsel %vm292, %v2115, %v2119
        %v2122 = vshrl.u32 %v2052, 16
        %v2124 = vrot.slane %v2122, 4
        %v2125 = vshll.u32 %v2052, 16
        %v2127 = vrot.slane %v2125, 5
        %v2128 = vor.u32 %v2124, %v2127
        %v2129 = vrot.slane %v2128, 4
        %v2131 = vshll.u32 %v2053, 16
        %v2133 = vrot.slane %v2131, 5
        %v2134 = vsel %vm292, %v2129, %v2133
        %v2135 = vshrl.u32 %v2053, 16
        %v2137 = vrot.slane %v2135, 4
        %v2138 = vor.u32 %v2137, %v2133
        %v2139 = vrot.slane %v2138, 4
        %v2141 = vshll.u32 %v2054, 16
        %v2143 = vrot.slane %v2141, 5
        %v2144 = vsel %vm292, %v2139, %v2143
        %v2146 = vshrl.u32 %v2055, 16
        %v2148 = vrot.slane %v2146, 4
        %v2149 = vshll.u32 %v2055, 16
        %v2151 = vrot.slane %v2149, 5
        %v2152 = vor.u32 %v2148, %v2151
        %v2153 = vrot.slane %v2152, 4
        %v2155 = vshll.u32 %v2056, 16
        %v2157 = vrot.slane %v2155, 5
        %v2158 = vsel %vm292, %v2153, %v2157
        %v2159 = vshrl.u32 %v2056, 16
        %v2161 = vrot.slane %v2159, 4
        %v2162 = vor.u32 %v2161, %v2157
        %v2163 = vrot.slane %v2162, 4
        %v2165 = vshll.u32 %v2057, 16
        %v2167 = vrot.slane %v2165, 5
        %v2168 = vsel %vm292, %v2163, %v2167
        %v2170 = vshrl.u32 %v2058, 16
        %v2172 = vrot.slane %v2170, 4
        %v2173 = vshll.u32 %v2058, 16
        %v2175 = vrot.slane %v2173, 5
        %v2176 = vor.u32 %v2172, %v2175
        %v2177 = vrot.slane %v2176, 4
        %v2179 = vshll.u32 %v2059, 16
        %v2181 = vrot.slane %v2179, 5
        %v2182 = vsel %vm292, %v2177, %v2181
        %v2183 = vshrl.u32 %v2059, 16
        %v2185 = vrot.slane %v2183, 4
        %v2186 = vor.u32 %v2185, %v2181
        %v2187 = vrot.slane %v2186, 4
        %v2189 = vshll.u32 %v2060, 16
        %v2191 = vrot.slane %v2189, 5
        %v2192 = vsel %vm292, %v2187, %v2191
        %v2194 = vshrl.u32 %v2061, 16
        %v2196 = vrot.slane %v2194, 4
        %v2197 = vshll.u32 %v2061, 16
        %v2199 = vrot.slane %v2197, 5
        %v2200 = vor.u32 %v2196, %v2199
        %v2201 = vrot.slane %v2200, 4
        %v2203 = vshll.u32 %v2062, 16
        %v2205 = vrot.slane %v2203, 5
        %v2206 = vsel %vm292, %v2201, %v2205
        %v2207 = vshrl.u32 %v2062, 16
        %v2209 = vrot.slane %v2207, 4
        %v2210 = vor.u32 %v2209, %v2205
        %v2211 = vrot.slane %v2210, 4
        %v2213 = vshll.u32 %v2063, 16
        %v2215 = vrot.slane %v2213, 5
        %v2216 = vsel %vm292, %v2211, %v2215
        %v2218 = vshrl.u32 %v2064, 16
        %v2220 = vrot.slane %v2218, 4
        %v2221 = vshll.u32 %v2064, 16
        %v2223 = vrot.slane %v2221, 5
        %v2224 = vor.u32 %v2220, %v2223
        %v2225 = vrot.slane %v2224, 4
        %v2227 = vshll.u32 %v2065, 16
        %v2229 = vrot.slane %v2227, 5
        %v2230 = vsel %vm292, %v2225, %v2229
        %v2231 = vshrl.u32 %v2065, 16
        %v2233 = vrot.slane %v2231, 4
        %v2234 = vor.u32 %v2233, %v2229
        %v2235 = vrot.slane %v2234, 4
        %v2237 = vshll.u32 %v2066, 16
        %v2239 = vrot.slane %v2237, 5
        %v2240 = vsel %vm292, %v2235, %v2239
        %v2242 = vshrl.u32 %v2067, 16
        %v2244 = vrot.slane %v2242, 4
        %v2245 = vshll.u32 %v2067, 16
        %v2247 = vrot.slane %v2245, 5
        %v2248 = vor.u32 %v2244, %v2247
        %v2249 = vrot.slane %v2248, 4
        %v2251 = vshll.u32 %v2068, 16
        %v2253 = vrot.slane %v2251, 5
        %v2254 = vsel %vm292, %v2249, %v2253
        %v2255 = vshrl.u32 %v2068, 16
        %v2257 = vrot.slane %v2255, 4
        %v2258 = vor.u32 %v2257, %v2253
        %v2259 = vrot.slane %v2258, 4
        %v2261 = vshll.u32 %v2069, 16
        %v2263 = vrot.slane %v2261, 5
        %v2264 = vsel %vm292, %v2259, %v2263
        %v2266 = vshrl.u32 %v2070, 16
        %v2268 = vrot.slane %v2266, 4
        %v2269 = vshll.u32 %v2070, 16
        %v2271 = vrot.slane %v2269, 5
        %v2272 = vor.u32 %v2268, %v2271
        %v2273 = vrot.slane %v2272, 4
        %v2275 = vshll.u32 %v2071, 16
        %v2277 = vrot.slane %v2275, 5
        %v2278 = vsel %vm292, %v2273, %v2277
        %v2279 = vshrl.u32 %v2071, 16
        %v2281 = vrot.slane %v2279, 4
        %v2282 = vor.u32 %v2281, %v2277
        %v2283 = vrot.slane %v2282, 4
        %v2285 = vshll.u32 %v2072, 16
        %v2287 = vrot.slane %v2285, 5
        %v2288 = vsel %vm292, %v2283, %v2287
        %v2290 = vshrl.u32 %v2073, 16
        %v2292 = vrot.slane %v2290, 4
        %v2293 = vshll.u32 %v2073, 16
        %v2295 = vrot.slane %v2293, 5
        %v2296 = vor.u32 %v2292, %v2295
        %v2297 = vrot.slane %v2296, 4
        %v2299 = vshll.u32 %v2074, 16
        %v2301 = vrot.slane %v2299, 5
        %v2302 = vsel %vm292, %v2297, %v2301
        %v2303 = vshrl.u32 %v2074, 16
        %v2305 = vrot.slane %v2303, 4
        %v2306 = vor.u32 %v2305, %v2301
        %v2307 = vrot.slane %v2306, 4
        %v2309 = vshll.u32 %v2075, 16
        %v2311 = vrot.slane %v2309, 5
        %v2312 = vsel %vm292, %v2307, %v2311
        %v2314 = vshrl.u32 %v2076, 16
        %v2316 = vrot.slane %v2314, 4
        %v2317 = vshll.u32 %v2076, 16
        %v2319 = vrot.slane %v2317, 5
        %v2320 = vor.u32 %v2316, %v2319
        %v2321 = vrot.slane %v2320, 4
        %v2323 = vshll.u32 %v2077, 16
        %v2325 = vrot.slane %v2323, 5
        %v2326 = vsel %vm292, %v2321, %v2325
        %v2327 = vshrl.u32 %v2077, 16
        %v2329 = vrot.slane %v2327, 4
        %v2330 = vor.u32 %v2329, %v2325
        %v2331 = vrot.slane %v2330, 4
        %v2333 = vshll.u32 %v2078, 16
        %v2335 = vrot.slane %v2333, 5
        %v2336 = vsel %vm292, %v2331, %v2335
        %v2338 = vshrl.u32 %v2079, 16
        %v2340 = vrot.slane %v2338, 4
        %v2341 = vshll.u32 %v2079, 16
        %v2343 = vrot.slane %v2341, 5
        %v2344 = vor.u32 %v2340, %v2343
        %v2345 = vrot.slane %v2344, 4
        %v2347 = vshll.u32 %v2080, 16
        %v2349 = vrot.slane %v2347, 5
        %v2350 = vsel %vm292, %v2345, %v2349
        %v2351 = vshrl.u32 %v2080, 16
        %v2353 = vrot.slane %v2351, 4
        %v2354 = vor.u32 %v2353, %v2349
        %v2355 = vrot.slane %v2354, 4
        %v2357 = vshll.u32 %v2081, 16
        %v2359 = vrot.slane %v2357, 5
        %v2360 = vsel %vm292, %v2355, %v2359
        %v2362 = vshrl.u32 %v2082, 16
        %v2364 = vrot.slane %v2362, 4
        %v2365 = vshll.u32 %v2082, 16
        %v2367 = vrot.slane %v2365, 5
        %v2368 = vor.u32 %v2364, %v2367
        %v2369 = vrot.slane %v2368, 4
        %v2371 = vshll.u32 %v2083, 16
        %v2373 = vrot.slane %v2371, 5
        %v2374 = vsel %vm292, %v2369, %v2373
        %v2375 = vshrl.u32 %v2083, 16
        %v2377 = vrot.slane %v2375, 4
        %v2378 = vor.u32 %v2377, %v2373
        %v2379 = vrot.slane %v2378, 4
        %v2381 = vshll.u32 %v2084, 16
        %v2383 = vrot.slane %v2381, 5
        %v2384 = vsel %vm292, %v2379, %v2383
        %v2386 = vshrl.u32 %v2085, 16
        %v2388 = vrot.slane %v2386, 4
        %v2389 = vshll.u32 %v2085, 16
        %v2391 = vrot.slane %v2389, 5
        %v2392 = vor.u32 %v2388, %v2391
        %v2393 = vrot.slane %v2392, 4
        %v2395 = vshll.u32 %v2086, 16
        %v2397 = vrot.slane %v2395, 5
        %v2398 = vsel %vm292, %v2393, %v2397
        %v2399 = vshrl.u32 %v2086, 16
        %v2401 = vrot.slane %v2399, 4
        %v2402 = vor.u32 %v2401, %v2397
        %v2403 = vrot.slane %v2402, 4
        %v2405 = vshll.u32 %v2087, 16
        %v2407 = vrot.slane %v2405, 5
        %v2408 = vsel %vm292, %v2403, %v2407
        %v2410 = vshrl.u32 %v2088, 16
        %v2412 = vrot.slane %v2410, 4
        %v2413 = vshll.u32 %v2088, 16
        %v2415 = vrot.slane %v2413, 5
        %v2416 = vor.u32 %v2412, %v2415
        %v2417 = vrot.slane %v2416, 4
        %v2419 = vshll.u32 %v2089, 16
        %v2421 = vrot.slane %v2419, 5
        %v2422 = vsel %vm292, %v2417, %v2421
        %v2423 = vshrl.u32 %v2089, 16
        %v2425 = vrot.slane %v2423, 4
        %v2426 = vor.u32 %v2425, %v2421
        %v2427 = vrot.slane %v2426, 4
        %v2429 = vshll.u32 %v2090, 16
        %v2431 = vrot.slane %v2429, 5
        %v2432 = vsel %vm292, %v2427, %v2431
        %v2434 = vshrl.u32 %v2091, 16
        %v2436 = vrot.slane %v2434, 4
        %v2437 = vshll.u32 %v2091, 16
        %v2439 = vrot.slane %v2437, 5
        %v2440 = vor.u32 %v2436, %v2439
        %v2441 = vrot.slane %v2440, 4
        %v2443 = vshll.u32 %v2092, 16
        %v2445 = vrot.slane %v2443, 5
        %v2446 = vsel %vm292, %v2441, %v2445
        %v2447 = vshrl.u32 %v2092, 16
        %v2449 = vrot.slane %v2447, 4
        %v2450 = vor.u32 %v2449, %v2445
        %v2451 = vrot.slane %v2450, 4
        %v2453 = vshll.u32 %v2093, 16
        %v2455 = vrot.slane %v2453, 5
        %v2456 = vsel %vm292, %v2451, %v2455
        %v2458 = vshrl.u32 %v2094, 16
        %v2460 = vrot.slane %v2458, 4
        %v2461 = vshll.u32 %v2094, 16
        %v2463 = vrot.slane %v2461, 5
        %v2464 = vor.u32 %v2460, %v2463
        %v2465 = vrot.slane %v2464, 4
        %v2467 = vshll.u32 %v2095, 16
        %v2469 = vrot.slane %v2467, 5
        %v2470 = vsel %vm292, %v2465, %v2469
        %v2471 = vshrl.u32 %v2095, 16
        %v2473 = vrot.slane %v2471, 4
        %v2474 = vor.u32 %v2473, %v2469
        %v2475 = vrot.slane %v2474, 4
        %v2477 = vshll.u32 %v2096, 16
        %v2479 = vrot.slane %v2477, 5
        %v2480 = vsel %vm292, %v2475, %v2479
        %s2481 = scalar_lea.vmem %s1, 8
        %v2482 = vld [vmem:[%s2481] sm:$0x3]
        %v2483 = vunpack.c.l.b16 %v2110
        %v2484 = vunpack.c.l.b16 %v2120
        %v2485 = vunpack.c.l.b16 %v2134
        %v2486 = vunpack.c.l.b16 %v2144
        %v2487 = vunpack.c.l.b16 %v2158
        %v2488 = vunpack.c.l.b16 %v2168
        %v2489 = vunpack.c.l.b16 %v2182
        %v2490 = vunpack.c.l.b16 %v2192
        %v2491 = vunpack.c.l.b16 %v2206
        %v2492 = vunpack.c.l.b16 %v2216
        %v2493 = vunpack.c.l.b16 %v2230
        %v2494 = vunpack.c.l.b16 %v2240
        %v2495 = vunpack.c.l.b16 %v2254
        %v2496 = vunpack.c.l.b16 %v2264
        %v2497 = vunpack.c.l.b16 %v2278
        %v2498 = vunpack.c.l.b16 %v2288
        %v2499 = vunpack.c.l.b16 %v2302
        %v2500 = vunpack.c.l.b16 %v2312
        %v2501 = vunpack.c.l.b16 %v2326
        %v2502 = vunpack.c.l.b16 %v2336
        %v2503 = vunpack.c.l.b16 %v2350
        %v2504 = vunpack.c.l.b16 %v2360
        %v2505 = vunpack.c.l.b16 %v2374
        %v2506 = vunpack.c.l.b16 %v2384
        %v2507 = vunpack.c.l.b16 %v2398
        %v2508 = vunpack.c.l.b16 %v2408
        %v2509 = vunpack.c.l.b16 %v2422
        %v2510 = vunpack.c.l.b16 %v2432
        %v2511 = vunpack.c.l.b16 %v2446
        %v2512 = vunpack.c.l.b16 %v2456
        %v2513 = vunpack.c.l.b16 %v2470
        %v2514 = vunpack.c.l.b16 %v2480
        %v2515 = vpack.c.b16 %v2484, %v2483
        %v2516 = vpack.c.b16 %v2486, %v2485
        %v2517 = vpack.c.b16 %v2488, %v2487
        %v2518 = vpack.c.b16 %v2490, %v2489
        %v2519 = vpack.c.b16 %v2492, %v2491
        %v2520 = vpack.c.b16 %v2494, %v2493
        %v2521 = vpack.c.b16 %v2496, %v2495
        %v2522 = vpack.c.b16 %v2498, %v2497
        %v2523 = vpack.c.b16 %v2500, %v2499
        %v2524 = vpack.c.b16 %v2502, %v2501
        %v2525 = vpack.c.b16 %v2504, %v2503
        %v2526 = vpack.c.b16 %v2506, %v2505
        %v2527 = vpack.c.b16 %v2508, %v2507
        %v2528 = vpack.c.b16 %v2510, %v2509
        %v2529 = vpack.c.b16 %v2512, %v2511
        %v2530 = vpack.c.b16 %v2514, %v2513
        %v2532 = vsel %vm727, %v2515, 0
        %v2535 = vsel %vm727, %v2516, 0
        %v2538 = vsel %vm727, %v2517, 0
        %v2541 = vsel %vm727, %v2518, 0
        %v2544 = vsel %vm727, %v2519, 0
        %v2547 = vsel %vm727, %v2520, 0
        %v2550 = vsel %vm727, %v2521, 0
        %v2553 = vsel %vm727, %v2522, 0
        %v2556 = vsel %vm727, %v2523, 0
        %v2559 = vsel %vm727, %v2524, 0
        %v2562 = vsel %vm727, %v2525, 0
        %v2565 = vsel %vm727, %v2526, 0
        %v2568 = vsel %vm727, %v2527, 0
        %v2571 = vsel %vm727, %v2528, 0
        %v2574 = vsel %vm727, %v2529, 0
        %v2577 = vsel %vm727, %v2530, 0
        %v2580 = vsel %vm776, %v2482, 0
        %2582 = vmatprep.subr.bf16.mxu0 0
        %2583 = vmatpush1.bf16.msra.mxu0 %v2580
        %2584 = vmatprep.subr.bf16.mxu0 0
        %2585 = vmatpush1.bf16.msra.mxu0 0
        %2586 = vmatprep.subr.bf16.mxu0 0
        %2587 = vmatpush1.bf16.msra.mxu0 0
        %2588 = vmatprep.subr.bf16.mxu0 0
        %2589 = vmatpush1.bf16.msra.mxu0 0
        %2590 = vmatprep.subr.bf16.mxu0 0
        %2591 = vmatpush1.bf16.msra.mxu0 0
        %2592 = vmatprep.subr.bf16.mxu0 0
        %2593 = vmatpush1.bf16.msra.mxu0 0
        %2594 = vmatprep.subr.bf16.mxu0 0
        %2595 = vmatpush1.bf16.msra.mxu0 0
        %2596 = vmatprep.subr.bf16.mxu0 0
        %2597 = vmatpush1.bf16.msra.mxu0 0
        %2598 = vmatprep.subr.bf16.mxu0 0
        %2599 = vmatpush1.bf16.msra.mxu0 0
        %2600 = vmatprep.subr.bf16.mxu0 0
        %2601 = vmatpush1.bf16.msra.mxu0 0
        %2602 = vmatprep.subr.bf16.mxu0 0
        %2603 = vmatpush1.bf16.msra.mxu0 0
        %2604 = vmatprep.subr.bf16.mxu0 0
        %2605 = vmatpush1.bf16.msra.mxu0 0
        %2606 = vmatprep.subr.bf16.mxu0 0
        %2607 = vmatpush1.bf16.msra.mxu0 0
        %2608 = vmatprep.subr.bf16.mxu0 0
        %2609 = vmatpush1.bf16.msra.mxu0 0
        %2610 = vmatprep.subr.bf16.mxu0 0
        %2611 = vmatpush1.bf16.msra.mxu0 0
        %2612 = vmatprep.subr.bf16.mxu0 0
        %2613 = vmatpush1.bf16.msra.mxu0 0
        %2614 = vmatprep.mubr.bf16.mxu0 0
        %2615 = vmatmul.mubr.bf16.gmra.mrb[0].mxu0 %v2532
        %v2616 = vpop.f32.mrb[0].mxu0
        %v2617 = vadd.f32 0.0, %v2616
        %v2618 = vpop.f32.mrb[0].mxu0
        %v2619 = vpop.f32.mrb[0].mxu0
        %v2620 = vadd.f32 0.0, %v2619
        %v2621 = vpop.f32.mrb[0].mxu0
        %2622 = vmatprep.mubr.bf16.mxu0 0
        %2623 = vmatmul.mubr.bf16.gmra.mrb[0].mxu0 %v2535
        %v2624 = vpop.f32.mrb[0].mxu0
        %v2625 = vadd.f32 0.0, %v2624
        %v2626 = vpop.f32.mrb[0].mxu0
        %v2627 = vpop.f32.mrb[0].mxu0
        %v2628 = vadd.f32 0.0, %v2627
        %v2629 = vpop.f32.mrb[0].mxu0
        %2630 = vmatprep.mubr.bf16.mxu0 0
        %2631 = vmatmul.mubr.bf16.gmra.mrb[0].mxu0 %v2538
        %v2632 = vpop.f32.mrb[0].mxu0
        %v2633 = vadd.f32 0.0, %v2632
        %v2634 = vpop.f32.mrb[0].mxu0
        %v2635 = vpop.f32.mrb[0].mxu0
        %v2636 = vadd.f32 0.0, %v2635
        %v2637 = vpop.f32.mrb[0].mxu0
        %2638 = vmatprep.mubr.bf16.mxu0 0
        %2639 = vmatmul.mubr.bf16.gmra.mrb[0].mxu0 %v2541
        %v2640 = vpop.f32.mrb[0].mxu0
        %v2641 = vadd.f32 0.0, %v2640
        %v2642 = vpop.f32.mrb[0].mxu0
        %v2643 = vpop.f32.mrb[0].mxu0
        %v2644 = vadd.f32 0.0, %v2643
        %v2645 = vpop.f32.mrb[0].mxu0
        %2646 = vmatprep.mubr.bf16.mxu0 0
        %2647 = vmatmul.mubr.bf16.gmra.mrb[0].mxu0 %v2544
        %v2648 = vpop.f32.mrb[0].mxu0
        %v2649 = vadd.f32 0.0, %v2648
        %v2650 = vpop.f32.mrb[0].mxu0
        %v2651 = vpop.f32.mrb[0].mxu0
        %v2652 = vadd.f32 0.0, %v2651
        %v2653 = vpop.f32.mrb[0].mxu0
        %2654 = vmatprep.mubr.bf16.mxu0 0
        %2655 = vmatmul.mubr.bf16.gmra.mrb[0].mxu0 %v2547
        %v2656 = vpop.f32.mrb[0].mxu0
        %v2657 = vadd.f32 0.0, %v2656
        %v2658 = vpop.f32.mrb[0].mxu0
        %v2659 = vpop.f32.mrb[0].mxu0
        %v2660 = vadd.f32 0.0, %v2659
        %v2661 = vpop.f32.mrb[0].mxu0
        %2662 = vmatprep.mubr.bf16.mxu0 0
        %2663 = vmatmul.mubr.bf16.gmra.mrb[0].mxu0 %v2550
        %v2664 = vpop.f32.mrb[0].mxu0
        %v2665 = vadd.f32 0.0, %v2664
        %v2666 = vpop.f32.mrb[0].mxu0
        %v2667 = vpop.f32.mrb[0].mxu0
        %v2668 = vadd.f32 0.0, %v2667
        %v2669 = vpop.f32.mrb[0].mxu0
        %2670 = vmatprep.mubr.bf16.mxu0 0
        %2671 = vmatmul.mubr.bf16.gmra.mrb[0].mxu0 %v2553
        %v2672 = vpop.f32.mrb[0].mxu0
        %v2673 = vadd.f32 0.0, %v2672
        %v2674 = vpop.f32.mrb[0].mxu0
        %v2675 = vpop.f32.mrb[0].mxu0
        %v2676 = vadd.f32 0.0, %v2675
        %v2677 = vpop.f32.mrb[0].mxu0
        %2678 = vmatprep.mubr.bf16.mxu0 0
        %2679 = vmatmul.mubr.bf16.gmra.mrb[0].mxu0 %v2556
        %v2680 = vpop.f32.mrb[0].mxu0
        %v2681 = vadd.f32 0.0, %v2680
        %v2682 = vpop.f32.mrb[0].mxu0
        %v2683 = vpop.f32.mrb[0].mxu0
        %v2684 = vadd.f32 0.0, %v2683
        %v2685 = vpop.f32.mrb[0].mxu0
        %2686 = vmatprep.mubr.bf16.mxu0 0
        %2687 = vmatmul.mubr.bf16.gmra.mrb[0].mxu0 %v2559
        %v2688 = vpop.f32.mrb[0].mxu0
        %v2689 = vadd.f32 0.0, %v2688
        %v2690 = vpop.f32.mrb[0].mxu0
        %v2691 = vpop.f32.mrb[0].mxu0
        %v2692 = vadd.f32 0.0, %v2691
        %v2693 = vpop.f32.mrb[0].mxu0
        %2694 = vmatprep.mubr.bf16.mxu0 0
        %2695 = vmatmul.mubr.bf16.gmra.mrb[0].mxu0 %v2562
        %v2696 = vpop.f32.mrb[0].mxu0
        %v2697 = vadd.f32 0.0, %v2696
        %v2698 = vpop.f32.mrb[0].mxu0
        %v2699 = vpop.f32.mrb[0].mxu0
        %v2700 = vadd.f32 0.0, %v2699
        %v2701 = vpop.f32.mrb[0].mxu0
        %2702 = vmatprep.mubr.bf16.mxu0 0
        %2703 = vmatmul.mubr.bf16.gmra.mrb[0].mxu0 %v2565
        %v2704 = vpop.f32.mrb[0].mxu0
        %v2705 = vadd.f32 0.0, %v2704
        %v2706 = vpop.f32.mrb[0].mxu0
        %v2707 = vpop.f32.mrb[0].mxu0
        %v2708 = vadd.f32 0.0, %v2707
        %v2709 = vpop.f32.mrb[0].mxu0
        %2710 = vmatprep.mubr.bf16.mxu0 0
        %2711 = vmatmul.mubr.bf16.gmra.mrb[0].mxu0 %v2568
        %v2712 = vpop.f32.mrb[0].mxu0
        %v2713 = vadd.f32 0.0, %v2712
        %v2714 = vpop.f32.mrb[0].mxu0
        %v2715 = vpop.f32.mrb[0].mxu0
        %v2716 = vadd.f32 0.0, %v2715
        %v2717 = vpop.f32.mrb[0].mxu0
        %2718 = vmatprep.mubr.bf16.mxu0 0
        %2719 = vmatmul.mubr.bf16.gmra.mrb[0].mxu0 %v2571
        %v2720 = vpop.f32.mrb[0].mxu0
        %v2721 = vadd.f32 0.0, %v2720
        %v2722 = vpop.f32.mrb[0].mxu0
        %v2723 = vpop.f32.mrb[0].mxu0
        %v2724 = vadd.f32 0.0, %v2723
        %v2725 = vpop.f32.mrb[0].mxu0
        %2726 = vmatprep.mubr.bf16.mxu0 0
        %2727 = vmatmul.mubr.bf16.gmra.mrb[0].mxu0 %v2574
        %v2728 = vpop.f32.mrb[0].mxu0
        %v2729 = vadd.f32 0.0, %v2728
        %v2730 = vpop.f32.mrb[0].mxu0
        %v2731 = vpop.f32.mrb[0].mxu0
        %v2732 = vadd.f32 0.0, %v2731
        %v2733 = vpop.f32.mrb[0].mxu0
        %2734 = vmatprep.mubr.bf16.mxu0 0
        %2735 = vmatmul.mubr.bf16.gmra.mrb[0].mxu0 %v2577
        %v2736 = vpop.f32.mrb[0].mxu0
        %v2737 = vadd.f32 0.0, %v2736
        %v2738 = vpop.f32.mrb[0].mxu0
        %v2739 = vpop.f32.mrb[0].mxu0
        %v2740 = vadd.f32 0.0, %v2739
        %v2741 = vpop.f32.mrb[0].mxu0
        %2742 = vdwg.mxu0
        %v2743 = vadd.f32 %v2017, %v2617
        %v2744 = vadd.f32 %v2018, %v2620
        %v2745 = vadd.f32 %v2019, %v2625
        %v2746 = vadd.f32 %v2020, %v2628
        %v2747 = vadd.f32 %v2021, %v2633
        %v2748 = vadd.f32 %v2022, %v2636
        %v2749 = vadd.f32 %v2023, %v2641
        %v2750 = vadd.f32 %v2024, %v2644
        %v2751 = vadd.f32 %v2025, %v2649
        %v2752 = vadd.f32 %v2026, %v2652
        %v2753 = vadd.f32 %v2027, %v2657
        %v2754 = vadd.f32 %v2028, %v2660
        %v2755 = vadd.f32 %v2029, %v2665
        %v2756 = vadd.f32 %v2030, %v2668
        %v2757 = vadd.f32 %v2031, %v2673
        %v2758 = vadd.f32 %v2032, %v2676
        %v2759 = vadd.f32 %v2033, %v2681
        %v2760 = vadd.f32 %v2034, %v2684
        %v2761 = vadd.f32 %v2035, %v2689
        %v2762 = vadd.f32 %v2036, %v2692
        %v2763 = vadd.f32 %v2037, %v2697
        %v2764 = vadd.f32 %v2038, %v2700
        %v2765 = vadd.f32 %v2039, %v2705
        %v2766 = vadd.f32 %v2040, %v2708
        %v2767 = vadd.f32 %v2041, %v2713
        %v2768 = vadd.f32 %v2042, %v2716
        %v2769 = vadd.f32 %v2043, %v2721
        %v2770 = vadd.f32 %v2044, %v2724
        %v2771 = vadd.f32 %v2045, %v2729
        %v2772 = vadd.f32 %v2046, %v2732
        %v2773 = vadd.f32 %v2047, %v2737
        %v2774 = vadd.f32 %v2048, %v2740
        %v2775 = vld [vmem:[%s1690] sm:$0xe]
        %v2776 = vld [vmem:[%s1690 + $0xc] sm:$0xe]
        %v2777 = vld [vmem:[%s1690 + $0x18] sm:$0xe]
        %v2778 = vld [vmem:[%s1690 + $0x24] sm:$0xe]
        %v2779 = vld [vmem:[%s1690 + $0x30] sm:$0xe]
        %v2780 = vld [vmem:[%s1690 + $0x3c] sm:$0xe]
        %v2781 = vld [vmem:[%s1690 + $0x48] sm:$0xe]
        %v2782 = vld [vmem:[%s1690 + $0x54] sm:$0xe]
        %v2783 = vld [vmem:[%s1690 + $0x60] sm:$0xe]
        %v2784 = vld [vmem:[%s1690 + $0x6c] sm:$0xe]
        %v2785 = vld [vmem:[%s1690 + $0x78] sm:$0xe]
        %v2786 = vld [vmem:[%s1690 + $0x84] sm:$0xe]
        %v2787 = vld [vmem:[%s1690 + $0x90] sm:$0xe]
        %v2788 = vld [vmem:[%s1690 + $0x9c] sm:$0xe]
        %v2789 = vld [vmem:[%s1690 + $0xa8] sm:$0xe]
        %v2790 = vld [vmem:[%s1690 + $0xb4] sm:$0xe]
        %v2839 = vrot.slane %v2775, 5
        %v2840 = vrot.slane %v2839, 4
        %v2841 = vrot.slane %v2050, 5
        %v2842 = vsel %vm1283, %v2840, %v2841
        %v2843 = vrot.slane %v2841, 4
        %v2844 = vrot.slane %v2051, 5
        %v2845 = vsel %vm1283, %v2843, %v2844
        %v2846 = vrot.slane %v2776, 5
        %v2847 = vrot.slane %v2846, 4
        %v2848 = vrot.slane %v2053, 5
        %v2849 = vsel %vm1283, %v2847, %v2848
        %v2850 = vrot.slane %v2848, 4
        %v2851 = vrot.slane %v2054, 5
        %v2852 = vsel %vm1283, %v2850, %v2851
        %v2853 = vrot.slane %v2777, 5
        %v2854 = vrot.slane %v2853, 4
        %v2855 = vrot.slane %v2056, 5
        %v2856 = vsel %vm1283, %v2854, %v2855
        %v2857 = vrot.slane %v2855, 4
        %v2858 = vrot.slane %v2057, 5
        %v2859 = vsel %vm1283, %v2857, %v2858
        %v2860 = vrot.slane %v2778, 5
        %v2861 = vrot.slane %v2860, 4
        %v2862 = vrot.slane %v2059, 5
        %v2863 = vsel %vm1283, %v2861, %v2862
        %v2864 = vrot.slane %v2862, 4
        %v2865 = vrot.slane %v2060, 5
        %v2866 = vsel %vm1283, %v2864, %v2865
        %v2867 = vrot.slane %v2779, 5
        %v2868 = vrot.slane %v2867, 4
        %v2869 = vrot.slane %v2062, 5
        %v2870 = vsel %vm1283, %v2868, %v2869
        %v2871 = vrot.slane %v2869, 4
        %v2872 = vrot.slane %v2063, 5
        %v2873 = vsel %vm1283, %v2871, %v2872
        %v2874 = vrot.slane %v2780, 5
        %v2875 = vrot.slane %v2874, 4
        %v2876 = vrot.slane %v2065, 5
        %v2877 = vsel %vm1283, %v2875, %v2876
        %v2878 = vrot.slane %v2876, 4
        %v2879 = vrot.slane %v2066, 5
        %v2880 = vsel %vm1283, %v2878, %v2879
        %v2881 = vrot.slane %v2781, 5
        %v2882 = vrot.slane %v2881, 4
        %v2883 = vrot.slane %v2068, 5
        %v2884 = vsel %vm1283, %v2882, %v2883
        %v2885 = vrot.slane %v2883, 4
        %v2886 = vrot.slane %v2069, 5
        %v2887 = vsel %vm1283, %v2885, %v2886
        %v2888 = vrot.slane %v2782, 5
        %v2889 = vrot.slane %v2888, 4
        %v2890 = vrot.slane %v2071, 5
        %v2891 = vsel %vm1283, %v2889, %v2890
        %v2892 = vrot.slane %v2890, 4
        %v2893 = vrot.slane %v2072, 5
        %v2894 = vsel %vm1283, %v2892, %v2893
        %v2895 = vrot.slane %v2783, 5
        %v2896 = vrot.slane %v2895, 4
        %v2897 = vrot.slane %v2074, 5
        %v2898 = vsel %vm1283, %v2896, %v2897
        %v2899 = vrot.slane %v2897, 4
        %v2900 = vrot.slane %v2075, 5
        %v2901 = vsel %vm1283, %v2899, %v2900
        %v2902 = vrot.slane %v2784, 5
        %v2903 = vrot.slane %v2902, 4
        %v2904 = vrot.slane %v2077, 5
        %v2905 = vsel %vm1283, %v2903, %v2904
        %v2906 = vrot.slane %v2904, 4
        %v2907 = vrot.slane %v2078, 5
        %v2908 = vsel %vm1283, %v2906, %v2907
        %v2909 = vrot.slane %v2785, 5
        %v2910 = vrot.slane %v2909, 4
        %v2911 = vrot.slane %v2080, 5
        %v2912 = vsel %vm1283, %v2910, %v2911
        %v2913 = vrot.slane %v2911, 4
        %v2914 = vrot.slane %v2081, 5
        %v2915 = vsel %vm1283, %v2913, %v2914
        %v2916 = vrot.slane %v2786, 5
        %v2917 = vrot.slane %v2916, 4
        %v2918 = vrot.slane %v2083, 5
        %v2919 = vsel %vm1283, %v2917, %v2918
        %v2920 = vrot.slane %v2918, 4
        %v2921 = vrot.slane %v2084, 5
        %v2922 = vsel %vm1283, %v2920, %v2921
        %v2923 = vrot.slane %v2787, 5
        %v2924 = vrot.slane %v2923, 4
        %v2925 = vrot.slane %v2086, 5
        %v2926 = vsel %vm1283, %v2924, %v2925
        %v2927 = vrot.slane %v2925, 4
        %v2928 = vrot.slane %v2087, 5
        %v2929 = vsel %vm1283, %v2927, %v2928
        %v2930 = vrot.slane %v2788, 5
        %v2931 = vrot.slane %v2930, 4
        %v2932 = vrot.slane %v2089, 5
        %v2933 = vsel %vm1283, %v2931, %v2932
        %v2934 = vrot.slane %v2932, 4
        %v2935 = vrot.slane %v2090, 5
        %v2936 = vsel %vm1283, %v2934, %v2935
        %v2937 = vrot.slane %v2789, 5
        %v2938 = vrot.slane %v2937, 4
        %v2939 = vrot.slane %v2092, 5
        %v2940 = vsel %vm1283, %v2938, %v2939
        %v2941 = vrot.slane %v2939, 4
        %v2942 = vrot.slane %v2093, 5
        %v2943 = vsel %vm1283, %v2941, %v2942
        %v2944 = vrot.slane %v2790, 5
        %v2945 = vrot.slane %v2944, 4
        %v2946 = vrot.slane %v2095, 5
        %v2947 = vsel %vm1283, %v2945, %v2946
        %v2948 = vrot.slane %v2946, 4
        %v2949 = vrot.slane %v2096, 5
        %v2950 = vsel %vm1283, %v2948, %v2949
        %s2951 = scalar_lea.vmem %s1, 10
        %v2952 = vld [vmem:[%s2951] sm:$0x3]
        %v2953 = vunpack.c.l.b16 %v2842
        %v2954 = vunpack.c.l.b16 %v2845
        %v2955 = vunpack.c.l.b16 %v2849
        %v2956 = vunpack.c.l.b16 %v2852
        %v2957 = vunpack.c.l.b16 %v2856
        %v2958 = vunpack.c.l.b16 %v2859
        %v2959 = vunpack.c.l.b16 %v2863
        %v2960 = vunpack.c.l.b16 %v2866
        %v2961 = vunpack.c.l.b16 %v2870
        %v2962 = vunpack.c.l.b16 %v2873
        %v2963 = vunpack.c.l.b16 %v2877
        %v2964 = vunpack.c.l.b16 %v2880
        %v2965 = vunpack.c.l.b16 %v2884
        %v2966 = vunpack.c.l.b16 %v2887
        %v2967 = vunpack.c.l.b16 %v2891
        %v2968 = vunpack.c.l.b16 %v2894
        %v2969 = vunpack.c.l.b16 %v2898
        %v2970 = vunpack.c.l.b16 %v2901
        %v2971 = vunpack.c.l.b16 %v2905
        %v2972 = vunpack.c.l.b16 %v2908
        %v2973 = vunpack.c.l.b16 %v2912
        %v2974 = vunpack.c.l.b16 %v2915
        %v2975 = vunpack.c.l.b16 %v2919
        %v2976 = vunpack.c.l.b16 %v2922
        %v2977 = vunpack.c.l.b16 %v2926
        %v2978 = vunpack.c.l.b16 %v2929
        %v2979 = vunpack.c.l.b16 %v2933
        %v2980 = vunpack.c.l.b16 %v2936
        %v2981 = vunpack.c.l.b16 %v2940
        %v2982 = vunpack.c.l.b16 %v2943
        %v2983 = vunpack.c.l.b16 %v2947
        %v2984 = vunpack.c.l.b16 %v2950
        %v2985 = vpack.c.b16 %v2954, %v2953
        %v2986 = vpack.c.b16 %v2956, %v2955
        %v2987 = vpack.c.b16 %v2958, %v2957
        %v2988 = vpack.c.b16 %v2960, %v2959
        %v2989 = vpack.c.b16 %v2962, %v2961
        %v2990 = vpack.c.b16 %v2964, %v2963
        %v2991 = vpack.c.b16 %v2966, %v2965
        %v2992 = vpack.c.b16 %v2968, %v2967
        %v2993 = vpack.c.b16 %v2970, %v2969
        %v2994 = vpack.c.b16 %v2972, %v2971
        %v2995 = vpack.c.b16 %v2974, %v2973
        %v2996 = vpack.c.b16 %v2976, %v2975
        %v2997 = vpack.c.b16 %v2978, %v2977
        %v2998 = vpack.c.b16 %v2980, %v2979
        %v2999 = vpack.c.b16 %v2982, %v2981
        %v3000 = vpack.c.b16 %v2984, %v2983
        %v3002 = vsel %vm727, %v2985, 0
        %v3005 = vsel %vm727, %v2986, 0
        %v3008 = vsel %vm727, %v2987, 0
        %v3011 = vsel %vm727, %v2988, 0
        %v3014 = vsel %vm727, %v2989, 0
        %v3017 = vsel %vm727, %v2990, 0
        %v3020 = vsel %vm727, %v2991, 0
        %v3023 = vsel %vm727, %v2992, 0
        %v3026 = vsel %vm727, %v2993, 0
        %v3029 = vsel %vm727, %v2994, 0
        %v3032 = vsel %vm727, %v2995, 0
        %v3035 = vsel %vm727, %v2996, 0
        %v3038 = vsel %vm727, %v2997, 0
        %v3041 = vsel %vm727, %v2998, 0
        %v3044 = vsel %vm727, %v2999, 0
        %v3047 = vsel %vm727, %v3000, 0
        %v3050 = vsel %vm776, %v2952, 0
        %3052 = vmatprep.subr.bf16.mxu0 0
        %3053 = vmatpush1.bf16.msra.mxu0 %v3050
        %3054 = vmatprep.subr.bf16.mxu0 0
        %3055 = vmatpush1.bf16.msra.mxu0 0
        %3056 = vmatprep.subr.bf16.mxu0 0
        %3057 = vmatpush1.bf16.msra.mxu0 0
        %3058 = vmatprep.subr.bf16.mxu0 0
        %3059 = vmatpush1.bf16.msra.mxu0 0
        %3060 = vmatprep.subr.bf16.mxu0 0
        %3061 = vmatpush1.bf16.msra.mxu0 0
        %3062 = vmatprep.subr.bf16.mxu0 0
        %3063 = vmatpush1.bf16.msra.mxu0 0
        %3064 = vmatprep.subr.bf16.mxu0 0
        %3065 = vmatpush1.bf16.msra.mxu0 0
        %3066 = vmatprep.subr.bf16.mxu0 0
        %3067 = vmatpush1.bf16.msra.mxu0 0
        %3068 = vmatprep.subr.bf16.mxu0 0
        %3069 = vmatpush1.bf16.msra.mxu0 0
        %3070 = vmatprep.subr.bf16.mxu0 0
        %3071 = vmatpush1.bf16.msra.mxu0 0
        %3072 = vmatprep.subr.bf16.mxu0 0
        %3073 = vmatpush1.bf16.msra.mxu0 0
        %3074 = vmatprep.subr.bf16.mxu0 0
        %3075 = vmatpush1.bf16.msra.mxu0 0
        %3076 = vmatprep.subr.bf16.mxu0 0
        %3077 = vmatpush1.bf16.msra.mxu0 0
        %3078 = vmatprep.subr.bf16.mxu0 0
        %3079 = vmatpush1.bf16.msra.mxu0 0
        %3080 = vmatprep.subr.bf16.mxu0 0
        %3081 = vmatpush1.bf16.msra.mxu0 0
        %3082 = vmatprep.subr.bf16.mxu0 0
        %3083 = vmatpush1.bf16.msra.mxu0 0
        %3084 = vmatprep.mubr.bf16.mxu0 0
        %3085 = vmatmul.mubr.bf16.gmra.mrb[0].mxu0 %v3002
        %v3086 = vpop.f32.mrb[0].mxu0
        %v3087 = vadd.f32 0.0, %v3086
        %v3088 = vpop.f32.mrb[0].mxu0
        %v3089 = vpop.f32.mrb[0].mxu0
        %v3090 = vadd.f32 0.0, %v3089
        %v3091 = vpop.f32.mrb[0].mxu0
        %3092 = vmatprep.mubr.bf16.mxu0 0
        %3093 = vmatmul.mubr.bf16.gmra.mrb[0].mxu0 %v3005
        %v3094 = vpop.f32.mrb[0].mxu0
        %v3095 = vadd.f32 0.0, %v3094
        %v3096 = vpop.f32.mrb[0].mxu0
        %v3097 = vpop.f32.mrb[0].mxu0
        %v3098 = vadd.f32 0.0, %v3097
        %v3099 = vpop.f32.mrb[0].mxu0
        %3100 = vmatprep.mubr.bf16.mxu0 0
        %3101 = vmatmul.mubr.bf16.gmra.mrb[0].mxu0 %v3008
        %v3102 = vpop.f32.mrb[0].mxu0
        %v3103 = vadd.f32 0.0, %v3102
        %v3104 = vpop.f32.mrb[0].mxu0
        %v3105 = vpop.f32.mrb[0].mxu0
        %v3106 = vadd.f32 0.0, %v3105
        %v3107 = vpop.f32.mrb[0].mxu0
        %3108 = vmatprep.mubr.bf16.mxu0 0
        %3109 = vmatmul.mubr.bf16.gmra.mrb[0].mxu0 %v3011
        %v3110 = vpop.f32.mrb[0].mxu0
        %v3111 = vadd.f32 0.0, %v3110
        %v3112 = vpop.f32.mrb[0].mxu0
        %v3113 = vpop.f32.mrb[0].mxu0
        %v3114 = vadd.f32 0.0, %v3113
        %v3115 = vpop.f32.mrb[0].mxu0
        %3116 = vmatprep.mubr.bf16.mxu0 0
        %3117 = vmatmul.mubr.bf16.gmra.mrb[0].mxu0 %v3014
        %v3118 = vpop.f32.mrb[0].mxu0
        %v3119 = vadd.f32 0.0, %v3118
        %v3120 = vpop.f32.mrb[0].mxu0
        %v3121 = vpop.f32.mrb[0].mxu0
        %v3122 = vadd.f32 0.0, %v3121
        %v3123 = vpop.f32.mrb[0].mxu0
        %3124 = vmatprep.mubr.bf16.mxu0 0
        %3125 = vmatmul.mubr.bf16.gmra.mrb[0].mxu0 %v3017
        %v3126 = vpop.f32.mrb[0].mxu0
        %v3127 = vadd.f32 0.0, %v3126
        %v3128 = vpop.f32.mrb[0].mxu0
        %v3129 = vpop.f32.mrb[0].mxu0
        %v3130 = vadd.f32 0.0, %v3129
        %v3131 = vpop.f32.mrb[0].mxu0
        %3132 = vmatprep.mubr.bf16.mxu0 0
        %3133 = vmatmul.mubr.bf16.gmra.mrb[0].mxu0 %v3020
        %v3134 = vpop.f32.mrb[0].mxu0
        %v3135 = vadd.f32 0.0, %v3134
        %v3136 = vpop.f32.mrb[0].mxu0
        %v3137 = vpop.f32.mrb[0].mxu0
        %v3138 = vadd.f32 0.0, %v3137
        %v3139 = vpop.f32.mrb[0].mxu0
        %3140 = vmatprep.mubr.bf16.mxu0 0
        %3141 = vmatmul.mubr.bf16.gmra.mrb[0].mxu0 %v3023
        %v3142 = vpop.f32.mrb[0].mxu0
        %v3143 = vadd.f32 0.0, %v3142
        %v3144 = vpop.f32.mrb[0].mxu0
        %v3145 = vpop.f32.mrb[0].mxu0
        %v3146 = vadd.f32 0.0, %v3145
        %v3147 = vpop.f32.mrb[0].mxu0
        %3148 = vmatprep.mubr.bf16.mxu0 0
        %3149 = vmatmul.mubr.bf16.gmra.mrb[0].mxu0 %v3026
        %v3150 = vpop.f32.mrb[0].mxu0
        %v3151 = vadd.f32 0.0, %v3150
        %v3152 = vpop.f32.mrb[0].mxu0
        %v3153 = vpop.f32.mrb[0].mxu0
        %v3154 = vadd.f32 0.0, %v3153
        %v3155 = vpop.f32.mrb[0].mxu0
        %3156 = vmatprep.mubr.bf16.mxu0 0
        %3157 = vmatmul.mubr.bf16.gmra.mrb[0].mxu0 %v3029
        %v3158 = vpop.f32.mrb[0].mxu0
        %v3159 = vadd.f32 0.0, %v3158
        %v3160 = vpop.f32.mrb[0].mxu0
        %v3161 = vpop.f32.mrb[0].mxu0
        %v3162 = vadd.f32 0.0, %v3161
        %v3163 = vpop.f32.mrb[0].mxu0
        %3164 = vmatprep.mubr.bf16.mxu0 0
        %3165 = vmatmul.mubr.bf16.gmra.mrb[0].mxu0 %v3032
        %v3166 = vpop.f32.mrb[0].mxu0
        %v3167 = vadd.f32 0.0, %v3166
        %v3168 = vpop.f32.mrb[0].mxu0
        %v3169 = vpop.f32.mrb[0].mxu0
        %v3170 = vadd.f32 0.0, %v3169
        %v3171 = vpop.f32.mrb[0].mxu0
        %3172 = vmatprep.mubr.bf16.mxu0 0
        %3173 = vmatmul.mubr.bf16.gmra.mrb[0].mxu0 %v3035
        %v3174 = vpop.f32.mrb[0].mxu0
        %v3175 = vadd.f32 0.0, %v3174
        %v3176 = vpop.f32.mrb[0].mxu0
        %v3177 = vpop.f32.mrb[0].mxu0
        %v3178 = vadd.f32 0.0, %v3177
        %v3179 = vpop.f32.mrb[0].mxu0
        %3180 = vmatprep.mubr.bf16.mxu0 0
        %3181 = vmatmul.mubr.bf16.gmra.mrb[0].mxu0 %v3038
        %v3182 = vpop.f32.mrb[0].mxu0
        %v3183 = vadd.f32 0.0, %v3182
        %v3184 = vpop.f32.mrb[0].mxu0
        %v3185 = vpop.f32.mrb[0].mxu0
        %v3186 = vadd.f32 0.0, %v3185
        %v3187 = vpop.f32.mrb[0].mxu0
        %3188 = vmatprep.mubr.bf16.mxu0 0
        %3189 = vmatmul.mubr.bf16.gmra.mrb[0].mxu0 %v3041
        %v3190 = vpop.f32.mrb[0].mxu0
        %v3191 = vadd.f32 0.0, %v3190
        %v3192 = vpop.f32.mrb[0].mxu0
        %v3193 = vpop.f32.mrb[0].mxu0
        %v3194 = vadd.f32 0.0, %v3193
        %v3195 = vpop.f32.mrb[0].mxu0
        %3196 = vmatprep.mubr.bf16.mxu0 0
        %3197 = vmatmul.mubr.bf16.gmra.mrb[0].mxu0 %v3044
        %v3198 = vpop.f32.mrb[0].mxu0
        %v3199 = vadd.f32 0.0, %v3198
        %v3200 = vpop.f32.mrb[0].mxu0
        %v3201 = vpop.f32.mrb[0].mxu0
        %v3202 = vadd.f32 0.0, %v3201
        %v3203 = vpop.f32.mrb[0].mxu0
        %3204 = vmatprep.mubr.bf16.mxu0 0
        %3205 = vmatmul.mubr.bf16.gmra.mrb[0].mxu0 %v3047
        %v3206 = vpop.f32.mrb[0].mxu0
        %v3207 = vadd.f32 0.0, %v3206
        %v3208 = vpop.f32.mrb[0].mxu0
        %v3209 = vpop.f32.mrb[0].mxu0
        %v3210 = vadd.f32 0.0, %v3209
        %v3211 = vpop.f32.mrb[0].mxu0
        %3212 = vdwg.mxu0
        %v3213 = vadd.f32 %v2743, %v3087
        %v3214 = vadd.f32 %v2744, %v3090
        %v3215 = vadd.f32 %v2745, %v3095
        %v3216 = vadd.f32 %v2746, %v3098
        %v3217 = vadd.f32 %v2747, %v3103
        %v3218 = vadd.f32 %v2748, %v3106
        %v3219 = vadd.f32 %v2749, %v3111
        %v3220 = vadd.f32 %v2750, %v3114
        %v3221 = vadd.f32 %v2751, %v3119
        %v3222 = vadd.f32 %v2752, %v3122
        %v3223 = vadd.f32 %v2753, %v3127
        %v3224 = vadd.f32 %v2754, %v3130
        %v3225 = vadd.f32 %v2755, %v3135
        %v3226 = vadd.f32 %v2756, %v3138
        %v3227 = vadd.f32 %v2757, %v3143
        %v3228 = vadd.f32 %v2758, %v3146
        %v3229 = vadd.f32 %v2759, %v3151
        %v3230 = vadd.f32 %v2760, %v3154
        %v3231 = vadd.f32 %v2761, %v3159
        %v3232 = vadd.f32 %v2762, %v3162
        %v3233 = vadd.f32 %v2763, %v3167
        %v3234 = vadd.f32 %v2764, %v3170
        %v3235 = vadd.f32 %v2765, %v3175
        %v3236 = vadd.f32 %v2766, %v3178
        %v3237 = vadd.f32 %v2767, %v3183
        %v3238 = vadd.f32 %v2768, %v3186
        %v3239 = vadd.f32 %v2769, %v3191
        %v3240 = vadd.f32 %v2770, %v3194
        %v3241 = vadd.f32 %v2771, %v3199
        %v3242 = vadd.f32 %v2772, %v3202
        %v3243 = vadd.f32 %v2773, %v3207
        %v3244 = vadd.f32 %v2774, %v3210
        %s3245 = scalar_lea.vmem %s237, 24
        %v3246 = vld [vmem:[%s3245] sm:$0xf]
        %v3247 = vld [vmem:[%s3245 + $0x4] sm:$0xf]
        %v3248 = vld [vmem:[%s3245 + $0xc] sm:$0xf]
        %v3249 = vld [vmem:[%s3245 + $0x10] sm:$0xf]
        %v3250 = vld [vmem:[%s3245 + $0x18] sm:$0xf]
        %v3251 = vld [vmem:[%s3245 + $0x1c] sm:$0xf]
        %v3252 = vld [vmem:[%s3245 + $0x24] sm:$0xf]
        %v3253 = vld [vmem:[%s3245 + $0x28] sm:$0xf]
        %v3254 = vld [vmem:[%s3245 + $0x30] sm:$0xf]
        %v3255 = vld [vmem:[%s3245 + $0x34] sm:$0xf]
        %v3256 = vld [vmem:[%s3245 + $0x3c] sm:$0xf]
        %v3257 = vld [vmem:[%s3245 + $0x40] sm:$0xf]
        %v3258 = vld [vmem:[%s3245 + $0x48] sm:$0xf]
        %v3259 = vld [vmem:[%s3245 + $0x4c] sm:$0xf]
        %v3260 = vld [vmem:[%s3245 + $0x54] sm:$0xf]
        %v3261 = vld [vmem:[%s3245 + $0x58] sm:$0xf]
        %v3262 = vld [vmem:[%s3245 + $0x60] sm:$0xf]
        %v3263 = vld [vmem:[%s3245 + $0x64] sm:$0xf]
        %v3264 = vld [vmem:[%s3245 + $0x6c] sm:$0xf]
        %v3265 = vld [vmem:[%s3245 + $0x70] sm:$0xf]
        %v3266 = vld [vmem:[%s3245 + $0x78] sm:$0xf]
        %v3267 = vld [vmem:[%s3245 + $0x7c] sm:$0xf]
        %v3268 = vld [vmem:[%s3245 + $0x84] sm:$0xf]
        %v3269 = vld [vmem:[%s3245 + $0x88] sm:$0xf]
        %v3270 = vld [vmem:[%s3245 + $0x90] sm:$0xf]
        %v3271 = vld [vmem:[%s3245 + $0x94] sm:$0xf]
        %v3272 = vld [vmem:[%s3245 + $0x9c] sm:$0xf]
        %v3273 = vld [vmem:[%s3245 + $0xa0] sm:$0xf]
        %v3274 = vld [vmem:[%s3245 + $0xa8] sm:$0xf]
        %v3275 = vld [vmem:[%s3245 + $0xac] sm:$0xf]
        %v3276 = vld [vmem:[%s3245 + $0xb4] sm:$0xf]
        %v3277 = vld [vmem:[%s3245 + $0xb8] sm:$0xf]
        %s3278 = scalar_lea.vmem %s1, 12
        %v3279 = vld [vmem:[%s3278] sm:$0x3]
        %v3312 = vunpack.c.l.b16 %v3246
        %v3313 = vunpack.c.l.b16 %v3247
        %v3314 = vunpack.c.l.b16 %v3248
        %v3315 = vunpack.c.l.b16 %v3249
        %v3316 = vunpack.c.l.b16 %v3250
        %v3317 = vunpack.c.l.b16 %v3251
        %v3318 = vunpack.c.l.b16 %v3252
        %v3319 = vunpack.c.l.b16 %v3253
        %v3320 = vunpack.c.l.b16 %v3254
        %v3321 = vunpack.c.l.b16 %v3255
        %v3322 = vunpack.c.l.b16 %v3256
        %v3323 = vunpack.c.l.b16 %v3257
        %v3324 = vunpack.c.l.b16 %v3258
        %v3325 = vunpack.c.l.b16 %v3259
        %v3326 = vunpack.c.l.b16 %v3260
        %v3327 = vunpack.c.l.b16 %v3261
        %v3328 = vunpack.c.l.b16 %v3262
        %v3329 = vunpack.c.l.b16 %v3263
        %v3330 = vunpack.c.l.b16 %v3264
        %v3331 = vunpack.c.l.b16 %v3265
        %v3332 = vunpack.c.l.b16 %v3266
        %v3333 = vunpack.c.l.b16 %v3267
        %v3334 = vunpack.c.l.b16 %v3268
        %v3335 = vunpack.c.l.b16 %v3269
        %v3336 = vunpack.c.l.b16 %v3270
        %v3337 = vunpack.c.l.b16 %v3271
        %v3338 = vunpack.c.l.b16 %v3272
        %v3339 = vunpack.c.l.b16 %v3273
        %v3340 = vunpack.c.l.b16 %v3274
        %v3341 = vunpack.c.l.b16 %v3275
        %v3342 = vunpack.c.l.b16 %v3276
        %v3343 = vunpack.c.l.b16 %v3277
        %v3344 = vpack.c.b16 %v3313, %v3312
        %v3345 = vpack.c.b16 %v3315, %v3314
        %v3346 = vpack.c.b16 %v3317, %v3316
        %v3347 = vpack.c.b16 %v3319, %v3318
        %v3348 = vpack.c.b16 %v3321, %v3320
        %v3349 = vpack.c.b16 %v3323, %v3322
        %v3350 = vpack.c.b16 %v3325, %v3324
        %v3351 = vpack.c.b16 %v3327, %v3326
        %v3352 = vpack.c.b16 %v3329, %v3328
        %v3353 = vpack.c.b16 %v3331, %v3330
        %v3354 = vpack.c.b16 %v3333, %v3332
        %v3355 = vpack.c.b16 %v3335, %v3334
        %v3356 = vpack.c.b16 %v3337, %v3336
        %v3357 = vpack.c.b16 %v3339, %v3338
        %v3358 = vpack.c.b16 %v3341, %v3340
        %v3359 = vpack.c.b16 %v3343, %v3342
        %v3361 = vsel %vm727, %v3344, 0
        %v3364 = vsel %vm727, %v3345, 0
        %v3367 = vsel %vm727, %v3346, 0
        %v3370 = vsel %vm727, %v3347, 0
        %v3373 = vsel %vm727, %v3348, 0
        %v3376 = vsel %vm727, %v3349, 0
        %v3379 = vsel %vm727, %v3350, 0
        %v3382 = vsel %vm727, %v3351, 0
        %v3385 = vsel %vm727, %v3352, 0
        %v3388 = vsel %vm727, %v3353, 0
        %v3391 = vsel %vm727, %v3354, 0
        %v3394 = vsel %vm727, %v3355, 0
        %v3397 = vsel %vm727, %v3356, 0
        %v3400 = vsel %vm727, %v3357, 0
        %v3403 = vsel %vm727, %v3358, 0
        %v3406 = vsel %vm727, %v3359, 0
        %v3409 = vsel %vm776, %v3279, 0
        %3411 = vmatprep.subr.bf16.mxu0 0
        %3412 = vmatpush1.bf16.msra.mxu0 %v3409
        %3413 = vmatprep.subr.bf16.mxu0 0
        %3414 = vmatpush1.bf16.msra.mxu0 0
        %3415 = vmatprep.subr.bf16.mxu0 0
        %3416 = vmatpush1.bf16.msra.mxu0 0
        %3417 = vmatprep.subr.bf16.mxu0 0
        %3418 = vmatpush1.bf16.msra.mxu0 0
        %3419 = vmatprep.subr.bf16.mxu0 0
        %3420 = vmatpush1.bf16.msra.mxu0 0
        %3421 = vmatprep.subr.bf16.mxu0 0
        %3422 = vmatpush1.bf16.msra.mxu0 0
        %3423 = vmatprep.subr.bf16.mxu0 0
        %3424 = vmatpush1.bf16.msra.mxu0 0
        %3425 = vmatprep.subr.bf16.mxu0 0
        %3426 = vmatpush1.bf16.msra.mxu0 0
        %3427 = vmatprep.subr.bf16.mxu0 0
        %3428 = vmatpush1.bf16.msra.mxu0 0
        %3429 = vmatprep.subr.bf16.mxu0 0
        %3430 = vmatpush1.bf16.msra.mxu0 0
        %3431 = vmatprep.subr.bf16.mxu0 0
        %3432 = vmatpush1.bf16.msra.mxu0 0
        %3433 = vmatprep.subr.bf16.mxu0 0
        %3434 = vmatpush1.bf16.msra.mxu0 0
        %3435 = vmatprep.subr.bf16.mxu0 0
        %3436 = vmatpush1.bf16.msra.mxu0 0
        %3437 = vmatprep.subr.bf16.mxu0 0
        %3438 = vmatpush1.bf16.msra.mxu0 0
        %3439 = vmatprep.subr.bf16.mxu0 0
        %3440 = vmatpush1.bf16.msra.mxu0 0
        %3441 = vmatprep.subr.bf16.mxu0 0
        %3442 = vmatpush1.bf16.msra.mxu0 0
        %3443 = vmatprep.mubr.bf16.mxu0 0
        %3444 = vmatmul.mubr.bf16.gmra.mrb[0].mxu0 %v3361
        %v3445 = vpop.f32.mrb[0].mxu0
        %v3446 = vadd.f32 0.0, %v3445
        %v3447 = vpop.f32.mrb[0].mxu0
        %v3448 = vpop.f32.mrb[0].mxu0
        %v3449 = vadd.f32 0.0, %v3448
        %v3450 = vpop.f32.mrb[0].mxu0
        %3451 = vmatprep.mubr.bf16.mxu0 0
        %3452 = vmatmul.mubr.bf16.gmra.mrb[0].mxu0 %v3364
        %v3453 = vpop.f32.mrb[0].mxu0
        %v3454 = vadd.f32 0.0, %v3453
        %v3455 = vpop.f32.mrb[0].mxu0
        %v3456 = vpop.f32.mrb[0].mxu0
        %v3457 = vadd.f32 0.0, %v3456
        %v3458 = vpop.f32.mrb[0].mxu0
        %3459 = vmatprep.mubr.bf16.mxu0 0
        %3460 = vmatmul.mubr.bf16.gmra.mrb[0].mxu0 %v3367
        %v3461 = vpop.f32.mrb[0].mxu0
        %v3462 = vadd.f32 0.0, %v3461
        %v3463 = vpop.f32.mrb[0].mxu0
        %v3464 = vpop.f32.mrb[0].mxu0
        %v3465 = vadd.f32 0.0, %v3464
        %v3466 = vpop.f32.mrb[0].mxu0
        %3467 = vmatprep.mubr.bf16.mxu0 0
        %3468 = vmatmul.mubr.bf16.gmra.mrb[0].mxu0 %v3370
        %v3469 = vpop.f32.mrb[0].mxu0
        %v3470 = vadd.f32 0.0, %v3469
        %v3471 = vpop.f32.mrb[0].mxu0
        %v3472 = vpop.f32.mrb[0].mxu0
        %v3473 = vadd.f32 0.0, %v3472
        %v3474 = vpop.f32.mrb[0].mxu0
        %3475 = vmatprep.mubr.bf16.mxu0 0
        %3476 = vmatmul.mubr.bf16.gmra.mrb[0].mxu0 %v3373
        %v3477 = vpop.f32.mrb[0].mxu0
        %v3478 = vadd.f32 0.0, %v3477
        %v3479 = vpop.f32.mrb[0].mxu0
        %v3480 = vpop.f32.mrb[0].mxu0
        %v3481 = vadd.f32 0.0, %v3480
        %v3482 = vpop.f32.mrb[0].mxu0
        %3483 = vmatprep.mubr.bf16.mxu0 0
        %3484 = vmatmul.mubr.bf16.gmra.mrb[0].mxu0 %v3376
        %v3485 = vpop.f32.mrb[0].mxu0
        %v3486 = vadd.f32 0.0, %v3485
        %v3487 = vpop.f32.mrb[0].mxu0
        %v3488 = vpop.f32.mrb[0].mxu0
        %v3489 = vadd.f32 0.0, %v3488
        %v3490 = vpop.f32.mrb[0].mxu0
        %3491 = vmatprep.mubr.bf16.mxu0 0
        %3492 = vmatmul.mubr.bf16.gmra.mrb[0].mxu0 %v3379
        %v3493 = vpop.f32.mrb[0].mxu0
        %v3494 = vadd.f32 0.0, %v3493
        %v3495 = vpop.f32.mrb[0].mxu0
        %v3496 = vpop.f32.mrb[0].mxu0
        %v3497 = vadd.f32 0.0, %v3496
        %v3498 = vpop.f32.mrb[0].mxu0
        %3499 = vmatprep.mubr.bf16.mxu0 0
        %3500 = vmatmul.mubr.bf16.gmra.mrb[0].mxu0 %v3382
        %v3501 = vpop.f32.mrb[0].mxu0
        %v3502 = vadd.f32 0.0, %v3501
        %v3503 = vpop.f32.mrb[0].mxu0
        %v3504 = vpop.f32.mrb[0].mxu0
        %v3505 = vadd.f32 0.0, %v3504
        %v3506 = vpop.f32.mrb[0].mxu0
        %3507 = vmatprep.mubr.bf16.mxu0 0
        %3508 = vmatmul.mubr.bf16.gmra.mrb[0].mxu0 %v3385
        %v3509 = vpop.f32.mrb[0].mxu0
        %v3510 = vadd.f32 0.0, %v3509
        %v3511 = vpop.f32.mrb[0].mxu0
        %v3512 = vpop.f32.mrb[0].mxu0
        %v3513 = vadd.f32 0.0, %v3512
        %v3514 = vpop.f32.mrb[0].mxu0
        %3515 = vmatprep.mubr.bf16.mxu0 0
        %3516 = vmatmul.mubr.bf16.gmra.mrb[0].mxu0 %v3388
        %v3517 = vpop.f32.mrb[0].mxu0
        %v3518 = vadd.f32 0.0, %v3517
        %v3519 = vpop.f32.mrb[0].mxu0
        %v3520 = vpop.f32.mrb[0].mxu0
        %v3521 = vadd.f32 0.0, %v3520
        %v3522 = vpop.f32.mrb[0].mxu0
        %3523 = vmatprep.mubr.bf16.mxu0 0
        %3524 = vmatmul.mubr.bf16.gmra.mrb[0].mxu0 %v3391
        %v3525 = vpop.f32.mrb[0].mxu0
        %v3526 = vadd.f32 0.0, %v3525
        %v3527 = vpop.f32.mrb[0].mxu0
        %v3528 = vpop.f32.mrb[0].mxu0
        %v3529 = vadd.f32 0.0, %v3528
        %v3530 = vpop.f32.mrb[0].mxu0
        %3531 = vmatprep.mubr.bf16.mxu0 0
        %3532 = vmatmul.mubr.bf16.gmra.mrb[0].mxu0 %v3394
        %v3533 = vpop.f32.mrb[0].mxu0
        %v3534 = vadd.f32 0.0, %v3533
        %v3535 = vpop.f32.mrb[0].mxu0
        %v3536 = vpop.f32.mrb[0].mxu0
        %v3537 = vadd.f32 0.0, %v3536
        %v3538 = vpop.f32.mrb[0].mxu0
        %3539 = vmatprep.mubr.bf16.mxu0 0
        %3540 = vmatmul.mubr.bf16.gmra.mrb[0].mxu0 %v3397
        %v3541 = vpop.f32.mrb[0].mxu0
        %v3542 = vadd.f32 0.0, %v3541
        %v3543 = vpop.f32.mrb[0].mxu0
        %v3544 = vpop.f32.mrb[0].mxu0
        %v3545 = vadd.f32 0.0, %v3544
        %v3546 = vpop.f32.mrb[0].mxu0
        %3547 = vmatprep.mubr.bf16.mxu0 0
        %3548 = vmatmul.mubr.bf16.gmra.mrb[0].mxu0 %v3400
        %v3549 = vpop.f32.mrb[0].mxu0
        %v3550 = vadd.f32 0.0, %v3549
        %v3551 = vpop.f32.mrb[0].mxu0
        %v3552 = vpop.f32.mrb[0].mxu0
        %v3553 = vadd.f32 0.0, %v3552
        %v3554 = vpop.f32.mrb[0].mxu0
        %3555 = vmatprep.mubr.bf16.mxu0 0
        %3556 = vmatmul.mubr.bf16.gmra.mrb[0].mxu0 %v3403
        %v3557 = vpop.f32.mrb[0].mxu0
        %v3558 = vadd.f32 0.0, %v3557
        %v3559 = vpop.f32.mrb[0].mxu0
        %v3560 = vpop.f32.mrb[0].mxu0
        %v3561 = vadd.f32 0.0, %v3560
        %v3562 = vpop.f32.mrb[0].mxu0
        %3563 = vmatprep.mubr.bf16.mxu0 0
        %3564 = vmatmul.mubr.bf16.gmra.mrb[0].mxu0 %v3406
        %v3565 = vpop.f32.mrb[0].mxu0
        %v3566 = vadd.f32 0.0, %v3565
        %v3567 = vpop.f32.mrb[0].mxu0
        %v3568 = vpop.f32.mrb[0].mxu0
        %v3569 = vadd.f32 0.0, %v3568
        %v3570 = vpop.f32.mrb[0].mxu0
        %3571 = vdwg.mxu0
        %v3572 = vadd.f32 %v3213, %v3446
        %v3573 = vadd.f32 %v3214, %v3449
        %v3574 = vadd.f32 %v3215, %v3454
        %v3575 = vadd.f32 %v3216, %v3457
        %v3576 = vadd.f32 %v3217, %v3462
        %v3577 = vadd.f32 %v3218, %v3465
        %v3578 = vadd.f32 %v3219, %v3470
        %v3579 = vadd.f32 %v3220, %v3473
        %v3580 = vadd.f32 %v3221, %v3478
        %v3581 = vadd.f32 %v3222, %v3481
        %v3582 = vadd.f32 %v3223, %v3486
        %v3583 = vadd.f32 %v3224, %v3489
        %v3584 = vadd.f32 %v3225, %v3494
        %v3585 = vadd.f32 %v3226, %v3497
        %v3586 = vadd.f32 %v3227, %v3502
        %v3587 = vadd.f32 %v3228, %v3505
        %v3588 = vadd.f32 %v3229, %v3510
        %v3589 = vadd.f32 %v3230, %v3513
        %v3590 = vadd.f32 %v3231, %v3518
        %v3591 = vadd.f32 %v3232, %v3521
        %v3592 = vadd.f32 %v3233, %v3526
        %v3593 = vadd.f32 %v3234, %v3529
        %v3594 = vadd.f32 %v3235, %v3534
        %v3595 = vadd.f32 %v3236, %v3537
        %v3596 = vadd.f32 %v3237, %v3542
        %v3597 = vadd.f32 %v3238, %v3545
        %v3598 = vadd.f32 %v3239, %v3550
        %v3599 = vadd.f32 %v3240, %v3553
        %v3600 = vadd.f32 %v3241, %v3558
        %v3601 = vadd.f32 %v3242, %v3561
        %v3602 = vadd.f32 %v3243, %v3566
        %v3603 = vadd.f32 %v3244, %v3569
        %v3604 = vld [vmem:[%s3245] sm:$0xf]
        %v3605 = vld [vmem:[%s3245 + $0x4] sm:$0xf]
        %v3606 = vld [vmem:[%s3245 + $0x8] sm:$0x1]
        %v3607 = vld [vmem:[%s3245 + $0xc] sm:$0xf]
        %v3608 = vld [vmem:[%s3245 + $0x10] sm:$0xf]
        %v3609 = vld [vmem:[%s3245 + $0x14] sm:$0x1]
        %v3610 = vld [vmem:[%s3245 + $0x18] sm:$0xf]
        %v3611 = vld [vmem:[%s3245 + $0x1c] sm:$0xf]
        %v3612 = vld [vmem:[%s3245 + $0x20] sm:$0x1]
        %v3613 = vld [vmem:[%s3245 + $0x24] sm:$0xf]
        %v3614 = vld [vmem:[%s3245 + $0x28] sm:$0xf]
        %v3615 = vld [vmem:[%s3245 + $0x2c] sm:$0x1]
        %v3616 = vld [vmem:[%s3245 + $0x30] sm:$0xf]
        %v3617 = vld [vmem:[%s3245 + $0x34] sm:$0xf]
        %v3618 = vld [vmem:[%s3245 + $0x38] sm:$0x1]
        %v3619 = vld [vmem:[%s3245 + $0x3c] sm:$0xf]
        %v3620 = vld [vmem:[%s3245 + $0x40] sm:$0xf]
        %v3621 = vld [vmem:[%s3245 + $0x44] sm:$0x1]
        %v3622 = vld [vmem:[%s3245 + $0x48] sm:$0xf]
        %v3623 = vld [vmem:[%s3245 + $0x4c] sm:$0xf]
        %v3624 = vld [vmem:[%s3245 + $0x50] sm:$0x1]
        %v3625 = vld [vmem:[%s3245 + $0x54] sm:$0xf]
        %v3626 = vld [vmem:[%s3245 + $0x58] sm:$0xf]
        %v3627 = vld [vmem:[%s3245 + $0x5c] sm:$0x1]
        %v3628 = vld [vmem:[%s3245 + $0x60] sm:$0xf]
        %v3629 = vld [vmem:[%s3245 + $0x64] sm:$0xf]
        %v3630 = vld [vmem:[%s3245 + $0x68] sm:$0x1]
        %v3631 = vld [vmem:[%s3245 + $0x6c] sm:$0xf]
        %v3632 = vld [vmem:[%s3245 + $0x70] sm:$0xf]
        %v3633 = vld [vmem:[%s3245 + $0x74] sm:$0x1]
        %v3634 = vld [vmem:[%s3245 + $0x78] sm:$0xf]
        %v3635 = vld [vmem:[%s3245 + $0x7c] sm:$0xf]
        %v3636 = vld [vmem:[%s3245 + $0x80] sm:$0x1]
        %v3637 = vld [vmem:[%s3245 + $0x84] sm:$0xf]
        %v3638 = vld [vmem:[%s3245 + $0x88] sm:$0xf]
        %v3639 = vld [vmem:[%s3245 + $0x8c] sm:$0x1]
        %v3640 = vld [vmem:[%s3245 + $0x90] sm:$0xf]
        %v3641 = vld [vmem:[%s3245 + $0x94] sm:$0xf]
        %v3642 = vld [vmem:[%s3245 + $0x98] sm:$0x1]
        %v3643 = vld [vmem:[%s3245 + $0x9c] sm:$0xf]
        %v3644 = vld [vmem:[%s3245 + $0xa0] sm:$0xf]
        %v3645 = vld [vmem:[%s3245 + $0xa4] sm:$0x1]
        %v3646 = vld [vmem:[%s3245 + $0xa8] sm:$0xf]
        %v3647 = vld [vmem:[%s3245 + $0xac] sm:$0xf]
        %v3648 = vld [vmem:[%s3245 + $0xb0] sm:$0x1]
        %v3649 = vld [vmem:[%s3245 + $0xb4] sm:$0xf]
        %v3650 = vld [vmem:[%s3245 + $0xb8] sm:$0xf]
        %v3651 = vld [vmem:[%s3245 + $0xbc] sm:$0x1]
        %v3653 = vshrl.u32 %v3604, 16
        %v3655 = vrot.slane %v3653, 4
        %v3656 = vshll.u32 %v3604, 16
        %v3658 = vrot.slane %v3656, 5
        %v3659 = vor.u32 %v3655, %v3658
        %v3660 = vrot.slane %v3659, 4
        %v3662 = vshll.u32 %v3605, 16
        %v3664 = vrot.slane %v3662, 5
        %v3665 = vsel %vm292, %v3660, %v3664
        %v3666 = vshrl.u32 %v3605, 16
        %v3668 = vrot.slane %v3666, 4
        %v3669 = vor.u32 %v3668, %v3664
        %v3670 = vrot.slane %v3669, 4
        %v3672 = vshll.u32 %v3606, 16
        %v3674 = vrot.slane %v3672, 5
        %v3675 = vsel %vm292, %v3670, %v3674
        %v3677 = vshrl.u32 %v3607, 16
        %v3679 = vrot.slane %v3677, 4
        %v3680 = vshll.u32 %v3607, 16
        %v3682 = vrot.slane %v3680, 5
        %v3683 = vor.u32 %v3679, %v3682
        %v3684 = vrot.slane %v3683, 4
        %v3686 = vshll.u32 %v3608, 16
        %v3688 = vrot.slane %v3686, 5
        %v3689 = vsel %vm292, %v3684, %v3688
        %v3690 = vshrl.u32 %v3608, 16
        %v3692 = vrot.slane %v3690, 4
        %v3693 = vor.u32 %v3692, %v3688
        %v3694 = vrot.slane %v3693, 4
        %v3696 = vshll.u32 %v3609, 16
        %v3698 = vrot.slane %v3696, 5
        %v3699 = vsel %vm292, %v3694, %v3698
        %v3701 = vshrl.u32 %v3610, 16
        %v3703 = vrot.slane %v3701, 4
        %v3704 = vshll.u32 %v3610, 16
        %v3706 = vrot.slane %v3704, 5
        %v3707 = vor.u32 %v3703, %v3706
        %v3708 = vrot.slane %v3707, 4
        %v3710 = vshll.u32 %v3611, 16
        %v3712 = vrot.slane %v3710, 5
        %v3713 = vsel %vm292, %v3708, %v3712
        %v3714 = vshrl.u32 %v3611, 16
        %v3716 = vrot.slane %v3714, 4
        %v3717 = vor.u32 %v3716, %v3712
        %v3718 = vrot.slane %v3717, 4
        %v3720 = vshll.u32 %v3612, 16
        %v3722 = vrot.slane %v3720, 5
        %v3723 = vsel %vm292, %v3718, %v3722
        %v3725 = vshrl.u32 %v3613, 16
        %v3727 = vrot.slane %v3725, 4
        %v3728 = vshll.u32 %v3613, 16
        %v3730 = vrot.slane %v3728, 5
        %v3731 = vor.u32 %v3727, %v3730
        %v3732 = vrot.slane %v3731, 4
        %v3734 = vshll.u32 %v3614, 16
        %v3736 = vrot.slane %v3734, 5
        %v3737 = vsel %vm292, %v3732, %v3736
        %v3738 = vshrl.u32 %v3614, 16
        %v3740 = vrot.slane %v3738, 4
        %v3741 = vor.u32 %v3740, %v3736
        %v3742 = vrot.slane %v3741, 4
        %v3744 = vshll.u32 %v3615, 16
        %v3746 = vrot.slane %v3744, 5
        %v3747 = vsel %vm292, %v3742, %v3746
        %v3749 = vshrl.u32 %v3616, 16
        %v3751 = vrot.slane %v3749, 4
        %v3752 = vshll.u32 %v3616, 16
        %v3754 = vrot.slane %v3752, 5
        %v3755 = vor.u32 %v3751, %v3754
        %v3756 = vrot.slane %v3755, 4
        %v3758 = vshll.u32 %v3617, 16
        %v3760 = vrot.slane %v3758, 5
        %v3761 = vsel %vm292, %v3756, %v3760
        %v3762 = vshrl.u32 %v3617, 16
        %v3764 = vrot.slane %v3762, 4
        %v3765 = vor.u32 %v3764, %v3760
        %v3766 = vrot.slane %v3765, 4
        %v3768 = vshll.u32 %v3618, 16
        %v3770 = vrot.slane %v3768, 5
        %v3771 = vsel %vm292, %v3766, %v3770
        %v3773 = vshrl.u32 %v3619, 16
        %v3775 = vrot.slane %v3773, 4
        %v3776 = vshll.u32 %v3619, 16
        %v3778 = vrot.slane %v3776, 5
        %v3779 = vor.u32 %v3775, %v3778
        %v3780 = vrot.slane %v3779, 4
        %v3782 = vshll.u32 %v3620, 16
        %v3784 = vrot.slane %v3782, 5
        %v3785 = vsel %vm292, %v3780, %v3784
        %v3786 = vshrl.u32 %v3620, 16
        %v3788 = vrot.slane %v3786, 4
        %v3789 = vor.u32 %v3788, %v3784
        %v3790 = vrot.slane %v3789, 4
        %v3792 = vshll.u32 %v3621, 16
        %v3794 = vrot.slane %v3792, 5
        %v3795 = vsel %vm292, %v3790, %v3794
        %v3797 = vshrl.u32 %v3622, 16
        %v3799 = vrot.slane %v3797, 4
        %v3800 = vshll.u32 %v3622, 16
        %v3802 = vrot.slane %v3800, 5
        %v3803 = vor.u32 %v3799, %v3802
        %v3804 = vrot.slane %v3803, 4
        %v3806 = vshll.u32 %v3623, 16
        %v3808 = vrot.slane %v3806, 5
        %v3809 = vsel %vm292, %v3804, %v3808
        %v3810 = vshrl.u32 %v3623, 16
        %v3812 = vrot.slane %v3810, 4
        %v3813 = vor.u32 %v3812, %v3808
        %v3814 = vrot.slane %v3813, 4
        %v3816 = vshll.u32 %v3624, 16
        %v3818 = vrot.slane %v3816, 5
        %v3819 = vsel %vm292, %v3814, %v3818
        %v3821 = vshrl.u32 %v3625, 16
        %v3823 = vrot.slane %v3821, 4
        %v3824 = vshll.u32 %v3625, 16
        %v3826 = vrot.slane %v3824, 5
        %v3827 = vor.u32 %v3823, %v3826
        %v3828 = vrot.slane %v3827, 4
        %v3830 = vshll.u32 %v3626, 16
        %v3832 = vrot.slane %v3830, 5
        %v3833 = vsel %vm292, %v3828, %v3832
        %v3834 = vshrl.u32 %v3626, 16
        %v3836 = vrot.slane %v3834, 4
        %v3837 = vor.u32 %v3836, %v3832
        %v3838 = vrot.slane %v3837, 4
        %v3840 = vshll.u32 %v3627, 16
        %v3842 = vrot.slane %v3840, 5
        %v3843 = vsel %vm292, %v3838, %v3842
        %v3845 = vshrl.u32 %v3628, 16
        %v3847 = vrot.slane %v3845, 4
        %v3848 = vshll.u32 %v3628, 16
        %v3850 = vrot.slane %v3848, 5
        %v3851 = vor.u32 %v3847, %v3850
        %v3852 = vrot.slane %v3851, 4
        %v3854 = vshll.u32 %v3629, 16
        %v3856 = vrot.slane %v3854, 5
        %v3857 = vsel %vm292, %v3852, %v3856
        %v3858 = vshrl.u32 %v3629, 16
        %v3860 = vrot.slane %v3858, 4
        %v3861 = vor.u32 %v3860, %v3856
        %v3862 = vrot.slane %v3861, 4
        %v3864 = vshll.u32 %v3630, 16
        %v3866 = vrot.slane %v3864, 5
        %v3867 = vsel %vm292, %v3862, %v3866
        %v3869 = vshrl.u32 %v3631, 16
        %v3871 = vrot.slane %v3869, 4
        %v3872 = vshll.u32 %v3631, 16
        %v3874 = vrot.slane %v3872, 5
        %v3875 = vor.u32 %v3871, %v3874
        %v3876 = vrot.slane %v3875, 4
        %v3878 = vshll.u32 %v3632, 16
        %v3880 = vrot.slane %v3878, 5
        %v3881 = vsel %vm292, %v3876, %v3880
        %v3882 = vshrl.u32 %v3632, 16
        %v3884 = vrot.slane %v3882, 4
        %v3885 = vor.u32 %v3884, %v3880
        %v3886 = vrot.slane %v3885, 4
        %v3888 = vshll.u32 %v3633, 16
        %v3890 = vrot.slane %v3888, 5
        %v3891 = vsel %vm292, %v3886, %v3890
        %v3893 = vshrl.u32 %v3634, 16
        %v3895 = vrot.slane %v3893, 4
        %v3896 = vshll.u32 %v3634, 16
        %v3898 = vrot.slane %v3896, 5
        %v3899 = vor.u32 %v3895, %v3898
        %v3900 = vrot.slane %v3899, 4
        %v3902 = vshll.u32 %v3635, 16
        %v3904 = vrot.slane %v3902, 5
        %v3905 = vsel %vm292, %v3900, %v3904
        %v3906 = vshrl.u32 %v3635, 16
        %v3908 = vrot.slane %v3906, 4
        %v3909 = vor.u32 %v3908, %v3904
        %v3910 = vrot.slane %v3909, 4
        %v3912 = vshll.u32 %v3636, 16
        %v3914 = vrot.slane %v3912, 5
        %v3915 = vsel %vm292, %v3910, %v3914
        %v3917 = vshrl.u32 %v3637, 16
        %v3919 = vrot.slane %v3917, 4
        %v3920 = vshll.u32 %v3637, 16
        %v3922 = vrot.slane %v3920, 5
        %v3923 = vor.u32 %v3919, %v3922
        %v3924 = vrot.slane %v3923, 4
        %v3926 = vshll.u32 %v3638, 16
        %v3928 = vrot.slane %v3926, 5
        %v3929 = vsel %vm292, %v3924, %v3928
        %v3930 = vshrl.u32 %v3638, 16
        %v3932 = vrot.slane %v3930, 4
        %v3933 = vor.u32 %v3932, %v3928
        %v3934 = vrot.slane %v3933, 4
        %v3936 = vshll.u32 %v3639, 16
        %v3938 = vrot.slane %v3936, 5
        %v3939 = vsel %vm292, %v3934, %v3938
        %v3941 = vshrl.u32 %v3640, 16
        %v3943 = vrot.slane %v3941, 4
        %v3944 = vshll.u32 %v3640, 16
        %v3946 = vrot.slane %v3944, 5
        %v3947 = vor.u32 %v3943, %v3946
        %v3948 = vrot.slane %v3947, 4
        %v3950 = vshll.u32 %v3641, 16
        %v3952 = vrot.slane %v3950, 5
        %v3953 = vsel %vm292, %v3948, %v3952
        %v3954 = vshrl.u32 %v3641, 16
        %v3956 = vrot.slane %v3954, 4
        %v3957 = vor.u32 %v3956, %v3952
        %v3958 = vrot.slane %v3957, 4
        %v3960 = vshll.u32 %v3642, 16
        %v3962 = vrot.slane %v3960, 5
        %v3963 = vsel %vm292, %v3958, %v3962
        %v3965 = vshrl.u32 %v3643, 16
        %v3967 = vrot.slane %v3965, 4
        %v3968 = vshll.u32 %v3643, 16
        %v3970 = vrot.slane %v3968, 5
        %v3971 = vor.u32 %v3967, %v3970
        %v3972 = vrot.slane %v3971, 4
        %v3974 = vshll.u32 %v3644, 16
        %v3976 = vrot.slane %v3974, 5
        %v3977 = vsel %vm292, %v3972, %v3976
        %v3978 = vshrl.u32 %v3644, 16
        %v3980 = vrot.slane %v3978, 4
        %v3981 = vor.u32 %v3980, %v3976
        %v3982 = vrot.slane %v3981, 4
        %v3984 = vshll.u32 %v3645, 16
        %v3986 = vrot.slane %v3984, 5
        %v3987 = vsel %vm292, %v3982, %v3986
        %v3989 = vshrl.u32 %v3646, 16
        %v3991 = vrot.slane %v3989, 4
        %v3992 = vshll.u32 %v3646, 16
        %v3994 = vrot.slane %v3992, 5
        %v3995 = vor.u32 %v3991, %v3994
        %v3996 = vrot.slane %v3995, 4
        %v3998 = vshll.u32 %v3647, 16
        %v4000 = vrot.slane %v3998, 5
        %v4001 = vsel %vm292, %v3996, %v4000
        %v4002 = vshrl.u32 %v3647, 16
        %v4004 = vrot.slane %v4002, 4
        %v4005 = vor.u32 %v4004, %v4000
        %v4006 = vrot.slane %v4005, 4
        %v4008 = vshll.u32 %v3648, 16
        %v4010 = vrot.slane %v4008, 5
        %v4011 = vsel %vm292, %v4006, %v4010
        %v4013 = vshrl.u32 %v3649, 16
        %v4015 = vrot.slane %v4013, 4
        %v4016 = vshll.u32 %v3649, 16
        %v4018 = vrot.slane %v4016, 5
        %v4019 = vor.u32 %v4015, %v4018
        %v4020 = vrot.slane %v4019, 4
        %v4022 = vshll.u32 %v3650, 16
        %v4024 = vrot.slane %v4022, 5
        %v4025 = vsel %vm292, %v4020, %v4024
        %v4026 = vshrl.u32 %v3650, 16
        %v4028 = vrot.slane %v4026, 4
        %v4029 = vor.u32 %v4028, %v4024
        %v4030 = vrot.slane %v4029, 4
        %v4032 = vshll.u32 %v3651, 16
        %v4034 = vrot.slane %v4032, 5
        %v4035 = vsel %vm292, %v4030, %v4034
        %s4036 = scalar_lea.vmem %s1, 14
        %v4037 = vld [vmem:[%s4036] sm:$0x3]
        %v4038 = vunpack.c.l.b16 %v3665
        %v4039 = vunpack.c.l.b16 %v3675
        %v4040 = vunpack.c.l.b16 %v3689
        %v4041 = vunpack.c.l.b16 %v3699
        %v4042 = vunpack.c.l.b16 %v3713
        %v4043 = vunpack.c.l.b16 %v3723
        %v4044 = vunpack.c.l.b16 %v3737
        %v4045 = vunpack.c.l.b16 %v3747
        %v4046 = vunpack.c.l.b16 %v3761
        %v4047 = vunpack.c.l.b16 %v3771
        %v4048 = vunpack.c.l.b16 %v3785
        %v4049 = vunpack.c.l.b16 %v3795
        %v4050 = vunpack.c.l.b16 %v3809
        %v4051 = vunpack.c.l.b16 %v3819
        %v4052 = vunpack.c.l.b16 %v3833
        %v4053 = vunpack.c.l.b16 %v3843
        %v4054 = vunpack.c.l.b16 %v3857
        %v4055 = vunpack.c.l.b16 %v3867
        %v4056 = vunpack.c.l.b16 %v3881
        %v4057 = vunpack.c.l.b16 %v3891
        %v4058 = vunpack.c.l.b16 %v3905
        %v4059 = vunpack.c.l.b16 %v3915
        %v4060 = vunpack.c.l.b16 %v3929
        %v4061 = vunpack.c.l.b16 %v3939
        %v4062 = vunpack.c.l.b16 %v3953
        %v4063 = vunpack.c.l.b16 %v3963
        %v4064 = vunpack.c.l.b16 %v3977
        %v4065 = vunpack.c.l.b16 %v3987
        %v4066 = vunpack.c.l.b16 %v4001
        %v4067 = vunpack.c.l.b16 %v4011
        %v4068 = vunpack.c.l.b16 %v4025
        %v4069 = vunpack.c.l.b16 %v4035
        %v4070 = vpack.c.b16 %v4039, %v4038
        %v4071 = vpack.c.b16 %v4041, %v4040
        %v4072 = vpack.c.b16 %v4043, %v4042
        %v4073 = vpack.c.b16 %v4045, %v4044
        %v4074 = vpack.c.b16 %v4047, %v4046
        %v4075 = vpack.c.b16 %v4049, %v4048
        %v4076 = vpack.c.b16 %v4051, %v4050
        %v4077 = vpack.c.b16 %v4053, %v4052
        %v4078 = vpack.c.b16 %v4055, %v4054
        %v4079 = vpack.c.b16 %v4057, %v4056
        %v4080 = vpack.c.b16 %v4059, %v4058
        %v4081 = vpack.c.b16 %v4061, %v4060
        %v4082 = vpack.c.b16 %v4063, %v4062
        %v4083 = vpack.c.b16 %v4065, %v4064
        %v4084 = vpack.c.b16 %v4067, %v4066
        %v4085 = vpack.c.b16 %v4069, %v4068
        %v4087 = vsel %vm727, %v4070, 0
        %v4090 = vsel %vm727, %v4071, 0
        %v4093 = vsel %vm727, %v4072, 0
        %v4096 = vsel %vm727, %v4073, 0
        %v4099 = vsel %vm727, %v4074, 0
        %v4102 = vsel %vm727, %v4075, 0
        %v4105 = vsel %vm727, %v4076, 0
        %v4108 = vsel %vm727, %v4077, 0
        %v4111 = vsel %vm727, %v4078, 0
        %v4114 = vsel %vm727, %v4079, 0
        %v4117 = vsel %vm727, %v4080, 0
        %v4120 = vsel %vm727, %v4081, 0
        %v4123 = vsel %vm727, %v4082, 0
        %v4126 = vsel %vm727, %v4083, 0
        %v4129 = vsel %vm727, %v4084, 0
        %v4132 = vsel %vm727, %v4085, 0
        %v4135 = vsel %vm776, %v4037, 0
        %4137 = vmatprep.subr.bf16.mxu0 0
        %4138 = vmatpush1.bf16.msra.mxu0 %v4135
        %4139 = vmatprep.subr.bf16.mxu0 0
        %4140 = vmatpush1.bf16.msra.mxu0 0
        %4141 = vmatprep.subr.bf16.mxu0 0
        %4142 = vmatpush1.bf16.msra.mxu0 0
        %4143 = vmatprep.subr.bf16.mxu0 0
        %4144 = vmatpush1.bf16.msra.mxu0 0
        %4145 = vmatprep.subr.bf16.mxu0 0
        %4146 = vmatpush1.bf16.msra.mxu0 0
        %4147 = vmatprep.subr.bf16.mxu0 0
        %4148 = vmatpush1.bf16.msra.mxu0 0
        %4149 = vmatprep.subr.bf16.mxu0 0
        %4150 = vmatpush1.bf16.msra.mxu0 0
        %4151 = vmatprep.subr.bf16.mxu0 0
        %4152 = vmatpush1.bf16.msra.mxu0 0
        %4153 = vmatprep.subr.bf16.mxu0 0
        %4154 = vmatpush1.bf16.msra.mxu0 0
        %4155 = vmatprep.subr.bf16.mxu0 0
        %4156 = vmatpush1.bf16.msra.mxu0 0
        %4157 = vmatprep.subr.bf16.mxu0 0
        %4158 = vmatpush1.bf16.msra.mxu0 0
        %4159 = vmatprep.subr.bf16.mxu0 0
        %4160 = vmatpush1.bf16.msra.mxu0 0
        %4161 = vmatprep.subr.bf16.mxu0 0
        %4162 = vmatpush1.bf16.msra.mxu0 0
        %4163 = vmatprep.subr.bf16.mxu0 0
        %4164 = vmatpush1.bf16.msra.mxu0 0
        %4165 = vmatprep.subr.bf16.mxu0 0
        %4166 = vmatpush1.bf16.msra.mxu0 0
        %4167 = vmatprep.subr.bf16.mxu0 0
        %4168 = vmatpush1.bf16.msra.mxu0 0
        %4169 = vmatprep.mubr.bf16.mxu0 0
        %4170 = vmatmul.mubr.bf16.gmra.mrb[0].mxu0 %v4087
        %v4171 = vpop.f32.mrb[0].mxu0
        %v4172 = vadd.f32 0.0, %v4171
        %v4173 = vpop.f32.mrb[0].mxu0
        %v4174 = vpop.f32.mrb[0].mxu0
        %v4175 = vadd.f32 0.0, %v4174
        %v4176 = vpop.f32.mrb[0].mxu0
        %4177 = vmatprep.mubr.bf16.mxu0 0
        %4178 = vmatmul.mubr.bf16.gmra.mrb[0].mxu0 %v4090
        %v4179 = vpop.f32.mrb[0].mxu0
        %v4180 = vadd.f32 0.0, %v4179
        %v4181 = vpop.f32.mrb[0].mxu0
        %v4182 = vpop.f32.mrb[0].mxu0
        %v4183 = vadd.f32 0.0, %v4182
        %v4184 = vpop.f32.mrb[0].mxu0
        %4185 = vmatprep.mubr.bf16.mxu0 0
        %4186 = vmatmul.mubr.bf16.gmra.mrb[0].mxu0 %v4093
        %v4187 = vpop.f32.mrb[0].mxu0
        %v4188 = vadd.f32 0.0, %v4187
        %v4189 = vpop.f32.mrb[0].mxu0
        %v4190 = vpop.f32.mrb[0].mxu0
        %v4191 = vadd.f32 0.0, %v4190
        %v4192 = vpop.f32.mrb[0].mxu0
        %4193 = vmatprep.mubr.bf16.mxu0 0
        %4194 = vmatmul.mubr.bf16.gmra.mrb[0].mxu0 %v4096
        %v4195 = vpop.f32.mrb[0].mxu0
        %v4196 = vadd.f32 0.0, %v4195
        %v4197 = vpop.f32.mrb[0].mxu0
        %v4198 = vpop.f32.mrb[0].mxu0
        %v4199 = vadd.f32 0.0, %v4198
        %v4200 = vpop.f32.mrb[0].mxu0
        %4201 = vmatprep.mubr.bf16.mxu0 0
        %4202 = vmatmul.mubr.bf16.gmra.mrb[0].mxu0 %v4099
        %v4203 = vpop.f32.mrb[0].mxu0
        %v4204 = vadd.f32 0.0, %v4203
        %v4205 = vpop.f32.mrb[0].mxu0
        %v4206 = vpop.f32.mrb[0].mxu0
        %v4207 = vadd.f32 0.0, %v4206
        %v4208 = vpop.f32.mrb[0].mxu0
        %4209 = vmatprep.mubr.bf16.mxu0 0
        %4210 = vmatmul.mubr.bf16.gmra.mrb[0].mxu0 %v4102
        %v4211 = vpop.f32.mrb[0].mxu0
        %v4212 = vadd.f32 0.0, %v4211
        %v4213 = vpop.f32.mrb[0].mxu0
        %v4214 = vpop.f32.mrb[0].mxu0
        %v4215 = vadd.f32 0.0, %v4214
        %v4216 = vpop.f32.mrb[0].mxu0
        %4217 = vmatprep.mubr.bf16.mxu0 0
        %4218 = vmatmul.mubr.bf16.gmra.mrb[0].mxu0 %v4105
        %v4219 = vpop.f32.mrb[0].mxu0
        %v4220 = vadd.f32 0.0, %v4219
        %v4221 = vpop.f32.mrb[0].mxu0
        %v4222 = vpop.f32.mrb[0].mxu0
        %v4223 = vadd.f32 0.0, %v4222
        %v4224 = vpop.f32.mrb[0].mxu0
        %4225 = vmatprep.mubr.bf16.mxu0 0
        %4226 = vmatmul.mubr.bf16.gmra.mrb[0].mxu0 %v4108
        %v4227 = vpop.f32.mrb[0].mxu0
        %v4228 = vadd.f32 0.0, %v4227
        %v4229 = vpop.f32.mrb[0].mxu0
        %v4230 = vpop.f32.mrb[0].mxu0
        %v4231 = vadd.f32 0.0, %v4230
        %v4232 = vpop.f32.mrb[0].mxu0
        %4233 = vmatprep.mubr.bf16.mxu0 0
        %4234 = vmatmul.mubr.bf16.gmra.mrb[0].mxu0 %v4111
        %v4235 = vpop.f32.mrb[0].mxu0
        %v4236 = vadd.f32 0.0, %v4235
        %v4237 = vpop.f32.mrb[0].mxu0
        %v4238 = vpop.f32.mrb[0].mxu0
        %v4239 = vadd.f32 0.0, %v4238
        %v4240 = vpop.f32.mrb[0].mxu0
        %4241 = vmatprep.mubr.bf16.mxu0 0
        %4242 = vmatmul.mubr.bf16.gmra.mrb[0].mxu0 %v4114
        %v4243 = vpop.f32.mrb[0].mxu0
        %v4244 = vadd.f32 0.0, %v4243
        %v4245 = vpop.f32.mrb[0].mxu0
        %v4246 = vpop.f32.mrb[0].mxu0
        %v4247 = vadd.f32 0.0, %v4246
        %v4248 = vpop.f32.mrb[0].mxu0
        %4249 = vmatprep.mubr.bf16.mxu0 0
        %4250 = vmatmul.mubr.bf16.gmra.mrb[0].mxu0 %v4117
        %v4251 = vpop.f32.mrb[0].mxu0
        %v4252 = vadd.f32 0.0, %v4251
        %v4253 = vpop.f32.mrb[0].mxu0
        %v4254 = vpop.f32.mrb[0].mxu0
        %v4255 = vadd.f32 0.0, %v4254
        %v4256 = vpop.f32.mrb[0].mxu0
        %4257 = vmatprep.mubr.bf16.mxu0 0
        %4258 = vmatmul.mubr.bf16.gmra.mrb[0].mxu0 %v4120
        %v4259 = vpop.f32.mrb[0].mxu0
        %v4260 = vadd.f32 0.0, %v4259
        %v4261 = vpop.f32.mrb[0].mxu0
        %v4262 = vpop.f32.mrb[0].mxu0
        %v4263 = vadd.f32 0.0, %v4262
        %v4264 = vpop.f32.mrb[0].mxu0
        %4265 = vmatprep.mubr.bf16.mxu0 0
        %4266 = vmatmul.mubr.bf16.gmra.mrb[0].mxu0 %v4123
        %v4267 = vpop.f32.mrb[0].mxu0
        %v4268 = vadd.f32 0.0, %v4267
        %v4269 = vpop.f32.mrb[0].mxu0
        %v4270 = vpop.f32.mrb[0].mxu0
        %v4271 = vadd.f32 0.0, %v4270
        %v4272 = vpop.f32.mrb[0].mxu0
        %4273 = vmatprep.mubr.bf16.mxu0 0
        %4274 = vmatmul.mubr.bf16.gmra.mrb[0].mxu0 %v4126
        %v4275 = vpop.f32.mrb[0].mxu0
        %v4276 = vadd.f32 0.0, %v4275
        %v4277 = vpop.f32.mrb[0].mxu0
        %v4278 = vpop.f32.mrb[0].mxu0
        %v4279 = vadd.f32 0.0, %v4278
        %v4280 = vpop.f32.mrb[0].mxu0
        %4281 = vmatprep.mubr.bf16.mxu0 0
        %4282 = vmatmul.mubr.bf16.gmra.mrb[0].mxu0 %v4129
        %v4283 = vpop.f32.mrb[0].mxu0
        %v4284 = vadd.f32 0.0, %v4283
        %v4285 = vpop.f32.mrb[0].mxu0
        %v4286 = vpop.f32.mrb[0].mxu0
        %v4287 = vadd.f32 0.0, %v4286
        %v4288 = vpop.f32.mrb[0].mxu0
        %4289 = vmatprep.mubr.bf16.mxu0 0
        %4290 = vmatmul.mubr.bf16.gmra.mrb[0].mxu0 %v4132
        %v4291 = vpop.f32.mrb[0].mxu0
        %v4292 = vadd.f32 0.0, %v4291
        %v4293 = vpop.f32.mrb[0].mxu0
        %v4294 = vpop.f32.mrb[0].mxu0
        %v4295 = vadd.f32 0.0, %v4294
        %v4296 = vpop.f32.mrb[0].mxu0
        %4297 = vdwg.mxu0
        %v4298 = vadd.f32 %v3572, %v4172
        %v4299 = vadd.f32 %v3573, %v4175
        %v4300 = vadd.f32 %v3574, %v4180
        %v4301 = vadd.f32 %v3575, %v4183
        %v4302 = vadd.f32 %v3576, %v4188
        %v4303 = vadd.f32 %v3577, %v4191
        %v4304 = vadd.f32 %v3578, %v4196
        %v4305 = vadd.f32 %v3579, %v4199
        %v4306 = vadd.f32 %v3580, %v4204
        %v4307 = vadd.f32 %v3581, %v4207
        %v4308 = vadd.f32 %v3582, %v4212
        %v4309 = vadd.f32 %v3583, %v4215
        %v4310 = vadd.f32 %v3584, %v4220
        %v4311 = vadd.f32 %v3585, %v4223
        %v4312 = vadd.f32 %v3586, %v4228
        %v4313 = vadd.f32 %v3587, %v4231
        %v4314 = vadd.f32 %v3588, %v4236
        %v4315 = vadd.f32 %v3589, %v4239
        %v4316 = vadd.f32 %v3590, %v4244
        %v4317 = vadd.f32 %v3591, %v4247
        %v4318 = vadd.f32 %v3592, %v4252
        %v4319 = vadd.f32 %v3593, %v4255
        %v4320 = vadd.f32 %v3594, %v4260
        %v4321 = vadd.f32 %v3595, %v4263
        %v4322 = vadd.f32 %v3596, %v4268
        %v4323 = vadd.f32 %v3597, %v4271
        %v4324 = vadd.f32 %v3598, %v4276
        %v4325 = vadd.f32 %v3599, %v4279
        %v4326 = vadd.f32 %v3600, %v4284
        %v4327 = vadd.f32 %v3601, %v4287
        %v4328 = vadd.f32 %v3602, %v4292
        %v4329 = vadd.f32 %v3603, %v4295
        %v4330 = vld [vmem:[%s3245] sm:$0xe]
        %v4331 = vld [vmem:[%s3245 + $0xc] sm:$0xe]
        %v4332 = vld [vmem:[%s3245 + $0x18] sm:$0xe]
        %v4333 = vld [vmem:[%s3245 + $0x24] sm:$0xe]
        %v4334 = vld [vmem:[%s3245 + $0x30] sm:$0xe]
        %v4335 = vld [vmem:[%s3245 + $0x3c] sm:$0xe]
        %v4336 = vld [vmem:[%s3245 + $0x48] sm:$0xe]
        %v4337 = vld [vmem:[%s3245 + $0x54] sm:$0xe]
        %v4338 = vld [vmem:[%s3245 + $0x60] sm:$0xe]
        %v4339 = vld [vmem:[%s3245 + $0x6c] sm:$0xe]
        %v4340 = vld [vmem:[%s3245 + $0x78] sm:$0xe]
        %v4341 = vld [vmem:[%s3245 + $0x84] sm:$0xe]
        %v4342 = vld [vmem:[%s3245 + $0x90] sm:$0xe]
        %v4343 = vld [vmem:[%s3245 + $0x9c] sm:$0xe]
        %v4344 = vld [vmem:[%s3245 + $0xa8] sm:$0xe]
        %v4345 = vld [vmem:[%s3245 + $0xb4] sm:$0xe]
        %v4394 = vrot.slane %v4330, 5
        %v4395 = vrot.slane %v4394, 4
        %v4396 = vrot.slane %v3605, 5
        %v4397 = vsel %vm1283, %v4395, %v4396
        %v4398 = vrot.slane %v4396, 4
        %v4399 = vrot.slane %v3606, 5
        %v4400 = vsel %vm1283, %v4398, %v4399
        %v4401 = vrot.slane %v4331, 5
        %v4402 = vrot.slane %v4401, 4
        %v4403 = vrot.slane %v3608, 5
        %v4404 = vsel %vm1283, %v4402, %v4403
        %v4405 = vrot.slane %v4403, 4
        %v4406 = vrot.slane %v3609, 5
        %v4407 = vsel %vm1283, %v4405, %v4406
        %v4408 = vrot.slane %v4332, 5
        %v4409 = vrot.slane %v4408, 4
        %v4410 = vrot.slane %v3611, 5
        %v4411 = vsel %vm1283, %v4409, %v4410
        %v4412 = vrot.slane %v4410, 4
        %v4413 = vrot.slane %v3612, 5
        %v4414 = vsel %vm1283, %v4412, %v4413
        %v4415 = vrot.slane %v4333, 5
        %v4416 = vrot.slane %v4415, 4
        %v4417 = vrot.slane %v3614, 5
        %v4418 = vsel %vm1283, %v4416, %v4417
        %v4419 = vrot.slane %v4417, 4
        %v4420 = vrot.slane %v3615, 5
        %v4421 = vsel %vm1283, %v4419, %v4420
        %v4422 = vrot.slane %v4334, 5
        %v4423 = vrot.slane %v4422, 4
        %v4424 = vrot.slane %v3617, 5
        %v4425 = vsel %vm1283, %v4423, %v4424
        %v4426 = vrot.slane %v4424, 4
        %v4427 = vrot.slane %v3618, 5
        %v4428 = vsel %vm1283, %v4426, %v4427
        %v4429 = vrot.slane %v4335, 5
        %v4430 = vrot.slane %v4429, 4
        %v4431 = vrot.slane %v3620, 5
        %v4432 = vsel %vm1283, %v4430, %v4431
        %v4433 = vrot.slane %v4431, 4
        %v4434 = vrot.slane %v3621, 5
        %v4435 = vsel %vm1283, %v4433, %v4434
        %v4436 = vrot.slane %v4336, 5
        %v4437 = vrot.slane %v4436, 4
        %v4438 = vrot.slane %v3623, 5
        %v4439 = vsel %vm1283, %v4437, %v4438
        %v4440 = vrot.slane %v4438, 4
        %v4441 = vrot.slane %v3624, 5
        %v4442 = vsel %vm1283, %v4440, %v4441
        %v4443 = vrot.slane %v4337, 5
        %v4444 = vrot.slane %v4443, 4
        %v4445 = vrot.slane %v3626, 5
        %v4446 = vsel %vm1283, %v4444, %v4445
        %v4447 = vrot.slane %v4445, 4
        %v4448 = vrot.slane %v3627, 5
        %v4449 = vsel %vm1283, %v4447, %v4448
        %v4450 = vrot.slane %v4338, 5
        %v4451 = vrot.slane %v4450, 4
        %v4452 = vrot.slane %v3629, 5
        %v4453 = vsel %vm1283, %v4451, %v4452
        %v4454 = vrot.slane %v4452, 4
        %v4455 = vrot.slane %v3630, 5
        %v4456 = vsel %vm1283, %v4454, %v4455
        %v4457 = vrot.slane %v4339, 5
        %v4458 = vrot.slane %v4457, 4
        %v4459 = vrot.slane %v3632, 5
        %v4460 = vsel %vm1283, %v4458, %v4459
        %v4461 = vrot.slane %v4459, 4
        %v4462 = vrot.slane %v3633, 5
        %v4463 = vsel %vm1283, %v4461, %v4462
        %v4464 = vrot.slane %v4340, 5
        %v4465 = vrot.slane %v4464, 4
        %v4466 = vrot.slane %v3635, 5
        %v4467 = vsel %vm1283, %v4465, %v4466
        %v4468 = vrot.slane %v4466, 4
        %v4469 = vrot.slane %v3636, 5
        %v4470 = vsel %vm1283, %v4468, %v4469
        %v4471 = vrot.slane %v4341, 5
        %v4472 = vrot.slane %v4471, 4
        %v4473 = vrot.slane %v3638, 5
        %v4474 = vsel %vm1283, %v4472, %v4473
        %v4475 = vrot.slane %v4473, 4
        %v4476 = vrot.slane %v3639, 5
        %v4477 = vsel %vm1283, %v4475, %v4476
        %v4478 = vrot.slane %v4342, 5
        %v4479 = vrot.slane %v4478, 4
        %v4480 = vrot.slane %v3641, 5
        %v4481 = vsel %vm1283, %v4479, %v4480
        %v4482 = vrot.slane %v4480, 4
        %v4483 = vrot.slane %v3642, 5
        %v4484 = vsel %vm1283, %v4482, %v4483
        %v4485 = vrot.slane %v4343, 5
        %v4486 = vrot.slane %v4485, 4
        %v4487 = vrot.slane %v3644, 5
        %v4488 = vsel %vm1283, %v4486, %v4487
        %v4489 = vrot.slane %v4487, 4
        %v4490 = vrot.slane %v3645, 5
        %v4491 = vsel %vm1283, %v4489, %v4490
        %v4492 = vrot.slane %v4344, 5
        %v4493 = vrot.slane %v4492, 4
        %v4494 = vrot.slane %v3647, 5
        %v4495 = vsel %vm1283, %v4493, %v4494
        %v4496 = vrot.slane %v4494, 4
        %v4497 = vrot.slane %v3648, 5
        %v4498 = vsel %vm1283, %v4496, %v4497
        %v4499 = vrot.slane %v4345, 5
        %v4500 = vrot.slane %v4499, 4
        %v4501 = vrot.slane %v3650, 5
        %v4502 = vsel %vm1283, %v4500, %v4501
        %v4503 = vrot.slane %v4501, 4
        %v4504 = vrot.slane %v3651, 5
        %v4505 = vsel %vm1283, %v4503, %v4504
        %s4506 = scalar_lea.vmem %s1, 16
        %v4507 = vld [vmem:[%s4506] sm:$0x3]
        %v4508 = vunpack.c.l.b16 %v4397
        %v4509 = vunpack.c.l.b16 %v4400
        %v4510 = vunpack.c.l.b16 %v4404
        %v4511 = vunpack.c.l.b16 %v4407
        %v4512 = vunpack.c.l.b16 %v4411
        %v4513 = vunpack.c.l.b16 %v4414
        %v4514 = vunpack.c.l.b16 %v4418
        %v4515 = vunpack.c.l.b16 %v4421
        %v4516 = vunpack.c.l.b16 %v4425
        %v4517 = vunpack.c.l.b16 %v4428
        %v4518 = vunpack.c.l.b16 %v4432
        %v4519 = vunpack.c.l.b16 %v4435
        %v4520 = vunpack.c.l.b16 %v4439
        %v4521 = vunpack.c.l.b16 %v4442
        %v4522 = vunpack.c.l.b16 %v4446
        %v4523 = vunpack.c.l.b16 %v4449
        %v4524 = vunpack.c.l.b16 %v4453
        %v4525 = vunpack.c.l.b16 %v4456
        %v4526 = vunpack.c.l.b16 %v4460
        %v4527 = vunpack.c.l.b16 %v4463
        %v4528 = vunpack.c.l.b16 %v4467
        %v4529 = vunpack.c.l.b16 %v4470
        %v4530 = vunpack.c.l.b16 %v4474
        %v4531 = vunpack.c.l.b16 %v4477
        %v4532 = vunpack.c.l.b16 %v4481
        %v4533 = vunpack.c.l.b16 %v4484
        %v4534 = vunpack.c.l.b16 %v4488
        %v4535 = vunpack.c.l.b16 %v4491
        %v4536 = vunpack.c.l.b16 %v4495
        %v4537 = vunpack.c.l.b16 %v4498
        %v4538 = vunpack.c.l.b16 %v4502
        %v4539 = vunpack.c.l.b16 %v4505
        %v4540 = vpack.c.b16 %v4509, %v4508
        %v4541 = vpack.c.b16 %v4511, %v4510
        %v4542 = vpack.c.b16 %v4513, %v4512
        %v4543 = vpack.c.b16 %v4515, %v4514
        %v4544 = vpack.c.b16 %v4517, %v4516
        %v4545 = vpack.c.b16 %v4519, %v4518
        %v4546 = vpack.c.b16 %v4521, %v4520
        %v4547 = vpack.c.b16 %v4523, %v4522
        %v4548 = vpack.c.b16 %v4525, %v4524
        %v4549 = vpack.c.b16 %v4527, %v4526
        %v4550 = vpack.c.b16 %v4529, %v4528
        %v4551 = vpack.c.b16 %v4531, %v4530
        %v4552 = vpack.c.b16 %v4533, %v4532
        %v4553 = vpack.c.b16 %v4535, %v4534
        %v4554 = vpack.c.b16 %v4537, %v4536
        %v4555 = vpack.c.b16 %v4539, %v4538
        %v4557 = vsel %vm727, %v4540, 0
        %v4560 = vsel %vm727, %v4541, 0
        %v4563 = vsel %vm727, %v4542, 0
        %v4566 = vsel %vm727, %v4543, 0
        %v4569 = vsel %vm727, %v4544, 0
        %v4572 = vsel %vm727, %v4545, 0
        %v4575 = vsel %vm727, %v4546, 0
        %v4578 = vsel %vm727, %v4547, 0
        %v4581 = vsel %vm727, %v4548, 0
        %v4584 = vsel %vm727, %v4549, 0
        %v4587 = vsel %vm727, %v4550, 0
        %v4590 = vsel %vm727, %v4551, 0
        %v4593 = vsel %vm727, %v4552, 0
        %v4596 = vsel %vm727, %v4553, 0
        %v4599 = vsel %vm727, %v4554, 0
        %v4602 = vsel %vm727, %v4555, 0
        %v4605 = vsel %vm776, %v4507, 0
        %4607 = vmatprep.subr.bf16.mxu0 0
        %4608 = vmatpush1.bf16.msra.mxu0 %v4605
        %4609 = vmatprep.subr.bf16.mxu0 0
        %4610 = vmatpush1.bf16.msra.mxu0 0
        %4611 = vmatprep.subr.bf16.mxu0 0
        %4612 = vmatpush1.bf16.msra.mxu0 0
        %4613 = vmatprep.subr.bf16.mxu0 0
        %4614 = vmatpush1.bf16.msra.mxu0 0
        %4615 = vmatprep.subr.bf16.mxu0 0
        %4616 = vmatpush1.bf16.msra.mxu0 0
        %4617 = vmatprep.subr.bf16.mxu0 0
        %4618 = vmatpush1.bf16.msra.mxu0 0
        %4619 = vmatprep.subr.bf16.mxu0 0
        %4620 = vmatpush1.bf16.msra.mxu0 0
        %4621 = vmatprep.subr.bf16.mxu0 0
        %4622 = vmatpush1.bf16.msra.mxu0 0
        %4623 = vmatprep.subr.bf16.mxu0 0
        %4624 = vmatpush1.bf16.msra.mxu0 0
        %4625 = vmatprep.subr.bf16.mxu0 0
        %4626 = vmatpush1.bf16.msra.mxu0 0
        %4627 = vmatprep.subr.bf16.mxu0 0
        %4628 = vmatpush1.bf16.msra.mxu0 0
        %4629 = vmatprep.subr.bf16.mxu0 0
        %4630 = vmatpush1.bf16.msra.mxu0 0
        %4631 = vmatprep.subr.bf16.mxu0 0
        %4632 = vmatpush1.bf16.msra.mxu0 0
        %4633 = vmatprep.subr.bf16.mxu0 0
        %4634 = vmatpush1.bf16.msra.mxu0 0
        %4635 = vmatprep.subr.bf16.mxu0 0
        %4636 = vmatpush1.bf16.msra.mxu0 0
        %4637 = vmatprep.subr.bf16.mxu0 0
        %4638 = vmatpush1.bf16.msra.mxu0 0
        %4639 = vmatprep.mubr.bf16.mxu0 0
        %4640 = vmatmul.mubr.bf16.gmra.mrb[0].mxu0 %v4557
        %v4641 = vpop.f32.mrb[0].mxu0
        %v4642 = vadd.f32 0.0, %v4641
        %v4643 = vpop.f32.mrb[0].mxu0
        %v4644 = vpop.f32.mrb[0].mxu0
        %v4645 = vadd.f32 0.0, %v4644
        %v4646 = vpop.f32.mrb[0].mxu0
        %4647 = vmatprep.mubr.bf16.mxu0 0
        %4648 = vmatmul.mubr.bf16.gmra.mrb[0].mxu0 %v4560
        %v4649 = vpop.f32.mrb[0].mxu0
        %v4650 = vadd.f32 0.0, %v4649
        %v4651 = vpop.f32.mrb[0].mxu0
        %v4652 = vpop.f32.mrb[0].mxu0
        %v4653 = vadd.f32 0.0, %v4652
        %v4654 = vpop.f32.mrb[0].mxu0
        %4655 = vmatprep.mubr.bf16.mxu0 0
        %4656 = vmatmul.mubr.bf16.gmra.mrb[0].mxu0 %v4563
        %v4657 = vpop.f32.mrb[0].mxu0
        %v4658 = vadd.f32 0.0, %v4657
        %v4659 = vpop.f32.mrb[0].mxu0
        %v4660 = vpop.f32.mrb[0].mxu0
        %v4661 = vadd.f32 0.0, %v4660
        %v4662 = vpop.f32.mrb[0].mxu0
        %4663 = vmatprep.mubr.bf16.mxu0 0
        %4664 = vmatmul.mubr.bf16.gmra.mrb[0].mxu0 %v4566
        %v4665 = vpop.f32.mrb[0].mxu0
        %v4666 = vadd.f32 0.0, %v4665
        %v4667 = vpop.f32.mrb[0].mxu0
        %v4668 = vpop.f32.mrb[0].mxu0
        %v4669 = vadd.f32 0.0, %v4668
        %v4670 = vpop.f32.mrb[0].mxu0
        %4671 = vmatprep.mubr.bf16.mxu0 0
        %4672 = vmatmul.mubr.bf16.gmra.mrb[0].mxu0 %v4569
        %v4673 = vpop.f32.mrb[0].mxu0
        %v4674 = vadd.f32 0.0, %v4673
        %v4675 = vpop.f32.mrb[0].mxu0
        %v4676 = vpop.f32.mrb[0].mxu0
        %v4677 = vadd.f32 0.0, %v4676
        %v4678 = vpop.f32.mrb[0].mxu0
        %4679 = vmatprep.mubr.bf16.mxu0 0
        %4680 = vmatmul.mubr.bf16.gmra.mrb[0].mxu0 %v4572
        %v4681 = vpop.f32.mrb[0].mxu0
        %v4682 = vadd.f32 0.0, %v4681
        %v4683 = vpop.f32.mrb[0].mxu0
        %v4684 = vpop.f32.mrb[0].mxu0
        %v4685 = vadd.f32 0.0, %v4684
        %v4686 = vpop.f32.mrb[0].mxu0
        %4687 = vmatprep.mubr.bf16.mxu0 0
        %4688 = vmatmul.mubr.bf16.gmra.mrb[0].mxu0 %v4575
        %v4689 = vpop.f32.mrb[0].mxu0
        %v4690 = vadd.f32 0.0, %v4689
        %v4691 = vpop.f32.mrb[0].mxu0
        %v4692 = vpop.f32.mrb[0].mxu0
        %v4693 = vadd.f32 0.0, %v4692
        %v4694 = vpop.f32.mrb[0].mxu0
        %4695 = vmatprep.mubr.bf16.mxu0 0
        %4696 = vmatmul.mubr.bf16.gmra.mrb[0].mxu0 %v4578
        %v4697 = vpop.f32.mrb[0].mxu0
        %v4698 = vadd.f32 0.0, %v4697
        %v4699 = vpop.f32.mrb[0].mxu0
        %v4700 = vpop.f32.mrb[0].mxu0
        %v4701 = vadd.f32 0.0, %v4700
        %v4702 = vpop.f32.mrb[0].mxu0
        %4703 = vmatprep.mubr.bf16.mxu0 0
        %4704 = vmatmul.mubr.bf16.gmra.mrb[0].mxu0 %v4581
        %v4705 = vpop.f32.mrb[0].mxu0
        %v4706 = vadd.f32 0.0, %v4705
        %v4707 = vpop.f32.mrb[0].mxu0
        %v4708 = vpop.f32.mrb[0].mxu0
        %v4709 = vadd.f32 0.0, %v4708
        %v4710 = vpop.f32.mrb[0].mxu0
        %4711 = vmatprep.mubr.bf16.mxu0 0
        %4712 = vmatmul.mubr.bf16.gmra.mrb[0].mxu0 %v4584
        %v4713 = vpop.f32.mrb[0].mxu0
        %v4714 = vadd.f32 0.0, %v4713
        %v4715 = vpop.f32.mrb[0].mxu0
        %v4716 = vpop.f32.mrb[0].mxu0
        %v4717 = vadd.f32 0.0, %v4716
        %v4718 = vpop.f32.mrb[0].mxu0
        %4719 = vmatprep.mubr.bf16.mxu0 0
        %4720 = vmatmul.mubr.bf16.gmra.mrb[0].mxu0 %v4587
        %v4721 = vpop.f32.mrb[0].mxu0
        %v4722 = vadd.f32 0.0, %v4721
        %v4723 = vpop.f32.mrb[0].mxu0
        %v4724 = vpop.f32.mrb[0].mxu0
        %v4725 = vadd.f32 0.0, %v4724
        %v4726 = vpop.f32.mrb[0].mxu0
        %4727 = vmatprep.mubr.bf16.mxu0 0
        %4728 = vmatmul.mubr.bf16.gmra.mrb[0].mxu0 %v4590
        %v4729 = vpop.f32.mrb[0].mxu0
        %v4730 = vadd.f32 0.0, %v4729
        %v4731 = vpop.f32.mrb[0].mxu0
        %v4732 = vpop.f32.mrb[0].mxu0
        %v4733 = vadd.f32 0.0, %v4732
        %v4734 = vpop.f32.mrb[0].mxu0
        %4735 = vmatprep.mubr.bf16.mxu0 0
        %4736 = vmatmul.mubr.bf16.gmra.mrb[0].mxu0 %v4593
        %v4737 = vpop.f32.mrb[0].mxu0
        %v4738 = vadd.f32 0.0, %v4737
        %v4739 = vpop.f32.mrb[0].mxu0
        %v4740 = vpop.f32.mrb[0].mxu0
        %v4741 = vadd.f32 0.0, %v4740
        %v4742 = vpop.f32.mrb[0].mxu0
        %4743 = vmatprep.mubr.bf16.mxu0 0
        %4744 = vmatmul.mubr.bf16.gmra.mrb[0].mxu0 %v4596
        %v4745 = vpop.f32.mrb[0].mxu0
        %v4746 = vadd.f32 0.0, %v4745
        %v4747 = vpop.f32.mrb[0].mxu0
        %v4748 = vpop.f32.mrb[0].mxu0
        %v4749 = vadd.f32 0.0, %v4748
        %v4750 = vpop.f32.mrb[0].mxu0
        %4751 = vmatprep.mubr.bf16.mxu0 0
        %4752 = vmatmul.mubr.bf16.gmra.mrb[0].mxu0 %v4599
        %v4753 = vpop.f32.mrb[0].mxu0
        %v4754 = vadd.f32 0.0, %v4753
        %v4755 = vpop.f32.mrb[0].mxu0
        %v4756 = vpop.f32.mrb[0].mxu0
        %v4757 = vadd.f32 0.0, %v4756
        %v4758 = vpop.f32.mrb[0].mxu0
        %4759 = vmatprep.mubr.bf16.mxu0 0
        %4760 = vmatmul.mubr.bf16.gmra.mrb[0].mxu0 %v4602
        %v4761 = vpop.f32.mrb[0].mxu0
        %v4762 = vadd.f32 0.0, %v4761
        %v4763 = vpop.f32.mrb[0].mxu0
        %v4764 = vpop.f32.mrb[0].mxu0
        %v4765 = vadd.f32 0.0, %v4764
        %v4766 = vpop.f32.mrb[0].mxu0
        %4767 = vdwg.mxu0
        %v4768 = vadd.f32 %v4298, %v4642
        %v4769 = vadd.f32 %v4299, %v4645
        %v4770 = vadd.f32 %v4300, %v4650
        %v4771 = vadd.f32 %v4301, %v4653
        %v4772 = vadd.f32 %v4302, %v4658
        %v4773 = vadd.f32 %v4303, %v4661
        %v4774 = vadd.f32 %v4304, %v4666
        %v4775 = vadd.f32 %v4305, %v4669
        %v4776 = vadd.f32 %v4306, %v4674
        %v4777 = vadd.f32 %v4307, %v4677
        %v4778 = vadd.f32 %v4308, %v4682
        %v4779 = vadd.f32 %v4309, %v4685
        %v4780 = vadd.f32 %v4310, %v4690
        %v4781 = vadd.f32 %v4311, %v4693
        %v4782 = vadd.f32 %v4312, %v4698
        %v4783 = vadd.f32 %v4313, %v4701
        %v4784 = vadd.f32 %v4314, %v4706
        %v4785 = vadd.f32 %v4315, %v4709
        %v4786 = vadd.f32 %v4316, %v4714
        %v4787 = vadd.f32 %v4317, %v4717
        %v4788 = vadd.f32 %v4318, %v4722
        %v4789 = vadd.f32 %v4319, %v4725
        %v4790 = vadd.f32 %v4320, %v4730
        %v4791 = vadd.f32 %v4321, %v4733
        %v4792 = vadd.f32 %v4322, %v4738
        %v4793 = vadd.f32 %v4323, %v4741
        %v4794 = vadd.f32 %v4324, %v4746
        %v4795 = vadd.f32 %v4325, %v4749
        %v4796 = vadd.f32 %v4326, %v4754
        %v4797 = vadd.f32 %v4327, %v4757
        %v4798 = vadd.f32 %v4328, %v4762
        %v4799 = vadd.f32 %v4329, %v4765
        %v4800 = vadd.f32 %v4768, %v4769
        %v4801 = vadd.f32 %v4800, %v4770
        %v4802 = vadd.f32 %v4801, %v4771
        %v4803 = vadd.f32 %v4802, %v4772
        %v4804 = vadd.f32 %v4803, %v4773
        %v4805 = vadd.f32 %v4804, %v4774
        %v4806 = vadd.f32 %v4805, %v4775
        %v4807 = vadd.f32 %v4806, %v4776
        %v4808 = vadd.f32 %v4807, %v4777
        %v4809 = vadd.f32 %v4808, %v4778
        %v4810 = vadd.f32 %v4809, %v4779
        %v4811 = vadd.f32 %v4810, %v4780
        %v4812 = vadd.f32 %v4811, %v4781
        %v4813 = vadd.f32 %v4812, %v4782
        %v4814 = vadd.f32 %v4813, %v4783
        %v4815 = vadd.f32 %v4814, %v4784
        %v4816 = vadd.f32 %v4815, %v4785
        %v4817 = vadd.f32 %v4816, %v4786
        %v4818 = vadd.f32 %v4817, %v4787
        %v4819 = vadd.f32 %v4818, %v4788
        %v4820 = vadd.f32 %v4819, %v4789
        %v4821 = vadd.f32 %v4820, %v4790
        %v4822 = vadd.f32 %v4821, %v4791
        %v4823 = vadd.f32 %v4822, %v4792
        %v4824 = vadd.f32 %v4823, %v4793
        %v4825 = vadd.f32 %v4824, %v4794
        %v4826 = vadd.f32 %v4825, %v4795
        %v4827 = vadd.f32 %v4826, %v4796
        %v4828 = vadd.f32 %v4827, %v4797
        %v4829 = vadd.f32 %v4828, %v4798
        %v4830 = vadd.f32 %v4829, %v4799
        %v4831 = vrot.slane %v4830, 4
        %v4832 = vadd.f32 %v4830, %v4831
        %v4833 = vrot.slane %v4832, 2
        %v4834 = vadd.f32 %v4832, %v4833
        %v4835 = vrot.slane %v4834, 1
        %v4836 = vadd.f32 %v4834, %v4835
        %v4837 = vrcp.pop 256.0
        %v4838 = vmul.f32 %v4836, %v4837
        %v4839 = vsub.f32 %v4768, %v4838
        %v4840 = vsub.f32 %v4769, %v4838
        %v4841 = vsub.f32 %v4770, %v4838
        %v4842 = vsub.f32 %v4771, %v4838
        %v4843 = vsub.f32 %v4772, %v4838
        %v4844 = vsub.f32 %v4773, %v4838
        %v4845 = vsub.f32 %v4774, %v4838
        %v4846 = vsub.f32 %v4775, %v4838
        %v4847 = vsub.f32 %v4776, %v4838
        %v4848 = vsub.f32 %v4777, %v4838
        %v4849 = vsub.f32 %v4778, %v4838
        %v4850 = vsub.f32 %v4779, %v4838
        %v4851 = vsub.f32 %v4780, %v4838
        %v4852 = vsub.f32 %v4781, %v4838
        %v4853 = vsub.f32 %v4782, %v4838
        %v4854 = vsub.f32 %v4783, %v4838
        %v4855 = vsub.f32 %v4784, %v4838
        %v4856 = vsub.f32 %v4785, %v4838
        %v4857 = vsub.f32 %v4786, %v4838
        %v4858 = vsub.f32 %v4787, %v4838
        %v4859 = vsub.f32 %v4788, %v4838
        %v4860 = vsub.f32 %v4789, %v4838
        %v4861 = vsub.f32 %v4790, %v4838
        %v4862 = vsub.f32 %v4791, %v4838
        %v4863 = vsub.f32 %v4792, %v4838
        %v4864 = vsub.f32 %v4793, %v4838
        %v4865 = vsub.f32 %v4794, %v4838
        %v4866 = vsub.f32 %v4795, %v4838
        %v4867 = vsub.f32 %v4796, %v4838
        %v4868 = vsub.f32 %v4797, %v4838
        %v4869 = vsub.f32 %v4798, %v4838
        %v4870 = vsub.f32 %v4799, %v4838
        %v4871 = vmul.f32 %v4839, %v4839
        %v4872 = vmul.f32 %v4840, %v4840
        %v4873 = vmul.f32 %v4841, %v4841
        %v4874 = vmul.f32 %v4842, %v4842
        %v4875 = vmul.f32 %v4843, %v4843
        %v4876 = vmul.f32 %v4844, %v4844
        %v4877 = vmul.f32 %v4845, %v4845
        %v4878 = vmul.f32 %v4846, %v4846
        %v4879 = vmul.f32 %v4847, %v4847
        %v4880 = vmul.f32 %v4848, %v4848
        %v4881 = vmul.f32 %v4849, %v4849
        %v4882 = vmul.f32 %v4850, %v4850
        %v4883 = vmul.f32 %v4851, %v4851
        %v4884 = vmul.f32 %v4852, %v4852
        %v4885 = vmul.f32 %v4853, %v4853
        %v4886 = vmul.f32 %v4854, %v4854
        %v4887 = vmul.f32 %v4855, %v4855
        %v4888 = vmul.f32 %v4856, %v4856
        %v4889 = vmul.f32 %v4857, %v4857
        %v4890 = vmul.f32 %v4858, %v4858
        %v4891 = vmul.f32 %v4859, %v4859
        %v4892 = vmul.f32 %v4860, %v4860
        %v4893 = vmul.f32 %v4861, %v4861
        %v4894 = vmul.f32 %v4862, %v4862
        %v4895 = vmul.f32 %v4863, %v4863
        %v4896 = vmul.f32 %v4864, %v4864
        %v4897 = vmul.f32 %v4865, %v4865
        %v4898 = vmul.f32 %v4866, %v4866
        %v4899 = vmul.f32 %v4867, %v4867
        %v4900 = vmul.f32 %v4868, %v4868
        %v4901 = vmul.f32 %v4869, %v4869
        %v4902 = vmul.f32 %v4870, %v4870
        %v4903 = vadd.f32 %v4871, %v4872
        %v4904 = vadd.f32 %v4903, %v4873
        %v4905 = vadd.f32 %v4904, %v4874
        %v4906 = vadd.f32 %v4905, %v4875
        %v4907 = vadd.f32 %v4906, %v4876
        %v4908 = vadd.f32 %v4907, %v4877
        %v4909 = vadd.f32 %v4908, %v4878
        %v4910 = vadd.f32 %v4909, %v4879
        %v4911 = vadd.f32 %v4910, %v4880
        %v4912 = vadd.f32 %v4911, %v4881
        %v4913 = vadd.f32 %v4912, %v4882
        %v4914 = vadd.f32 %v4913, %v4883
        %v4915 = vadd.f32 %v4914, %v4884
        %v4916 = vadd.f32 %v4915, %v4885
        %v4917 = vadd.f32 %v4916, %v4886
        %v4918 = vadd.f32 %v4917, %v4887
        %v4919 = vadd.f32 %v4918, %v4888
        %v4920 = vadd.f32 %v4919, %v4889
        %v4921 = vadd.f32 %v4920, %v4890
        %v4922 = vadd.f32 %v4921, %v4891
        %v4923 = vadd.f32 %v4922, %v4892
        %v4924 = vadd.f32 %v4923, %v4893
        %v4925 = vadd.f32 %v4924, %v4894
        %v4926 = vadd.f32 %v4925, %v4895
        %v4927 = vadd.f32 %v4926, %v4896
        %v4928 = vadd.f32 %v4927, %v4897
        %v4929 = vadd.f32 %v4928, %v4898
        %v4930 = vadd.f32 %v4929, %v4899
        %v4931 = vadd.f32 %v4930, %v4900
        %v4932 = vadd.f32 %v4931, %v4901
        %v4933 = vadd.f32 %v4932, %v4902
        %v4934 = vrot.slane %v4933, 4
        %v4935 = vadd.f32 %v4933, %v4934
        %v4936 = vrot.slane %v4935, 2
        %v4937 = vadd.f32 %v4935, %v4936
        %v4938 = vrot.slane %v4937, 1
        %v4939 = vadd.f32 %v4937, %v4938
        %v4940 = vmul.f32 %v4939, %v4837
        %v4941 = vadd.f32 %v4940, 1e-05
        %v4942 = vrsqrt.pop %v4941
        %v4943 = vmul.f32 %v239, %v4942
        %v4944 = vmul.f32 %v4838, %v4943
        %v4945 = vsub.f32 %v240, %v4944
        %v4947 = vlaneseq
        %v4948 = vshrl.u32 %v4947, 7
        %v4949 = vsub.s32 0, %v4948
        %v4950 = vrot.slane %v4943, %v4949
        %v4952 = vmul.f32 %v4768, %v4950
        %v4953 = vmul.f32 %v4769, %v4950
        %v4954 = vmul.f32 %v4770, %v4950
        %v4955 = vmul.f32 %v4771, %v4950
        %v4956 = vmul.f32 %v4772, %v4950
        %v4957 = vmul.f32 %v4773, %v4950
        %v4958 = vmul.f32 %v4774, %v4950
        %v4959 = vmul.f32 %v4775, %v4950
        %v4960 = vmul.f32 %v4776, %v4950
        %v4961 = vmul.f32 %v4777, %v4950
        %v4962 = vmul.f32 %v4778, %v4950
        %v4963 = vmul.f32 %v4779, %v4950
        %v4964 = vmul.f32 %v4780, %v4950
        %v4965 = vmul.f32 %v4781, %v4950
        %v4966 = vmul.f32 %v4782, %v4950
        %v4967 = vmul.f32 %v4783, %v4950
        %v4968 = vmul.f32 %v4784, %v4950
        %v4969 = vmul.f32 %v4785, %v4950
        %v4970 = vmul.f32 %v4786, %v4950
        %v4971 = vmul.f32 %v4787, %v4950
        %v4972 = vmul.f32 %v4788, %v4950
        %v4973 = vmul.f32 %v4789, %v4950
        %v4974 = vmul.f32 %v4790, %v4950
        %v4975 = vmul.f32 %v4791, %v4950
        %v4976 = vmul.f32 %v4792, %v4950
        %v4977 = vmul.f32 %v4793, %v4950
        %v4978 = vmul.f32 %v4794, %v4950
        %v4979 = vmul.f32 %v4795, %v4950
        %v4980 = vmul.f32 %v4796, %v4950
        %v4981 = vmul.f32 %v4797, %v4950
        %v4982 = vmul.f32 %v4798, %v4950
        %v4983 = vmul.f32 %v4799, %v4950
        %v4985 = vlaneseq
        %v4986 = vshrl.u32 %v4985, 7
        %v4987 = vsub.s32 0, %v4986
        %v4988 = vrot.slane %v4945, %v4987
        %v4990 = vadd.f32 %v4952, %v4988
        %v4991 = vadd.f32 %v4953, %v4988
        %v4992 = vadd.f32 %v4954, %v4988
        %v4993 = vadd.f32 %v4955, %v4988
        %v4994 = vadd.f32 %v4956, %v4988
        %v4995 = vadd.f32 %v4957, %v4988
        %v4996 = vadd.f32 %v4958, %v4988
        %v4997 = vadd.f32 %v4959, %v4988
        %v4998 = vadd.f32 %v4960, %v4988
        %v4999 = vadd.f32 %v4961, %v4988
        %v5000 = vadd.f32 %v4962, %v4988
        %v5001 = vadd.f32 %v4963, %v4988
        %v5002 = vadd.f32 %v4964, %v4988
        %v5003 = vadd.f32 %v4965, %v4988
        %v5004 = vadd.f32 %v4966, %v4988
        %v5005 = vadd.f32 %v4967, %v4988
        %v5006 = vadd.f32 %v4968, %v4988
        %v5007 = vadd.f32 %v4969, %v4988
        %v5008 = vadd.f32 %v4970, %v4988
        %v5009 = vadd.f32 %v4971, %v4988
        %v5010 = vadd.f32 %v4972, %v4988
        %v5011 = vadd.f32 %v4973, %v4988
        %v5012 = vadd.f32 %v4974, %v4988
        %v5013 = vadd.f32 %v4975, %v4988
        %v5014 = vadd.f32 %v4976, %v4988
        %v5015 = vadd.f32 %v4977, %v4988
        %v5016 = vadd.f32 %v4978, %v4988
        %v5017 = vadd.f32 %v4979, %v4988
        %v5018 = vadd.f32 %v4980, %v4988
        %v5019 = vadd.f32 %v4981, %v4988
        %v5020 = vadd.f32 %v4982, %v4988
        %v5021 = vadd.f32 %v4983, %v4988
        %v5022 = vmax.f32 %v4990, 0.0
        %v5023 = vmax.f32 %v4991, 0.0
        %v5024 = vmax.f32 %v4992, 0.0
        %v5025 = vmax.f32 %v4993, 0.0
        %v5026 = vmax.f32 %v4994, 0.0
        %v5027 = vmax.f32 %v4995, 0.0
        %v5028 = vmax.f32 %v4996, 0.0
        %v5029 = vmax.f32 %v4997, 0.0
        %v5030 = vmax.f32 %v4998, 0.0
        %v5031 = vmax.f32 %v4999, 0.0
        %v5032 = vmax.f32 %v5000, 0.0
        %v5033 = vmax.f32 %v5001, 0.0
        %v5034 = vmax.f32 %v5002, 0.0
        %v5035 = vmax.f32 %v5003, 0.0
        %v5036 = vmax.f32 %v5004, 0.0
        %v5037 = vmax.f32 %v5005, 0.0
        %v5038 = vmax.f32 %v5006, 0.0
        %v5039 = vmax.f32 %v5007, 0.0
        %v5040 = vmax.f32 %v5008, 0.0
        %v5041 = vmax.f32 %v5009, 0.0
        %v5042 = vmax.f32 %v5010, 0.0
        %v5043 = vmax.f32 %v5011, 0.0
        %v5044 = vmax.f32 %v5012, 0.0
        %v5045 = vmax.f32 %v5013, 0.0
        %v5046 = vmax.f32 %v5014, 0.0
        %v5047 = vmax.f32 %v5015, 0.0
        %v5048 = vmax.f32 %v5016, 0.0
        %v5049 = vmax.f32 %v5017, 0.0
        %v5050 = vmax.f32 %v5018, 0.0
        %v5051 = vmax.f32 %v5019, 0.0
        %v5052 = vmax.f32 %v5020, 0.0
        %v5053 = vmax.f32 %v5021, 0.0
        %5054 = vst [vmem:[#allocation2] sm:$0xf] 0
        %5055 = vst [vmem:[#allocation2 + $0x4] sm:$0xf] 0
        %5056 = vst [vmem:[#allocation2 + $0x8] sm:$0x1] 0
        %s5057 = scalar_lea.vmem [#allocation2], 204
        %5058 = vst [vmem:[%s5057] sm:$0xf] 0
        %5059 = vst [vmem:[%s5057 + $0x4] sm:$0xf] 0
        %5060 = vst [vmem:[%s5057 + $0x8] sm:$0x1] 0
        %vm5061 = vcmask 1040384
        %vm5062 = vsmask.f32 256
        %vm5063 = vmand %vm5061, %vm5062
        %v5064 = vld [vmem:[#allocation2] sm:$0x1]
        %v5065 = vsel %vm5063, 0, %v5064
        %5066 = vst [vmem:[#allocation2] sm:$0x1] %v5065
        %v5067 = vld [vmem:[#allocation2 + $0xc] sm:$0x1]
        %v5068 = vsel %vm5063, 0, %v5067
        %5069 = vst [vmem:[#allocation2 + $0xc] sm:$0x1] %v5068
        %v5070 = vld [vmem:[#allocation2 + $0x18] sm:$0x1]
        %v5071 = vsel %vm5063, 0, %v5070
        %5072 = vst [vmem:[#allocation2 + $0x18] sm:$0x1] %v5071
        %v5073 = vld [vmem:[#allocation2 + $0x24] sm:$0x1]
        %v5074 = vsel %vm5063, 0, %v5073
        %5075 = vst [vmem:[#allocation2 + $0x24] sm:$0x1] %v5074
        %v5076 = vld [vmem:[#allocation2 + $0x30] sm:$0x1]
        %v5077 = vsel %vm5063, 0, %v5076
        %5078 = vst [vmem:[#allocation2 + $0x30] sm:$0x1] %v5077
        %v5079 = vld [vmem:[#allocation2 + $0x3c] sm:$0x1]
        %v5080 = vsel %vm5063, 0, %v5079
        %5081 = vst [vmem:[#allocation2 + $0x3c] sm:$0x1] %v5080
        %v5082 = vld [vmem:[#allocation2 + $0x48] sm:$0x1]
        %v5083 = vsel %vm5063, 0, %v5082
        %5084 = vst [vmem:[#allocation2 + $0x48] sm:$0x1] %v5083
        %v5085 = vld [vmem:[#allocation2 + $0x54] sm:$0x1]
        %v5086 = vsel %vm5063, 0, %v5085
        %5087 = vst [vmem:[#allocation2 + $0x54] sm:$0x1] %v5086
        %v5088 = vld [vmem:[#allocation2 + $0x60] sm:$0x1]
        %v5089 = vsel %vm5063, 0, %v5088
        %5090 = vst [vmem:[#allocation2 + $0x60] sm:$0x1] %v5089
        %v5091 = vld [vmem:[#allocation2 + $0x6c] sm:$0x1]
        %v5092 = vsel %vm5063, 0, %v5091
        %5093 = vst [vmem:[#allocation2 + $0x6c] sm:$0x1] %v5092
        %v5094 = vld [vmem:[#allocation2 + $0x78] sm:$0x1]
        %v5095 = vsel %vm5063, 0, %v5094
        %5096 = vst [vmem:[#allocation2 + $0x78] sm:$0x1] %v5095
        %v5097 = vld [vmem:[#allocation2 + $0x84] sm:$0x1]
        %v5098 = vsel %vm5063, 0, %v5097
        %5099 = vst [vmem:[#allocation2 + $0x84] sm:$0x1] %v5098
        %v5100 = vld [vmem:[#allocation2 + $0x90] sm:$0x1]
        %v5101 = vsel %vm5063, 0, %v5100
        %5102 = vst [vmem:[#allocation2 + $0x90] sm:$0x1] %v5101
        %v5103 = vld [vmem:[#allocation2 + $0x9c] sm:$0x1]
        %v5104 = vsel %vm5063, 0, %v5103
        %5105 = vst [vmem:[#allocation2 + $0x9c] sm:$0x1] %v5104
        %v5106 = vld [vmem:[#allocation2 + $0xa8] sm:$0x1]
        %v5107 = vsel %vm5063, 0, %v5106
        %5108 = vst [vmem:[#allocation2 + $0xa8] sm:$0x1] %v5107
        %v5109 = vld [vmem:[#allocation2 + $0xb4] sm:$0x1]
        %v5110 = vsel %vm5063, 0, %v5109
        %5111 = vst [vmem:[#allocation2 + $0xb4] sm:$0x1] %v5110
        %v5112 = vld [vmem:[#allocation2 + $0xc0] sm:$0x1]
        %v5113 = vsel %vm5063, 0, %v5112
        %5114 = vst [vmem:[#allocation2 + $0xc0] sm:$0x1] %v5113
        %v5115 = vld [vmem:[#allocation2 + $0xcc] sm:$0x1]
        %v5116 = vsel %vm5063, 0, %v5115
        %5117 = vst [vmem:[#allocation2 + $0xcc] sm:$0x1] %v5116
        %vm5118 = vsmask.f32 7938
        %vm5119 = vmand %vm5061, %vm5118
        %v5120 = vld [vmem:[#allocation2 + $0x8] sm:$0x1]
        %v5121 = vsel %vm5119, 0, %v5120
        %5122 = vst [vmem:[#allocation2 + $0x8] sm:$0x1] %v5121
        %v5123 = vld [vmem:[#allocation2 + $0x14] sm:$0x1]
        %v5124 = vsel %vm5119, 0, %v5123
        %5125 = vst [vmem:[#allocation2 + $0x14] sm:$0x1] %v5124
        %v5126 = vld [vmem:[#allocation2 + $0x20] sm:$0x1]
        %v5127 = vsel %vm5119, 0, %v5126
        %5128 = vst [vmem:[#allocation2 + $0x20] sm:$0x1] %v5127
        %v5129 = vld [vmem:[#allocation2 + $0x2c] sm:$0x1]
        %v5130 = vsel %vm5119, 0, %v5129
        %5131 = vst [vmem:[#allocation2 + $0x2c] sm:$0x1] %v5130
        %v5132 = vld [vmem:[#allocation2 + $0x38] sm:$0x1]
        %v5133 = vsel %vm5119, 0, %v5132
        %5134 = vst [vmem:[#allocation2 + $0x38] sm:$0x1] %v5133
        %v5135 = vld [vmem:[#allocation2 + $0x44] sm:$0x1]
        %v5136 = vsel %vm5119, 0, %v5135
        %5137 = vst [vmem:[#allocation2 + $0x44] sm:$0x1] %v5136
        %v5138 = vld [vmem:[#allocation2 + $0x50] sm:$0x1]
        %v5139 = vsel %vm5119, 0, %v5138
        %5140 = vst [vmem:[#allocation2 + $0x50] sm:$0x1] %v5139
        %v5141 = vld [vmem:[#allocation2 + $0x5c] sm:$0x1]
        %v5142 = vsel %vm5119, 0, %v5141
        %5143 = vst [vmem:[#allocation2 + $0x5c] sm:$0x1] %v5142
        %v5144 = vld [vmem:[#allocation2 + $0x68] sm:$0x1]
        %v5145 = vsel %vm5119, 0, %v5144
        %5146 = vst [vmem:[#allocation2 + $0x68] sm:$0x1] %v5145
        %v5147 = vld [vmem:[#allocation2 + $0x74] sm:$0x1]
        %v5148 = vsel %vm5119, 0, %v5147
        %5149 = vst [vmem:[#allocation2 + $0x74] sm:$0x1] %v5148
        %v5150 = vld [vmem:[#allocation2 + $0x80] sm:$0x1]
        %v5151 = vsel %vm5119, 0, %v5150
        %5152 = vst [vmem:[#allocation2 + $0x80] sm:$0x1] %v5151
        %v5153 = vld [vmem:[#allocation2 + $0x8c] sm:$0x1]
        %v5154 = vsel %vm5119, 0, %v5153
        %5155 = vst [vmem:[#allocation2 + $0x8c] sm:$0x1] %v5154
        %v5156 = vld [vmem:[#allocation2 + $0x98] sm:$0x1]
        %v5157 = vsel %vm5119, 0, %v5156
        %5158 = vst [vmem:[#allocation2 + $0x98] sm:$0x1] %v5157
        %v5159 = vld [vmem:[#allocation2 + $0xa4] sm:$0x1]
        %v5160 = vsel %vm5119, 0, %v5159
        %5161 = vst [vmem:[#allocation2 + $0xa4] sm:$0x1] %v5160
        %v5162 = vld [vmem:[#allocation2 + $0xb0] sm:$0x1]
        %v5163 = vsel %vm5119, 0, %v5162
        %5164 = vst [vmem:[#allocation2 + $0xb0] sm:$0x1] %v5163
        %v5165 = vld [vmem:[#allocation2 + $0xbc] sm:$0x1]
        %v5166 = vsel %vm5119, 0, %v5165
        %5167 = vst [vmem:[#allocation2 + $0xbc] sm:$0x1] %v5166
        %v5168 = vld [vmem:[#allocation2 + $0xc8] sm:$0x1]
        %v5169 = vsel %vm5119, 0, %v5168
        %5170 = vst [vmem:[#allocation2 + $0xc8] sm:$0x1] %v5169
        %v5171 = vld [vmem:[#allocation2 + $0xd4] sm:$0x1]
        %v5172 = vsel %vm5119, 0, %v5171
        %5173 = vst [vmem:[#allocation2 + $0xd4] sm:$0x1] %v5172
        %v5174 = vpack.c.bf16 %v5023, %v5022
        %v5175 = vpack.c.bf16 %v5025, %v5024
        %v5176 = vpack.c.bf16 %v5027, %v5026
        %v5177 = vpack.c.bf16 %v5029, %v5028
        %v5178 = vpack.c.bf16 %v5031, %v5030
        %v5179 = vpack.c.bf16 %v5033, %v5032
        %v5180 = vpack.c.bf16 %v5035, %v5034
        %v5181 = vpack.c.bf16 %v5037, %v5036
        %v5182 = vpack.c.bf16 %v5039, %v5038
        %v5183 = vpack.c.bf16 %v5041, %v5040
        %v5184 = vpack.c.bf16 %v5043, %v5042
        %v5185 = vpack.c.bf16 %v5045, %v5044
        %v5186 = vpack.c.bf16 %v5047, %v5046
        %v5187 = vpack.c.bf16 %v5049, %v5048
        %v5188 = vpack.c.bf16 %v5051, %v5050
        %v5189 = vpack.c.bf16 %v5053, %v5052
        %v5206 = vunpack.c.l.b16 %v5174
        %v5207 = vunpack.c.h.b16 %v5174
        %v5208 = vunpack.c.l.b16 %v5175
        %v5209 = vunpack.c.h.b16 %v5175
        %v5210 = vunpack.c.l.b16 %v5176
        %v5211 = vunpack.c.h.b16 %v5176
        %v5212 = vunpack.c.l.b16 %v5177
        %v5213 = vunpack.c.h.b16 %v5177
        %v5214 = vunpack.c.l.b16 %v5178
        %v5215 = vunpack.c.h.b16 %v5178
        %v5216 = vunpack.c.l.b16 %v5179
        %v5217 = vunpack.c.h.b16 %v5179
        %v5218 = vunpack.c.l.b16 %v5180
        %v5219 = vunpack.c.h.b16 %v5180
        %v5220 = vunpack.c.l.b16 %v5181
        %v5221 = vunpack.c.h.b16 %v5181
        %v5222 = vunpack.c.l.b16 %v5182
        %v5223 = vunpack.c.h.b16 %v5182
        %v5224 = vunpack.c.l.b16 %v5183
        %v5225 = vunpack.c.h.b16 %v5183
        %v5226 = vunpack.c.l.b16 %v5184
        %v5227 = vunpack.c.h.b16 %v5184
        %v5228 = vunpack.c.l.b16 %v5185
        %v5229 = vunpack.c.h.b16 %v5185
        %v5230 = vunpack.c.l.b16 %v5186
        %v5231 = vunpack.c.h.b16 %v5186
        %v5232 = vunpack.c.l.b16 %v5187
        %v5233 = vunpack.c.h.b16 %v5187
        %v5234 = vunpack.c.l.b16 %v5188
        %v5235 = vunpack.c.h.b16 %v5188
        %v5236 = vunpack.c.l.b16 %v5189
        %v5237 = vunpack.c.h.b16 %v5189
        %v5238 = vpack.c.b16 %v5206, %v5206
        %v5239 = vpack.c.b16 %v5207, %v5207
        %v5240 = vpack.c.b16 %v5208, %v5208
        %v5241 = vpack.c.b16 %v5209, %v5209
        %v5242 = vpack.c.b16 %v5210, %v5210
        %v5243 = vpack.c.b16 %v5211, %v5211
        %v5244 = vpack.c.b16 %v5212, %v5212
        %v5245 = vpack.c.b16 %v5213, %v5213
        %v5246 = vpack.c.b16 %v5214, %v5214
        %v5247 = vpack.c.b16 %v5215, %v5215
        %v5248 = vpack.c.b16 %v5216, %v5216
        %v5249 = vpack.c.b16 %v5217, %v5217
        %v5250 = vpack.c.b16 %v5218, %v5218
        %v5251 = vpack.c.b16 %v5219, %v5219
        %v5252 = vpack.c.b16 %v5220, %v5220
        %v5253 = vpack.c.b16 %v5221, %v5221
        %v5254 = vpack.c.b16 %v5222, %v5222
        %v5255 = vpack.c.b16 %v5223, %v5223
        %v5256 = vpack.c.b16 %v5224, %v5224
        %v5257 = vpack.c.b16 %v5225, %v5225
        %v5258 = vpack.c.b16 %v5226, %v5226
        %v5259 = vpack.c.b16 %v5227, %v5227
        %v5260 = vpack.c.b16 %v5228, %v5228
        %v5261 = vpack.c.b16 %v5229, %v5229
        %v5262 = vpack.c.b16 %v5230, %v5230
        %v5263 = vpack.c.b16 %v5231, %v5231
        %v5264 = vpack.c.b16 %v5232, %v5232
        %v5265 = vpack.c.b16 %v5233, %v5233
        %v5266 = vpack.c.b16 %v5234, %v5234
        %v5267 = vpack.c.b16 %v5235, %v5235
        %v5268 = vpack.c.b16 %v5236, %v5236
        %v5269 = vpack.c.b16 %v5237, %v5237
        %vm5270 = vsmask.f32 4368
        %vm5271 = vmor %vm5062, %vm5270
        %v5273 = vshrl.u32 %v5238, 16
        %v5275 = vrot.slane %v5273, 7
        %v5276 = vshll.u32 %v5238, 16
        %v5278 = vor.u32 %v5275, %v5276
        %v5279 = vrot.slane %v5275, 4
        %v5281 = vshrl.u32 %v5239, 16
        %v5283 = vrot.slane %v5281, 7
        %v5284 = vshll.u32 %v5239, 16
        %v5286 = vor.u32 %v5283, %v5284
        %v5287 = vsel %vm5271, %v5279, %v5286
        %v5288 = vrot.slane %v5283, 4
        %v5290 = vshrl.u32 %v5240, 16
        %v5292 = vrot.slane %v5290, 7
        %v5293 = vshll.u32 %v5240, 16
        %v5295 = vor.u32 %v5292, %v5293
        %v5296 = vrot.slane %v5292, 4
        %v5298 = vshrl.u32 %v5241, 16
        %v5300 = vrot.slane %v5298, 7
        %v5301 = vshll.u32 %v5241, 16
        %v5303 = vor.u32 %v5300, %v5301
        %v5304 = vsel %vm5271, %v5296, %v5303
        %v5305 = vrot.slane %v5300, 4
        %v5307 = vshrl.u32 %v5242, 16
        %v5309 = vrot.slane %v5307, 7
        %v5310 = vshll.u32 %v5242, 16
        %v5312 = vor.u32 %v5309, %v5310
        %v5313 = vrot.slane %v5309, 4
        %v5315 = vshrl.u32 %v5243, 16
        %v5317 = vrot.slane %v5315, 7
        %v5318 = vshll.u32 %v5243, 16
        %v5320 = vor.u32 %v5317, %v5318
        %v5321 = vsel %vm5271, %v5313, %v5320
        %v5322 = vrot.slane %v5317, 4
        %v5324 = vshrl.u32 %v5244, 16
        %v5326 = vrot.slane %v5324, 7
        %v5327 = vshll.u32 %v5244, 16
        %v5329 = vor.u32 %v5326, %v5327
        %v5330 = vrot.slane %v5326, 4
        %v5332 = vshrl.u32 %v5245, 16
        %v5334 = vrot.slane %v5332, 7
        %v5335 = vshll.u32 %v5245, 16
        %v5337 = vor.u32 %v5334, %v5335
        %v5338 = vsel %vm5271, %v5330, %v5337
        %v5339 = vrot.slane %v5334, 4
        %v5341 = vshrl.u32 %v5246, 16
        %v5343 = vrot.slane %v5341, 7
        %v5344 = vshll.u32 %v5246, 16
        %v5346 = vor.u32 %v5343, %v5344
        %v5347 = vrot.slane %v5343, 4
        %v5349 = vshrl.u32 %v5247, 16
        %v5351 = vrot.slane %v5349, 7
        %v5352 = vshll.u32 %v5247, 16
        %v5354 = vor.u32 %v5351, %v5352
        %v5355 = vsel %vm5271, %v5347, %v5354
        %v5356 = vrot.slane %v5351, 4
        %v5358 = vshrl.u32 %v5248, 16
        %v5360 = vrot.slane %v5358, 7
        %v5361 = vshll.u32 %v5248, 16
        %v5363 = vor.u32 %v5360, %v5361
        %v5364 = vrot.slane %v5360, 4
        %v5366 = vshrl.u32 %v5249, 16
        %v5368 = vrot.slane %v5366, 7
        %v5369 = vshll.u32 %v5249, 16
        %v5371 = vor.u32 %v5368, %v5369
        %v5372 = vsel %vm5271, %v5364, %v5371
        %v5373 = vrot.slane %v5368, 4
        %v5375 = vshrl.u32 %v5250, 16
        %v5377 = vrot.slane %v5375, 7
        %v5378 = vshll.u32 %v5250, 16
        %v5380 = vor.u32 %v5377, %v5378
        %v5381 = vrot.slane %v5377, 4
        %v5383 = vshrl.u32 %v5251, 16
        %v5385 = vrot.slane %v5383, 7
        %v5386 = vshll.u32 %v5251, 16
        %v5388 = vor.u32 %v5385, %v5386
        %v5389 = vsel %vm5271, %v5381, %v5388
        %v5390 = vrot.slane %v5385, 4
        %v5392 = vshrl.u32 %v5252, 16
        %v5394 = vrot.slane %v5392, 7
        %v5395 = vshll.u32 %v5252, 16
        %v5397 = vor.u32 %v5394, %v5395
        %v5398 = vrot.slane %v5394, 4
        %v5400 = vshrl.u32 %v5253, 16
        %v5402 = vrot.slane %v5400, 7
        %v5403 = vshll.u32 %v5253, 16
        %v5405 = vor.u32 %v5402, %v5403
        %v5406 = vsel %vm5271, %v5398, %v5405
        %v5407 = vrot.slane %v5402, 4
        %v5409 = vshrl.u32 %v5254, 16
        %v5411 = vrot.slane %v5409, 7
        %v5412 = vshll.u32 %v5254, 16
        %v5414 = vor.u32 %v5411, %v5412
        %v5415 = vrot.slane %v5411, 4
        %v5417 = vshrl.u32 %v5255, 16
        %v5419 = vrot.slane %v5417, 7
        %v5420 = vshll.u32 %v5255, 16
        %v5422 = vor.u32 %v5419, %v5420
        %v5423 = vsel %vm5271, %v5415, %v5422
        %v5424 = vrot.slane %v5419, 4
        %v5426 = vshrl.u32 %v5256, 16
        %v5428 = vrot.slane %v5426, 7
        %v5429 = vshll.u32 %v5256, 16
        %v5431 = vor.u32 %v5428, %v5429
        %v5432 = vrot.slane %v5428, 4
        %v5434 = vshrl.u32 %v5257, 16
        %v5436 = vrot.slane %v5434, 7
        %v5437 = vshll.u32 %v5257, 16
        %v5439 = vor.u32 %v5436, %v5437
        %v5440 = vsel %vm5271, %v5432, %v5439
        %v5441 = vrot.slane %v5436, 4
        %v5443 = vshrl.u32 %v5258, 16
        %v5445 = vrot.slane %v5443, 7
        %v5446 = vshll.u32 %v5258, 16
        %v5448 = vor.u32 %v5445, %v5446
        %v5449 = vrot.slane %v5445, 4
        %v5451 = vshrl.u32 %v5259, 16
        %v5453 = vrot.slane %v5451, 7
        %v5454 = vshll.u32 %v5259, 16
        %v5456 = vor.u32 %v5453, %v5454
        %v5457 = vsel %vm5271, %v5449, %v5456
        %v5458 = vrot.slane %v5453, 4
        %v5460 = vshrl.u32 %v5260, 16
        %v5462 = vrot.slane %v5460, 7
        %v5463 = vshll.u32 %v5260, 16
        %v5465 = vor.u32 %v5462, %v5463
        %v5466 = vrot.slane %v5462, 4
        %v5468 = vshrl.u32 %v5261, 16
        %v5470 = vrot.slane %v5468, 7
        %v5471 = vshll.u32 %v5261, 16
        %v5473 = vor.u32 %v5470, %v5471
        %v5474 = vsel %vm5271, %v5466, %v5473
        %v5475 = vrot.slane %v5470, 4
        %v5477 = vshrl.u32 %v5262, 16
        %v5479 = vrot.slane %v5477, 7
        %v5480 = vshll.u32 %v5262, 16
        %v5482 = vor.u32 %v5479, %v5480
        %v5483 = vrot.slane %v5479, 4
        %v5485 = vshrl.u32 %v5263, 16
        %v5487 = vrot.slane %v5485, 7
        %v5488 = vshll.u32 %v5263, 16
        %v5490 = vor.u32 %v5487, %v5488
        %v5491 = vsel %vm5271, %v5483, %v5490
        %v5492 = vrot.slane %v5487, 4
        %v5494 = vshrl.u32 %v5264, 16
        %v5496 = vrot.slane %v5494, 7
        %v5497 = vshll.u32 %v5264, 16
        %v5499 = vor.u32 %v5496, %v5497
        %v5500 = vrot.slane %v5496, 4
        %v5502 = vshrl.u32 %v5265, 16
        %v5504 = vrot.slane %v5502, 7
        %v5505 = vshll.u32 %v5265, 16
        %v5507 = vor.u32 %v5504, %v5505
        %v5508 = vsel %vm5271, %v5500, %v5507
        %v5509 = vrot.slane %v5504, 4
        %v5511 = vshrl.u32 %v5266, 16
        %v5513 = vrot.slane %v5511, 7
        %v5514 = vshll.u32 %v5266, 16
        %v5516 = vor.u32 %v5513, %v5514
        %v5517 = vrot.slane %v5513, 4
        %v5519 = vshrl.u32 %v5267, 16
        %v5521 = vrot.slane %v5519, 7
        %v5522 = vshll.u32 %v5267, 16
        %v5524 = vor.u32 %v5521, %v5522
        %v5525 = vsel %vm5271, %v5517, %v5524
        %v5526 = vrot.slane %v5521, 4
        %v5528 = vshrl.u32 %v5268, 16
        %v5530 = vrot.slane %v5528, 7
        %v5531 = vshll.u32 %v5268, 16
        %v5533 = vor.u32 %v5530, %v5531
        %v5534 = vrot.slane %v5530, 4
        %v5536 = vshrl.u32 %v5269, 16
        %v5538 = vrot.slane %v5536, 7
        %v5539 = vshll.u32 %v5269, 16
        %v5541 = vor.u32 %v5538, %v5539
        %v5542 = vsel %vm5271, %v5534, %v5541
        %v5543 = vrot.slane %v5538, 4
        %s5592 = scalar_lea.vmem [#allocation2], 12
        %vm5593 = vcmask 1043456
        %vm5594 = vmand %vm5593, %vm5118
        %v5595 = vld [vmem:[%s5592] sm:$0xf]
        %v5596 = vsel %vm5594, %v5278, %v5595
        %5597 = vst [vmem:[%s5592] sm:$0xf] %v5596
        %5598 = vst [vmem:[%s5592 + $0x4] sm:$0xf] %v5287
        %v5599 = vld [vmem:[%s5592 + $0x8] sm:$0x1]
        %v5600 = vsel %vm5063, %v5288, %v5599
        %5601 = vst [vmem:[%s5592 + $0x8] sm:$0x1] %v5600
        %v5602 = vld [vmem:[%s5592 + $0xc] sm:$0xf]
        %v5603 = vsel %vm5594, %v5295, %v5602
        %5604 = vst [vmem:[%s5592 + $0xc] sm:$0xf] %v5603
        %5605 = vst [vmem:[%s5592 + $0x10] sm:$0xf] %v5304
        %v5606 = vld [vmem:[%s5592 + $0x14] sm:$0x1]
        %v5607 = vsel %vm5063, %v5305, %v5606
        %5608 = vst [vmem:[%s5592 + $0x14] sm:$0x1] %v5607
        %v5609 = vld [vmem:[%s5592 + $0x18] sm:$0xf]
        %v5610 = vsel %vm5594, %v5312, %v5609
        %5611 = vst [vmem:[%s5592 + $0x18] sm:$0xf] %v5610
        %5612 = vst [vmem:[%s5592 + $0x1c] sm:$0xf] %v5321
        %v5613 = vld [vmem:[%s5592 + $0x20] sm:$0x1]
        %v5614 = vsel %vm5063, %v5322, %v5613
        %5615 = vst [vmem:[%s5592 + $0x20] sm:$0x1] %v5614
        %v5616 = vld [vmem:[%s5592 + $0x24] sm:$0xf]
        %v5617 = vsel %vm5594, %v5329, %v5616
        %5618 = vst [vmem:[%s5592 + $0x24] sm:$0xf] %v5617
        %5619 = vst [vmem:[%s5592 + $0x28] sm:$0xf] %v5338
        %v5620 = vld [vmem:[%s5592 + $0x2c] sm:$0x1]
        %v5621 = vsel %vm5063, %v5339, %v5620
        %5622 = vst [vmem:[%s5592 + $0x2c] sm:$0x1] %v5621
        %v5623 = vld [vmem:[%s5592 + $0x30] sm:$0xf]
        %v5624 = vsel %vm5594, %v5346, %v5623
        %5625 = vst [vmem:[%s5592 + $0x30] sm:$0xf] %v5624
        %5626 = vst [vmem:[%s5592 + $0x34] sm:$0xf] %v5355
        %v5627 = vld [vmem:[%s5592 + $0x38] sm:$0x1]
        %v5628 = vsel %vm5063, %v5356, %v5627
        %5629 = vst [vmem:[%s5592 + $0x38] sm:$0x1] %v5628
        %v5630 = vld [vmem:[%s5592 + $0x3c] sm:$0xf]
        %v5631 = vsel %vm5594, %v5363, %v5630
        %5632 = vst [vmem:[%s5592 + $0x3c] sm:$0xf] %v5631
        %5633 = vst [vmem:[%s5592 + $0x40] sm:$0xf] %v5372
        %v5634 = vld [vmem:[%s5592 + $0x44] sm:$0x1]
        %v5635 = vsel %vm5063, %v5373, %v5634
        %5636 = vst [vmem:[%s5592 + $0x44] sm:$0x1] %v5635
        %v5637 = vld [vmem:[%s5592 + $0x48] sm:$0xf]
        %v5638 = vsel %vm5594, %v5380, %v5637
        %5639 = vst [vmem:[%s5592 + $0x48] sm:$0xf] %v5638
        %5640 = vst [vmem:[%s5592 + $0x4c] sm:$0xf] %v5389
        %v5641 = vld [vmem:[%s5592 + $0x50] sm:$0x1]
        %v5642 = vsel %vm5063, %v5390, %v5641
        %5643 = vst [vmem:[%s5592 + $0x50] sm:$0x1] %v5642
        %v5644 = vld [vmem:[%s5592 + $0x54] sm:$0xf]
        %v5645 = vsel %vm5594, %v5397, %v5644
        %5646 = vst [vmem:[%s5592 + $0x54] sm:$0xf] %v5645
        %5647 = vst [vmem:[%s5592 + $0x58] sm:$0xf] %v5406
        %v5648 = vld [vmem:[%s5592 + $0x5c] sm:$0x1]
        %v5649 = vsel %vm5063, %v5407, %v5648
        %5650 = vst [vmem:[%s5592 + $0x5c] sm:$0x1] %v5649
        %v5651 = vld [vmem:[%s5592 + $0x60] sm:$0xf]
        %v5652 = vsel %vm5594, %v5414, %v5651
        %5653 = vst [vmem:[%s5592 + $0x60] sm:$0xf] %v5652
        %5654 = vst [vmem:[%s5592 + $0x64] sm:$0xf] %v5423
        %v5655 = vld [vmem:[%s5592 + $0x68] sm:$0x1]
        %v5656 = vsel %vm5063, %v5424, %v5655
        %5657 = vst [vmem:[%s5592 + $0x68] sm:$0x1] %v5656
        %v5658 = vld [vmem:[%s5592 + $0x6c] sm:$0xf]
        %v5659 = vsel %vm5594, %v5431, %v5658
        %5660 = vst [vmem:[%s5592 + $0x6c] sm:$0xf] %v5659
        %5661 = vst [vmem:[%s5592 + $0x70] sm:$0xf] %v5440
        %v5662 = vld [vmem:[%s5592 + $0x74] sm:$0x1]
        %v5663 = vsel %vm5063, %v5441, %v5662
        %5664 = vst [vmem:[%s5592 + $0x74] sm:$0x1] %v5663
        %v5665 = vld [vmem:[%s5592 + $0x78] sm:$0xf]
        %v5666 = vsel %vm5594, %v5448, %v5665
        %5667 = vst [vmem:[%s5592 + $0x78] sm:$0xf] %v5666
        %5668 = vst [vmem:[%s5592 + $0x7c] sm:$0xf] %v5457
        %v5669 = vld [vmem:[%s5592 + $0x80] sm:$0x1]
        %v5670 = vsel %vm5063, %v5458, %v5669
        %5671 = vst [vmem:[%s5592 + $0x80] sm:$0x1] %v5670
        %v5672 = vld [vmem:[%s5592 + $0x84] sm:$0xf]
        %v5673 = vsel %vm5594, %v5465, %v5672
        %5674 = vst [vmem:[%s5592 + $0x84] sm:$0xf] %v5673
        %5675 = vst [vmem:[%s5592 + $0x88] sm:$0xf] %v5474
        %v5676 = vld [vmem:[%s5592 + $0x8c] sm:$0x1]
        %v5677 = vsel %vm5063, %v5475, %v5676
        %5678 = vst [vmem:[%s5592 + $0x8c] sm:$0x1] %v5677
        %v5679 = vld [vmem:[%s5592 + $0x90] sm:$0xf]
        %v5680 = vsel %vm5594, %v5482, %v5679
        %5681 = vst [vmem:[%s5592 + $0x90] sm:$0xf] %v5680
        %5682 = vst [vmem:[%s5592 + $0x94] sm:$0xf] %v5491
        %v5683 = vld [vmem:[%s5592 + $0x98] sm:$0x1]
        %v5684 = vsel %vm5063, %v5492, %v5683
        %5685 = vst [vmem:[%s5592 + $0x98] sm:$0x1] %v5684
        %v5686 = vld [vmem:[%s5592 + $0x9c] sm:$0xf]
        %v5687 = vsel %vm5594, %v5499, %v5686
        %5688 = vst [vmem:[%s5592 + $0x9c] sm:$0xf] %v5687
        %5689 = vst [vmem:[%s5592 + $0xa0] sm:$0xf] %v5508
        %v5690 = vld [vmem:[%s5592 + $0xa4] sm:$0x1]
        %v5691 = vsel %vm5063, %v5509, %v5690
        %5692 = vst [vmem:[%s5592 + $0xa4] sm:$0x1] %v5691
        %v5693 = vld [vmem:[%s5592 + $0xa8] sm:$0xf]
        %v5694 = vsel %vm5594, %v5516, %v5693
        %5695 = vst [vmem:[%s5592 + $0xa8] sm:$0xf] %v5694
        %5696 = vst [vmem:[%s5592 + $0xac] sm:$0xf] %v5525
        %v5697 = vld [vmem:[%s5592 + $0xb0] sm:$0x1]
        %v5698 = vsel %vm5063, %v5526, %v5697
        %5699 = vst [vmem:[%s5592 + $0xb0] sm:$0x1] %v5698
        %v5700 = vld [vmem:[%s5592 + $0xb4] sm:$0xf]
        %v5701 = vsel %vm5594, %v5533, %v5700
        %5702 = vst [vmem:[%s5592 + $0xb4] sm:$0xf] %v5701
        %5703 = vst [vmem:[%s5592 + $0xb8] sm:$0xf] %v5542
        %v5704 = vld [vmem:[%s5592 + $0xbc] sm:$0x1]
        %v5705 = vsel %vm5063, %v5543, %v5704
        %5706 = vst [vmem:[%s5592 + $0xbc] sm:$0x1] %v5705
        %v5707 = vld [vmem:[#allocation2] sm:$0xf]
        %v5708 = vld [vmem:[#allocation2 + $0x4] sm:$0xf]
        %v5709 = vld [vmem:[#allocation2 + $0xc] sm:$0xf]
        %v5710 = vld [vmem:[#allocation2 + $0x10] sm:$0xf]
        %v5711 = vld [vmem:[#allocation2 + $0x18] sm:$0xf]
        %v5712 = vld [vmem:[#allocation2 + $0x1c] sm:$0xf]
        %v5713 = vld [vmem:[#allocation2 + $0x24] sm:$0xf]
        %v5714 = vld [vmem:[#allocation2 + $0x28] sm:$0xf]
        %v5715 = vld [vmem:[#allocation2 + $0x30] sm:$0xf]
        %v5716 = vld [vmem:[#allocation2 + $0x34] sm:$0xf]
        %v5717 = vld [vmem:[#allocation2 + $0x3c] sm:$0xf]
        %v5718 = vld [vmem:[#allocation2 + $0x40] sm:$0xf]
        %v5719 = vld [vmem:[#allocation2 + $0x48] sm:$0xf]
        %v5720 = vld [vmem:[#allocation2 + $0x4c] sm:$0xf]
        %v5721 = vld [vmem:[#allocation2 + $0x54] sm:$0xf]
        %v5722 = vld [vmem:[#allocation2 + $0x58] sm:$0xf]
        %v5723 = vld [vmem:[#allocation2 + $0x60] sm:$0xf]
        %v5724 = vld [vmem:[#allocation2 + $0x64] sm:$0xf]
        %v5725 = vld [vmem:[#allocation2 + $0x6c] sm:$0xf]
        %v5726 = vld [vmem:[#allocation2 + $0x70] sm:$0xf]
        %v5727 = vld [vmem:[#allocation2 + $0x78] sm:$0xf]
        %v5728 = vld [vmem:[#allocation2 + $0x7c] sm:$0xf]
        %v5729 = vld [vmem:[#allocation2 + $0x84] sm:$0xf]
        %v5730 = vld [vmem:[#allocation2 + $0x88] sm:$0xf]
        %v5731 = vld [vmem:[#allocation2 + $0x90] sm:$0xf]
        %v5732 = vld [vmem:[#allocation2 + $0x94] sm:$0xf]
        %v5733 = vld [vmem:[#allocation2 + $0x9c] sm:$0xf]
        %v5734 = vld [vmem:[#allocation2 + $0xa0] sm:$0xf]
        %v5735 = vld [vmem:[#allocation2 + $0xa8] sm:$0xf]
        %v5736 = vld [vmem:[#allocation2 + $0xac] sm:$0xf]
        %v5737 = vld [vmem:[#allocation2 + $0xb4] sm:$0xf]
        %v5738 = vld [vmem:[#allocation2 + $0xb8] sm:$0xf]
        %v5739 = vld [vmem:[#allocation4] sm:$0xf]
        %v5740 = vld [vmem:[#allocation4 + $0x4] sm:$0xf]
        %v5741 = vld [vmem:[#allocation4 + $0x8] sm:$0xf]
        %v5742 = vld [vmem:[#allocation4 + $0xc] sm:$0xf]
        %v5743 = vld [vmem:[#allocation4 + $0x10] sm:$0xf]
        %v5744 = vld [vmem:[#allocation4 + $0x14] sm:$0xf]
        %v5745 = vld [vmem:[#allocation4 + $0x18] sm:$0xf]
        %v5746 = vld [vmem:[#allocation4 + $0x1c] sm:$0xf]
        %v5747 = vld [vmem:[#allocation4 + $0x20] sm:$0xf]
        %v5748 = vld [vmem:[#allocation4 + $0x24] sm:$0xf]
        %v5749 = vld [vmem:[#allocation4 + $0x28] sm:$0xf]
        %v5750 = vld [vmem:[#allocation4 + $0x2c] sm:$0xf]
        %v5751 = vld [vmem:[#allocation4 + $0x30] sm:$0xf]
        %v5752 = vld [vmem:[#allocation4 + $0x34] sm:$0xf]
        %v5753 = vld [vmem:[#allocation4 + $0x38] sm:$0xf]
        %v5754 = vld [vmem:[#allocation4 + $0x3c] sm:$0xf]
        %v5755 = vld [vmem:[#allocation2 + $0x8] sm:$0x1]
        %v5756 = vld [vmem:[#allocation2 + $0x14] sm:$0x1]
        %v5757 = vld [vmem:[#allocation2 + $0x20] sm:$0x1]
        %v5758 = vld [vmem:[#allocation2 + $0x2c] sm:$0x1]
        %v5759 = vld [vmem:[#allocation2 + $0x38] sm:$0x1]
        %v5760 = vld [vmem:[#allocation2 + $0x44] sm:$0x1]
        %v5761 = vld [vmem:[#allocation2 + $0x50] sm:$0x1]
        %v5762 = vld [vmem:[#allocation2 + $0x5c] sm:$0x1]
        %v5763 = vld [vmem:[#allocation2 + $0x68] sm:$0x1]
        %v5764 = vld [vmem:[#allocation2 + $0x74] sm:$0x1]
        %v5765 = vld [vmem:[#allocation2 + $0x80] sm:$0x1]
        %v5766 = vld [vmem:[#allocation2 + $0x8c] sm:$0x1]
        %v5767 = vld [vmem:[#allocation2 + $0x98] sm:$0x1]
        %v5768 = vld [vmem:[#allocation2 + $0xa4] sm:$0x1]
        %v5769 = vld [vmem:[#allocation2 + $0xb0] sm:$0x1]
        %v5770 = vld [vmem:[#allocation2 + $0xbc] sm:$0x1]
        %v5772 = vshrl.u32 %v5707, 16
        %v5774 = vrot.slane %v5772, 4
        %v5775 = vshll.u32 %v5707, 16
        %v5777 = vrot.slane %v5775, 5
        %v5778 = vor.u32 %v5774, %v5777
        %v5779 = vrot.slane %v5778, 4
        %v5781 = vshll.u32 %v5708, 16
        %v5783 = vrot.slane %v5781, 5
        %v5784 = vsel %vm292, %v5779, %v5783
        %v5785 = vshrl.u32 %v5708, 16
        %v5787 = vrot.slane %v5785, 4
        %v5788 = vor.u32 %v5787, %v5783
        %v5789 = vrot.slane %v5788, 4
        %v5791 = vshll.u32 %v5755, 16
        %v5793 = vrot.slane %v5791, 5
        %v5794 = vsel %vm292, %v5789, %v5793
        %v5796 = vshrl.u32 %v5709, 16
        %v5798 = vrot.slane %v5796, 4
        %v5799 = vshll.u32 %v5709, 16
        %v5801 = vrot.slane %v5799, 5
        %v5802 = vor.u32 %v5798, %v5801
        %v5803 = vrot.slane %v5802, 4
        %v5805 = vshll.u32 %v5710, 16
        %v5807 = vrot.slane %v5805, 5
        %v5808 = vsel %vm292, %v5803, %v5807
        %v5809 = vshrl.u32 %v5710, 16
        %v5811 = vrot.slane %v5809, 4
        %v5812 = vor.u32 %v5811, %v5807
        %v5813 = vrot.slane %v5812, 4
        %v5815 = vshll.u32 %v5756, 16
        %v5817 = vrot.slane %v5815, 5
        %v5818 = vsel %vm292, %v5813, %v5817
        %v5820 = vshrl.u32 %v5711, 16
        %v5822 = vrot.slane %v5820, 4
        %v5823 = vshll.u32 %v5711, 16
        %v5825 = vrot.slane %v5823, 5
        %v5826 = vor.u32 %v5822, %v5825
        %v5827 = vrot.slane %v5826, 4
        %v5829 = vshll.u32 %v5712, 16
        %v5831 = vrot.slane %v5829, 5
        %v5832 = vsel %vm292, %v5827, %v5831
        %v5833 = vshrl.u32 %v5712, 16
        %v5835 = vrot.slane %v5833, 4
        %v5836 = vor.u32 %v5835, %v5831
        %v5837 = vrot.slane %v5836, 4
        %v5839 = vshll.u32 %v5757, 16
        %v5841 = vrot.slane %v5839, 5
        %v5842 = vsel %vm292, %v5837, %v5841
        %v5844 = vshrl.u32 %v5713, 16
        %v5846 = vrot.slane %v5844, 4
        %v5847 = vshll.u32 %v5713, 16
        %v5849 = vrot.slane %v5847, 5
        %v5850 = vor.u32 %v5846, %v5849
        %v5851 = vrot.slane %v5850, 4
        %v5853 = vshll.u32 %v5714, 16
        %v5855 = vrot.slane %v5853, 5
        %v5856 = vsel %vm292, %v5851, %v5855
        %v5857 = vshrl.u32 %v5714, 16
        %v5859 = vrot.slane %v5857, 4
        %v5860 = vor.u32 %v5859, %v5855
        %v5861 = vrot.slane %v5860, 4
        %v5863 = vshll.u32 %v5758, 16
        %v5865 = vrot.slane %v5863, 5
        %v5866 = vsel %vm292, %v5861, %v5865
        %v5868 = vshrl.u32 %v5715, 16
        %v5870 = vrot.slane %v5868, 4
        %v5871 = vshll.u32 %v5715, 16
        %v5873 = vrot.slane %v5871, 5
        %v5874 = vor.u32 %v5870, %v5873
        %v5875 = vrot.slane %v5874, 4
        %v5877 = vshll.u32 %v5716, 16
        %v5879 = vrot.slane %v5877, 5
        %v5880 = vsel %vm292, %v5875, %v5879
        %v5881 = vshrl.u32 %v5716, 16
        %v5883 = vrot.slane %v5881, 4
        %v5884 = vor.u32 %v5883, %v5879
        %v5885 = vrot.slane %v5884, 4
        %v5887 = vshll.u32 %v5759, 16
        %v5889 = vrot.slane %v5887, 5
        %v5890 = vsel %vm292, %v5885, %v5889
        %v5892 = vshrl.u32 %v5717, 16
        %v5894 = vrot.slane %v5892, 4
        %v5895 = vshll.u32 %v5717, 16
        %v5897 = vrot.slane %v5895, 5
        %v5898 = vor.u32 %v5894, %v5897
        %v5899 = vrot.slane %v5898, 4
        %v5901 = vshll.u32 %v5718, 16
        %v5903 = vrot.slane %v5901, 5
        %v5904 = vsel %vm292, %v5899, %v5903
        %v5905 = vshrl.u32 %v5718, 16
        %v5907 = vrot.slane %v5905, 4
        %v5908 = vor.u32 %v5907, %v5903
        %v5909 = vrot.slane %v5908, 4
        %v5911 = vshll.u32 %v5760, 16
        %v5913 = vrot.slane %v5911, 5
        %v5914 = vsel %vm292, %v5909, %v5913
        %v5916 = vshrl.u32 %v5719, 16
        %v5918 = vrot.slane %v5916, 4
        %v5919 = vshll.u32 %v5719, 16
        %v5921 = vrot.slane %v5919, 5
        %v5922 = vor.u32 %v5918, %v5921
        %v5923 = vrot.slane %v5922, 4
        %v5925 = vshll.u32 %v5720, 16
        %v5927 = vrot.slane %v5925, 5
        %v5928 = vsel %vm292, %v5923, %v5927
        %v5929 = vshrl.u32 %v5720, 16
        %v5931 = vrot.slane %v5929, 4
        %v5932 = vor.u32 %v5931, %v5927
        %v5933 = vrot.slane %v5932, 4
        %v5935 = vshll.u32 %v5761, 16
        %v5937 = vrot.slane %v5935, 5
        %v5938 = vsel %vm292, %v5933, %v5937
        %v5940 = vshrl.u32 %v5721, 16
        %v5942 = vrot.slane %v5940, 4
        %v5943 = vshll.u32 %v5721, 16
        %v5945 = vrot.slane %v5943, 5
        %v5946 = vor.u32 %v5942, %v5945
        %v5947 = vrot.slane %v5946, 4
        %v5949 = vshll.u32 %v5722, 16
        %v5951 = vrot.slane %v5949, 5
        %v5952 = vsel %vm292, %v5947, %v5951
        %v5953 = vshrl.u32 %v5722, 16
        %v5955 = vrot.slane %v5953, 4
        %v5956 = vor.u32 %v5955, %v5951
        %v5957 = vrot.slane %v5956, 4
        %v5959 = vshll.u32 %v5762, 16
        %v5961 = vrot.slane %v5959, 5
        %v5962 = vsel %vm292, %v5957, %v5961
        %v5964 = vshrl.u32 %v5723, 16
        %v5966 = vrot.slane %v5964, 4
        %v5967 = vshll.u32 %v5723, 16
        %v5969 = vrot.slane %v5967, 5
        %v5970 = vor.u32 %v5966, %v5969
        %v5971 = vrot.slane %v5970, 4
        %v5973 = vshll.u32 %v5724, 16
        %v5975 = vrot.slane %v5973, 5
        %v5976 = vsel %vm292, %v5971, %v5975
        %v5977 = vshrl.u32 %v5724, 16
        %v5979 = vrot.slane %v5977, 4
        %v5980 = vor.u32 %v5979, %v5975
        %v5981 = vrot.slane %v5980, 4
        %v5983 = vshll.u32 %v5763, 16
        %v5985 = vrot.slane %v5983, 5
        %v5986 = vsel %vm292, %v5981, %v5985
        %v5988 = vshrl.u32 %v5725, 16
        %v5990 = vrot.slane %v5988, 4
        %v5991 = vshll.u32 %v5725, 16
        %v5993 = vrot.slane %v5991, 5
        %v5994 = vor.u32 %v5990, %v5993
        %v5995 = vrot.slane %v5994, 4
        %v5997 = vshll.u32 %v5726, 16
        %v5999 = vrot.slane %v5997, 5
        %v6000 = vsel %vm292, %v5995, %v5999
        %v6001 = vshrl.u32 %v5726, 16
        %v6003 = vrot.slane %v6001, 4
        %v6004 = vor.u32 %v6003, %v5999
        %v6005 = vrot.slane %v6004, 4
        %v6007 = vshll.u32 %v5764, 16
        %v6009 = vrot.slane %v6007, 5
        %v6010 = vsel %vm292, %v6005, %v6009
        %v6012 = vshrl.u32 %v5727, 16
        %v6014 = vrot.slane %v6012, 4
        %v6015 = vshll.u32 %v5727, 16
        %v6017 = vrot.slane %v6015, 5
        %v6018 = vor.u32 %v6014, %v6017
        %v6019 = vrot.slane %v6018, 4
        %v6021 = vshll.u32 %v5728, 16
        %v6023 = vrot.slane %v6021, 5
        %v6024 = vsel %vm292, %v6019, %v6023
        %v6025 = vshrl.u32 %v5728, 16
        %v6027 = vrot.slane %v6025, 4
        %v6028 = vor.u32 %v6027, %v6023
        %v6029 = vrot.slane %v6028, 4
        %v6031 = vshll.u32 %v5765, 16
        %v6033 = vrot.slane %v6031, 5
        %v6034 = vsel %vm292, %v6029, %v6033
        %v6036 = vshrl.u32 %v5729, 16
        %v6038 = vrot.slane %v6036, 4
        %v6039 = vshll.u32 %v5729, 16
        %v6041 = vrot.slane %v6039, 5
        %v6042 = vor.u32 %v6038, %v6041
        %v6043 = vrot.slane %v6042, 4
        %v6045 = vshll.u32 %v5730, 16
        %v6047 = vrot.slane %v6045, 5
        %v6048 = vsel %vm292, %v6043, %v6047
        %v6049 = vshrl.u32 %v5730, 16
        %v6051 = vrot.slane %v6049, 4
        %v6052 = vor.u32 %v6051, %v6047
        %v6053 = vrot.slane %v6052, 4
        %v6055 = vshll.u32 %v5766, 16
        %v6057 = vrot.slane %v6055, 5
        %v6058 = vsel %vm292, %v6053, %v6057
        %v6060 = vshrl.u32 %v5731, 16
        %v6062 = vrot.slane %v6060, 4
        %v6063 = vshll.u32 %v5731, 16
        %v6065 = vrot.slane %v6063, 5
        %v6066 = vor.u32 %v6062, %v6065
        %v6067 = vrot.slane %v6066, 4
        %v6069 = vshll.u32 %v5732, 16
        %v6071 = vrot.slane %v6069, 5
        %v6072 = vsel %vm292, %v6067, %v6071
        %v6073 = vshrl.u32 %v5732, 16
        %v6075 = vrot.slane %v6073, 4
        %v6076 = vor.u32 %v6075, %v6071
        %v6077 = vrot.slane %v6076, 4
        %v6079 = vshll.u32 %v5767, 16
        %v6081 = vrot.slane %v6079, 5
        %v6082 = vsel %vm292, %v6077, %v6081
        %v6084 = vshrl.u32 %v5733, 16
        %v6086 = vrot.slane %v6084, 4
        %v6087 = vshll.u32 %v5733, 16
        %v6089 = vrot.slane %v6087, 5
        %v6090 = vor.u32 %v6086, %v6089
        %v6091 = vrot.slane %v6090, 4
        %v6093 = vshll.u32 %v5734, 16
        %v6095 = vrot.slane %v6093, 5
        %v6096 = vsel %vm292, %v6091, %v6095
        %v6097 = vshrl.u32 %v5734, 16
        %v6099 = vrot.slane %v6097, 4
        %v6100 = vor.u32 %v6099, %v6095
        %v6101 = vrot.slane %v6100, 4
        %v6103 = vshll.u32 %v5768, 16
        %v6105 = vrot.slane %v6103, 5
        %v6106 = vsel %vm292, %v6101, %v6105
        %v6108 = vshrl.u32 %v5735, 16
        %v6110 = vrot.slane %v6108, 4
        %v6111 = vshll.u32 %v5735, 16
        %v6113 = vrot.slane %v6111, 5
        %v6114 = vor.u32 %v6110, %v6113
        %v6115 = vrot.slane %v6114, 4
        %v6117 = vshll.u32 %v5736, 16
        %v6119 = vrot.slane %v6117, 5
        %v6120 = vsel %vm292, %v6115, %v6119
        %v6121 = vshrl.u32 %v5736, 16
        %v6123 = vrot.slane %v6121, 4
        %v6124 = vor.u32 %v6123, %v6119
        %v6125 = vrot.slane %v6124, 4
        %v6127 = vshll.u32 %v5769, 16
        %v6129 = vrot.slane %v6127, 5
        %v6130 = vsel %vm292, %v6125, %v6129
        %v6132 = vshrl.u32 %v5737, 16
        %v6134 = vrot.slane %v6132, 4
        %v6135 = vshll.u32 %v5737, 16
        %v6137 = vrot.slane %v6135, 5
        %v6138 = vor.u32 %v6134, %v6137
        %v6139 = vrot.slane %v6138, 4
        %v6141 = vshll.u32 %v5738, 16
        %v6143 = vrot.slane %v6141, 5
        %v6144 = vsel %vm292, %v6139, %v6143
        %v6145 = vshrl.u32 %v5738, 16
        %v6147 = vrot.slane %v6145, 4
        %v6148 = vor.u32 %v6147, %v6143
        %v6149 = vrot.slane %v6148, 4
        %v6151 = vshll.u32 %v5770, 16
        %v6153 = vrot.slane %v6151, 5
        %v6154 = vsel %vm292, %v6149, %v6153
        %s6155 = scalar_lea.vmem [#allocation4], 64
        %v6156 = vld [vmem:[%s6155] sm:$0xf]
        %v6157 = vld [vmem:[%s6155 + $0x4] sm:$0xf]
        %v6158 = vld [vmem:[%s6155 + $0x8] sm:$0xf]
        %v6159 = vld [vmem:[%s6155 + $0xc] sm:$0xf]
        %v6160 = vld [vmem:[%s6155 + $0x10] sm:$0xf]
        %v6161 = vld [vmem:[%s6155 + $0x14] sm:$0xf]
        %v6162 = vld [vmem:[%s6155 + $0x18] sm:$0xf]
        %v6163 = vld [vmem:[%s6155 + $0x1c] sm:$0xf]
        %v6164 = vld [vmem:[%s6155 + $0x20] sm:$0xf]
        %v6165 = vld [vmem:[%s6155 + $0x24] sm:$0xf]
        %v6166 = vld [vmem:[%s6155 + $0x28] sm:$0xf]
        %v6167 = vld [vmem:[%s6155 + $0x2c] sm:$0xf]
        %v6168 = vld [vmem:[%s6155 + $0x30] sm:$0xf]
        %v6169 = vld [vmem:[%s6155 + $0x34] sm:$0xf]
        %v6170 = vld [vmem:[%s6155 + $0x38] sm:$0xf]
        %v6171 = vld [vmem:[%s6155 + $0x3c] sm:$0xf]
        %v6172 = vunpack.c.l.b16 %v5784
        %v6173 = vunpack.c.l.b16 %v5794
        %v6174 = vunpack.c.l.b16 %v5808
        %v6175 = vunpack.c.l.b16 %v5818
        %v6176 = vunpack.c.l.b16 %v5832
        %v6177 = vunpack.c.l.b16 %v5842
        %v6178 = vunpack.c.l.b16 %v5856
        %v6179 = vunpack.c.l.b16 %v5866
        %v6180 = vunpack.c.l.b16 %v5880
        %v6181 = vunpack.c.l.b16 %v5890
        %v6182 = vunpack.c.l.b16 %v5904
        %v6183 = vunpack.c.l.b16 %v5914
        %v6184 = vunpack.c.l.b16 %v5928
        %v6185 = vunpack.c.l.b16 %v5938
        %v6186 = vunpack.c.l.b16 %v5952
        %v6187 = vunpack.c.l.b16 %v5962
        %v6188 = vunpack.c.l.b16 %v5976
        %v6189 = vunpack.c.l.b16 %v5986
        %v6190 = vunpack.c.l.b16 %v6000
        %v6191 = vunpack.c.l.b16 %v6010
        %v6192 = vunpack.c.l.b16 %v6024
        %v6193 = vunpack.c.l.b16 %v6034
        %v6194 = vunpack.c.l.b16 %v6048
        %v6195 = vunpack.c.l.b16 %v6058
        %v6196 = vunpack.c.l.b16 %v6072
        %v6197 = vunpack.c.l.b16 %v6082
        %v6198 = vunpack.c.l.b16 %v6096
        %v6199 = vunpack.c.l.b16 %v6106
        %v6200 = vunpack.c.l.b16 %v6120
        %v6201 = vunpack.c.l.b16 %v6130
        %v6202 = vunpack.c.l.b16 %v6144
        %v6203 = vunpack.c.l.b16 %v6154
        %v6204 = vpack.c.b16 %v6173, %v6172
        %v6205 = vpack.c.b16 %v6175, %v6174
        %v6206 = vpack.c.b16 %v6177, %v6176
        %v6207 = vpack.c.b16 %v6179, %v6178
        %v6208 = vpack.c.b16 %v6181, %v6180
        %v6209 = vpack.c.b16 %v6183, %v6182
        %v6210 = vpack.c.b16 %v6185, %v6184
        %v6211 = vpack.c.b16 %v6187, %v6186
        %v6212 = vpack.c.b16 %v6189, %v6188
        %v6213 = vpack.c.b16 %v6191, %v6190
        %v6214 = vpack.c.b16 %v6193, %v6192
        %v6215 = vpack.c.b16 %v6195, %v6194
        %v6216 = vpack.c.b16 %v6197, %v6196
        %v6217 = vpack.c.b16 %v6199, %v6198
        %v6218 = vpack.c.b16 %v6201, %v6200
        %v6219 = vpack.c.b16 %v6203, %v6202
        %v6252 = vunpack.c.l.b16 %v6156
        %v6253 = vunpack.c.l.b16 %v6157
        %v6254 = vunpack.c.l.b16 %v6158
        %v6255 = vunpack.c.l.b16 %v6159
        %v6256 = vunpack.c.l.b16 %v6160
        %v6257 = vunpack.c.l.b16 %v6161
        %v6258 = vunpack.c.l.b16 %v6162
        %v6259 = vunpack.c.l.b16 %v6163
        %v6260 = vunpack.c.l.b16 %v6164
        %v6261 = vunpack.c.l.b16 %v6165
        %v6262 = vunpack.c.l.b16 %v6166
        %v6263 = vunpack.c.l.b16 %v6167
        %v6264 = vunpack.c.l.b16 %v6168
        %v6265 = vunpack.c.l.b16 %v6169
        %v6266 = vunpack.c.l.b16 %v6170
        %v6267 = vunpack.c.l.b16 %v6171
        %v6268 = vpack.c.b16 %v6253, %v6252
        %v6269 = vpack.c.b16 %v6255, %v6254
        %v6270 = vpack.c.b16 %v6257, %v6256
        %v6271 = vpack.c.b16 %v6259, %v6258
        %v6272 = vpack.c.b16 %v6261, %v6260
        %v6273 = vpack.c.b16 %v6263, %v6262
        %v6274 = vpack.c.b16 %v6265, %v6264
        %v6275 = vpack.c.b16 %v6267, %v6266
        %6284 = vmatprep.subr.bf16.mxu0 0
        %6285 = vmatpush1.bf16.msra.mxu0 %v6268
        %6286 = vmatprep.subr.bf16.mxu0 0
        %6287 = vmatpush1.bf16.msra.mxu0 %v6269
        %6288 = vmatprep.subr.bf16.mxu0 0
        %6289 = vmatpush1.bf16.msra.mxu0 %v6270
        %6290 = vmatprep.subr.bf16.mxu0 0
        %6291 = vmatpush1.bf16.msra.mxu0 %v6271
        %6292 = vmatprep.subr.bf16.mxu0 0
        %6293 = vmatpush1.bf16.msra.mxu0 %v6272
        %6294 = vmatprep.subr.bf16.mxu0 0
        %6295 = vmatpush1.bf16.msra.mxu0 %v6273
        %6296 = vmatprep.subr.bf16.mxu0 0
        %6297 = vmatpush1.bf16.msra.mxu0 %v6274
        %6298 = vmatprep.subr.bf16.mxu0 0
        %6299 = vmatpush1.bf16.msra.mxu0 %v6275
        %6300 = vmatprep.subr.bf16.mxu0 0
        %6301 = vmatpush1.bf16.msra.mxu0 0
        %6302 = vmatprep.subr.bf16.mxu0 0
        %6303 = vmatpush1.bf16.msra.mxu0 0
        %6304 = vmatprep.subr.bf16.mxu0 0
        %6305 = vmatpush1.bf16.msra.mxu0 0
        %6306 = vmatprep.subr.bf16.mxu0 0
        %6307 = vmatpush1.bf16.msra.mxu0 0
        %6308 = vmatprep.subr.bf16.mxu0 0
        %6309 = vmatpush1.bf16.msra.mxu0 0
        %6310 = vmatprep.subr.bf16.mxu0 0
        %6311 = vmatpush1.bf16.msra.mxu0 0
        %6312 = vmatprep.subr.bf16.mxu0 0
        %6313 = vmatpush1.bf16.msra.mxu0 0
        %6314 = vmatprep.subr.bf16.mxu0 0
        %6315 = vmatpush1.bf16.msra.mxu0 0
        %6316 = vmatprep.mubr.bf16.mxu0 0
        %6317 = vmatmul.mubr.bf16.gmra.mrb[0].mxu0 %v6204
        %v6318 = vpop.f32.mrb[0].mxu0
        %v6319 = vadd.f32 0.0, %v6318
        %v6320 = vpop.f32.mrb[0].mxu0
        %v6321 = vpop.f32.mrb[0].mxu0
        %v6322 = vadd.f32 0.0, %v6321
        %v6323 = vpop.f32.mrb[0].mxu0
        %6324 = vmatprep.mubr.bf16.mxu0 0
        %6325 = vmatmul.mubr.bf16.gmra.mrb[0].mxu0 %v6205
        %v6326 = vpop.f32.mrb[0].mxu0
        %v6327 = vadd.f32 0.0, %v6326
        %v6328 = vpop.f32.mrb[0].mxu0
        %v6329 = vpop.f32.mrb[0].mxu0
        %v6330 = vadd.f32 0.0, %v6329
        %v6331 = vpop.f32.mrb[0].mxu0
        %6332 = vmatprep.mubr.bf16.mxu0 0
        %6333 = vmatmul.mubr.bf16.gmra.mrb[0].mxu0 %v6206
        %v6334 = vpop.f32.mrb[0].mxu0
        %v6335 = vadd.f32 0.0, %v6334
        %v6336 = vpop.f32.mrb[0].mxu0
        %v6337 = vpop.f32.mrb[0].mxu0
        %v6338 = vadd.f32 0.0, %v6337
        %v6339 = vpop.f32.mrb[0].mxu0
        %6340 = vmatprep.mubr.bf16.mxu0 0
        %6341 = vmatmul.mubr.bf16.gmra.mrb[0].mxu0 %v6207
        %v6342 = vpop.f32.mrb[0].mxu0
        %v6343 = vadd.f32 0.0, %v6342
        %v6344 = vpop.f32.mrb[0].mxu0
        %v6345 = vpop.f32.mrb[0].mxu0
        %v6346 = vadd.f32 0.0, %v6345
        %v6347 = vpop.f32.mrb[0].mxu0
        %6348 = vmatprep.mubr.bf16.mxu0 0
        %6349 = vmatmul.mubr.bf16.gmra.mrb[0].mxu0 %v6208
        %v6350 = vpop.f32.mrb[0].mxu0
        %v6351 = vadd.f32 0.0, %v6350
        %v6352 = vpop.f32.mrb[0].mxu0
        %v6353 = vpop.f32.mrb[0].mxu0
        %v6354 = vadd.f32 0.0, %v6353
        %v6355 = vpop.f32.mrb[0].mxu0
        %6356 = vmatprep.mubr.bf16.mxu0 0
        %6357 = vmatmul.mubr.bf16.gmra.mrb[0].mxu0 %v6209
        %v6358 = vpop.f32.mrb[0].mxu0
        %v6359 = vadd.f32 0.0, %v6358
        %v6360 = vpop.f32.mrb[0].mxu0
        %v6361 = vpop.f32.mrb[0].mxu0
        %v6362 = vadd.f32 0.0, %v6361
        %v6363 = vpop.f32.mrb[0].mxu0
        %6364 = vmatprep.mubr.bf16.mxu0 0
        %6365 = vmatmul.mubr.bf16.gmra.mrb[0].mxu0 %v6210
        %v6366 = vpop.f32.mrb[0].mxu0
        %v6367 = vadd.f32 0.0, %v6366
        %v6368 = vpop.f32.mrb[0].mxu0
        %v6369 = vpop.f32.mrb[0].mxu0
        %v6370 = vadd.f32 0.0, %v6369
        %v6371 = vpop.f32.mrb[0].mxu0
        %6372 = vmatprep.mubr.bf16.mxu0 0
        %6373 = vmatmul.mubr.bf16.gmra.mrb[0].mxu0 %v6211
        %v6374 = vpop.f32.mrb[0].mxu0
        %v6375 = vadd.f32 0.0, %v6374
        %v6376 = vpop.f32.mrb[0].mxu0
        %v6377 = vpop.f32.mrb[0].mxu0
        %v6378 = vadd.f32 0.0, %v6377
        %v6379 = vpop.f32.mrb[0].mxu0
        %6380 = vmatprep.mubr.bf16.mxu0 0
        %6381 = vmatmul.mubr.bf16.gmra.mrb[0].mxu0 %v6212
        %v6382 = vpop.f32.mrb[0].mxu0
        %v6383 = vadd.f32 0.0, %v6382
        %v6384 = vpop.f32.mrb[0].mxu0
        %v6385 = vpop.f32.mrb[0].mxu0
        %v6386 = vadd.f32 0.0, %v6385
        %v6387 = vpop.f32.mrb[0].mxu0
        %6388 = vmatprep.mubr.bf16.mxu0 0
        %6389 = vmatmul.mubr.bf16.gmra.mrb[0].mxu0 %v6213
        %v6390 = vpop.f32.mrb[0].mxu0
        %v6391 = vadd.f32 0.0, %v6390
        %v6392 = vpop.f32.mrb[0].mxu0
        %v6393 = vpop.f32.mrb[0].mxu0
        %v6394 = vadd.f32 0.0, %v6393
        %v6395 = vpop.f32.mrb[0].mxu0
        %6396 = vmatprep.mubr.bf16.mxu0 0
        %6397 = vmatmul.mubr.bf16.gmra.mrb[0].mxu0 %v6214
        %v6398 = vpop.f32.mrb[0].mxu0
        %v6399 = vadd.f32 0.0, %v6398
        %v6400 = vpop.f32.mrb[0].mxu0
        %v6401 = vpop.f32.mrb[0].mxu0
        %v6402 = vadd.f32 0.0, %v6401
        %v6403 = vpop.f32.mrb[0].mxu0
        %6404 = vmatprep.mubr.bf16.mxu0 0
        %6405 = vmatmul.mubr.bf16.gmra.mrb[0].mxu0 %v6215
        %v6406 = vpop.f32.mrb[0].mxu0
        %v6407 = vadd.f32 0.0, %v6406
        %v6408 = vpop.f32.mrb[0].mxu0
        %v6409 = vpop.f32.mrb[0].mxu0
        %v6410 = vadd.f32 0.0, %v6409
        %v6411 = vpop.f32.mrb[0].mxu0
        %6412 = vmatprep.mubr.bf16.mxu0 0
        %6413 = vmatmul.mubr.bf16.gmra.mrb[0].mxu0 %v6216
        %v6414 = vpop.f32.mrb[0].mxu0
        %v6415 = vadd.f32 0.0, %v6414
        %v6416 = vpop.f32.mrb[0].mxu0
        %v6417 = vpop.f32.mrb[0].mxu0
        %v6418 = vadd.f32 0.0, %v6417
        %v6419 = vpop.f32.mrb[0].mxu0
        %6420 = vmatprep.mubr.bf16.mxu0 0
        %6421 = vmatmul.mubr.bf16.gmra.mrb[0].mxu0 %v6217
        %v6422 = vpop.f32.mrb[0].mxu0
        %v6423 = vadd.f32 0.0, %v6422
        %v6424 = vpop.f32.mrb[0].mxu0
        %v6425 = vpop.f32.mrb[0].mxu0
        %v6426 = vadd.f32 0.0, %v6425
        %v6427 = vpop.f32.mrb[0].mxu0
        %6428 = vmatprep.mubr.bf16.mxu0 0
        %6429 = vmatmul.mubr.bf16.gmra.mrb[0].mxu0 %v6218
        %v6430 = vpop.f32.mrb[0].mxu0
        %v6431 = vadd.f32 0.0, %v6430
        %v6432 = vpop.f32.mrb[0].mxu0
        %v6433 = vpop.f32.mrb[0].mxu0
        %v6434 = vadd.f32 0.0, %v6433
        %v6435 = vpop.f32.mrb[0].mxu0
        %6436 = vmatprep.mubr.bf16.mxu0 0
        %6437 = vmatmul.mubr.bf16.gmra.mrb[0].mxu0 %v6219
        %v6438 = vpop.f32.mrb[0].mxu0
        %v6439 = vadd.f32 0.0, %v6438
        %v6440 = vpop.f32.mrb[0].mxu0
        %v6441 = vpop.f32.mrb[0].mxu0
        %v6442 = vadd.f32 0.0, %v6441
        %v6443 = vpop.f32.mrb[0].mxu0
        %6444 = vdwg.mxu0
        %v6477 = vunpack.c.l.b16 %v5707
        %v6478 = vunpack.c.l.b16 %v5708
        %v6479 = vunpack.c.l.b16 %v5709
        %v6480 = vunpack.c.l.b16 %v5710
        %v6481 = vunpack.c.l.b16 %v5711
        %v6482 = vunpack.c.l.b16 %v5712
        %v6483 = vunpack.c.l.b16 %v5713
        %v6484 = vunpack.c.l.b16 %v5714
        %v6485 = vunpack.c.l.b16 %v5715
        %v6486 = vunpack.c.l.b16 %v5716
        %v6487 = vunpack.c.l.b16 %v5717
        %v6488 = vunpack.c.l.b16 %v5718
        %v6489 = vunpack.c.l.b16 %v5719
        %v6490 = vunpack.c.l.b16 %v5720
        %v6491 = vunpack.c.l.b16 %v5721
        %v6492 = vunpack.c.l.b16 %v5722
        %v6493 = vunpack.c.l.b16 %v5723
        %v6494 = vunpack.c.l.b16 %v5724
        %v6495 = vunpack.c.l.b16 %v5725
        %v6496 = vunpack.c.l.b16 %v5726
        %v6497 = vunpack.c.l.b16 %v5727
        %v6498 = vunpack.c.l.b16 %v5728
        %v6499 = vunpack.c.l.b16 %v5729
        %v6500 = vunpack.c.l.b16 %v5730
        %v6501 = vunpack.c.l.b16 %v5731
        %v6502 = vunpack.c.l.b16 %v5732
        %v6503 = vunpack.c.l.b16 %v5733
        %v6504 = vunpack.c.l.b16 %v5734
        %v6505 = vunpack.c.l.b16 %v5735
        %v6506 = vunpack.c.l.b16 %v5736
        %v6507 = vunpack.c.l.b16 %v5737
        %v6508 = vunpack.c.l.b16 %v5738
        %v6509 = vpack.c.b16 %v6478, %v6477
        %v6510 = vpack.c.b16 %v6480, %v6479
        %v6511 = vpack.c.b16 %v6482, %v6481
        %v6512 = vpack.c.b16 %v6484, %v6483
        %v6513 = vpack.c.b16 %v6486, %v6485
        %v6514 = vpack.c.b16 %v6488, %v6487
        %v6515 = vpack.c.b16 %v6490, %v6489
        %v6516 = vpack.c.b16 %v6492, %v6491
        %v6517 = vpack.c.b16 %v6494, %v6493
        %v6518 = vpack.c.b16 %v6496, %v6495
        %v6519 = vpack.c.b16 %v6498, %v6497
        %v6520 = vpack.c.b16 %v6500, %v6499
        %v6521 = vpack.c.b16 %v6502, %v6501
        %v6522 = vpack.c.b16 %v6504, %v6503
        %v6523 = vpack.c.b16 %v6506, %v6505
        %v6524 = vpack.c.b16 %v6508, %v6507
        %v6557 = vunpack.c.l.b16 %v5739
        %v6558 = vunpack.c.l.b16 %v5740
        %v6559 = vunpack.c.l.b16 %v5741
        %v6560 = vunpack.c.l.b16 %v5742
        %v6561 = vunpack.c.l.b16 %v5743
        %v6562 = vunpack.c.l.b16 %v5744
        %v6563 = vunpack.c.l.b16 %v5745
        %v6564 = vunpack.c.l.b16 %v5746
        %v6565 = vunpack.c.l.b16 %v5747
        %v6566 = vunpack.c.l.b16 %v5748
        %v6567 = vunpack.c.l.b16 %v5749
        %v6568 = vunpack.c.l.b16 %v5750
        %v6569 = vunpack.c.l.b16 %v5751
        %v6570 = vunpack.c.l.b16 %v5752
        %v6571 = vunpack.c.l.b16 %v5753
        %v6572 = vunpack.c.l.b16 %v5754
        %v6573 = vpack.c.b16 %v6558, %v6557
        %v6574 = vpack.c.b16 %v6560, %v6559
        %v6575 = vpack.c.b16 %v6562, %v6561
        %v6576 = vpack.c.b16 %v6564, %v6563
        %v6577 = vpack.c.b16 %v6566, %v6565
        %v6578 = vpack.c.b16 %v6568, %v6567
        %v6579 = vpack.c.b16 %v6570, %v6569
        %v6580 = vpack.c.b16 %v6572, %v6571
        %6589 = vmatprep.subr.bf16.mxu0 0
        %6590 = vmatpush1.bf16.msra.mxu0 %v6573
        %6591 = vmatprep.subr.bf16.mxu0 0
        %6592 = vmatpush1.bf16.msra.mxu0 %v6574
        %6593 = vmatprep.subr.bf16.mxu0 0
        %6594 = vmatpush1.bf16.msra.mxu0 %v6575
        %6595 = vmatprep.subr.bf16.mxu0 0
        %6596 = vmatpush1.bf16.msra.mxu0 %v6576
        %6597 = vmatprep.subr.bf16.mxu0 0
        %6598 = vmatpush1.bf16.msra.mxu0 %v6577
        %6599 = vmatprep.subr.bf16.mxu0 0
        %6600 = vmatpush1.bf16.msra.mxu0 %v6578
        %6601 = vmatprep.subr.bf16.mxu0 0
        %6602 = vmatpush1.bf16.msra.mxu0 %v6579
        %6603 = vmatprep.subr.bf16.mxu0 0
        %6604 = vmatpush1.bf16.msra.mxu0 %v6580
        %6605 = vmatprep.subr.bf16.mxu0 0
        %6606 = vmatpush1.bf16.msra.mxu0 0
        %6607 = vmatprep.subr.bf16.mxu0 0
        %6608 = vmatpush1.bf16.msra.mxu0 0
        %6609 = vmatprep.subr.bf16.mxu0 0
        %6610 = vmatpush1.bf16.msra.mxu0 0
        %6611 = vmatprep.subr.bf16.mxu0 0
        %6612 = vmatpush1.bf16.msra.mxu0 0
        %6613 = vmatprep.subr.bf16.mxu0 0
        %6614 = vmatpush1.bf16.msra.mxu0 0
        %6615 = vmatprep.subr.bf16.mxu0 0
        %6616 = vmatpush1.bf16.msra.mxu0 0
        %6617 = vmatprep.subr.bf16.mxu0 0
        %6618 = vmatpush1.bf16.msra.mxu0 0
        %6619 = vmatprep.subr.bf16.mxu0 0
        %6620 = vmatpush1.bf16.msra.mxu0 0
        %6621 = vmatprep.mubr.bf16.mxu0 0
        %6622 = vmatmul.mubr.bf16.gmra.mrb[0].mxu0 %v6509
        %v6623 = vpop.f32.mrb[0].mxu0
        %v6624 = vadd.f32 %v6319, %v6623
        %v6625 = vpop.f32.mrb[0].mxu0
        %v6626 = vpop.f32.mrb[0].mxu0
        %v6627 = vadd.f32 %v6322, %v6626
        %v6628 = vpop.f32.mrb[0].mxu0
        %6629 = vmatprep.mubr.bf16.mxu0 0
        %6630 = vmatmul.mubr.bf16.gmra.mrb[0].mxu0 %v6510
        %v6631 = vpop.f32.mrb[0].mxu0
        %v6632 = vadd.f32 %v6327, %v6631
        %v6633 = vpop.f32.mrb[0].mxu0
        %v6634 = vpop.f32.mrb[0].mxu0
        %v6635 = vadd.f32 %v6330, %v6634
        %v6636 = vpop.f32.mrb[0].mxu0
        %6637 = vmatprep.mubr.bf16.mxu0 0
        %6638 = vmatmul.mubr.bf16.gmra.mrb[0].mxu0 %v6511
        %v6639 = vpop.f32.mrb[0].mxu0
        %v6640 = vadd.f32 %v6335, %v6639
        %v6641 = vpop.f32.mrb[0].mxu0
        %v6642 = vpop.f32.mrb[0].mxu0
        %v6643 = vadd.f32 %v6338, %v6642
        %v6644 = vpop.f32.mrb[0].mxu0
        %6645 = vmatprep.mubr.bf16.mxu0 0
        %6646 = vmatmul.mubr.bf16.gmra.mrb[0].mxu0 %v6512
        %v6647 = vpop.f32.mrb[0].mxu0
        %v6648 = vadd.f32 %v6343, %v6647
        %v6649 = vpop.f32.mrb[0].mxu0
        %v6650 = vpop.f32.mrb[0].mxu0
        %v6651 = vadd.f32 %v6346, %v6650
        %v6652 = vpop.f32.mrb[0].mxu0
        %6653 = vmatprep.mubr.bf16.mxu0 0
        %6654 = vmatmul.mubr.bf16.gmra.mrb[0].mxu0 %v6513
        %v6655 = vpop.f32.mrb[0].mxu0
        %v6656 = vadd.f32 %v6351, %v6655
        %v6657 = vpop.f32.mrb[0].mxu0
        %v6658 = vpop.f32.mrb[0].mxu0
        %v6659 = vadd.f32 %v6354, %v6658
        %v6660 = vpop.f32.mrb[0].mxu0
        %6661 = vmatprep.mubr.bf16.mxu0 0
        %6662 = vmatmul.mubr.bf16.gmra.mrb[0].mxu0 %v6514
        %v6663 = vpop.f32.mrb[0].mxu0
        %v6664 = vadd.f32 %v6359, %v6663
        %v6665 = vpop.f32.mrb[0].mxu0
        %v6666 = vpop.f32.mrb[0].mxu0
        %v6667 = vadd.f32 %v6362, %v6666
        %v6668 = vpop.f32.mrb[0].mxu0
        %6669 = vmatprep.mubr.bf16.mxu0 0
        %6670 = vmatmul.mubr.bf16.gmra.mrb[0].mxu0 %v6515
        %v6671 = vpop.f32.mrb[0].mxu0
        %v6672 = vadd.f32 %v6367, %v6671
        %v6673 = vpop.f32.mrb[0].mxu0
        %v6674 = vpop.f32.mrb[0].mxu0
        %v6675 = vadd.f32 %v6370, %v6674
        %v6676 = vpop.f32.mrb[0].mxu0
        %6677 = vmatprep.mubr.bf16.mxu0 0
        %6678 = vmatmul.mubr.bf16.gmra.mrb[0].mxu0 %v6516
        %v6679 = vpop.f32.mrb[0].mxu0
        %v6680 = vadd.f32 %v6375, %v6679
        %v6681 = vpop.f32.mrb[0].mxu0
        %v6682 = vpop.f32.mrb[0].mxu0
        %v6683 = vadd.f32 %v6378, %v6682
        %v6684 = vpop.f32.mrb[0].mxu0
        %6685 = vmatprep.mubr.bf16.mxu0 0
        %6686 = vmatmul.mubr.bf16.gmra.mrb[0].mxu0 %v6517
        %v6687 = vpop.f32.mrb[0].mxu0
        %v6688 = vadd.f32 %v6383, %v6687
        %v6689 = vpop.f32.mrb[0].mxu0
        %v6690 = vpop.f32.mrb[0].mxu0
        %v6691 = vadd.f32 %v6386, %v6690
        %v6692 = vpop.f32.mrb[0].mxu0
        %6693 = vmatprep.mubr.bf16.mxu0 0
        %6694 = vmatmul.mubr.bf16.gmra.mrb[0].mxu0 %v6518
        %v6695 = vpop.f32.mrb[0].mxu0
        %v6696 = vadd.f32 %v6391, %v6695
        %v6697 = vpop.f32.mrb[0].mxu0
        %v6698 = vpop.f32.mrb[0].mxu0
        %v6699 = vadd.f32 %v6394, %v6698
        %v6700 = vpop.f32.mrb[0].mxu0
        %6701 = vmatprep.mubr.bf16.mxu0 0
        %6702 = vmatmul.mubr.bf16.gmra.mrb[0].mxu0 %v6519
        %v6703 = vpop.f32.mrb[0].mxu0
        %v6704 = vadd.f32 %v6399, %v6703
        %v6705 = vpop.f32.mrb[0].mxu0
        %v6706 = vpop.f32.mrb[0].mxu0
        %v6707 = vadd.f32 %v6402, %v6706
        %v6708 = vpop.f32.mrb[0].mxu0
        %6709 = vmatprep.mubr.bf16.mxu0 0
        %6710 = vmatmul.mubr.bf16.gmra.mrb[0].mxu0 %v6520
        %v6711 = vpop.f32.mrb[0].mxu0
        %v6712 = vadd.f32 %v6407, %v6711
        %v6713 = vpop.f32.mrb[0].mxu0
        %v6714 = vpop.f32.mrb[0].mxu0
        %v6715 = vadd.f32 %v6410, %v6714
        %v6716 = vpop.f32.mrb[0].mxu0
        %6717 = vmatprep.mubr.bf16.mxu0 0
        %6718 = vmatmul.mubr.bf16.gmra.mrb[0].mxu0 %v6521
        %v6719 = vpop.f32.mrb[0].mxu0
        %v6720 = vadd.f32 %v6415, %v6719
        %v6721 = vpop.f32.mrb[0].mxu0
        %v6722 = vpop.f32.mrb[0].mxu0
        %v6723 = vadd.f32 %v6418, %v6722
        %v6724 = vpop.f32.mrb[0].mxu0
        %6725 = vmatprep.mubr.bf16.mxu0 0
        %6726 = vmatmul.mubr.bf16.gmra.mrb[0].mxu0 %v6522
        %v6727 = vpop.f32.mrb[0].mxu0
        %v6728 = vadd.f32 %v6423, %v6727
        %v6729 = vpop.f32.mrb[0].mxu0
        %v6730 = vpop.f32.mrb[0].mxu0
        %v6731 = vadd.f32 %v6426, %v6730
        %v6732 = vpop.f32.mrb[0].mxu0
        %6733 = vmatprep.mubr.bf16.mxu0 0
        %6734 = vmatmul.mubr.bf16.gmra.mrb[0].mxu0 %v6523
        %v6735 = vpop.f32.mrb[0].mxu0
        %v6736 = vadd.f32 %v6431, %v6735
        %v6737 = vpop.f32.mrb[0].mxu0
        %v6738 = vpop.f32.mrb[0].mxu0
        %v6739 = vadd.f32 %v6434, %v6738
        %v6740 = vpop.f32.mrb[0].mxu0
        %6741 = vmatprep.mubr.bf16.mxu0 0
        %6742 = vmatmul.mubr.bf16.gmra.mrb[0].mxu0 %v6524
        %v6743 = vpop.f32.mrb[0].mxu0
        %v6744 = vadd.f32 %v6439, %v6743
        %v6745 = vpop.f32.mrb[0].mxu0
        %v6746 = vpop.f32.mrb[0].mxu0
        %v6747 = vadd.f32 %v6442, %v6746
        %v6748 = vpop.f32.mrb[0].mxu0
        %6749 = vdwg.mxu0
        %v6750 = vld [vmem:[#allocation2] sm:$0xe]
        %v6751 = vld [vmem:[#allocation2 + $0xc] sm:$0xe]
        %v6752 = vld [vmem:[#allocation2 + $0x18] sm:$0xe]
        %v6753 = vld [vmem:[#allocation2 + $0x24] sm:$0xe]
        %v6754 = vld [vmem:[#allocation2 + $0x30] sm:$0xe]
        %v6755 = vld [vmem:[#allocation2 + $0x3c] sm:$0xe]
        %v6756 = vld [vmem:[#allocation2 + $0x48] sm:$0xe]
        %v6757 = vld [vmem:[#allocation2 + $0x54] sm:$0xe]
        %v6758 = vld [vmem:[#allocation2 + $0x60] sm:$0xe]
        %v6759 = vld [vmem:[#allocation2 + $0x6c] sm:$0xe]
        %v6760 = vld [vmem:[#allocation2 + $0x78] sm:$0xe]
        %v6761 = vld [vmem:[#allocation2 + $0x84] sm:$0xe]
        %v6762 = vld [vmem:[#allocation2 + $0x90] sm:$0xe]
        %v6763 = vld [vmem:[#allocation2 + $0x9c] sm:$0xe]
        %v6764 = vld [vmem:[#allocation2 + $0xa8] sm:$0xe]
        %v6765 = vld [vmem:[#allocation2 + $0xb4] sm:$0xe]
        %v6798 = vrot.slane %v6750, 5
        %v6799 = vrot.slane %v6798, 4
        %v6800 = vrot.slane %v5708, 5
        %v6801 = vsel %vm1283, %v6799, %v6800
        %v6802 = vrot.slane %v6800, 4
        %v6803 = vrot.slane %v5755, 5
        %v6804 = vsel %vm1283, %v6802, %v6803
        %v6805 = vrot.slane %v6751, 5
        %v6806 = vrot.slane %v6805, 4
        %v6807 = vrot.slane %v5710, 5
        %v6808 = vsel %vm1283, %v6806, %v6807
        %v6809 = vrot.slane %v6807, 4
        %v6810 = vrot.slane %v5756, 5
        %v6811 = vsel %vm1283, %v6809, %v6810
        %v6812 = vrot.slane %v6752, 5
        %v6813 = vrot.slane %v6812, 4
        %v6814 = vrot.slane %v5712, 5
        %v6815 = vsel %vm1283, %v6813, %v6814
        %v6816 = vrot.slane %v6814, 4
        %v6817 = vrot.slane %v5757, 5
        %v6818 = vsel %vm1283, %v6816, %v6817
        %v6819 = vrot.slane %v6753, 5
        %v6820 = vrot.slane %v6819, 4
        %v6821 = vrot.slane %v5714, 5
        %v6822 = vsel %vm1283, %v6820, %v6821
        %v6823 = vrot.slane %v6821, 4
        %v6824 = vrot.slane %v5758, 5
        %v6825 = vsel %vm1283, %v6823, %v6824
        %v6826 = vrot.slane %v6754, 5
        %v6827 = vrot.slane %v6826, 4
        %v6828 = vrot.slane %v5716, 5
        %v6829 = vsel %vm1283, %v6827, %v6828
        %v6830 = vrot.slane %v6828, 4
        %v6831 = vrot.slane %v5759, 5
        %v6832 = vsel %vm1283, %v6830, %v6831
        %v6833 = vrot.slane %v6755, 5
        %v6834 = vrot.slane %v6833, 4
        %v6835 = vrot.slane %v5718, 5
        %v6836 = vsel %vm1283, %v6834, %v6835
        %v6837 = vrot.slane %v6835, 4
        %v6838 = vrot.slane %v5760, 5
        %v6839 = vsel %vm1283, %v6837, %v6838
        %v6840 = vrot.slane %v6756, 5
        %v6841 = vrot.slane %v6840, 4
        %v6842 = vrot.slane %v5720, 5
        %v6843 = vsel %vm1283, %v6841, %v6842
        %v6844 = vrot.slane %v6842, 4
        %v6845 = vrot.slane %v5761, 5
        %v6846 = vsel %vm1283, %v6844, %v6845
        %v6847 = vrot.slane %v6757, 5
        %v6848 = vrot.slane %v6847, 4
        %v6849 = vrot.slane %v5722, 5
        %v6850 = vsel %vm1283, %v6848, %v6849
        %v6851 = vrot.slane %v6849, 4
        %v6852 = vrot.slane %v5762, 5
        %v6853 = vsel %vm1283, %v6851, %v6852
        %v6854 = vrot.slane %v6758, 5
        %v6855 = vrot.slane %v6854, 4
        %v6856 = vrot.slane %v5724, 5
        %v6857 = vsel %vm1283, %v6855, %v6856
        %v6858 = vrot.slane %v6856, 4
        %v6859 = vrot.slane %v5763, 5
        %v6860 = vsel %vm1283, %v6858, %v6859
        %v6861 = vrot.slane %v6759, 5
        %v6862 = vrot.slane %v6861, 4
        %v6863 = vrot.slane %v5726, 5
        %v6864 = vsel %vm1283, %v6862, %v6863
        %v6865 = vrot.slane %v6863, 4
        %v6866 = vrot.slane %v5764, 5
        %v6867 = vsel %vm1283, %v6865, %v6866
        %v6868 = vrot.slane %v6760, 5
        %v6869 = vrot.slane %v6868, 4
        %v6870 = vrot.slane %v5728, 5
        %v6871 = vsel %vm1283, %v6869, %v6870
        %v6872 = vrot.slane %v6870, 4
        %v6873 = vrot.slane %v5765, 5
        %v6874 = vsel %vm1283, %v6872, %v6873
        %v6875 = vrot.slane %v6761, 5
        %v6876 = vrot.slane %v6875, 4
        %v6877 = vrot.slane %v5730, 5
        %v6878 = vsel %vm1283, %v6876, %v6877
        %v6879 = vrot.slane %v6877, 4
        %v6880 = vrot.slane %v5766, 5
        %v6881 = vsel %vm1283, %v6879, %v6880
        %v6882 = vrot.slane %v6762, 5
        %v6883 = vrot.slane %v6882, 4
        %v6884 = vrot.slane %v5732, 5
        %v6885 = vsel %vm1283, %v6883, %v6884
        %v6886 = vrot.slane %v6884, 4
        %v6887 = vrot.slane %v5767, 5
        %v6888 = vsel %vm1283, %v6886, %v6887
        %v6889 = vrot.slane %v6763, 5
        %v6890 = vrot.slane %v6889, 4
        %v6891 = vrot.slane %v5734, 5
        %v6892 = vsel %vm1283, %v6890, %v6891
        %v6893 = vrot.slane %v6891, 4
        %v6894 = vrot.slane %v5768, 5
        %v6895 = vsel %vm1283, %v6893, %v6894
        %v6896 = vrot.slane %v6764, 5
        %v6897 = vrot.slane %v6896, 4
        %v6898 = vrot.slane %v5736, 5
        %v6899 = vsel %vm1283, %v6897, %v6898
        %v6900 = vrot.slane %v6898, 4
        %v6901 = vrot.slane %v5769, 5
        %v6902 = vsel %vm1283, %v6900, %v6901
        %v6903 = vrot.slane %v6765, 5
        %v6904 = vrot.slane %v6903, 4
        %v6905 = vrot.slane %v5738, 5
        %v6906 = vsel %vm1283, %v6904, %v6905
        %v6907 = vrot.slane %v6905, 4
        %v6908 = vrot.slane %v5770, 5
        %v6909 = vsel %vm1283, %v6907, %v6908
        %s6910 = scalar_lea.vmem [#allocation4], 128
        %v6911 = vld [vmem:[%s6910] sm:$0xf]
        %v6912 = vld [vmem:[%s6910 + $0x4] sm:$0xf]
        %v6913 = vld [vmem:[%s6910 + $0x8] sm:$0xf]
        %v6914 = vld [vmem:[%s6910 + $0xc] sm:$0xf]
        %v6915 = vld [vmem:[%s6910 + $0x10] sm:$0xf]
        %v6916 = vld [vmem:[%s6910 + $0x14] sm:$0xf]
        %v6917 = vld [vmem:[%s6910 + $0x18] sm:$0xf]
        %v6918 = vld [vmem:[%s6910 + $0x1c] sm:$0xf]
        %v6919 = vld [vmem:[%s6910 + $0x20] sm:$0xf]
        %v6920 = vld [vmem:[%s6910 + $0x24] sm:$0xf]
        %v6921 = vld [vmem:[%s6910 + $0x28] sm:$0xf]
        %v6922 = vld [vmem:[%s6910 + $0x2c] sm:$0xf]
        %v6923 = vld [vmem:[%s6910 + $0x30] sm:$0xf]
        %v6924 = vld [vmem:[%s6910 + $0x34] sm:$0xf]
        %v6925 = vld [vmem:[%s6910 + $0x38] sm:$0xf]
        %v6926 = vld [vmem:[%s6910 + $0x3c] sm:$0xf]
        %v6927 = vunpack.c.l.b16 %v6801
        %v6928 = vunpack.c.l.b16 %v6804
        %v6929 = vunpack.c.l.b16 %v6808
        %v6930 = vunpack.c.l.b16 %v6811
        %v6931 = vunpack.c.l.b16 %v6815
        %v6932 = vunpack.c.l.b16 %v6818
        %v6933 = vunpack.c.l.b16 %v6822
        %v6934 = vunpack.c.l.b16 %v6825
        %v6935 = vunpack.c.l.b16 %v6829
        %v6936 = vunpack.c.l.b16 %v6832
        %v6937 = vunpack.c.l.b16 %v6836
        %v6938 = vunpack.c.l.b16 %v6839
        %v6939 = vunpack.c.l.b16 %v6843
        %v6940 = vunpack.c.l.b16 %v6846
        %v6941 = vunpack.c.l.b16 %v6850
        %v6942 = vunpack.c.l.b16 %v6853
        %v6943 = vunpack.c.l.b16 %v6857
        %v6944 = vunpack.c.l.b16 %v6860
        %v6945 = vunpack.c.l.b16 %v6864
        %v6946 = vunpack.c.l.b16 %v6867
        %v6947 = vunpack.c.l.b16 %v6871
        %v6948 = vunpack.c.l.b16 %v6874
        %v6949 = vunpack.c.l.b16 %v6878
        %v6950 = vunpack.c.l.b16 %v6881
        %v6951 = vunpack.c.l.b16 %v6885
        %v6952 = vunpack.c.l.b16 %v6888
        %v6953 = vunpack.c.l.b16 %v6892
        %v6954 = vunpack.c.l.b16 %v6895
        %v6955 = vunpack.c.l.b16 %v6899
        %v6956 = vunpack.c.l.b16 %v6902
        %v6957 = vunpack.c.l.b16 %v6906
        %v6958 = vunpack.c.l.b16 %v6909
        %v6959 = vpack.c.b16 %v6928, %v6927
        %v6960 = vpack.c.b16 %v6930, %v6929
        %v6961 = vpack.c.b16 %v6932, %v6931
        %v6962 = vpack.c.b16 %v6934, %v6933
        %v6963 = vpack.c.b16 %v6936, %v6935
        %v6964 = vpack.c.b16 %v6938, %v6937
        %v6965 = vpack.c.b16 %v6940, %v6939
        %v6966 = vpack.c.b16 %v6942, %v6941
        %v6967 = vpack.c.b16 %v6944, %v6943
        %v6968 = vpack.c.b16 %v6946, %v6945
        %v6969 = vpack.c.b16 %v6948, %v6947
        %v6970 = vpack.c.b16 %v6950, %v6949
        %v6971 = vpack.c.b16 %v6952, %v6951
        %v6972 = vpack.c.b16 %v6954, %v6953
        %v6973 = vpack.c.b16 %v6956, %v6955
        %v6974 = vpack.c.b16 %v6958, %v6957
        %v7007 = vunpack.c.l.b16 %v6911
        %v7008 = vunpack.c.l.b16 %v6912
        %v7009 = vunpack.c.l.b16 %v6913
        %v7010 = vunpack.c.l.b16 %v6914
        %v7011 = vunpack.c.l.b16 %v6915
        %v7012 = vunpack.c.l.b16 %v6916
        %v7013 = vunpack.c.l.b16 %v6917
        %v7014 = vunpack.c.l.b16 %v6918
        %v7015 = vunpack.c.l.b16 %v6919
        %v7016 = vunpack.c.l.b16 %v6920
        %v7017 = vunpack.c.l.b16 %v6921
        %v7018 = vunpack.c.l.b16 %v6922
        %v7019 = vunpack.c.l.b16 %v6923
        %v7020 = vunpack.c.l.b16 %v6924
        %v7021 = vunpack.c.l.b16 %v6925
        %v7022 = vunpack.c.l.b16 %v6926
        %v7023 = vpack.c.b16 %v7008, %v7007
        %v7024 = vpack.c.b16 %v7010, %v7009
        %v7025 = vpack.c.b16 %v7012, %v7011
        %v7026 = vpack.c.b16 %v7014, %v7013
        %v7027 = vpack.c.b16 %v7016, %v7015
        %v7028 = vpack.c.b16 %v7018, %v7017
        %v7029 = vpack.c.b16 %v7020, %v7019
        %v7030 = vpack.c.b16 %v7022, %v7021
        %7039 = vmatprep.subr.bf16.mxu0 0
        %7040 = vmatpush1.bf16.msra.mxu0 %v7023
        %7041 = vmatprep.subr.bf16.mxu0 0
        %7042 = vmatpush1.bf16.msra.mxu0 %v7024
        %7043 = vmatprep.subr.bf16.mxu0 0
        %7044 = vmatpush1.bf16.msra.mxu0 %v7025
        %7045 = vmatprep.subr.bf16.mxu0 0
        %7046 = vmatpush1.bf16.msra.mxu0 %v7026
        %7047 = vmatprep.subr.bf16.mxu0 0
        %7048 = vmatpush1.bf16.msra.mxu0 %v7027
        %7049 = vmatprep.subr.bf16.mxu0 0
        %7050 = vmatpush1.bf16.msra.mxu0 %v7028
        %7051 = vmatprep.subr.bf16.mxu0 0
        %7052 = vmatpush1.bf16.msra.mxu0 %v7029
        %7053 = vmatprep.subr.bf16.mxu0 0
        %7054 = vmatpush1.bf16.msra.mxu0 %v7030
        %7055 = vmatprep.subr.bf16.mxu0 0
        %7056 = vmatpush1.bf16.msra.mxu0 0
        %7057 = vmatprep.subr.bf16.mxu0 0
        %7058 = vmatpush1.bf16.msra.mxu0 0
        %7059 = vmatprep.subr.bf16.mxu0 0
        %7060 = vmatpush1.bf16.msra.mxu0 0
        %7061 = vmatprep.subr.bf16.mxu0 0
        %7062 = vmatpush1.bf16.msra.mxu0 0
        %7063 = vmatprep.subr.bf16.mxu0 0
        %7064 = vmatpush1.bf16.msra.mxu0 0
        %7065 = vmatprep.subr.bf16.mxu0 0
        %7066 = vmatpush1.bf16.msra.mxu0 0
        %7067 = vmatprep.subr.bf16.mxu0 0
        %7068 = vmatpush1.bf16.msra.mxu0 0
        %7069 = vmatprep.subr.bf16.mxu0 0
        %7070 = vmatpush1.bf16.msra.mxu0 0
        %7071 = vmatprep.mubr.bf16.mxu0 0
        %7072 = vmatmul.mubr.bf16.gmra.mrb[0].mxu0 %v6959
        %v7073 = vpop.f32.mrb[0].mxu0
        %v7074 = vadd.f32 0.0, %v7073
        %v7075 = vpop.f32.mrb[0].mxu0
        %v7076 = vpop.f32.mrb[0].mxu0
        %v7077 = vadd.f32 0.0, %v7076
        %v7078 = vpop.f32.mrb[0].mxu0
        %7079 = vmatprep.mubr.bf16.mxu0 0
        %7080 = vmatmul.mubr.bf16.gmra.mrb[0].mxu0 %v6960
        %v7081 = vpop.f32.mrb[0].mxu0
        %v7082 = vadd.f32 0.0, %v7081
        %v7083 = vpop.f32.mrb[0].mxu0
        %v7084 = vpop.f32.mrb[0].mxu0
        %v7085 = vadd.f32 0.0, %v7084
        %v7086 = vpop.f32.mrb[0].mxu0
        %7087 = vmatprep.mubr.bf16.mxu0 0
        %7088 = vmatmul.mubr.bf16.gmra.mrb[0].mxu0 %v6961
        %v7089 = vpop.f32.mrb[0].mxu0
        %v7090 = vadd.f32 0.0, %v7089
        %v7091 = vpop.f32.mrb[0].mxu0
        %v7092 = vpop.f32.mrb[0].mxu0
        %v7093 = vadd.f32 0.0, %v7092
        %v7094 = vpop.f32.mrb[0].mxu0
        %7095 = vmatprep.mubr.bf16.mxu0 0
        %7096 = vmatmul.mubr.bf16.gmra.mrb[0].mxu0 %v6962
        %v7097 = vpop.f32.mrb[0].mxu0
        %v7098 = vadd.f32 0.0, %v7097
        %v7099 = vpop.f32.mrb[0].mxu0
        %v7100 = vpop.f32.mrb[0].mxu0
        %v7101 = vadd.f32 0.0, %v7100
        %v7102 = vpop.f32.mrb[0].mxu0
        %7103 = vmatprep.mubr.bf16.mxu0 0
        %7104 = vmatmul.mubr.bf16.gmra.mrb[0].mxu0 %v6963
        %v7105 = vpop.f32.mrb[0].mxu0
        %v7106 = vadd.f32 0.0, %v7105
        %v7107 = vpop.f32.mrb[0].mxu0
        %v7108 = vpop.f32.mrb[0].mxu0
        %v7109 = vadd.f32 0.0, %v7108
        %v7110 = vpop.f32.mrb[0].mxu0
        %7111 = vmatprep.mubr.bf16.mxu0 0
        %7112 = vmatmul.mubr.bf16.gmra.mrb[0].mxu0 %v6964
        %v7113 = vpop.f32.mrb[0].mxu0
        %v7114 = vadd.f32 0.0, %v7113
        %v7115 = vpop.f32.mrb[0].mxu0
        %v7116 = vpop.f32.mrb[0].mxu0
        %v7117 = vadd.f32 0.0, %v7116
        %v7118 = vpop.f32.mrb[0].mxu0
        %7119 = vmatprep.mubr.bf16.mxu0 0
        %7120 = vmatmul.mubr.bf16.gmra.mrb[0].mxu0 %v6965
        %v7121 = vpop.f32.mrb[0].mxu0
        %v7122 = vadd.f32 0.0, %v7121
        %v7123 = vpop.f32.mrb[0].mxu0
        %v7124 = vpop.f32.mrb[0].mxu0
        %v7125 = vadd.f32 0.0, %v7124
        %v7126 = vpop.f32.mrb[0].mxu0
        %7127 = vmatprep.mubr.bf16.mxu0 0
        %7128 = vmatmul.mubr.bf16.gmra.mrb[0].mxu0 %v6966
        %v7129 = vpop.f32.mrb[0].mxu0
        %v7130 = vadd.f32 0.0, %v7129
        %v7131 = vpop.f32.mrb[0].mxu0
        %v7132 = vpop.f32.mrb[0].mxu0
        %v7133 = vadd.f32 0.0, %v7132
        %v7134 = vpop.f32.mrb[0].mxu0
        %7135 = vmatprep.mubr.bf16.mxu0 0
        %7136 = vmatmul.mubr.bf16.gmra.mrb[0].mxu0 %v6967
        %v7137 = vpop.f32.mrb[0].mxu0
        %v7138 = vadd.f32 0.0, %v7137
        %v7139 = vpop.f32.mrb[0].mxu0
        %v7140 = vpop.f32.mrb[0].mxu0
        %v7141 = vadd.f32 0.0, %v7140
        %v7142 = vpop.f32.mrb[0].mxu0
        %7143 = vmatprep.mubr.bf16.mxu0 0
        %7144 = vmatmul.mubr.bf16.gmra.mrb[0].mxu0 %v6968
        %v7145 = vpop.f32.mrb[0].mxu0
        %v7146 = vadd.f32 0.0, %v7145
        %v7147 = vpop.f32.mrb[0].mxu0
        %v7148 = vpop.f32.mrb[0].mxu0
        %v7149 = vadd.f32 0.0, %v7148
        %v7150 = vpop.f32.mrb[0].mxu0
        %7151 = vmatprep.mubr.bf16.mxu0 0
        %7152 = vmatmul.mubr.bf16.gmra.mrb[0].mxu0 %v6969
        %v7153 = vpop.f32.mrb[0].mxu0
        %v7154 = vadd.f32 0.0, %v7153
        %v7155 = vpop.f32.mrb[0].mxu0
        %v7156 = vpop.f32.mrb[0].mxu0
        %v7157 = vadd.f32 0.0, %v7156
        %v7158 = vpop.f32.mrb[0].mxu0
        %7159 = vmatprep.mubr.bf16.mxu0 0
        %7160 = vmatmul.mubr.bf16.gmra.mrb[0].mxu0 %v6970
        %v7161 = vpop.f32.mrb[0].mxu0
        %v7162 = vadd.f32 0.0, %v7161
        %v7163 = vpop.f32.mrb[0].mxu0
        %v7164 = vpop.f32.mrb[0].mxu0
        %v7165 = vadd.f32 0.0, %v7164
        %v7166 = vpop.f32.mrb[0].mxu0
        %7167 = vmatprep.mubr.bf16.mxu0 0
        %7168 = vmatmul.mubr.bf16.gmra.mrb[0].mxu0 %v6971
        %v7169 = vpop.f32.mrb[0].mxu0
        %v7170 = vadd.f32 0.0, %v7169
        %v7171 = vpop.f32.mrb[0].mxu0
        %v7172 = vpop.f32.mrb[0].mxu0
        %v7173 = vadd.f32 0.0, %v7172
        %v7174 = vpop.f32.mrb[0].mxu0
        %7175 = vmatprep.mubr.bf16.mxu0 0
        %7176 = vmatmul.mubr.bf16.gmra.mrb[0].mxu0 %v6972
        %v7177 = vpop.f32.mrb[0].mxu0
        %v7178 = vadd.f32 0.0, %v7177
        %v7179 = vpop.f32.mrb[0].mxu0
        %v7180 = vpop.f32.mrb[0].mxu0
        %v7181 = vadd.f32 0.0, %v7180
        %v7182 = vpop.f32.mrb[0].mxu0
        %7183 = vmatprep.mubr.bf16.mxu0 0
        %7184 = vmatmul.mubr.bf16.gmra.mrb[0].mxu0 %v6973
        %v7185 = vpop.f32.mrb[0].mxu0
        %v7186 = vadd.f32 0.0, %v7185
        %v7187 = vpop.f32.mrb[0].mxu0
        %v7188 = vpop.f32.mrb[0].mxu0
        %v7189 = vadd.f32 0.0, %v7188
        %v7190 = vpop.f32.mrb[0].mxu0
        %7191 = vmatprep.mubr.bf16.mxu0 0
        %7192 = vmatmul.mubr.bf16.gmra.mrb[0].mxu0 %v6974
        %v7193 = vpop.f32.mrb[0].mxu0
        %v7194 = vadd.f32 0.0, %v7193
        %v7195 = vpop.f32.mrb[0].mxu0
        %v7196 = vpop.f32.mrb[0].mxu0
        %v7197 = vadd.f32 0.0, %v7196
        %v7198 = vpop.f32.mrb[0].mxu0
        %7199 = vdwg.mxu0
        %v7200 = vadd.f32 %v6624, %v7074
        %v7201 = vadd.f32 %v6627, %v7077
        %v7202 = vadd.f32 %v6632, %v7082
        %v7203 = vadd.f32 %v6635, %v7085
        %v7204 = vadd.f32 %v6640, %v7090
        %v7205 = vadd.f32 %v6643, %v7093
        %v7206 = vadd.f32 %v6648, %v7098
        %v7207 = vadd.f32 %v6651, %v7101
        %v7208 = vadd.f32 %v6656, %v7106
        %v7209 = vadd.f32 %v6659, %v7109
        %v7210 = vadd.f32 %v6664, %v7114
        %v7211 = vadd.f32 %v6667, %v7117
        %v7212 = vadd.f32 %v6672, %v7122
        %v7213 = vadd.f32 %v6675, %v7125
        %v7214 = vadd.f32 %v6680, %v7130
        %v7215 = vadd.f32 %v6683, %v7133
        %v7216 = vadd.f32 %v6688, %v7138
        %v7217 = vadd.f32 %v6691, %v7141
        %v7218 = vadd.f32 %v6696, %v7146
        %v7219 = vadd.f32 %v6699, %v7149
        %v7220 = vadd.f32 %v6704, %v7154
        %v7221 = vadd.f32 %v6707, %v7157
        %v7222 = vadd.f32 %v6712, %v7162
        %v7223 = vadd.f32 %v6715, %v7165
        %v7224 = vadd.f32 %v6720, %v7170
        %v7225 = vadd.f32 %v6723, %v7173
        %v7226 = vadd.f32 %v6728, %v7178
        %v7227 = vadd.f32 %v6731, %v7181
        %v7228 = vadd.f32 %v6736, %v7186
        %v7229 = vadd.f32 %v6739, %v7189
        %v7230 = vadd.f32 %v6744, %v7194
        %v7231 = vadd.f32 %v6747, %v7197
        %v7232 = vld [vmem:[%s5592] sm:$0xf]
        %v7233 = vld [vmem:[%s5592 + $0x4] sm:$0xf]
        %v7234 = vld [vmem:[%s5592 + $0xc] sm:$0xf]
        %v7235 = vld [vmem:[%s5592 + $0x10] sm:$0xf]
        %v7236 = vld [vmem:[%s5592 + $0x18] sm:$0xf]
        %v7237 = vld [vmem:[%s5592 + $0x1c] sm:$0xf]
        %v7238 = vld [vmem:[%s5592 + $0x24] sm:$0xf]
        %v7239 = vld [vmem:[%s5592 + $0x28] sm:$0xf]
        %v7240 = vld [vmem:[%s5592 + $0x30] sm:$0xf]
        %v7241 = vld [vmem:[%s5592 + $0x34] sm:$0xf]
        %v7242 = vld [vmem:[%s5592 + $0x3c] sm:$0xf]
        %v7243 = vld [vmem:[%s5592 + $0x40] sm:$0xf]
        %v7244 = vld [vmem:[%s5592 + $0x48] sm:$0xf]
        %v7245 = vld [vmem:[%s5592 + $0x4c] sm:$0xf]
        %v7246 = vld [vmem:[%s5592 + $0x54] sm:$0xf]
        %v7247 = vld [vmem:[%s5592 + $0x58] sm:$0xf]
        %v7248 = vld [vmem:[%s5592 + $0x60] sm:$0xf]
        %v7249 = vld [vmem:[%s5592 + $0x64] sm:$0xf]
        %v7250 = vld [vmem:[%s5592 + $0x6c] sm:$0xf]
        %v7251 = vld [vmem:[%s5592 + $0x70] sm:$0xf]
        %v7252 = vld [vmem:[%s5592 + $0x78] sm:$0xf]
        %v7253 = vld [vmem:[%s5592 + $0x7c] sm:$0xf]
        %v7254 = vld [vmem:[%s5592 + $0x84] sm:$0xf]
        %v7255 = vld [vmem:[%s5592 + $0x88] sm:$0xf]
        %v7256 = vld [vmem:[%s5592 + $0x90] sm:$0xf]
        %v7257 = vld [vmem:[%s5592 + $0x94] sm:$0xf]
        %v7258 = vld [vmem:[%s5592 + $0x9c] sm:$0xf]
        %v7259 = vld [vmem:[%s5592 + $0xa0] sm:$0xf]
        %v7260 = vld [vmem:[%s5592 + $0xa8] sm:$0xf]
        %v7261 = vld [vmem:[%s5592 + $0xac] sm:$0xf]
        %v7262 = vld [vmem:[%s5592 + $0xb4] sm:$0xf]
        %v7263 = vld [vmem:[%s5592 + $0xb8] sm:$0xf]
        %s7264 = scalar_lea.vmem [#allocation4], 192
        %v7265 = vld [vmem:[%s7264] sm:$0xf]
        %v7266 = vld [vmem:[%s7264 + $0x4] sm:$0xf]
        %v7267 = vld [vmem:[%s7264 + $0x8] sm:$0xf]
        %v7268 = vld [vmem:[%s7264 + $0xc] sm:$0xf]
        %v7269 = vld [vmem:[%s7264 + $0x10] sm:$0xf]
        %v7270 = vld [vmem:[%s7264 + $0x14] sm:$0xf]
        %v7271 = vld [vmem:[%s7264 + $0x18] sm:$0xf]
        %v7272 = vld [vmem:[%s7264 + $0x1c] sm:$0xf]
        %v7273 = vld [vmem:[%s7264 + $0x20] sm:$0xf]
        %v7274 = vld [vmem:[%s7264 + $0x24] sm:$0xf]
        %v7275 = vld [vmem:[%s7264 + $0x28] sm:$0xf]
        %v7276 = vld [vmem:[%s7264 + $0x2c] sm:$0xf]
        %v7277 = vld [vmem:[%s7264 + $0x30] sm:$0xf]
        %v7278 = vld [vmem:[%s7264 + $0x34] sm:$0xf]
        %v7279 = vld [vmem:[%s7264 + $0x38] sm:$0xf]
        %v7280 = vld [vmem:[%s7264 + $0x3c] sm:$0xf]
        %v7313 = vunpack.c.l.b16 %v7232
        %v7314 = vunpack.c.l.b16 %v7233
        %v7315 = vunpack.c.l.b16 %v7234
        %v7316 = vunpack.c.l.b16 %v7235
        %v7317 = vunpack.c.l.b16 %v7236
        %v7318 = vunpack.c.l.b16 %v7237
        %v7319 = vunpack.c.l.b16 %v7238
        %v7320 = vunpack.c.l.b16 %v7239
        %v7321 = vunpack.c.l.b16 %v7240
        %v7322 = vunpack.c.l.b16 %v7241
        %v7323 = vunpack.c.l.b16 %v7242
        %v7324 = vunpack.c.l.b16 %v7243
        %v7325 = vunpack.c.l.b16 %v7244
        %v7326 = vunpack.c.l.b16 %v7245
        %v7327 = vunpack.c.l.b16 %v7246
        %v7328 = vunpack.c.l.b16 %v7247
        %v7329 = vunpack.c.l.b16 %v7248
        %v7330 = vunpack.c.l.b16 %v7249
        %v7331 = vunpack.c.l.b16 %v7250
        %v7332 = vunpack.c.l.b16 %v7251
        %v7333 = vunpack.c.l.b16 %v7252
        %v7334 = vunpack.c.l.b16 %v7253
        %v7335 = vunpack.c.l.b16 %v7254
        %v7336 = vunpack.c.l.b16 %v7255
        %v7337 = vunpack.c.l.b16 %v7256
        %v7338 = vunpack.c.l.b16 %v7257
        %v7339 = vunpack.c.l.b16 %v7258
        %v7340 = vunpack.c.l.b16 %v7259
        %v7341 = vunpack.c.l.b16 %v7260
        %v7342 = vunpack.c.l.b16 %v7261
        %v7343 = vunpack.c.l.b16 %v7262
        %v7344 = vunpack.c.l.b16 %v7263
        %v7345 = vpack.c.b16 %v7314, %v7313
        %v7346 = vpack.c.b16 %v7316, %v7315
        %v7347 = vpack.c.b16 %v7318, %v7317
        %v7348 = vpack.c.b16 %v7320, %v7319
        %v7349 = vpack.c.b16 %v7322, %v7321
        %v7350 = vpack.c.b16 %v7324, %v7323
        %v7351 = vpack.c.b16 %v7326, %v7325
        %v7352 = vpack.c.b16 %v7328, %v7327
        %v7353 = vpack.c.b16 %v7330, %v7329
        %v7354 = vpack.c.b16 %v7332, %v7331
        %v7355 = vpack.c.b16 %v7334, %v7333
        %v7356 = vpack.c.b16 %v7336, %v7335
        %v7357 = vpack.c.b16 %v7338, %v7337
        %v7358 = vpack.c.b16 %v7340, %v7339
        %v7359 = vpack.c.b16 %v7342, %v7341
        %v7360 = vpack.c.b16 %v7344, %v7343
        %v7393 = vunpack.c.l.b16 %v7265
        %v7394 = vunpack.c.l.b16 %v7266
        %v7395 = vunpack.c.l.b16 %v7267
        %v7396 = vunpack.c.l.b16 %v7268
        %v7397 = vunpack.c.l.b16 %v7269
        %v7398 = vunpack.c.l.b16 %v7270
        %v7399 = vunpack.c.l.b16 %v7271
        %v7400 = vunpack.c.l.b16 %v7272
        %v7401 = vunpack.c.l.b16 %v7273
        %v7402 = vunpack.c.l.b16 %v7274
        %v7403 = vunpack.c.l.b16 %v7275
        %v7404 = vunpack.c.l.b16 %v7276
        %v7405 = vunpack.c.l.b16 %v7277
        %v7406 = vunpack.c.l.b16 %v7278
        %v7407 = vunpack.c.l.b16 %v7279
        %v7408 = vunpack.c.l.b16 %v7280
        %v7409 = vpack.c.b16 %v7394, %v7393
        %v7410 = vpack.c.b16 %v7396, %v7395
        %v7411 = vpack.c.b16 %v7398, %v7397
        %v7412 = vpack.c.b16 %v7400, %v7399
        %v7413 = vpack.c.b16 %v7402, %v7401
        %v7414 = vpack.c.b16 %v7404, %v7403
        %v7415 = vpack.c.b16 %v7406, %v7405
        %v7416 = vpack.c.b16 %v7408, %v7407
        %7425 = vmatprep.subr.bf16.mxu0 0
        %7426 = vmatpush1.bf16.msra.mxu0 %v7409
        %7427 = vmatprep.subr.bf16.mxu0 0
        %7428 = vmatpush1.bf16.msra.mxu0 %v7410
        %7429 = vmatprep.subr.bf16.mxu0 0
        %7430 = vmatpush1.bf16.msra.mxu0 %v7411
        %7431 = vmatprep.subr.bf16.mxu0 0
        %7432 = vmatpush1.bf16.msra.mxu0 %v7412
        %7433 = vmatprep.subr.bf16.mxu0 0
        %7434 = vmatpush1.bf16.msra.mxu0 %v7413
        %7435 = vmatprep.subr.bf16.mxu0 0
        %7436 = vmatpush1.bf16.msra.mxu0 %v7414
        %7437 = vmatprep.subr.bf16.mxu0 0
        %7438 = vmatpush1.bf16.msra.mxu0 %v7415
        %7439 = vmatprep.subr.bf16.mxu0 0
        %7440 = vmatpush1.bf16.msra.mxu0 %v7416
        %7441 = vmatprep.subr.bf16.mxu0 0
        %7442 = vmatpush1.bf16.msra.mxu0 0
        %7443 = vmatprep.subr.bf16.mxu0 0
        %7444 = vmatpush1.bf16.msra.mxu0 0
        %7445 = vmatprep.subr.bf16.mxu0 0
        %7446 = vmatpush1.bf16.msra.mxu0 0
        %7447 = vmatprep.subr.bf16.mxu0 0
        %7448 = vmatpush1.bf16.msra.mxu0 0
        %7449 = vmatprep.subr.bf16.mxu0 0
        %7450 = vmatpush1.bf16.msra.mxu0 0
        %7451 = vmatprep.subr.bf16.mxu0 0
        %7452 = vmatpush1.bf16.msra.mxu0 0
        %7453 = vmatprep.subr.bf16.mxu0 0
        %7454 = vmatpush1.bf16.msra.mxu0 0
        %7455 = vmatprep.subr.bf16.mxu0 0
        %7456 = vmatpush1.bf16.msra.mxu0 0
        %7457 = vmatprep.mubr.bf16.mxu0 0
        %7458 = vmatmul.mubr.bf16.gmra.mrb[0].mxu0 %v7345
        %v7459 = vpop.f32.mrb[0].mxu0
        %v7460 = vadd.f32 0.0, %v7459
        %v7461 = vpop.f32.mrb[0].mxu0
        %v7462 = vpop.f32.mrb[0].mxu0
        %v7463 = vadd.f32 0.0, %v7462
        %v7464 = vpop.f32.mrb[0].mxu0
        %7465 = vmatprep.mubr.bf16.mxu0 0
        %7466 = vmatmul.mubr.bf16.gmra.mrb[0].mxu0 %v7346
        %v7467 = vpop.f32.mrb[0].mxu0
        %v7468 = vadd.f32 0.0, %v7467
        %v7469 = vpop.f32.mrb[0].mxu0
        %v7470 = vpop.f32.mrb[0].mxu0
        %v7471 = vadd.f32 0.0, %v7470
        %v7472 = vpop.f32.mrb[0].mxu0
        %7473 = vmatprep.mubr.bf16.mxu0 0
        %7474 = vmatmul.mubr.bf16.gmra.mrb[0].mxu0 %v7347
        %v7475 = vpop.f32.mrb[0].mxu0
        %v7476 = vadd.f32 0.0, %v7475
        %v7477 = vpop.f32.mrb[0].mxu0
        %v7478 = vpop.f32.mrb[0].mxu0
        %v7479 = vadd.f32 0.0, %v7478
        %v7480 = vpop.f32.mrb[0].mxu0
        %7481 = vmatprep.mubr.bf16.mxu0 0
        %7482 = vmatmul.mubr.bf16.gmra.mrb[0].mxu0 %v7348
        %v7483 = vpop.f32.mrb[0].mxu0
        %v7484 = vadd.f32 0.0, %v7483
        %v7485 = vpop.f32.mrb[0].mxu0
        %v7486 = vpop.f32.mrb[0].mxu0
        %v7487 = vadd.f32 0.0, %v7486
        %v7488 = vpop.f32.mrb[0].mxu0
        %7489 = vmatprep.mubr.bf16.mxu0 0
        %7490 = vmatmul.mubr.bf16.gmra.mrb[0].mxu0 %v7349
        %v7491 = vpop.f32.mrb[0].mxu0
        %v7492 = vadd.f32 0.0, %v7491
        %v7493 = vpop.f32.mrb[0].mxu0
        %v7494 = vpop.f32.mrb[0].mxu0
        %v7495 = vadd.f32 0.0, %v7494
        %v7496 = vpop.f32.mrb[0].mxu0
        %7497 = vmatprep.mubr.bf16.mxu0 0
        %7498 = vmatmul.mubr.bf16.gmra.mrb[0].mxu0 %v7350
        %v7499 = vpop.f32.mrb[0].mxu0
        %v7500 = vadd.f32 0.0, %v7499
        %v7501 = vpop.f32.mrb[0].mxu0
        %v7502 = vpop.f32.mrb[0].mxu0
        %v7503 = vadd.f32 0.0, %v7502
        %v7504 = vpop.f32.mrb[0].mxu0
        %7505 = vmatprep.mubr.bf16.mxu0 0
        %7506 = vmatmul.mubr.bf16.gmra.mrb[0].mxu0 %v7351
        %v7507 = vpop.f32.mrb[0].mxu0
        %v7508 = vadd.f32 0.0, %v7507
        %v7509 = vpop.f32.mrb[0].mxu0
        %v7510 = vpop.f32.mrb[0].mxu0
        %v7511 = vadd.f32 0.0, %v7510
        %v7512 = vpop.f32.mrb[0].mxu0
        %7513 = vmatprep.mubr.bf16.mxu0 0
        %7514 = vmatmul.mubr.bf16.gmra.mrb[0].mxu0 %v7352
        %v7515 = vpop.f32.mrb[0].mxu0
        %v7516 = vadd.f32 0.0, %v7515
        %v7517 = vpop.f32.mrb[0].mxu0
        %v7518 = vpop.f32.mrb[0].mxu0
        %v7519 = vadd.f32 0.0, %v7518
        %v7520 = vpop.f32.mrb[0].mxu0
        %7521 = vmatprep.mubr.bf16.mxu0 0
        %7522 = vmatmul.mubr.bf16.gmra.mrb[0].mxu0 %v7353
        %v7523 = vpop.f32.mrb[0].mxu0
        %v7524 = vadd.f32 0.0, %v7523
        %v7525 = vpop.f32.mrb[0].mxu0
        %v7526 = vpop.f32.mrb[0].mxu0
        %v7527 = vadd.f32 0.0, %v7526
        %v7528 = vpop.f32.mrb[0].mxu0
        %7529 = vmatprep.mubr.bf16.mxu0 0
        %7530 = vmatmul.mubr.bf16.gmra.mrb[0].mxu0 %v7354
        %v7531 = vpop.f32.mrb[0].mxu0
        %v7532 = vadd.f32 0.0, %v7531
        %v7533 = vpop.f32.mrb[0].mxu0
        %v7534 = vpop.f32.mrb[0].mxu0
        %v7535 = vadd.f32 0.0, %v7534
        %v7536 = vpop.f32.mrb[0].mxu0
        %7537 = vmatprep.mubr.bf16.mxu0 0
        %7538 = vmatmul.mubr.bf16.gmra.mrb[0].mxu0 %v7355
        %v7539 = vpop.f32.mrb[0].mxu0
        %v7540 = vadd.f32 0.0, %v7539
        %v7541 = vpop.f32.mrb[0].mxu0
        %v7542 = vpop.f32.mrb[0].mxu0
        %v7543 = vadd.f32 0.0, %v7542
        %v7544 = vpop.f32.mrb[0].mxu0
        %7545 = vmatprep.mubr.bf16.mxu0 0
        %7546 = vmatmul.mubr.bf16.gmra.mrb[0].mxu0 %v7356
        %v7547 = vpop.f32.mrb[0].mxu0
        %v7548 = vadd.f32 0.0, %v7547
        %v7549 = vpop.f32.mrb[0].mxu0
        %v7550 = vpop.f32.mrb[0].mxu0
        %v7551 = vadd.f32 0.0, %v7550
        %v7552 = vpop.f32.mrb[0].mxu0
        %7553 = vmatprep.mubr.bf16.mxu0 0
        %7554 = vmatmul.mubr.bf16.gmra.mrb[0].mxu0 %v7357
        %v7555 = vpop.f32.mrb[0].mxu0
        %v7556 = vadd.f32 0.0, %v7555
        %v7557 = vpop.f32.mrb[0].mxu0
        %v7558 = vpop.f32.mrb[0].mxu0
        %v7559 = vadd.f32 0.0, %v7558
        %v7560 = vpop.f32.mrb[0].mxu0
        %7561 = vmatprep.mubr.bf16.mxu0 0
        %7562 = vmatmul.mubr.bf16.gmra.mrb[0].mxu0 %v7358
        %v7563 = vpop.f32.mrb[0].mxu0
        %v7564 = vadd.f32 0.0, %v7563
        %v7565 = vpop.f32.mrb[0].mxu0
        %v7566 = vpop.f32.mrb[0].mxu0
        %v7567 = vadd.f32 0.0, %v7566
        %v7568 = vpop.f32.mrb[0].mxu0
        %7569 = vmatprep.mubr.bf16.mxu0 0
        %7570 = vmatmul.mubr.bf16.gmra.mrb[0].mxu0 %v7359
        %v7571 = vpop.f32.mrb[0].mxu0
        %v7572 = vadd.f32 0.0, %v7571
        %v7573 = vpop.f32.mrb[0].mxu0
        %v7574 = vpop.f32.mrb[0].mxu0
        %v7575 = vadd.f32 0.0, %v7574
        %v7576 = vpop.f32.mrb[0].mxu0
        %7577 = vmatprep.mubr.bf16.mxu0 0
        %7578 = vmatmul.mubr.bf16.gmra.mrb[0].mxu0 %v7360
        %v7579 = vpop.f32.mrb[0].mxu0
        %v7580 = vadd.f32 0.0, %v7579
        %v7581 = vpop.f32.mrb[0].mxu0
        %v7582 = vpop.f32.mrb[0].mxu0
        %v7583 = vadd.f32 0.0, %v7582
        %v7584 = vpop.f32.mrb[0].mxu0
        %7585 = vdwg.mxu0
        %v7586 = vadd.f32 %v7200, %v7460
        %v7587 = vadd.f32 %v7201, %v7463
        %v7588 = vadd.f32 %v7202, %v7468
        %v7589 = vadd.f32 %v7203, %v7471
        %v7590 = vadd.f32 %v7204, %v7476
        %v7591 = vadd.f32 %v7205, %v7479
        %v7592 = vadd.f32 %v7206, %v7484
        %v7593 = vadd.f32 %v7207, %v7487
        %v7594 = vadd.f32 %v7208, %v7492
        %v7595 = vadd.f32 %v7209, %v7495
        %v7596 = vadd.f32 %v7210, %v7500
        %v7597 = vadd.f32 %v7211, %v7503
        %v7598 = vadd.f32 %v7212, %v7508
        %v7599 = vadd.f32 %v7213, %v7511
        %v7600 = vadd.f32 %v7214, %v7516
        %v7601 = vadd.f32 %v7215, %v7519
        %v7602 = vadd.f32 %v7216, %v7524
        %v7603 = vadd.f32 %v7217, %v7527
        %v7604 = vadd.f32 %v7218, %v7532
        %v7605 = vadd.f32 %v7219, %v7535
        %v7606 = vadd.f32 %v7220, %v7540
        %v7607 = vadd.f32 %v7221, %v7543
        %v7608 = vadd.f32 %v7222, %v7548
        %v7609 = vadd.f32 %v7223, %v7551
        %v7610 = vadd.f32 %v7224, %v7556
        %v7611 = vadd.f32 %v7225, %v7559
        %v7612 = vadd.f32 %v7226, %v7564
        %v7613 = vadd.f32 %v7227, %v7567
        %v7614 = vadd.f32 %v7228, %v7572
        %v7615 = vadd.f32 %v7229, %v7575
        %v7616 = vadd.f32 %v7230, %v7580
        %v7617 = vadd.f32 %v7231, %v7583
        %v7618 = vld [vmem:[%s5592] sm:$0xf]
        %v7619 = vld [vmem:[%s5592 + $0x4] sm:$0xf]
        %v7620 = vld [vmem:[%s5592 + $0x8] sm:$0x1]
        %v7621 = vld [vmem:[%s5592 + $0xc] sm:$0xf]
        %v7622 = vld [vmem:[%s5592 + $0x10] sm:$0xf]
        %v7623 = vld [vmem:[%s5592 + $0x14] sm:$0x1]
        %v7624 = vld [vmem:[%s5592 + $0x18] sm:$0xf]
        %v7625 = vld [vmem:[%s5592 + $0x1c] sm:$0xf]
        %v7626 = vld [vmem:[%s5592 + $0x20] sm:$0x1]
        %v7627 = vld [vmem:[%s5592 + $0x24] sm:$0xf]
        %v7628 = vld [vmem:[%s5592 + $0x28] sm:$0xf]
        %v7629 = vld [vmem:[%s5592 + $0x2c] sm:$0x1]
        %v7630 = vld [vmem:[%s5592 + $0x30] sm:$0xf]
        %v7631 = vld [vmem:[%s5592 + $0x34] sm:$0xf]
        %v7632 = vld [vmem:[%s5592 + $0x38] sm:$0x1]
        %v7633 = vld [vmem:[%s5592 + $0x3c] sm:$0xf]
        %v7634 = vld [vmem:[%s5592 + $0x40] sm:$0xf]
        %v7635 = vld [vmem:[%s5592 + $0x44] sm:$0x1]
        %v7636 = vld [vmem:[%s5592 + $0x48] sm:$0xf]
        %v7637 = vld [vmem:[%s5592 + $0x4c] sm:$0xf]
        %v7638 = vld [vmem:[%s5592 + $0x50] sm:$0x1]
        %v7639 = vld [vmem:[%s5592 + $0x54] sm:$0xf]
        %v7640 = vld [vmem:[%s5592 + $0x58] sm:$0xf]
        %v7641 = vld [vmem:[%s5592 + $0x5c] sm:$0x1]
        %v7642 = vld [vmem:[%s5592 + $0x60] sm:$0xf]
        %v7643 = vld [vmem:[%s5592 + $0x64] sm:$0xf]
        %v7644 = vld [vmem:[%s5592 + $0x68] sm:$0x1]
        %v7645 = vld [vmem:[%s5592 + $0x6c] sm:$0xf]
        %v7646 = vld [vmem:[%s5592 + $0x70] sm:$0xf]
        %v7647 = vld [vmem:[%s5592 + $0x74] sm:$0x1]
        %v7648 = vld [vmem:[%s5592 + $0x78] sm:$0xf]
        %v7649 = vld [vmem:[%s5592 + $0x7c] sm:$0xf]
        %v7650 = vld [vmem:[%s5592 + $0x80] sm:$0x1]
        %v7651 = vld [vmem:[%s5592 + $0x84] sm:$0xf]
        %v7652 = vld [vmem:[%s5592 + $0x88] sm:$0xf]
        %v7653 = vld [vmem:[%s5592 + $0x8c] sm:$0x1]
        %v7654 = vld [vmem:[%s5592 + $0x90] sm:$0xf]
        %v7655 = vld [vmem:[%s5592 + $0x94] sm:$0xf]
        %v7656 = vld [vmem:[%s5592 + $0x98] sm:$0x1]
        %v7657 = vld [vmem:[%s5592 + $0x9c] sm:$0xf]
        %v7658 = vld [vmem:[%s5592 + $0xa0] sm:$0xf]
        %v7659 = vld [vmem:[%s5592 + $0xa4] sm:$0x1]
        %v7660 = vld [vmem:[%s5592 + $0xa8] sm:$0xf]
        %v7661 = vld [vmem:[%s5592 + $0xac] sm:$0xf]
        %v7662 = vld [vmem:[%s5592 + $0xb0] sm:$0x1]
        %v7663 = vld [vmem:[%s5592 + $0xb4] sm:$0xf]
        %v7664 = vld [vmem:[%s5592 + $0xb8] sm:$0xf]
        %v7665 = vld [vmem:[%s5592 + $0xbc] sm:$0x1]
        %v7667 = vshrl.u32 %v7618, 16
        %v7669 = vrot.slane %v7667, 4
        %v7670 = vshll.u32 %v7618, 16
        %v7672 = vrot.slane %v7670, 5
        %v7673 = vor.u32 %v7669, %v7672
        %v7674 = vrot.slane %v7673, 4
        %v7676 = vshll.u32 %v7619, 16
        %v7678 = vrot.slane %v7676, 5
        %v7679 = vsel %vm292, %v7674, %v7678
        %v7680 = vshrl.u32 %v7619, 16
        %v7682 = vrot.slane %v7680, 4
        %v7683 = vor.u32 %v7682, %v7678
        %v7684 = vrot.slane %v7683, 4
        %v7686 = vshll.u32 %v7620, 16
        %v7688 = vrot.slane %v7686, 5
        %v7689 = vsel %vm292, %v7684, %v7688
        %v7691 = vshrl.u32 %v7621, 16
        %v7693 = vrot.slane %v7691, 4
        %v7694 = vshll.u32 %v7621, 16
        %v7696 = vrot.slane %v7694, 5
        %v7697 = vor.u32 %v7693, %v7696
        %v7698 = vrot.slane %v7697, 4
        %v7700 = vshll.u32 %v7622, 16
        %v7702 = vrot.slane %v7700, 5
        %v7703 = vsel %vm292, %v7698, %v7702
        %v7704 = vshrl.u32 %v7622, 16
        %v7706 = vrot.slane %v7704, 4
        %v7707 = vor.u32 %v7706, %v7702
        %v7708 = vrot.slane %v7707, 4
        %v7710 = vshll.u32 %v7623, 16
        %v7712 = vrot.slane %v7710, 5
        %v7713 = vsel %vm292, %v7708, %v7712
        %v7715 = vshrl.u32 %v7624, 16
        %v7717 = vrot.slane %v7715, 4
        %v7718 = vshll.u32 %v7624, 16
        %v7720 = vrot.slane %v7718, 5
        %v7721 = vor.u32 %v7717, %v7720
        %v7722 = vrot.slane %v7721, 4
        %v7724 = vshll.u32 %v7625, 16
        %v7726 = vrot.slane %v7724, 5
        %v7727 = vsel %vm292, %v7722, %v7726
        %v7728 = vshrl.u32 %v7625, 16
        %v7730 = vrot.slane %v7728, 4
        %v7731 = vor.u32 %v7730, %v7726
        %v7732 = vrot.slane %v7731, 4
        %v7734 = vshll.u32 %v7626, 16
        %v7736 = vrot.slane %v7734, 5
        %v7737 = vsel %vm292, %v7732, %v7736
        %v7739 = vshrl.u32 %v7627, 16
        %v7741 = vrot.slane %v7739, 4
        %v7742 = vshll.u32 %v7627, 16
        %v7744 = vrot.slane %v7742, 5
        %v7745 = vor.u32 %v7741, %v7744
        %v7746 = vrot.slane %v7745, 4
        %v7748 = vshll.u32 %v7628, 16
        %v7750 = vrot.slane %v7748, 5
        %v7751 = vsel %vm292, %v7746, %v7750
        %v7752 = vshrl.u32 %v7628, 16
        %v7754 = vrot.slane %v7752, 4
        %v7755 = vor.u32 %v7754, %v7750
        %v7756 = vrot.slane %v7755, 4
        %v7758 = vshll.u32 %v7629, 16
        %v7760 = vrot.slane %v7758, 5
        %v7761 = vsel %vm292, %v7756, %v7760
        %v7763 = vshrl.u32 %v7630, 16
        %v7765 = vrot.slane %v7763, 4
        %v7766 = vshll.u32 %v7630, 16
        %v7768 = vrot.slane %v7766, 5
        %v7769 = vor.u32 %v7765, %v7768
        %v7770 = vrot.slane %v7769, 4
        %v7772 = vshll.u32 %v7631, 16
        %v7774 = vrot.slane %v7772, 5
        %v7775 = vsel %vm292, %v7770, %v7774
        %v7776 = vshrl.u32 %v7631, 16
        %v7778 = vrot.slane %v7776, 4
        %v7779 = vor.u32 %v7778, %v7774
        %v7780 = vrot.slane %v7779, 4
        %v7782 = vshll.u32 %v7632, 16
        %v7784 = vrot.slane %v7782, 5
        %v7785 = vsel %vm292, %v7780, %v7784
        %v7787 = vshrl.u32 %v7633, 16
        %v7789 = vrot.slane %v7787, 4
        %v7790 = vshll.u32 %v7633, 16
        %v7792 = vrot.slane %v7790, 5
        %v7793 = vor.u32 %v7789, %v7792
        %v7794 = vrot.slane %v7793, 4
        %v7796 = vshll.u32 %v7634, 16
        %v7798 = vrot.slane %v7796, 5
        %v7799 = vsel %vm292, %v7794, %v7798
        %v7800 = vshrl.u32 %v7634, 16
        %v7802 = vrot.slane %v7800, 4
        %v7803 = vor.u32 %v7802, %v7798
        %v7804 = vrot.slane %v7803, 4
        %v7806 = vshll.u32 %v7635, 16
        %v7808 = vrot.slane %v7806, 5
        %v7809 = vsel %vm292, %v7804, %v7808
        %v7811 = vshrl.u32 %v7636, 16
        %v7813 = vrot.slane %v7811, 4
        %v7814 = vshll.u32 %v7636, 16
        %v7816 = vrot.slane %v7814, 5
        %v7817 = vor.u32 %v7813, %v7816
        %v7818 = vrot.slane %v7817, 4
        %v7820 = vshll.u32 %v7637, 16
        %v7822 = vrot.slane %v7820, 5
        %v7823 = vsel %vm292, %v7818, %v7822
        %v7824 = vshrl.u32 %v7637, 16
        %v7826 = vrot.slane %v7824, 4
        %v7827 = vor.u32 %v7826, %v7822
        %v7828 = vrot.slane %v7827, 4
        %v7830 = vshll.u32 %v7638, 16
        %v7832 = vrot.slane %v7830, 5
        %v7833 = vsel %vm292, %v7828, %v7832
        %v7835 = vshrl.u32 %v7639, 16
        %v7837 = vrot.slane %v7835, 4
        %v7838 = vshll.u32 %v7639, 16
        %v7840 = vrot.slane %v7838, 5
        %v7841 = vor.u32 %v7837, %v7840
        %v7842 = vrot.slane %v7841, 4
        %v7844 = vshll.u32 %v7640, 16
        %v7846 = vrot.slane %v7844, 5
        %v7847 = vsel %vm292, %v7842, %v7846
        %v7848 = vshrl.u32 %v7640, 16
        %v7850 = vrot.slane %v7848, 4
        %v7851 = vor.u32 %v7850, %v7846
        %v7852 = vrot.slane %v7851, 4
        %v7854 = vshll.u32 %v7641, 16
        %v7856 = vrot.slane %v7854, 5
        %v7857 = vsel %vm292, %v7852, %v7856
        %v7859 = vshrl.u32 %v7642, 16
        %v7861 = vrot.slane %v7859, 4
        %v7862 = vshll.u32 %v7642, 16
        %v7864 = vrot.slane %v7862, 5
        %v7865 = vor.u32 %v7861, %v7864
        %v7866 = vrot.slane %v7865, 4
        %v7868 = vshll.u32 %v7643, 16
        %v7870 = vrot.slane %v7868, 5
        %v7871 = vsel %vm292, %v7866, %v7870
        %v7872 = vshrl.u32 %v7643, 16
        %v7874 = vrot.slane %v7872, 4
        %v7875 = vor.u32 %v7874, %v7870
        %v7876 = vrot.slane %v7875, 4
        %v7878 = vshll.u32 %v7644, 16
        %v7880 = vrot.slane %v7878, 5
        %v7881 = vsel %vm292, %v7876, %v7880
        %v7883 = vshrl.u32 %v7645, 16
        %v7885 = vrot.slane %v7883, 4
        %v7886 = vshll.u32 %v7645, 16
        %v7888 = vrot.slane %v7886, 5
        %v7889 = vor.u32 %v7885, %v7888
        %v7890 = vrot.slane %v7889, 4
        %v7892 = vshll.u32 %v7646, 16
        %v7894 = vrot.slane %v7892, 5
        %v7895 = vsel %vm292, %v7890, %v7894
        %v7896 = vshrl.u32 %v7646, 16
        %v7898 = vrot.slane %v7896, 4
        %v7899 = vor.u32 %v7898, %v7894
        %v7900 = vrot.slane %v7899, 4
        %v7902 = vshll.u32 %v7647, 16
        %v7904 = vrot.slane %v7902, 5
        %v7905 = vsel %vm292, %v7900, %v7904
        %v7907 = vshrl.u32 %v7648, 16
        %v7909 = vrot.slane %v7907, 4
        %v7910 = vshll.u32 %v7648, 16
        %v7912 = vrot.slane %v7910, 5
        %v7913 = vor.u32 %v7909, %v7912
        %v7914 = vrot.slane %v7913, 4
        %v7916 = vshll.u32 %v7649, 16
        %v7918 = vrot.slane %v7916, 5
        %v7919 = vsel %vm292, %v7914, %v7918
        %v7920 = vshrl.u32 %v7649, 16
        %v7922 = vrot.slane %v7920, 4
        %v7923 = vor.u32 %v7922, %v7918
        %v7924 = vrot.slane %v7923, 4
        %v7926 = vshll.u32 %v7650, 16
        %v7928 = vrot.slane %v7926, 5
        %v7929 = vsel %vm292, %v7924, %v7928
        %v7931 = vshrl.u32 %v7651, 16
        %v7933 = vrot.slane %v7931, 4
        %v7934 = vshll.u32 %v7651, 16
        %v7936 = vrot.slane %v7934, 5
        %v7937 = vor.u32 %v7933, %v7936
        %v7938 = vrot.slane %v7937, 4
        %v7940 = vshll.u32 %v7652, 16
        %v7942 = vrot.slane %v7940, 5
        %v7943 = vsel %vm292, %v7938, %v7942
        %v7944 = vshrl.u32 %v7652, 16
        %v7946 = vrot.slane %v7944, 4
        %v7947 = vor.u32 %v7946, %v7942
        %v7948 = vrot.slane %v7947, 4
        %v7950 = vshll.u32 %v7653, 16
        %v7952 = vrot.slane %v7950, 5
        %v7953 = vsel %vm292, %v7948, %v7952
        %v7955 = vshrl.u32 %v7654, 16
        %v7957 = vrot.slane %v7955, 4
        %v7958 = vshll.u32 %v7654, 16
        %v7960 = vrot.slane %v7958, 5
        %v7961 = vor.u32 %v7957, %v7960
        %v7962 = vrot.slane %v7961, 4
        %v7964 = vshll.u32 %v7655, 16
        %v7966 = vrot.slane %v7964, 5
        %v7967 = vsel %vm292, %v7962, %v7966
        %v7968 = vshrl.u32 %v7655, 16
        %v7970 = vrot.slane %v7968, 4
        %v7971 = vor.u32 %v7970, %v7966
        %v7972 = vrot.slane %v7971, 4
        %v7974 = vshll.u32 %v7656, 16
        %v7976 = vrot.slane %v7974, 5
        %v7977 = vsel %vm292, %v7972, %v7976
        %v7979 = vshrl.u32 %v7657, 16
        %v7981 = vrot.slane %v7979, 4
        %v7982 = vshll.u32 %v7657, 16
        %v7984 = vrot.slane %v7982, 5
        %v7985 = vor.u32 %v7981, %v7984
        %v7986 = vrot.slane %v7985, 4
        %v7988 = vshll.u32 %v7658, 16
        %v7990 = vrot.slane %v7988, 5
        %v7991 = vsel %vm292, %v7986, %v7990
        %v7992 = vshrl.u32 %v7658, 16
        %v7994 = vrot.slane %v7992, 4
        %v7995 = vor.u32 %v7994, %v7990
        %v7996 = vrot.slane %v7995, 4
        %v7998 = vshll.u32 %v7659, 16
        %v8000 = vrot.slane %v7998, 5
        %v8001 = vsel %vm292, %v7996, %v8000
        %v8003 = vshrl.u32 %v7660, 16
        %v8005 = vrot.slane %v8003, 4
        %v8006 = vshll.u32 %v7660, 16
        %v8008 = vrot.slane %v8006, 5
        %v8009 = vor.u32 %v8005, %v8008
        %v8010 = vrot.slane %v8009, 4
        %v8012 = vshll.u32 %v7661, 16
        %v8014 = vrot.slane %v8012, 5
        %v8015 = vsel %vm292, %v8010, %v8014
        %v8016 = vshrl.u32 %v7661, 16
        %v8018 = vrot.slane %v8016, 4
        %v8019 = vor.u32 %v8018, %v8014
        %v8020 = vrot.slane %v8019, 4
        %v8022 = vshll.u32 %v7662, 16
        %v8024 = vrot.slane %v8022, 5
        %v8025 = vsel %vm292, %v8020, %v8024
        %v8027 = vshrl.u32 %v7663, 16
        %v8029 = vrot.slane %v8027, 4
        %v8030 = vshll.u32 %v7663, 16
        %v8032 = vrot.slane %v8030, 5
        %v8033 = vor.u32 %v8029, %v8032
        %v8034 = vrot.slane %v8033, 4
        %v8036 = vshll.u32 %v7664, 16
        %v8038 = vrot.slane %v8036, 5
        %v8039 = vsel %vm292, %v8034, %v8038
        %v8040 = vshrl.u32 %v7664, 16
        %v8042 = vrot.slane %v8040, 4
        %v8043 = vor.u32 %v8042, %v8038
        %v8044 = vrot.slane %v8043, 4
        %v8046 = vshll.u32 %v7665, 16
        %v8048 = vrot.slane %v8046, 5
        %v8049 = vsel %vm292, %v8044, %v8048
        %s8050 = scalar_lea.vmem [#allocation4], 256
        %v8051 = vld [vmem:[%s8050] sm:$0xf]
        %v8052 = vld [vmem:[%s8050 + $0x4] sm:$0xf]
        %v8053 = vld [vmem:[%s8050 + $0x8] sm:$0xf]
        %v8054 = vld [vmem:[%s8050 + $0xc] sm:$0xf]
        %v8055 = vld [vmem:[%s8050 + $0x10] sm:$0xf]
        %v8056 = vld [vmem:[%s8050 + $0x14] sm:$0xf]
        %v8057 = vld [vmem:[%s8050 + $0x18] sm:$0xf]
        %v8058 = vld [vmem:[%s8050 + $0x1c] sm:$0xf]
        %v8059 = vld [vmem:[%s8050 + $0x20] sm:$0xf]
        %v8060 = vld [vmem:[%s8050 + $0x24] sm:$0xf]
        %v8061 = vld [vmem:[%s8050 + $0x28] sm:$0xf]
        %v8062 = vld [vmem:[%s8050 + $0x2c] sm:$0xf]
        %v8063 = vld [vmem:[%s8050 + $0x30] sm:$0xf]
        %v8064 = vld [vmem:[%s8050 + $0x34] sm:$0xf]
        %v8065 = vld [vmem:[%s8050 + $0x38] sm:$0xf]
        %v8066 = vld [vmem:[%s8050 + $0x3c] sm:$0xf]
        %v8067 = vunpack.c.l.b16 %v7679
        %v8068 = vunpack.c.l.b16 %v7689
        %v8069 = vunpack.c.l.b16 %v7703
        %v8070 = vunpack.c.l.b16 %v7713
        %v8071 = vunpack.c.l.b16 %v7727
        %v8072 = vunpack.c.l.b16 %v7737
        %v8073 = vunpack.c.l.b16 %v7751
        %v8074 = vunpack.c.l.b16 %v7761
        %v8075 = vunpack.c.l.b16 %v7775
        %v8076 = vunpack.c.l.b16 %v7785
        %v8077 = vunpack.c.l.b16 %v7799
        %v8078 = vunpack.c.l.b16 %v7809
        %v8079 = vunpack.c.l.b16 %v7823
        %v8080 = vunpack.c.l.b16 %v7833
        %v8081 = vunpack.c.l.b16 %v7847
        %v8082 = vunpack.c.l.b16 %v7857
        %v8083 = vunpack.c.l.b16 %v7871
        %v8084 = vunpack.c.l.b16 %v7881
        %v8085 = vunpack.c.l.b16 %v7895
        %v8086 = vunpack.c.l.b16 %v7905
        %v8087 = vunpack.c.l.b16 %v7919
        %v8088 = vunpack.c.l.b16 %v7929
        %v8089 = vunpack.c.l.b16 %v7943
        %v8090 = vunpack.c.l.b16 %v7953
        %v8091 = vunpack.c.l.b16 %v7967
        %v8092 = vunpack.c.l.b16 %v7977
        %v8093 = vunpack.c.l.b16 %v7991
        %v8094 = vunpack.c.l.b16 %v8001
        %v8095 = vunpack.c.l.b16 %v8015
        %v8096 = vunpack.c.l.b16 %v8025
        %v8097 = vunpack.c.l.b16 %v8039
        %v8098 = vunpack.c.l.b16 %v8049
        %v8099 = vpack.c.b16 %v8068, %v8067
        %v8100 = vpack.c.b16 %v8070, %v8069
        %v8101 = vpack.c.b16 %v8072, %v8071
        %v8102 = vpack.c.b16 %v8074, %v8073
        %v8103 = vpack.c.b16 %v8076, %v8075
        %v8104 = vpack.c.b16 %v8078, %v8077
        %v8105 = vpack.c.b16 %v8080, %v8079
        %v8106 = vpack.c.b16 %v8082, %v8081
        %v8107 = vpack.c.b16 %v8084, %v8083
        %v8108 = vpack.c.b16 %v8086, %v8085
        %v8109 = vpack.c.b16 %v8088, %v8087
        %v8110 = vpack.c.b16 %v8090, %v8089
        %v8111 = vpack.c.b16 %v8092, %v8091
        %v8112 = vpack.c.b16 %v8094, %v8093
        %v8113 = vpack.c.b16 %v8096, %v8095
        %v8114 = vpack.c.b16 %v8098, %v8097
        %v8147 = vunpack.c.l.b16 %v8051
        %v8148 = vunpack.c.l.b16 %v8052
        %v8149 = vunpack.c.l.b16 %v8053
        %v8150 = vunpack.c.l.b16 %v8054
        %v8151 = vunpack.c.l.b16 %v8055
        %v8152 = vunpack.c.l.b16 %v8056
        %v8153 = vunpack.c.l.b16 %v8057
        %v8154 = vunpack.c.l.b16 %v8058
        %v8155 = vunpack.c.l.b16 %v8059
        %v8156 = vunpack.c.l.b16 %v8060
        %v8157 = vunpack.c.l.b16 %v8061
        %v8158 = vunpack.c.l.b16 %v8062
        %v8159 = vunpack.c.l.b16 %v8063
        %v8160 = vunpack.c.l.b16 %v8064
        %v8161 = vunpack.c.l.b16 %v8065
        %v8162 = vunpack.c.l.b16 %v8066
        %v8163 = vpack.c.b16 %v8148, %v8147
        %v8164 = vpack.c.b16 %v8150, %v8149
        %v8165 = vpack.c.b16 %v8152, %v8151
        %v8166 = vpack.c.b16 %v8154, %v8153
        %v8167 = vpack.c.b16 %v8156, %v8155
        %v8168 = vpack.c.b16 %v8158, %v8157
        %v8169 = vpack.c.b16 %v8160, %v8159
        %v8170 = vpack.c.b16 %v8162, %v8161
        %8179 = vmatprep.subr.bf16.mxu0 0
        %8180 = vmatpush1.bf16.msra.mxu0 %v8163
        %8181 = vmatprep.subr.bf16.mxu0 0
        %8182 = vmatpush1.bf16.msra.mxu0 %v8164
        %8183 = vmatprep.subr.bf16.mxu0 0
        %8184 = vmatpush1.bf16.msra.mxu0 %v8165
        %8185 = vmatprep.subr.bf16.mxu0 0
        %8186 = vmatpush1.bf16.msra.mxu0 %v8166
        %8187 = vmatprep.subr.bf16.mxu0 0
        %8188 = vmatpush1.bf16.msra.mxu0 %v8167
        %8189 = vmatprep.subr.bf16.mxu0 0
        %8190 = vmatpush1.bf16.msra.mxu0 %v8168
        %8191 = vmatprep.subr.bf16.mxu0 0
        %8192 = vmatpush1.bf16.msra.mxu0 %v8169
        %8193 = vmatprep.subr.bf16.mxu0 0
        %8194 = vmatpush1.bf16.msra.mxu0 %v8170
        %8195 = vmatprep.subr.bf16.mxu0 0
        %8196 = vmatpush1.bf16.msra.mxu0 0
        %8197 = vmatprep.subr.bf16.mxu0 0
        %8198 = vmatpush1.bf16.msra.mxu0 0
        %8199 = vmatprep.subr.bf16.mxu0 0
        %8200 = vmatpush1.bf16.msra.mxu0 0
        %8201 = vmatprep.subr.bf16.mxu0 0
        %8202 = vmatpush1.bf16.msra.mxu0 0
        %8203 = vmatprep.subr.bf16.mxu0 0
        %8204 = vmatpush1.bf16.msra.mxu0 0
        %8205 = vmatprep.subr.bf16.mxu0 0
        %8206 = vmatpush1.bf16.msra.mxu0 0
        %8207 = vmatprep.subr.bf16.mxu0 0
        %8208 = vmatpush1.bf16.msra.mxu0 0
        %8209 = vmatprep.subr.bf16.mxu0 0
        %8210 = vmatpush1.bf16.msra.mxu0 0
        %8211 = vmatprep.mubr.bf16.mxu0 0
        %8212 = vmatmul.mubr.bf16.gmra.mrb[0].mxu0 %v8099
        %v8213 = vpop.f32.mrb[0].mxu0
        %v8214 = vadd.f32 0.0, %v8213
        %v8215 = vpop.f32.mrb[0].mxu0
        %v8216 = vpop.f32.mrb[0].mxu0
        %v8217 = vadd.f32 0.0, %v8216
        %v8218 = vpop.f32.mrb[0].mxu0
        %8219 = vmatprep.mubr.bf16.mxu0 0
        %8220 = vmatmul.mubr.bf16.gmra.mrb[0].mxu0 %v8100
        %v8221 = vpop.f32.mrb[0].mxu0
        %v8222 = vadd.f32 0.0, %v8221
        %v8223 = vpop.f32.mrb[0].mxu0
        %v8224 = vpop.f32.mrb[0].mxu0
        %v8225 = vadd.f32 0.0, %v8224
        %v8226 = vpop.f32.mrb[0].mxu0
        %8227 = vmatprep.mubr.bf16.mxu0 0
        %8228 = vmatmul.mubr.bf16.gmra.mrb[0].mxu0 %v8101
        %v8229 = vpop.f32.mrb[0].mxu0
        %v8230 = vadd.f32 0.0, %v8229
        %v8231 = vpop.f32.mrb[0].mxu0
        %v8232 = vpop.f32.mrb[0].mxu0
        %v8233 = vadd.f32 0.0, %v8232
        %v8234 = vpop.f32.mrb[0].mxu0
        %8235 = vmatprep.mubr.bf16.mxu0 0
        %8236 = vmatmul.mubr.bf16.gmra.mrb[0].mxu0 %v8102
        %v8237 = vpop.f32.mrb[0].mxu0
        %v8238 = vadd.f32 0.0, %v8237
        %v8239 = vpop.f32.mrb[0].mxu0
        %v8240 = vpop.f32.mrb[0].mxu0
        %v8241 = vadd.f32 0.0, %v8240
        %v8242 = vpop.f32.mrb[0].mxu0
        %8243 = vmatprep.mubr.bf16.mxu0 0
        %8244 = vmatmul.mubr.bf16.gmra.mrb[0].mxu0 %v8103
        %v8245 = vpop.f32.mrb[0].mxu0
        %v8246 = vadd.f32 0.0, %v8245
        %v8247 = vpop.f32.mrb[0].mxu0
        %v8248 = vpop.f32.mrb[0].mxu0
        %v8249 = vadd.f32 0.0, %v8248
        %v8250 = vpop.f32.mrb[0].mxu0
        %8251 = vmatprep.mubr.bf16.mxu0 0
        %8252 = vmatmul.mubr.bf16.gmra.mrb[0].mxu0 %v8104
        %v8253 = vpop.f32.mrb[0].mxu0
        %v8254 = vadd.f32 0.0, %v8253
        %v8255 = vpop.f32.mrb[0].mxu0
        %v8256 = vpop.f32.mrb[0].mxu0
        %v8257 = vadd.f32 0.0, %v8256
        %v8258 = vpop.f32.mrb[0].mxu0
        %8259 = vmatprep.mubr.bf16.mxu0 0
        %8260 = vmatmul.mubr.bf16.gmra.mrb[0].mxu0 %v8105
        %v8261 = vpop.f32.mrb[0].mxu0
        %v8262 = vadd.f32 0.0, %v8261
        %v8263 = vpop.f32.mrb[0].mxu0
        %v8264 = vpop.f32.mrb[0].mxu0
        %v8265 = vadd.f32 0.0, %v8264
        %v8266 = vpop.f32.mrb[0].mxu0
        %8267 = vmatprep.mubr.bf16.mxu0 0
        %8268 = vmatmul.mubr.bf16.gmra.mrb[0].mxu0 %v8106
        %v8269 = vpop.f32.mrb[0].mxu0
        %v8270 = vadd.f32 0.0, %v8269
        %v8271 = vpop.f32.mrb[0].mxu0
        %v8272 = vpop.f32.mrb[0].mxu0
        %v8273 = vadd.f32 0.0, %v8272
        %v8274 = vpop.f32.mrb[0].mxu0
        %8275 = vmatprep.mubr.bf16.mxu0 0
        %8276 = vmatmul.mubr.bf16.gmra.mrb[0].mxu0 %v8107
        %v8277 = vpop.f32.mrb[0].mxu0
        %v8278 = vadd.f32 0.0, %v8277
        %v8279 = vpop.f32.mrb[0].mxu0
        %v8280 = vpop.f32.mrb[0].mxu0
        %v8281 = vadd.f32 0.0, %v8280
        %v8282 = vpop.f32.mrb[0].mxu0
        %8283 = vmatprep.mubr.bf16.mxu0 0
        %8284 = vmatmul.mubr.bf16.gmra.mrb[0].mxu0 %v8108
        %v8285 = vpop.f32.mrb[0].mxu0
        %v8286 = vadd.f32 0.0, %v8285
        %v8287 = vpop.f32.mrb[0].mxu0
        %v8288 = vpop.f32.mrb[0].mxu0
        %v8289 = vadd.f32 0.0, %v8288
        %v8290 = vpop.f32.mrb[0].mxu0
        %8291 = vmatprep.mubr.bf16.mxu0 0
        %8292 = vmatmul.mubr.bf16.gmra.mrb[0].mxu0 %v8109
        %v8293 = vpop.f32.mrb[0].mxu0
        %v8294 = vadd.f32 0.0, %v8293
        %v8295 = vpop.f32.mrb[0].mxu0
        %v8296 = vpop.f32.mrb[0].mxu0
        %v8297 = vadd.f32 0.0, %v8296
        %v8298 = vpop.f32.mrb[0].mxu0
        %8299 = vmatprep.mubr.bf16.mxu0 0
        %8300 = vmatmul.mubr.bf16.gmra.mrb[0].mxu0 %v8110
        %v8301 = vpop.f32.mrb[0].mxu0
        %v8302 = vadd.f32 0.0, %v8301
        %v8303 = vpop.f32.mrb[0].mxu0
        %v8304 = vpop.f32.mrb[0].mxu0
        %v8305 = vadd.f32 0.0, %v8304
        %v8306 = vpop.f32.mrb[0].mxu0
        %8307 = vmatprep.mubr.bf16.mxu0 0
        %8308 = vmatmul.mubr.bf16.gmra.mrb[0].mxu0 %v8111
        %v8309 = vpop.f32.mrb[0].mxu0
        %v8310 = vadd.f32 0.0, %v8309
        %v8311 = vpop.f32.mrb[0].mxu0
        %v8312 = vpop.f32.mrb[0].mxu0
        %v8313 = vadd.f32 0.0, %v8312
        %v8314 = vpop.f32.mrb[0].mxu0
        %8315 = vmatprep.mubr.bf16.mxu0 0
        %8316 = vmatmul.mubr.bf16.gmra.mrb[0].mxu0 %v8112
        %v8317 = vpop.f32.mrb[0].mxu0
        %v8318 = vadd.f32 0.0, %v8317
        %v8319 = vpop.f32.mrb[0].mxu0
        %v8320 = vpop.f32.mrb[0].mxu0
        %v8321 = vadd.f32 0.0, %v8320
        %v8322 = vpop.f32.mrb[0].mxu0
        %8323 = vmatprep.mubr.bf16.mxu0 0
        %8324 = vmatmul.mubr.bf16.gmra.mrb[0].mxu0 %v8113
        %v8325 = vpop.f32.mrb[0].mxu0
        %v8326 = vadd.f32 0.0, %v8325
        %v8327 = vpop.f32.mrb[0].mxu0
        %v8328 = vpop.f32.mrb[0].mxu0
        %v8329 = vadd.f32 0.0, %v8328
        %v8330 = vpop.f32.mrb[0].mxu0
        %8331 = vmatprep.mubr.bf16.mxu0 0
        %8332 = vmatmul.mubr.bf16.gmra.mrb[0].mxu0 %v8114
        %v8333 = vpop.f32.mrb[0].mxu0
        %v8334 = vadd.f32 0.0, %v8333
        %v8335 = vpop.f32.mrb[0].mxu0
        %v8336 = vpop.f32.mrb[0].mxu0
        %v8337 = vadd.f32 0.0, %v8336
        %v8338 = vpop.f32.mrb[0].mxu0
        %8339 = vdwg.mxu0
        %v8340 = vadd.f32 %v7586, %v8214
        %v8341 = vadd.f32 %v7587, %v8217
        %v8342 = vadd.f32 %v7588, %v8222
        %v8343 = vadd.f32 %v7589, %v8225
        %v8344 = vadd.f32 %v7590, %v8230
        %v8345 = vadd.f32 %v7591, %v8233
        %v8346 = vadd.f32 %v7592, %v8238
        %v8347 = vadd.f32 %v7593, %v8241
        %v8348 = vadd.f32 %v7594, %v8246
        %v8349 = vadd.f32 %v7595, %v8249
        %v8350 = vadd.f32 %v7596, %v8254
        %v8351 = vadd.f32 %v7597, %v8257
        %v8352 = vadd.f32 %v7598, %v8262
        %v8353 = vadd.f32 %v7599, %v8265
        %v8354 = vadd.f32 %v7600, %v8270
        %v8355 = vadd.f32 %v7601, %v8273
        %v8356 = vadd.f32 %v7602, %v8278
        %v8357 = vadd.f32 %v7603, %v8281
        %v8358 = vadd.f32 %v7604, %v8286
        %v8359 = vadd.f32 %v7605, %v8289
        %v8360 = vadd.f32 %v7606, %v8294
        %v8361 = vadd.f32 %v7607, %v8297
        %v8362 = vadd.f32 %v7608, %v8302
        %v8363 = vadd.f32 %v7609, %v8305
        %v8364 = vadd.f32 %v7610, %v8310
        %v8365 = vadd.f32 %v7611, %v8313
        %v8366 = vadd.f32 %v7612, %v8318
        %v8367 = vadd.f32 %v7613, %v8321
        %v8368 = vadd.f32 %v7614, %v8326
        %v8369 = vadd.f32 %v7615, %v8329
        %v8370 = vadd.f32 %v7616, %v8334
        %v8371 = vadd.f32 %v7617, %v8337
        %v8372 = vld [vmem:[%s5592] sm:$0xe]
        %v8373 = vld [vmem:[%s5592 + $0xc] sm:$0xe]
        %v8374 = vld [vmem:[%s5592 + $0x18] sm:$0xe]
        %v8375 = vld [vmem:[%s5592 + $0x24] sm:$0xe]
        %v8376 = vld [vmem:[%s5592 + $0x30] sm:$0xe]
        %v8377 = vld [vmem:[%s5592 + $0x3c] sm:$0xe]
        %v8378 = vld [vmem:[%s5592 + $0x48] sm:$0xe]
        %v8379 = vld [vmem:[%s5592 + $0x54] sm:$0xe]
        %v8380 = vld [vmem:[%s5592 + $0x60] sm:$0xe]
        %v8381 = vld [vmem:[%s5592 + $0x6c] sm:$0xe]
        %v8382 = vld [vmem:[%s5592 + $0x78] sm:$0xe]
        %v8383 = vld [vmem:[%s5592 + $0x84] sm:$0xe]
        %v8384 = vld [vmem:[%s5592 + $0x90] sm:$0xe]
        %v8385 = vld [vmem:[%s5592 + $0x9c] sm:$0xe]
        %v8386 = vld [vmem:[%s5592 + $0xa8] sm:$0xe]
        %v8387 = vld [vmem:[%s5592 + $0xb4] sm:$0xe]
        %v8436 = vrot.slane %v8372, 5
        %v8437 = vrot.slane %v8436, 4
        %v8438 = vrot.slane %v7619, 5
        %v8439 = vsel %vm1283, %v8437, %v8438
        %v8440 = vrot.slane %v8438, 4
        %v8441 = vrot.slane %v7620, 5
        %v8442 = vsel %vm1283, %v8440, %v8441
        %v8443 = vrot.slane %v8373, 5
        %v8444 = vrot.slane %v8443, 4
        %v8445 = vrot.slane %v7622, 5
        %v8446 = vsel %vm1283, %v8444, %v8445
        %v8447 = vrot.slane %v8445, 4
        %v8448 = vrot.slane %v7623, 5
        %v8449 = vsel %vm1283, %v8447, %v8448
        %v8450 = vrot.slane %v8374, 5
        %v8451 = vrot.slane %v8450, 4
        %v8452 = vrot.slane %v7625, 5
        %v8453 = vsel %vm1283, %v8451, %v8452
        %v8454 = vrot.slane %v8452, 4
        %v8455 = vrot.slane %v7626, 5
        %v8456 = vsel %vm1283, %v8454, %v8455
        %v8457 = vrot.slane %v8375, 5
        %v8458 = vrot.slane %v8457, 4
        %v8459 = vrot.slane %v7628, 5
        %v8460 = vsel %vm1283, %v8458, %v8459
        %v8461 = vrot.slane %v8459, 4
        %v8462 = vrot.slane %v7629, 5
        %v8463 = vsel %vm1283, %v8461, %v8462
        %v8464 = vrot.slane %v8376, 5
        %v8465 = vrot.slane %v8464, 4
        %v8466 = vrot.slane %v7631, 5
        %v8467 = vsel %vm1283, %v8465, %v8466
        %v8468 = vrot.slane %v8466, 4
        %v8469 = vrot.slane %v7632, 5
        %v8470 = vsel %vm1283, %v8468, %v8469
        %v8471 = vrot.slane %v8377, 5
        %v8472 = vrot.slane %v8471, 4
        %v8473 = vrot.slane %v7634, 5
        %v8474 = vsel %vm1283, %v8472, %v8473
        %v8475 = vrot.slane %v8473, 4
        %v8476 = vrot.slane %v7635, 5
        %v8477 = vsel %vm1283, %v8475, %v8476
        %v8478 = vrot.slane %v8378, 5
        %v8479 = vrot.slane %v8478, 4
        %v8480 = vrot.slane %v7637, 5
        %v8481 = vsel %vm1283, %v8479, %v8480
        %v8482 = vrot.slane %v8480, 4
        %v8483 = vrot.slane %v7638, 5
        %v8484 = vsel %vm1283, %v8482, %v8483
        %v8485 = vrot.slane %v8379, 5
        %v8486 = vrot.slane %v8485, 4
        %v8487 = vrot.slane %v7640, 5
        %v8488 = vsel %vm1283, %v8486, %v8487
        %v8489 = vrot.slane %v8487, 4
        %v8490 = vrot.slane %v7641, 5
        %v8491 = vsel %vm1283, %v8489, %v8490
        %v8492 = vrot.slane %v8380, 5
        %v8493 = vrot.slane %v8492, 4
        %v8494 = vrot.slane %v7643, 5
        %v8495 = vsel %vm1283, %v8493, %v8494
        %v8496 = vrot.slane %v8494, 4
        %v8497 = vrot.slane %v7644, 5
        %v8498 = vsel %vm1283, %v8496, %v8497
        %v8499 = vrot.slane %v8381, 5
        %v8500 = vrot.slane %v8499, 4
        %v8501 = vrot.slane %v7646, 5
        %v8502 = vsel %vm1283, %v8500, %v8501
        %v8503 = vrot.slane %v8501, 4
        %v8504 = vrot.slane %v7647, 5
        %v8505 = vsel %vm1283, %v8503, %v8504
        %v8506 = vrot.slane %v8382, 5
        %v8507 = vrot.slane %v8506, 4
        %v8508 = vrot.slane %v7649, 5
        %v8509 = vsel %vm1283, %v8507, %v8508
        %v8510 = vrot.slane %v8508, 4
        %v8511 = vrot.slane %v7650, 5
        %v8512 = vsel %vm1283, %v8510, %v8511
        %v8513 = vrot.slane %v8383, 5
        %v8514 = vrot.slane %v8513, 4
        %v8515 = vrot.slane %v7652, 5
        %v8516 = vsel %vm1283, %v8514, %v8515
        %v8517 = vrot.slane %v8515, 4
        %v8518 = vrot.slane %v7653, 5
        %v8519 = vsel %vm1283, %v8517, %v8518
        %v8520 = vrot.slane %v8384, 5
        %v8521 = vrot.slane %v8520, 4
        %v8522 = vrot.slane %v7655, 5
        %v8523 = vsel %vm1283, %v8521, %v8522
        %v8524 = vrot.slane %v8522, 4
        %v8525 = vrot.slane %v7656, 5
        %v8526 = vsel %vm1283, %v8524, %v8525
        %v8527 = vrot.slane %v8385, 5
        %v8528 = vrot.slane %v8527, 4
        %v8529 = vrot.slane %v7658, 5
        %v8530 = vsel %vm1283, %v8528, %v8529
        %v8531 = vrot.slane %v8529, 4
        %v8532 = vrot.slane %v7659, 5
        %v8533 = vsel %vm1283, %v8531, %v8532
        %v8534 = vrot.slane %v8386, 5
        %v8535 = vrot.slane %v8534, 4
        %v8536 = vrot.slane %v7661, 5
        %v8537 = vsel %vm1283, %v8535, %v8536
        %v8538 = vrot.slane %v8536, 4
        %v8539 = vrot.slane %v7662, 5
        %v8540 = vsel %vm1283, %v8538, %v8539
        %v8541 = vrot.slane %v8387, 5
        %v8542 = vrot.slane %v8541, 4
        %v8543 = vrot.slane %v7664, 5
        %v8544 = vsel %vm1283, %v8542, %v8543
        %v8545 = vrot.slane %v8543, 4
        %v8546 = vrot.slane %v7665, 5
        %v8547 = vsel %vm1283, %v8545, %v8546
        %s8548 = scalar_lea.vmem [#allocation4], 320
        %v8549 = vld [vmem:[%s8548] sm:$0xf]
        %v8550 = vld [vmem:[%s8548 + $0x4] sm:$0xf]
        %v8551 = vld [vmem:[%s8548 + $0x8] sm:$0xf]
        %v8552 = vld [vmem:[%s8548 + $0xc] sm:$0xf]
        %v8553 = vld [vmem:[%s8548 + $0x10] sm:$0xf]
        %v8554 = vld [vmem:[%s8548 + $0x14] sm:$0xf]
        %v8555 = vld [vmem:[%s8548 + $0x18] sm:$0xf]
        %v8556 = vld [vmem:[%s8548 + $0x1c] sm:$0xf]
        %v8557 = vld [vmem:[%s8548 + $0x20] sm:$0xf]
        %v8558 = vld [vmem:[%s8548 + $0x24] sm:$0xf]
        %v8559 = vld [vmem:[%s8548 + $0x28] sm:$0xf]
        %v8560 = vld [vmem:[%s8548 + $0x2c] sm:$0xf]
        %v8561 = vld [vmem:[%s8548 + $0x30] sm:$0xf]
        %v8562 = vld [vmem:[%s8548 + $0x34] sm:$0xf]
        %v8563 = vld [vmem:[%s8548 + $0x38] sm:$0xf]
        %v8564 = vld [vmem:[%s8548 + $0x3c] sm:$0xf]
        %v8565 = vunpack.c.l.b16 %v8439
        %v8566 = vunpack.c.l.b16 %v8442
        %v8567 = vunpack.c.l.b16 %v8446
        %v8568 = vunpack.c.l.b16 %v8449
        %v8569 = vunpack.c.l.b16 %v8453
        %v8570 = vunpack.c.l.b16 %v8456
        %v8571 = vunpack.c.l.b16 %v8460
        %v8572 = vunpack.c.l.b16 %v8463
        %v8573 = vunpack.c.l.b16 %v8467
        %v8574 = vunpack.c.l.b16 %v8470
        %v8575 = vunpack.c.l.b16 %v8474
        %v8576 = vunpack.c.l.b16 %v8477
        %v8577 = vunpack.c.l.b16 %v8481
        %v8578 = vunpack.c.l.b16 %v8484
        %v8579 = vunpack.c.l.b16 %v8488
        %v8580 = vunpack.c.l.b16 %v8491
        %v8581 = vunpack.c.l.b16 %v8495
        %v8582 = vunpack.c.l.b16 %v8498
        %v8583 = vunpack.c.l.b16 %v8502
        %v8584 = vunpack.c.l.b16 %v8505
        %v8585 = vunpack.c.l.b16 %v8509
        %v8586 = vunpack.c.l.b16 %v8512
        %v8587 = vunpack.c.l.b16 %v8516
        %v8588 = vunpack.c.l.b16 %v8519
        %v8589 = vunpack.c.l.b16 %v8523
        %v8590 = vunpack.c.l.b16 %v8526
        %v8591 = vunpack.c.l.b16 %v8530
        %v8592 = vunpack.c.l.b16 %v8533
        %v8593 = vunpack.c.l.b16 %v8537
        %v8594 = vunpack.c.l.b16 %v8540
        %v8595 = vunpack.c.l.b16 %v8544
        %v8596 = vunpack.c.l.b16 %v8547
        %v8597 = vpack.c.b16 %v8566, %v8565
        %v8598 = vpack.c.b16 %v8568, %v8567
        %v8599 = vpack.c.b16 %v8570, %v8569
        %v8600 = vpack.c.b16 %v8572, %v8571
        %v8601 = vpack.c.b16 %v8574, %v8573
        %v8602 = vpack.c.b16 %v8576, %v8575
        %v8603 = vpack.c.b16 %v8578, %v8577
        %v8604 = vpack.c.b16 %v8580, %v8579
        %v8605 = vpack.c.b16 %v8582, %v8581
        %v8606 = vpack.c.b16 %v8584, %v8583
        %v8607 = vpack.c.b16 %v8586, %v8585
        %v8608 = vpack.c.b16 %v8588, %v8587
        %v8609 = vpack.c.b16 %v8590, %v8589
        %v8610 = vpack.c.b16 %v8592, %v8591
        %v8611 = vpack.c.b16 %v8594, %v8593
        %v8612 = vpack.c.b16 %v8596, %v8595
        %v8645 = vunpack.c.l.b16 %v8549
        %v8646 = vunpack.c.l.b16 %v8550
        %v8647 = vunpack.c.l.b16 %v8551
        %v8648 = vunpack.c.l.b16 %v8552
        %v8649 = vunpack.c.l.b16 %v8553
        %v8650 = vunpack.c.l.b16 %v8554
        %v8651 = vunpack.c.l.b16 %v8555
        %v8652 = vunpack.c.l.b16 %v8556
        %v8653 = vunpack.c.l.b16 %v8557
        %v8654 = vunpack.c.l.b16 %v8558
        %v8655 = vunpack.c.l.b16 %v8559
        %v8656 = vunpack.c.l.b16 %v8560
        %v8657 = vunpack.c.l.b16 %v8561
        %v8658 = vunpack.c.l.b16 %v8562
        %v8659 = vunpack.c.l.b16 %v8563
        %v8660 = vunpack.c.l.b16 %v8564
        %v8661 = vpack.c.b16 %v8646, %v8645
        %v8662 = vpack.c.b16 %v8648, %v8647
        %v8663 = vpack.c.b16 %v8650, %v8649
        %v8664 = vpack.c.b16 %v8652, %v8651
        %v8665 = vpack.c.b16 %v8654, %v8653
        %v8666 = vpack.c.b16 %v8656, %v8655
        %v8667 = vpack.c.b16 %v8658, %v8657
        %v8668 = vpack.c.b16 %v8660, %v8659
        %8677 = vmatprep.subr.bf16.mxu0 0
        %8678 = vmatpush1.bf16.msra.mxu0 %v8661
        %8679 = vmatprep.subr.bf16.mxu0 0
        %8680 = vmatpush1.bf16.msra.mxu0 %v8662
        %8681 = vmatprep.subr.bf16.mxu0 0
        %8682 = vmatpush1.bf16.msra.mxu0 %v8663
        %8683 = vmatprep.subr.bf16.mxu0 0
        %8684 = vmatpush1.bf16.msra.mxu0 %v8664
        %8685 = vmatprep.subr.bf16.mxu0 0
        %8686 = vmatpush1.bf16.msra.mxu0 %v8665
        %8687 = vmatprep.subr.bf16.mxu0 0
        %8688 = vmatpush1.bf16.msra.mxu0 %v8666
        %8689 = vmatprep.subr.bf16.mxu0 0
        %8690 = vmatpush1.bf16.msra.mxu0 %v8667
        %8691 = vmatprep.subr.bf16.mxu0 0
        %8692 = vmatpush1.bf16.msra.mxu0 %v8668
        %8693 = vmatprep.subr.bf16.mxu0 0
        %8694 = vmatpush1.bf16.msra.mxu0 0
        %8695 = vmatprep.subr.bf16.mxu0 0
        %8696 = vmatpush1.bf16.msra.mxu0 0
        %8697 = vmatprep.subr.bf16.mxu0 0
        %8698 = vmatpush1.bf16.msra.mxu0 0
        %8699 = vmatprep.subr.bf16.mxu0 0
        %8700 = vmatpush1.bf16.msra.mxu0 0
        %8701 = vmatprep.subr.bf16.mxu0 0
        %8702 = vmatpush1.bf16.msra.mxu0 0
        %8703 = vmatprep.subr.bf16.mxu0 0
        %8704 = vmatpush1.bf16.msra.mxu0 0
        %8705 = vmatprep.subr.bf16.mxu0 0
        %8706 = vmatpush1.bf16.msra.mxu0 0
        %8707 = vmatprep.subr.bf16.mxu0 0
        %8708 = vmatpush1.bf16.msra.mxu0 0
        %8709 = vmatprep.mubr.bf16.mxu0 0
        %8710 = vmatmul.mubr.bf16.gmra.mrb[0].mxu0 %v8597
        %v8711 = vpop.f32.mrb[0].mxu0
        %v8712 = vadd.f32 0.0, %v8711
        %v8713 = vpop.f32.mrb[0].mxu0
        %v8714 = vpop.f32.mrb[0].mxu0
        %v8715 = vadd.f32 0.0, %v8714
        %v8716 = vpop.f32.mrb[0].mxu0
        %8717 = vmatprep.mubr.bf16.mxu0 0
        %8718 = vmatmul.mubr.bf16.gmra.mrb[0].mxu0 %v8598
        %v8719 = vpop.f32.mrb[0].mxu0
        %v8720 = vadd.f32 0.0, %v8719
        %v8721 = vpop.f32.mrb[0].mxu0
        %v8722 = vpop.f32.mrb[0].mxu0
        %v8723 = vadd.f32 0.0, %v8722
        %v8724 = vpop.f32.mrb[0].mxu0
        %8725 = vmatprep.mubr.bf16.mxu0 0
        %8726 = vmatmul.mubr.bf16.gmra.mrb[0].mxu0 %v8599
        %v8727 = vpop.f32.mrb[0].mxu0
        %v8728 = vadd.f32 0.0, %v8727
        %v8729 = vpop.f32.mrb[0].mxu0
        %v8730 = vpop.f32.mrb[0].mxu0
        %v8731 = vadd.f32 0.0, %v8730
        %v8732 = vpop.f32.mrb[0].mxu0
        %8733 = vmatprep.mubr.bf16.mxu0 0
        %8734 = vmatmul.mubr.bf16.gmra.mrb[0].mxu0 %v8600
        %v8735 = vpop.f32.mrb[0].mxu0
        %v8736 = vadd.f32 0.0, %v8735
        %v8737 = vpop.f32.mrb[0].mxu0
        %v8738 = vpop.f32.mrb[0].mxu0
        %v8739 = vadd.f32 0.0, %v8738
        %v8740 = vpop.f32.mrb[0].mxu0
        %8741 = vmatprep.mubr.bf16.mxu0 0
        %8742 = vmatmul.mubr.bf16.gmra.mrb[0].mxu0 %v8601
        %v8743 = vpop.f32.mrb[0].mxu0
        %v8744 = vadd.f32 0.0, %v8743
        %v8745 = vpop.f32.mrb[0].mxu0
        %v8746 = vpop.f32.mrb[0].mxu0
        %v8747 = vadd.f32 0.0, %v8746
        %v8748 = vpop.f32.mrb[0].mxu0
        %8749 = vmatprep.mubr.bf16.mxu0 0
        %8750 = vmatmul.mubr.bf16.gmra.mrb[0].mxu0 %v8602
        %v8751 = vpop.f32.mrb[0].mxu0
        %v8752 = vadd.f32 0.0, %v8751
        %v8753 = vpop.f32.mrb[0].mxu0
        %v8754 = vpop.f32.mrb[0].mxu0
        %v8755 = vadd.f32 0.0, %v8754
        %v8756 = vpop.f32.mrb[0].mxu0
        %8757 = vmatprep.mubr.bf16.mxu0 0
        %8758 = vmatmul.mubr.bf16.gmra.mrb[0].mxu0 %v8603
        %v8759 = vpop.f32.mrb[0].mxu0
        %v8760 = vadd.f32 0.0, %v8759
        %v8761 = vpop.f32.mrb[0].mxu0
        %v8762 = vpop.f32.mrb[0].mxu0
        %v8763 = vadd.f32 0.0, %v8762
        %v8764 = vpop.f32.mrb[0].mxu0
        %8765 = vmatprep.mubr.bf16.mxu0 0
        %8766 = vmatmul.mubr.bf16.gmra.mrb[0].mxu0 %v8604
        %v8767 = vpop.f32.mrb[0].mxu0
        %v8768 = vadd.f32 0.0, %v8767
        %v8769 = vpop.f32.mrb[0].mxu0
        %v8770 = vpop.f32.mrb[0].mxu0
        %v8771 = vadd.f32 0.0, %v8770
        %v8772 = vpop.f32.mrb[0].mxu0
        %8773 = vmatprep.mubr.bf16.mxu0 0
        %8774 = vmatmul.mubr.bf16.gmra.mrb[0].mxu0 %v8605
        %v8775 = vpop.f32.mrb[0].mxu0
        %v8776 = vadd.f32 0.0, %v8775
        %v8777 = vpop.f32.mrb[0].mxu0
        %v8778 = vpop.f32.mrb[0].mxu0
        %v8779 = vadd.f32 0.0, %v8778
        %v8780 = vpop.f32.mrb[0].mxu0
        %8781 = vmatprep.mubr.bf16.mxu0 0
        %8782 = vmatmul.mubr.bf16.gmra.mrb[0].mxu0 %v8606
        %v8783 = vpop.f32.mrb[0].mxu0
        %v8784 = vadd.f32 0.0, %v8783
        %v8785 = vpop.f32.mrb[0].mxu0
        %v8786 = vpop.f32.mrb[0].mxu0
        %v8787 = vadd.f32 0.0, %v8786
        %v8788 = vpop.f32.mrb[0].mxu0
        %8789 = vmatprep.mubr.bf16.mxu0 0
        %8790 = vmatmul.mubr.bf16.gmra.mrb[0].mxu0 %v8607
        %v8791 = vpop.f32.mrb[0].mxu0
        %v8792 = vadd.f32 0.0, %v8791
        %v8793 = vpop.f32.mrb[0].mxu0
        %v8794 = vpop.f32.mrb[0].mxu0
        %v8795 = vadd.f32 0.0, %v8794
        %v8796 = vpop.f32.mrb[0].mxu0
        %8797 = vmatprep.mubr.bf16.mxu0 0
        %8798 = vmatmul.mubr.bf16.gmra.mrb[0].mxu0 %v8608
        %v8799 = vpop.f32.mrb[0].mxu0
        %v8800 = vadd.f32 0.0, %v8799
        %v8801 = vpop.f32.mrb[0].mxu0
        %v8802 = vpop.f32.mrb[0].mxu0
        %v8803 = vadd.f32 0.0, %v8802
        %v8804 = vpop.f32.mrb[0].mxu0
        %8805 = vmatprep.mubr.bf16.mxu0 0
        %8806 = vmatmul.mubr.bf16.gmra.mrb[0].mxu0 %v8609
        %v8807 = vpop.f32.mrb[0].mxu0
        %v8808 = vadd.f32 0.0, %v8807
        %v8809 = vpop.f32.mrb[0].mxu0
        %v8810 = vpop.f32.mrb[0].mxu0
        %v8811 = vadd.f32 0.0, %v8810
        %v8812 = vpop.f32.mrb[0].mxu0
        %8813 = vmatprep.mubr.bf16.mxu0 0
        %8814 = vmatmul.mubr.bf16.gmra.mrb[0].mxu0 %v8610
        %v8815 = vpop.f32.mrb[0].mxu0
        %v8816 = vadd.f32 0.0, %v8815
        %v8817 = vpop.f32.mrb[0].mxu0
        %v8818 = vpop.f32.mrb[0].mxu0
        %v8819 = vadd.f32 0.0, %v8818
        %v8820 = vpop.f32.mrb[0].mxu0
        %8821 = vmatprep.mubr.bf16.mxu0 0
        %8822 = vmatmul.mubr.bf16.gmra.mrb[0].mxu0 %v8611
        %v8823 = vpop.f32.mrb[0].mxu0
        %v8824 = vadd.f32 0.0, %v8823
        %v8825 = vpop.f32.mrb[0].mxu0
        %v8826 = vpop.f32.mrb[0].mxu0
        %v8827 = vadd.f32 0.0, %v8826
        %v8828 = vpop.f32.mrb[0].mxu0
        %8829 = vmatprep.mubr.bf16.mxu0 0
        %8830 = vmatmul.mubr.bf16.gmra.mrb[0].mxu0 %v8612
        %v8831 = vpop.f32.mrb[0].mxu0
        %v8832 = vadd.f32 0.0, %v8831
        %v8833 = vpop.f32.mrb[0].mxu0
        %v8834 = vpop.f32.mrb[0].mxu0
        %v8835 = vadd.f32 0.0, %v8834
        %v8836 = vpop.f32.mrb[0].mxu0
        %8837 = vdwg.mxu0
        %v8838 = vadd.f32 %v8340, %v8712
        %v8839 = vadd.f32 %v8341, %v8715
        %v8840 = vadd.f32 %v8342, %v8720
        %v8841 = vadd.f32 %v8343, %v8723
        %v8842 = vadd.f32 %v8344, %v8728
        %v8843 = vadd.f32 %v8345, %v8731
        %v8844 = vadd.f32 %v8346, %v8736
        %v8845 = vadd.f32 %v8347, %v8739
        %v8846 = vadd.f32 %v8348, %v8744
        %v8847 = vadd.f32 %v8349, %v8747
        %v8848 = vadd.f32 %v8350, %v8752
        %v8849 = vadd.f32 %v8351, %v8755
        %v8850 = vadd.f32 %v8352, %v8760
        %v8851 = vadd.f32 %v8353, %v8763
        %v8852 = vadd.f32 %v8354, %v8768
        %v8853 = vadd.f32 %v8355, %v8771
        %v8854 = vadd.f32 %v8356, %v8776
        %v8855 = vadd.f32 %v8357, %v8779
        %v8856 = vadd.f32 %v8358, %v8784
        %v8857 = vadd.f32 %v8359, %v8787
        %v8858 = vadd.f32 %v8360, %v8792
        %v8859 = vadd.f32 %v8361, %v8795
        %v8860 = vadd.f32 %v8362, %v8800
        %v8861 = vadd.f32 %v8363, %v8803
        %v8862 = vadd.f32 %v8364, %v8808
        %v8863 = vadd.f32 %v8365, %v8811
        %v8864 = vadd.f32 %v8366, %v8816
        %v8865 = vadd.f32 %v8367, %v8819
        %v8866 = vadd.f32 %v8368, %v8824
        %v8867 = vadd.f32 %v8369, %v8827
        %v8868 = vadd.f32 %v8370, %v8832
        %v8869 = vadd.f32 %v8371, %v8835
        %s8870 = scalar_lea.vmem [#allocation2], 24
        %v8871 = vld [vmem:[%s8870] sm:$0xf]
        %v8872 = vld [vmem:[%s8870 + $0x4] sm:$0xf]
        %v8873 = vld [vmem:[%s8870 + $0xc] sm:$0xf]
        %v8874 = vld [vmem:[%s8870 + $0x10] sm:$0xf]
        %v8875 = vld [vmem:[%s8870 + $0x18] sm:$0xf]
        %v8876 = vld [vmem:[%s8870 + $0x1c] sm:$0xf]
        %v8877 = vld [vmem:[%s8870 + $0x24] sm:$0xf]
        %v8878 = vld [vmem:[%s8870 + $0x28] sm:$0xf]
        %v8879 = vld [vmem:[%s8870 + $0x30] sm:$0xf]
        %v8880 = vld [vmem:[%s8870 + $0x34] sm:$0xf]
        %v8881 = vld [vmem:[%s8870 + $0x3c] sm:$0xf]
        %v8882 = vld [vmem:[%s8870 + $0x40] sm:$0xf]
        %v8883 = vld [vmem:[%s8870 + $0x48] sm:$0xf]
        %v8884 = vld [vmem:[%s8870 + $0x4c] sm:$0xf]
        %v8885 = vld [vmem:[%s8870 + $0x54] sm:$0xf]
        %v8886 = vld [vmem:[%s8870 + $0x58] sm:$0xf]
        %v8887 = vld [vmem:[%s8870 + $0x60] sm:$0xf]
        %v8888 = vld [vmem:[%s8870 + $0x64] sm:$0xf]
        %v8889 = vld [vmem:[%s8870 + $0x6c] sm:$0xf]
        %v8890 = vld [vmem:[%s8870 + $0x70] sm:$0xf]
        %v8891 = vld [vmem:[%s8870 + $0x78] sm:$0xf]
        %v8892 = vld [vmem:[%s8870 + $0x7c] sm:$0xf]
        %v8893 = vld [vmem:[%s8870 + $0x84] sm:$0xf]
        %v8894 = vld [vmem:[%s8870 + $0x88] sm:$0xf]
        %v8895 = vld [vmem:[%s8870 + $0x90] sm:$0xf]
        %v8896 = vld [vmem:[%s8870 + $0x94] sm:$0xf]
        %v8897 = vld [vmem:[%s8870 + $0x9c] sm:$0xf]
        %v8898 = vld [vmem:[%s8870 + $0xa0] sm:$0xf]
        %v8899 = vld [vmem:[%s8870 + $0xa8] sm:$0xf]
        %v8900 = vld [vmem:[%s8870 + $0xac] sm:$0xf]
        %v8901 = vld [vmem:[%s8870 + $0xb4] sm:$0xf]
        %v8902 = vld [vmem:[%s8870 + $0xb8] sm:$0xf]
        %s8903 = scalar_lea.vmem [#allocation4], 384
        %v8904 = vld [vmem:[%s8903] sm:$0xf]
        %v8905 = vld [vmem:[%s8903 + $0x4] sm:$0xf]
        %v8906 = vld [vmem:[%s8903 + $0x8] sm:$0xf]
        %v8907 = vld [vmem:[%s8903 + $0xc] sm:$0xf]
        %v8908 = vld [vmem:[%s8903 + $0x10] sm:$0xf]
        %v8909 = vld [vmem:[%s8903 + $0x14] sm:$0xf]
        %v8910 = vld [vmem:[%s8903 + $0x18] sm:$0xf]
        %v8911 = vld [vmem:[%s8903 + $0x1c] sm:$0xf]
        %v8912 = vld [vmem:[%s8903 + $0x20] sm:$0xf]
        %v8913 = vld [vmem:[%s8903 + $0x24] sm:$0xf]
        %v8914 = vld [vmem:[%s8903 + $0x28] sm:$0xf]
        %v8915 = vld [vmem:[%s8903 + $0x2c] sm:$0xf]
        %v8916 = vld [vmem:[%s8903 + $0x30] sm:$0xf]
        %v8917 = vld [vmem:[%s8903 + $0x34] sm:$0xf]
        %v8918 = vld [vmem:[%s8903 + $0x38] sm:$0xf]
        %v8919 = vld [vmem:[%s8903 + $0x3c] sm:$0xf]
        %v8952 = vunpack.c.l.b16 %v8871
        %v8953 = vunpack.c.l.b16 %v8872
        %v8954 = vunpack.c.l.b16 %v8873
        %v8955 = vunpack.c.l.b16 %v8874
        %v8956 = vunpack.c.l.b16 %v8875
        %v8957 = vunpack.c.l.b16 %v8876
        %v8958 = vunpack.c.l.b16 %v8877
        %v8959 = vunpack.c.l.b16 %v8878
        %v8960 = vunpack.c.l.b16 %v8879
        %v8961 = vunpack.c.l.b16 %v8880
        %v8962 = vunpack.c.l.b16 %v8881
        %v8963 = vunpack.c.l.b16 %v8882
        %v8964 = vunpack.c.l.b16 %v8883
        %v8965 = vunpack.c.l.b16 %v8884
        %v8966 = vunpack.c.l.b16 %v8885
        %v8967 = vunpack.c.l.b16 %v8886
        %v8968 = vunpack.c.l.b16 %v8887
        %v8969 = vunpack.c.l.b16 %v8888
        %v8970 = vunpack.c.l.b16 %v8889
        %v8971 = vunpack.c.l.b16 %v8890
        %v8972 = vunpack.c.l.b16 %v8891
        %v8973 = vunpack.c.l.b16 %v8892
        %v8974 = vunpack.c.l.b16 %v8893
        %v8975 = vunpack.c.l.b16 %v8894
        %v8976 = vunpack.c.l.b16 %v8895
        %v8977 = vunpack.c.l.b16 %v8896
        %v8978 = vunpack.c.l.b16 %v8897
        %v8979 = vunpack.c.l.b16 %v8898
        %v8980 = vunpack.c.l.b16 %v8899
        %v8981 = vunpack.c.l.b16 %v8900
        %v8982 = vunpack.c.l.b16 %v8901
        %v8983 = vunpack.c.l.b16 %v8902
        %v8984 = vpack.c.b16 %v8953, %v8952
        %v8985 = vpack.c.b16 %v8955, %v8954
        %v8986 = vpack.c.b16 %v8957, %v8956
        %v8987 = vpack.c.b16 %v8959, %v8958
        %v8988 = vpack.c.b16 %v8961, %v8960
        %v8989 = vpack.c.b16 %v8963, %v8962
        %v8990 = vpack.c.b16 %v8965, %v8964
        %v8991 = vpack.c.b16 %v8967, %v8966
        %v8992 = vpack.c.b16 %v8969, %v8968
        %v8993 = vpack.c.b16 %v8971, %v8970
        %v8994 = vpack.c.b16 %v8973, %v8972
        %v8995 = vpack.c.b16 %v8975, %v8974
        %v8996 = vpack.c.b16 %v8977, %v8976
        %v8997 = vpack.c.b16 %v8979, %v8978
        %v8998 = vpack.c.b16 %v8981, %v8980
        %v8999 = vpack.c.b16 %v8983, %v8982
        %v9032 = vunpack.c.l.b16 %v8904
        %v9033 = vunpack.c.l.b16 %v8905
        %v9034 = vunpack.c.l.b16 %v8906
        %v9035 = vunpack.c.l.b16 %v8907
        %v9036 = vunpack.c.l.b16 %v8908
        %v9037 = vunpack.c.l.b16 %v8909
        %v9038 = vunpack.c.l.b16 %v8910
        %v9039 = vunpack.c.l.b16 %v8911
        %v9040 = vunpack.c.l.b16 %v8912
        %v9041 = vunpack.c.l.b16 %v8913
        %v9042 = vunpack.c.l.b16 %v8914
        %v9043 = vunpack.c.l.b16 %v8915
        %v9044 = vunpack.c.l.b16 %v8916
        %v9045 = vunpack.c.l.b16 %v8917
        %v9046 = vunpack.c.l.b16 %v8918
        %v9047 = vunpack.c.l.b16 %v8919
        %v9048 = vpack.c.b16 %v9033, %v9032
        %v9049 = vpack.c.b16 %v9035, %v9034
        %v9050 = vpack.c.b16 %v9037, %v9036
        %v9051 = vpack.c.b16 %v9039, %v9038
        %v9052 = vpack.c.b16 %v9041, %v9040
        %v9053 = vpack.c.b16 %v9043, %v9042
        %v9054 = vpack.c.b16 %v9045, %v9044
        %v9055 = vpack.c.b16 %v9047, %v9046
        %9064 = vmatprep.subr.bf16.mxu0 0
        %9065 = vmatpush1.bf16.msra.mxu0 %v9048
        %9066 = vmatprep.subr.bf16.mxu0 0
        %9067 = vmatpush1.bf16.msra.mxu0 %v9049
        %9068 = vmatprep.subr.bf16.mxu0 0
        %9069 = vmatpush1.bf16.msra.mxu0 %v9050
        %9070 = vmatprep.subr.bf16.mxu0 0
        %9071 = vmatpush1.bf16.msra.mxu0 %v9051
        %9072 = vmatprep.subr.bf16.mxu0 0
        %9073 = vmatpush1.bf16.msra.mxu0 %v9052
        %9074 = vmatprep.subr.bf16.mxu0 0
        %9075 = vmatpush1.bf16.msra.mxu0 %v9053
        %9076 = vmatprep.subr.bf16.mxu0 0
        %9077 = vmatpush1.bf16.msra.mxu0 %v9054
        %9078 = vmatprep.subr.bf16.mxu0 0
        %9079 = vmatpush1.bf16.msra.mxu0 %v9055
        %9080 = vmatprep.subr.bf16.mxu0 0
        %9081 = vmatpush1.bf16.msra.mxu0 0
        %9082 = vmatprep.subr.bf16.mxu0 0
        %9083 = vmatpush1.bf16.msra.mxu0 0
        %9084 = vmatprep.subr.bf16.mxu0 0
        %9085 = vmatpush1.bf16.msra.mxu0 0
        %9086 = vmatprep.subr.bf16.mxu0 0
        %9087 = vmatpush1.bf16.msra.mxu0 0
        %9088 = vmatprep.subr.bf16.mxu0 0
        %9089 = vmatpush1.bf16.msra.mxu0 0
        %9090 = vmatprep.subr.bf16.mxu0 0
        %9091 = vmatpush1.bf16.msra.mxu0 0
        %9092 = vmatprep.subr.bf16.mxu0 0
        %9093 = vmatpush1.bf16.msra.mxu0 0
        %9094 = vmatprep.subr.bf16.mxu0 0
        %9095 = vmatpush1.bf16.msra.mxu0 0
        %9096 = vmatprep.mubr.bf16.mxu0 0
        %9097 = vmatmul.mubr.bf16.gmra.mrb[0].mxu0 %v8984
        %v9098 = vpop.f32.mrb[0].mxu0
        %v9099 = vadd.f32 0.0, %v9098
        %v9100 = vpop.f32.mrb[0].mxu0
        %v9101 = vpop.f32.mrb[0].mxu0
        %v9102 = vadd.f32 0.0, %v9101
        %v9103 = vpop.f32.mrb[0].mxu0
        %9104 = vmatprep.mubr.bf16.mxu0 0
        %9105 = vmatmul.mubr.bf16.gmra.mrb[0].mxu0 %v8985
        %v9106 = vpop.f32.mrb[0].mxu0
        %v9107 = vadd.f32 0.0, %v9106
        %v9108 = vpop.f32.mrb[0].mxu0
        %v9109 = vpop.f32.mrb[0].mxu0
        %v9110 = vadd.f32 0.0, %v9109
        %v9111 = vpop.f32.mrb[0].mxu0
        %9112 = vmatprep.mubr.bf16.mxu0 0
        %9113 = vmatmul.mubr.bf16.gmra.mrb[0].mxu0 %v8986
        %v9114 = vpop.f32.mrb[0].mxu0
        %v9115 = vadd.f32 0.0, %v9114
        %v9116 = vpop.f32.mrb[0].mxu0
        %v9117 = vpop.f32.mrb[0].mxu0
        %v9118 = vadd.f32 0.0, %v9117
        %v9119 = vpop.f32.mrb[0].mxu0
        %9120 = vmatprep.mubr.bf16.mxu0 0
        %9121 = vmatmul.mubr.bf16.gmra.mrb[0].mxu0 %v8987
        %v9122 = vpop.f32.mrb[0].mxu0
        %v9123 = vadd.f32 0.0, %v9122
        %v9124 = vpop.f32.mrb[0].mxu0
        %v9125 = vpop.f32.mrb[0].mxu0
        %v9126 = vadd.f32 0.0, %v9125
        %v9127 = vpop.f32.mrb[0].mxu0
        %9128 = vmatprep.mubr.bf16.mxu0 0
        %9129 = vmatmul.mubr.bf16.gmra.mrb[0].mxu0 %v8988
        %v9130 = vpop.f32.mrb[0].mxu0
        %v9131 = vadd.f32 0.0, %v9130
        %v9132 = vpop.f32.mrb[0].mxu0
        %v9133 = vpop.f32.mrb[0].mxu0
        %v9134 = vadd.f32 0.0, %v9133
        %v9135 = vpop.f32.mrb[0].mxu0
        %9136 = vmatprep.mubr.bf16.mxu0 0
        %9137 = vmatmul.mubr.bf16.gmra.mrb[0].mxu0 %v8989
        %v9138 = vpop.f32.mrb[0].mxu0
        %v9139 = vadd.f32 0.0, %v9138
        %v9140 = vpop.f32.mrb[0].mxu0
        %v9141 = vpop.f32.mrb[0].mxu0
        %v9142 = vadd.f32 0.0, %v9141
        %v9143 = vpop.f32.mrb[0].mxu0
        %9144 = vmatprep.mubr.bf16.mxu0 0
        %9145 = vmatmul.mubr.bf16.gmra.mrb[0].mxu0 %v8990
        %v9146 = vpop.f32.mrb[0].mxu0
        %v9147 = vadd.f32 0.0, %v9146
        %v9148 = vpop.f32.mrb[0].mxu0
        %v9149 = vpop.f32.mrb[0].mxu0
        %v9150 = vadd.f32 0.0, %v9149
        %v9151 = vpop.f32.mrb[0].mxu0
        %9152 = vmatprep.mubr.bf16.mxu0 0
        %9153 = vmatmul.mubr.bf16.gmra.mrb[0].mxu0 %v8991
        %v9154 = vpop.f32.mrb[0].mxu0
        %v9155 = vadd.f32 0.0, %v9154
        %v9156 = vpop.f32.mrb[0].mxu0
        %v9157 = vpop.f32.mrb[0].mxu0
        %v9158 = vadd.f32 0.0, %v9157
        %v9159 = vpop.f32.mrb[0].mxu0
        %9160 = vmatprep.mubr.bf16.mxu0 0
        %9161 = vmatmul.mubr.bf16.gmra.mrb[0].mxu0 %v8992
        %v9162 = vpop.f32.mrb[0].mxu0
        %v9163 = vadd.f32 0.0, %v9162
        %v9164 = vpop.f32.mrb[0].mxu0
        %v9165 = vpop.f32.mrb[0].mxu0
        %v9166 = vadd.f32 0.0, %v9165
        %v9167 = vpop.f32.mrb[0].mxu0
        %9168 = vmatprep.mubr.bf16.mxu0 0
        %9169 = vmatmul.mubr.bf16.gmra.mrb[0].mxu0 %v8993
        %v9170 = vpop.f32.mrb[0].mxu0
        %v9171 = vadd.f32 0.0, %v9170
        %v9172 = vpop.f32.mrb[0].mxu0
        %v9173 = vpop.f32.mrb[0].mxu0
        %v9174 = vadd.f32 0.0, %v9173
        %v9175 = vpop.f32.mrb[0].mxu0
        %9176 = vmatprep.mubr.bf16.mxu0 0
        %9177 = vmatmul.mubr.bf16.gmra.mrb[0].mxu0 %v8994
        %v9178 = vpop.f32.mrb[0].mxu0
        %v9179 = vadd.f32 0.0, %v9178
        %v9180 = vpop.f32.mrb[0].mxu0
        %v9181 = vpop.f32.mrb[0].mxu0
        %v9182 = vadd.f32 0.0, %v9181
        %v9183 = vpop.f32.mrb[0].mxu0
        %9184 = vmatprep.mubr.bf16.mxu0 0
        %9185 = vmatmul.mubr.bf16.gmra.mrb[0].mxu0 %v8995
        %v9186 = vpop.f32.mrb[0].mxu0
        %v9187 = vadd.f32 0.0, %v9186
        %v9188 = vpop.f32.mrb[0].mxu0
        %v9189 = vpop.f32.mrb[0].mxu0
        %v9190 = vadd.f32 0.0, %v9189
        %v9191 = vpop.f32.mrb[0].mxu0
        %9192 = vmatprep.mubr.bf16.mxu0 0
        %9193 = vmatmul.mubr.bf16.gmra.mrb[0].mxu0 %v8996
        %v9194 = vpop.f32.mrb[0].mxu0
        %v9195 = vadd.f32 0.0, %v9194
        %v9196 = vpop.f32.mrb[0].mxu0
        %v9197 = vpop.f32.mrb[0].mxu0
        %v9198 = vadd.f32 0.0, %v9197
        %v9199 = vpop.f32.mrb[0].mxu0
        %9200 = vmatprep.mubr.bf16.mxu0 0
        %9201 = vmatmul.mubr.bf16.gmra.mrb[0].mxu0 %v8997
        %v9202 = vpop.f32.mrb[0].mxu0
        %v9203 = vadd.f32 0.0, %v9202
        %v9204 = vpop.f32.mrb[0].mxu0
        %v9205 = vpop.f32.mrb[0].mxu0
        %v9206 = vadd.f32 0.0, %v9205
        %v9207 = vpop.f32.mrb[0].mxu0
        %9208 = vmatprep.mubr.bf16.mxu0 0
        %9209 = vmatmul.mubr.bf16.gmra.mrb[0].mxu0 %v8998
        %v9210 = vpop.f32.mrb[0].mxu0
        %v9211 = vadd.f32 0.0, %v9210
        %v9212 = vpop.f32.mrb[0].mxu0
        %v9213 = vpop.f32.mrb[0].mxu0
        %v9214 = vadd.f32 0.0, %v9213
        %v9215 = vpop.f32.mrb[0].mxu0
        %9216 = vmatprep.mubr.bf16.mxu0 0
        %9217 = vmatmul.mubr.bf16.gmra.mrb[0].mxu0 %v8999
        %v9218 = vpop.f32.mrb[0].mxu0
        %v9219 = vadd.f32 0.0, %v9218
        %v9220 = vpop.f32.mrb[0].mxu0
        %v9221 = vpop.f32.mrb[0].mxu0
        %v9222 = vadd.f32 0.0, %v9221
        %v9223 = vpop.f32.mrb[0].mxu0
        %9224 = vdwg.mxu0
        %v9225 = vadd.f32 %v8838, %v9099
        %v9226 = vadd.f32 %v8839, %v9102
        %v9227 = vadd.f32 %v8840, %v9107
        %v9228 = vadd.f32 %v8841, %v9110
        %v9229 = vadd.f32 %v8842, %v9115
        %v9230 = vadd.f32 %v8843, %v9118
        %v9231 = vadd.f32 %v8844, %v9123
        %v9232 = vadd.f32 %v8845, %v9126
        %v9233 = vadd.f32 %v8846, %v9131
        %v9234 = vadd.f32 %v8847, %v9134
        %v9235 = vadd.f32 %v8848, %v9139
        %v9236 = vadd.f32 %v8849, %v9142
        %v9237 = vadd.f32 %v8850, %v9147
        %v9238 = vadd.f32 %v8851, %v9150
        %v9239 = vadd.f32 %v8852, %v9155
        %v9240 = vadd.f32 %v8853, %v9158
        %v9241 = vadd.f32 %v8854, %v9163
        %v9242 = vadd.f32 %v8855, %v9166
        %v9243 = vadd.f32 %v8856, %v9171
        %v9244 = vadd.f32 %v8857, %v9174
        %v9245 = vadd.f32 %v8858, %v9179
        %v9246 = vadd.f32 %v8859, %v9182
        %v9247 = vadd.f32 %v8860, %v9187
        %v9248 = vadd.f32 %v8861, %v9190
        %v9249 = vadd.f32 %v8862, %v9195
        %v9250 = vadd.f32 %v8863, %v9198
        %v9251 = vadd.f32 %v8864, %v9203
        %v9252 = vadd.f32 %v8865, %v9206
        %v9253 = vadd.f32 %v8866, %v9211
        %v9254 = vadd.f32 %v8867, %v9214
        %v9255 = vadd.f32 %v8868, %v9219
        %v9256 = vadd.f32 %v8869, %v9222
        %v9257 = vld [vmem:[%s8870] sm:$0xf]
        %v9258 = vld [vmem:[%s8870 + $0x4] sm:$0xf]
        %v9259 = vld [vmem:[%s8870 + $0x8] sm:$0x1]
        %v9260 = vld [vmem:[%s8870 + $0xc] sm:$0xf]
        %v9261 = vld [vmem:[%s8870 + $0x10] sm:$0xf]
        %v9262 = vld [vmem:[%s8870 + $0x14] sm:$0x1]
        %v9263 = vld [vmem:[%s8870 + $0x18] sm:$0xf]
        %v9264 = vld [vmem:[%s8870 + $0x1c] sm:$0xf]
        %v9265 = vld [vmem:[%s8870 + $0x20] sm:$0x1]
        %v9266 = vld [vmem:[%s8870 + $0x24] sm:$0xf]
        %v9267 = vld [vmem:[%s8870 + $0x28] sm:$0xf]
        %v9268 = vld [vmem:[%s8870 + $0x2c] sm:$0x1]
        %v9269 = vld [vmem:[%s8870 + $0x30] sm:$0xf]
        %v9270 = vld [vmem:[%s8870 + $0x34] sm:$0xf]
        %v9271 = vld [vmem:[%s8870 + $0x38] sm:$0x1]
        %v9272 = vld [vmem:[%s8870 + $0x3c] sm:$0xf]
        %v9273 = vld [vmem:[%s8870 + $0x40] sm:$0xf]
        %v9274 = vld [vmem:[%s8870 + $0x44] sm:$0x1]
        %v9275 = vld [vmem:[%s8870 + $0x48] sm:$0xf]
        %v9276 = vld [vmem:[%s8870 + $0x4c] sm:$0xf]
        %v9277 = vld [vmem:[%s8870 + $0x50] sm:$0x1]
        %v9278 = vld [vmem:[%s8870 + $0x54] sm:$0xf]
        %v9279 = vld [vmem:[%s8870 + $0x58] sm:$0xf]
        %v9280 = vld [vmem:[%s8870 + $0x5c] sm:$0x1]
        %v9281 = vld [vmem:[%s8870 + $0x60] sm:$0xf]
        %v9282 = vld [vmem:[%s8870 + $0x64] sm:$0xf]
        %v9283 = vld [vmem:[%s8870 + $0x68] sm:$0x1]
        %v9284 = vld [vmem:[%s8870 + $0x6c] sm:$0xf]
        %v9285 = vld [vmem:[%s8870 + $0x70] sm:$0xf]
        %v9286 = vld [vmem:[%s8870 + $0x74] sm:$0x1]
        %v9287 = vld [vmem:[%s8870 + $0x78] sm:$0xf]
        %v9288 = vld [vmem:[%s8870 + $0x7c] sm:$0xf]
        %v9289 = vld [vmem:[%s8870 + $0x80] sm:$0x1]
        %v9290 = vld [vmem:[%s8870 + $0x84] sm:$0xf]
        %v9291 = vld [vmem:[%s8870 + $0x88] sm:$0xf]
        %v9292 = vld [vmem:[%s8870 + $0x8c] sm:$0x1]
        %v9293 = vld [vmem:[%s8870 + $0x90] sm:$0xf]
        %v9294 = vld [vmem:[%s8870 + $0x94] sm:$0xf]
        %v9295 = vld [vmem:[%s8870 + $0x98] sm:$0x1]
        %v9296 = vld [vmem:[%s8870 + $0x9c] sm:$0xf]
        %v9297 = vld [vmem:[%s8870 + $0xa0] sm:$0xf]
        %v9298 = vld [vmem:[%s8870 + $0xa4] sm:$0x1]
        %v9299 = vld [vmem:[%s8870 + $0xa8] sm:$0xf]
        %v9300 = vld [vmem:[%s8870 + $0xac] sm:$0xf]
        %v9301 = vld [vmem:[%s8870 + $0xb0] sm:$0x1]
        %v9302 = vld [vmem:[%s8870 + $0xb4] sm:$0xf]
        %v9303 = vld [vmem:[%s8870 + $0xb8] sm:$0xf]
        %v9304 = vld [vmem:[%s8870 + $0xbc] sm:$0x1]
        %v9306 = vshrl.u32 %v9257, 16
        %v9308 = vrot.slane %v9306, 4
        %v9309 = vshll.u32 %v9257, 16
        %v9311 = vrot.slane %v9309, 5
        %v9312 = vor.u32 %v9308, %v9311
        %v9313 = vrot.slane %v9312, 4
        %v9315 = vshll.u32 %v9258, 16
        %v9317 = vrot.slane %v9315, 5
        %v9318 = vsel %vm292, %v9313, %v9317
        %v9319 = vshrl.u32 %v9258, 16
        %v9321 = vrot.slane %v9319, 4
        %v9322 = vor.u32 %v9321, %v9317
        %v9323 = vrot.slane %v9322, 4
        %v9325 = vshll.u32 %v9259, 16
        %v9327 = vrot.slane %v9325, 5
        %v9328 = vsel %vm292, %v9323, %v9327
        %v9330 = vshrl.u32 %v9260, 16
        %v9332 = vrot.slane %v9330, 4
        %v9333 = vshll.u32 %v9260, 16
        %v9335 = vrot.slane %v9333, 5
        %v9336 = vor.u32 %v9332, %v9335
        %v9337 = vrot.slane %v9336, 4
        %v9339 = vshll.u32 %v9261, 16
        %v9341 = vrot.slane %v9339, 5
        %v9342 = vsel %vm292, %v9337, %v9341
        %v9343 = vshrl.u32 %v9261, 16
        %v9345 = vrot.slane %v9343, 4
        %v9346 = vor.u32 %v9345, %v9341
        %v9347 = vrot.slane %v9346, 4
        %v9349 = vshll.u32 %v9262, 16
        %v9351 = vrot.slane %v9349, 5
        %v9352 = vsel %vm292, %v9347, %v9351
        %v9354 = vshrl.u32 %v9263, 16
        %v9356 = vrot.slane %v9354, 4
        %v9357 = vshll.u32 %v9263, 16
        %v9359 = vrot.slane %v9357, 5
        %v9360 = vor.u32 %v9356, %v9359
        %v9361 = vrot.slane %v9360, 4
        %v9363 = vshll.u32 %v9264, 16
        %v9365 = vrot.slane %v9363, 5
        %v9366 = vsel %vm292, %v9361, %v9365
        %v9367 = vshrl.u32 %v9264, 16
        %v9369 = vrot.slane %v9367, 4
        %v9370 = vor.u32 %v9369, %v9365
        %v9371 = vrot.slane %v9370, 4
        %v9373 = vshll.u32 %v9265, 16
        %v9375 = vrot.slane %v9373, 5
        %v9376 = vsel %vm292, %v9371, %v9375
        %v9378 = vshrl.u32 %v9266, 16
        %v9380 = vrot.slane %v9378, 4
        %v9381 = vshll.u32 %v9266, 16
        %v9383 = vrot.slane %v9381, 5
        %v9384 = vor.u32 %v9380, %v9383
        %v9385 = vrot.slane %v9384, 4
        %v9387 = vshll.u32 %v9267, 16
        %v9389 = vrot.slane %v9387, 5
        %v9390 = vsel %vm292, %v9385, %v9389
        %v9391 = vshrl.u32 %v9267, 16
        %v9393 = vrot.slane %v9391, 4
        %v9394 = vor.u32 %v9393, %v9389
        %v9395 = vrot.slane %v9394, 4
        %v9397 = vshll.u32 %v9268, 16
        %v9399 = vrot.slane %v9397, 5
        %v9400 = vsel %vm292, %v9395, %v9399
        %v9402 = vshrl.u32 %v9269, 16
        %v9404 = vrot.slane %v9402, 4
        %v9405 = vshll.u32 %v9269, 16
        %v9407 = vrot.slane %v9405, 5
        %v9408 = vor.u32 %v9404, %v9407
        %v9409 = vrot.slane %v9408, 4
        %v9411 = vshll.u32 %v9270, 16
        %v9413 = vrot.slane %v9411, 5
        %v9414 = vsel %vm292, %v9409, %v9413
        %v9415 = vshrl.u32 %v9270, 16
        %v9417 = vrot.slane %v9415, 4
        %v9418 = vor.u32 %v9417, %v9413
        %v9419 = vrot.slane %v9418, 4
        %v9421 = vshll.u32 %v9271, 16
        %v9423 = vrot.slane %v9421, 5
        %v9424 = vsel %vm292, %v9419, %v9423
        %v9426 = vshrl.u32 %v9272, 16
        %v9428 = vrot.slane %v9426, 4
        %v9429 = vshll.u32 %v9272, 16
        %v9431 = vrot.slane %v9429, 5
        %v9432 = vor.u32 %v9428, %v9431
        %v9433 = vrot.slane %v9432, 4
        %v9435 = vshll.u32 %v9273, 16
        %v9437 = vrot.slane %v9435, 5
        %v9438 = vsel %vm292, %v9433, %v9437
        %v9439 = vshrl.u32 %v9273, 16
        %v9441 = vrot.slane %v9439, 4
        %v9442 = vor.u32 %v9441, %v9437
        %v9443 = vrot.slane %v9442, 4
        %v9445 = vshll.u32 %v9274, 16
        %v9447 = vrot.slane %v9445, 5
        %v9448 = vsel %vm292, %v9443, %v9447
        %v9450 = vshrl.u32 %v9275, 16
        %v9452 = vrot.slane %v9450, 4
        %v9453 = vshll.u32 %v9275, 16
        %v9455 = vrot.slane %v9453, 5
        %v9456 = vor.u32 %v9452, %v9455
        %v9457 = vrot.slane %v9456, 4
        %v9459 = vshll.u32 %v9276, 16
        %v9461 = vrot.slane %v9459, 5
        %v9462 = vsel %vm292, %v9457, %v9461
        %v9463 = vshrl.u32 %v9276, 16
        %v9465 = vrot.slane %v9463, 4
        %v9466 = vor.u32 %v9465, %v9461
        %v9467 = vrot.slane %v9466, 4
        %v9469 = vshll.u32 %v9277, 16
        %v9471 = vrot.slane %v9469, 5
        %v9472 = vsel %vm292, %v9467, %v9471
        %v9474 = vshrl.u32 %v9278, 16
        %v9476 = vrot.slane %v9474, 4
        %v9477 = vshll.u32 %v9278, 16
        %v9479 = vrot.slane %v9477, 5
        %v9480 = vor.u32 %v9476, %v9479
        %v9481 = vrot.slane %v9480, 4
        %v9483 = vshll.u32 %v9279, 16
        %v9485 = vrot.slane %v9483, 5
        %v9486 = vsel %vm292, %v9481, %v9485
        %v9487 = vshrl.u32 %v9279, 16
        %v9489 = vrot.slane %v9487, 4
        %v9490 = vor.u32 %v9489, %v9485
        %v9491 = vrot.slane %v9490, 4
        %v9493 = vshll.u32 %v9280, 16
        %v9495 = vrot.slane %v9493, 5
        %v9496 = vsel %vm292, %v9491, %v9495
        %v9498 = vshrl.u32 %v9281, 16
        %v9500 = vrot.slane %v9498, 4
        %v9501 = vshll.u32 %v9281, 16
        %v9503 = vrot.slane %v9501, 5
        %v9504 = vor.u32 %v9500, %v9503
        %v9505 = vrot.slane %v9504, 4
        %v9507 = vshll.u32 %v9282, 16
        %v9509 = vrot.slane %v9507, 5
        %v9510 = vsel %vm292, %v9505, %v9509
        %v9511 = vshrl.u32 %v9282, 16
        %v9513 = vrot.slane %v9511, 4
        %v9514 = vor.u32 %v9513, %v9509
        %v9515 = vrot.slane %v9514, 4
        %v9517 = vshll.u32 %v9283, 16
        %v9519 = vrot.slane %v9517, 5
        %v9520 = vsel %vm292, %v9515, %v9519
        %v9522 = vshrl.u32 %v9284, 16
        %v9524 = vrot.slane %v9522, 4
        %v9525 = vshll.u32 %v9284, 16
        %v9527 = vrot.slane %v9525, 5
        %v9528 = vor.u32 %v9524, %v9527
        %v9529 = vrot.slane %v9528, 4
        %v9531 = vshll.u32 %v9285, 16
        %v9533 = vrot.slane %v9531, 5
        %v9534 = vsel %vm292, %v9529, %v9533
        %v9535 = vshrl.u32 %v9285, 16
        %v9537 = vrot.slane %v9535, 4
        %v9538 = vor.u32 %v9537, %v9533
        %v9539 = vrot.slane %v9538, 4
        %v9541 = vshll.u32 %v9286, 16
        %v9543 = vrot.slane %v9541, 5
        %v9544 = vsel %vm292, %v9539, %v9543
        %v9546 = vshrl.u32 %v9287, 16
        %v9548 = vrot.slane %v9546, 4
        %v9549 = vshll.u32 %v9287, 16
        %v9551 = vrot.slane %v9549, 5
        %v9552 = vor.u32 %v9548, %v9551
        %v9553 = vrot.slane %v9552, 4
        %v9555 = vshll.u32 %v9288, 16
        %v9557 = vrot.slane %v9555, 5
        %v9558 = vsel %vm292, %v9553, %v9557
        %v9559 = vshrl.u32 %v9288, 16
        %v9561 = vrot.slane %v9559, 4
        %v9562 = vor.u32 %v9561, %v9557
        %v9563 = vrot.slane %v9562, 4
        %v9565 = vshll.u32 %v9289, 16
        %v9567 = vrot.slane %v9565, 5
        %v9568 = vsel %vm292, %v9563, %v9567
        %v9570 = vshrl.u32 %v9290, 16
        %v9572 = vrot.slane %v9570, 4
        %v9573 = vshll.u32 %v9290, 16
        %v9575 = vrot.slane %v9573, 5
        %v9576 = vor.u32 %v9572, %v9575
        %v9577 = vrot.slane %v9576, 4
        %v9579 = vshll.u32 %v9291, 16
        %v9581 = vrot.slane %v9579, 5
        %v9582 = vsel %vm292, %v9577, %v9581
        %v9583 = vshrl.u32 %v9291, 16
        %v9585 = vrot.slane %v9583, 4
        %v9586 = vor.u32 %v9585, %v9581
        %v9587 = vrot.slane %v9586, 4
        %v9589 = vshll.u32 %v9292, 16
        %v9591 = vrot.slane %v9589, 5
        %v9592 = vsel %vm292, %v9587, %v9591
        %v9594 = vshrl.u32 %v9293, 16
        %v9596 = vrot.slane %v9594, 4
        %v9597 = vshll.u32 %v9293, 16
        %v9599 = vrot.slane %v9597, 5
        %v9600 = vor.u32 %v9596, %v9599
        %v9601 = vrot.slane %v9600, 4
        %v9603 = vshll.u32 %v9294, 16
        %v9605 = vrot.slane %v9603, 5
        %v9606 = vsel %vm292, %v9601, %v9605
        %v9607 = vshrl.u32 %v9294, 16
        %v9609 = vrot.slane %v9607, 4
        %v9610 = vor.u32 %v9609, %v9605
        %v9611 = vrot.slane %v9610, 4
        %v9613 = vshll.u32 %v9295, 16
        %v9615 = vrot.slane %v9613, 5
        %v9616 = vsel %vm292, %v9611, %v9615
        %v9618 = vshrl.u32 %v9296, 16
        %v9620 = vrot.slane %v9618, 4
        %v9621 = vshll.u32 %v9296, 16
        %v9623 = vrot.slane %v9621, 5
        %v9624 = vor.u32 %v9620, %v9623
        %v9625 = vrot.slane %v9624, 4
        %v9627 = vshll.u32 %v9297, 16
        %v9629 = vrot.slane %v9627, 5
        %v9630 = vsel %vm292, %v9625, %v9629
        %v9631 = vshrl.u32 %v9297, 16
        %v9633 = vrot.slane %v9631, 4
        %v9634 = vor.u32 %v9633, %v9629
        %v9635 = vrot.slane %v9634, 4
        %v9637 = vshll.u32 %v9298, 16
        %v9639 = vrot.slane %v9637, 5
        %v9640 = vsel %vm292, %v9635, %v9639
        %v9642 = vshrl.u32 %v9299, 16
        %v9644 = vrot.slane %v9642, 4
        %v9645 = vshll.u32 %v9299, 16
        %v9647 = vrot.slane %v9645, 5
        %v9648 = vor.u32 %v9644, %v9647
        %v9649 = vrot.slane %v9648, 4
        %v9651 = vshll.u32 %v9300, 16
        %v9653 = vrot.slane %v9651, 5
        %v9654 = vsel %vm292, %v9649, %v9653
        %v9655 = vshrl.u32 %v9300, 16
        %v9657 = vrot.slane %v9655, 4
        %v9658 = vor.u32 %v9657, %v9653
        %v9659 = vrot.slane %v9658, 4
        %v9661 = vshll.u32 %v9301, 16
        %v9663 = vrot.slane %v9661, 5
        %v9664 = vsel %vm292, %v9659, %v9663
        %v9666 = vshrl.u32 %v9302, 16
        %v9668 = vrot.slane %v9666, 4
        %v9669 = vshll.u32 %v9302, 16
        %v9671 = vrot.slane %v9669, 5
        %v9672 = vor.u32 %v9668, %v9671
        %v9673 = vrot.slane %v9672, 4
        %v9675 = vshll.u32 %v9303, 16
        %v9677 = vrot.slane %v9675, 5
        %v9678 = vsel %vm292, %v9673, %v9677
        %v9679 = vshrl.u32 %v9303, 16
        %v9681 = vrot.slane %v9679, 4
        %v9682 = vor.u32 %v9681, %v9677
        %v9683 = vrot.slane %v9682, 4
        %v9685 = vshll.u32 %v9304, 16
        %v9687 = vrot.slane %v9685, 5
        %v9688 = vsel %vm292, %v9683, %v9687
        %s9689 = scalar_lea.vmem [#allocation4], 448
        %v9690 = vld [vmem:[%s9689] sm:$0xf]
        %v9691 = vld [vmem:[%s9689 + $0x4] sm:$0xf]
        %v9692 = vld [vmem:[%s9689 + $0x8] sm:$0xf]
        %v9693 = vld [vmem:[%s9689 + $0xc] sm:$0xf]
        %v9694 = vld [vmem:[%s9689 + $0x10] sm:$0xf]
        %v9695 = vld [vmem:[%s9689 + $0x14] sm:$0xf]
        %v9696 = vld [vmem:[%s9689 + $0x18] sm:$0xf]
        %v9697 = vld [vmem:[%s9689 + $0x1c] sm:$0xf]
        %v9698 = vld [vmem:[%s9689 + $0x20] sm:$0xf]
        %v9699 = vld [vmem:[%s9689 + $0x24] sm:$0xf]
        %v9700 = vld [vmem:[%s9689 + $0x28] sm:$0xf]
        %v9701 = vld [vmem:[%s9689 + $0x2c] sm:$0xf]
        %v9702 = vld [vmem:[%s9689 + $0x30] sm:$0xf]
        %v9703 = vld [vmem:[%s9689 + $0x34] sm:$0xf]
        %v9704 = vld [vmem:[%s9689 + $0x38] sm:$0xf]
        %v9705 = vld [vmem:[%s9689 + $0x3c] sm:$0xf]
        %v9706 = vunpack.c.l.b16 %v9318
        %v9707 = vunpack.c.l.b16 %v9328
        %v9708 = vunpack.c.l.b16 %v9342
        %v9709 = vunpack.c.l.b16 %v9352
        %v9710 = vunpack.c.l.b16 %v9366
        %v9711 = vunpack.c.l.b16 %v9376
        %v9712 = vunpack.c.l.b16 %v9390
        %v9713 = vunpack.c.l.b16 %v9400
        %v9714 = vunpack.c.l.b16 %v9414
        %v9715 = vunpack.c.l.b16 %v9424
        %v9716 = vunpack.c.l.b16 %v9438
        %v9717 = vunpack.c.l.b16 %v9448
        %v9718 = vunpack.c.l.b16 %v9462
        %v9719 = vunpack.c.l.b16 %v9472
        %v9720 = vunpack.c.l.b16 %v9486
        %v9721 = vunpack.c.l.b16 %v9496
        %v9722 = vunpack.c.l.b16 %v9510
        %v9723 = vunpack.c.l.b16 %v9520
        %v9724 = vunpack.c.l.b16 %v9534
        %v9725 = vunpack.c.l.b16 %v9544
        %v9726 = vunpack.c.l.b16 %v9558
        %v9727 = vunpack.c.l.b16 %v9568
        %v9728 = vunpack.c.l.b16 %v9582
        %v9729 = vunpack.c.l.b16 %v9592
        %v9730 = vunpack.c.l.b16 %v9606
        %v9731 = vunpack.c.l.b16 %v9616
        %v9732 = vunpack.c.l.b16 %v9630
        %v9733 = vunpack.c.l.b16 %v9640
        %v9734 = vunpack.c.l.b16 %v9654
        %v9735 = vunpack.c.l.b16 %v9664
        %v9736 = vunpack.c.l.b16 %v9678
        %v9737 = vunpack.c.l.b16 %v9688
        %v9738 = vpack.c.b16 %v9707, %v9706
        %v9739 = vpack.c.b16 %v9709, %v9708
        %v9740 = vpack.c.b16 %v9711, %v9710
        %v9741 = vpack.c.b16 %v9713, %v9712
        %v9742 = vpack.c.b16 %v9715, %v9714
        %v9743 = vpack.c.b16 %v9717, %v9716
        %v9744 = vpack.c.b16 %v9719, %v9718
        %v9745 = vpack.c.b16 %v9721, %v9720
        %v9746 = vpack.c.b16 %v9723, %v9722
        %v9747 = vpack.c.b16 %v9725, %v9724
        %v9748 = vpack.c.b16 %v9727, %v9726
        %v9749 = vpack.c.b16 %v9729, %v9728
        %v9750 = vpack.c.b16 %v9731, %v9730
        %v9751 = vpack.c.b16 %v9733, %v9732
        %v9752 = vpack.c.b16 %v9735, %v9734
        %v9753 = vpack.c.b16 %v9737, %v9736
        %v9786 = vunpack.c.l.b16 %v9690
        %v9787 = vunpack.c.l.b16 %v9691
        %v9788 = vunpack.c.l.b16 %v9692
        %v9789 = vunpack.c.l.b16 %v9693
        %v9790 = vunpack.c.l.b16 %v9694
        %v9791 = vunpack.c.l.b16 %v9695
        %v9792 = vunpack.c.l.b16 %v9696
        %v9793 = vunpack.c.l.b16 %v9697
        %v9794 = vunpack.c.l.b16 %v9698
        %v9795 = vunpack.c.l.b16 %v9699
        %v9796 = vunpack.c.l.b16 %v9700
        %v9797 = vunpack.c.l.b16 %v9701
        %v9798 = vunpack.c.l.b16 %v9702
        %v9799 = vunpack.c.l.b16 %v9703
        %v9800 = vunpack.c.l.b16 %v9704
        %v9801 = vunpack.c.l.b16 %v9705
        %v9802 = vpack.c.b16 %v9787, %v9786
        %v9803 = vpack.c.b16 %v9789, %v9788
        %v9804 = vpack.c.b16 %v9791, %v9790
        %v9805 = vpack.c.b16 %v9793, %v9792
        %v9806 = vpack.c.b16 %v9795, %v9794
        %v9807 = vpack.c.b16 %v9797, %v9796
        %v9808 = vpack.c.b16 %v9799, %v9798
        %v9809 = vpack.c.b16 %v9801, %v9800
        %9818 = vmatprep.subr.bf16.mxu0 0
        %9819 = vmatpush1.bf16.msra.mxu0 %v9802
        %9820 = vmatprep.subr.bf16.mxu0 0
        %9821 = vmatpush1.bf16.msra.mxu0 %v9803
        %9822 = vmatprep.subr.bf16.mxu0 0
        %9823 = vmatpush1.bf16.msra.mxu0 %v9804
        %9824 = vmatprep.subr.bf16.mxu0 0
        %9825 = vmatpush1.bf16.msra.mxu0 %v9805
        %9826 = vmatprep.subr.bf16.mxu0 0
        %9827 = vmatpush1.bf16.msra.mxu0 %v9806
        %9828 = vmatprep.subr.bf16.mxu0 0
        %9829 = vmatpush1.bf16.msra.mxu0 %v9807
        %9830 = vmatprep.subr.bf16.mxu0 0
        %9831 = vmatpush1.bf16.msra.mxu0 %v9808
        %9832 = vmatprep.subr.bf16.mxu0 0
        %9833 = vmatpush1.bf16.msra.mxu0 %v9809
        %9834 = vmatprep.subr.bf16.mxu0 0
        %9835 = vmatpush1.bf16.msra.mxu0 0
        %9836 = vmatprep.subr.bf16.mxu0 0
        %9837 = vmatpush1.bf16.msra.mxu0 0
        %9838 = vmatprep.subr.bf16.mxu0 0
        %9839 = vmatpush1.bf16.msra.mxu0 0
        %9840 = vmatprep.subr.bf16.mxu0 0
        %9841 = vmatpush1.bf16.msra.mxu0 0
        %9842 = vmatprep.subr.bf16.mxu0 0
        %9843 = vmatpush1.bf16.msra.mxu0 0
        %9844 = vmatprep.subr.bf16.mxu0 0
        %9845 = vmatpush1.bf16.msra.mxu0 0
        %9846 = vmatprep.subr.bf16.mxu0 0
        %9847 = vmatpush1.bf16.msra.mxu0 0
        %9848 = vmatprep.subr.bf16.mxu0 0
        %9849 = vmatpush1.bf16.msra.mxu0 0
        %9850 = vmatprep.mubr.bf16.mxu0 0
        %9851 = vmatmul.mubr.bf16.gmra.mrb[0].mxu0 %v9738
        %v9852 = vpop.f32.mrb[0].mxu0
        %v9853 = vadd.f32 0.0, %v9852
        %v9854 = vpop.f32.mrb[0].mxu0
        %v9855 = vpop.f32.mrb[0].mxu0
        %v9856 = vadd.f32 0.0, %v9855
        %v9857 = vpop.f32.mrb[0].mxu0
        %9858 = vmatprep.mubr.bf16.mxu0 0
        %9859 = vmatmul.mubr.bf16.gmra.mrb[0].mxu0 %v9739
        %v9860 = vpop.f32.mrb[0].mxu0
        %v9861 = vadd.f32 0.0, %v9860
        %v9862 = vpop.f32.mrb[0].mxu0
        %v9863 = vpop.f32.mrb[0].mxu0
        %v9864 = vadd.f32 0.0, %v9863
        %v9865 = vpop.f32.mrb[0].mxu0
        %9866 = vmatprep.mubr.bf16.mxu0 0
        %9867 = vmatmul.mubr.bf16.gmra.mrb[0].mxu0 %v9740
        %v9868 = vpop.f32.mrb[0].mxu0
        %v9869 = vadd.f32 0.0, %v9868
        %v9870 = vpop.f32.mrb[0].mxu0
        %v9871 = vpop.f32.mrb[0].mxu0
        %v9872 = vadd.f32 0.0, %v9871
        %v9873 = vpop.f32.mrb[0].mxu0
        %9874 = vmatprep.mubr.bf16.mxu0 0
        %9875 = vmatmul.mubr.bf16.gmra.mrb[0].mxu0 %v9741
        %v9876 = vpop.f32.mrb[0].mxu0
        %v9877 = vadd.f32 0.0, %v9876
        %v9878 = vpop.f32.mrb[0].mxu0
        %v9879 = vpop.f32.mrb[0].mxu0
        %v9880 = vadd.f32 0.0, %v9879
        %v9881 = vpop.f32.mrb[0].mxu0
        %9882 = vmatprep.mubr.bf16.mxu0 0
        %9883 = vmatmul.mubr.bf16.gmra.mrb[0].mxu0 %v9742
        %v9884 = vpop.f32.mrb[0].mxu0
        %v9885 = vadd.f32 0.0, %v9884
        %v9886 = vpop.f32.mrb[0].mxu0
        %v9887 = vpop.f32.mrb[0].mxu0
        %v9888 = vadd.f32 0.0, %v9887
        %v9889 = vpop.f32.mrb[0].mxu0
        %9890 = vmatprep.mubr.bf16.mxu0 0
        %9891 = vmatmul.mubr.bf16.gmra.mrb[0].mxu0 %v9743
        %v9892 = vpop.f32.mrb[0].mxu0
        %v9893 = vadd.f32 0.0, %v9892
        %v9894 = vpop.f32.mrb[0].mxu0
        %v9895 = vpop.f32.mrb[0].mxu0
        %v9896 = vadd.f32 0.0, %v9895
        %v9897 = vpop.f32.mrb[0].mxu0
        %9898 = vmatprep.mubr.bf16.mxu0 0
        %9899 = vmatmul.mubr.bf16.gmra.mrb[0].mxu0 %v9744
        %v9900 = vpop.f32.mrb[0].mxu0
        %v9901 = vadd.f32 0.0, %v9900
        %v9902 = vpop.f32.mrb[0].mxu0
        %v9903 = vpop.f32.mrb[0].mxu0
        %v9904 = vadd.f32 0.0, %v9903
        %v9905 = vpop.f32.mrb[0].mxu0
        %9906 = vmatprep.mubr.bf16.mxu0 0
        %9907 = vmatmul.mubr.bf16.gmra.mrb[0].mxu0 %v9745
        %v9908 = vpop.f32.mrb[0].mxu0
        %v9909 = vadd.f32 0.0, %v9908
        %v9910 = vpop.f32.mrb[0].mxu0
        %v9911 = vpop.f32.mrb[0].mxu0
        %v9912 = vadd.f32 0.0, %v9911
        %v9913 = vpop.f32.mrb[0].mxu0
        %9914 = vmatprep.mubr.bf16.mxu0 0
        %9915 = vmatmul.mubr.bf16.gmra.mrb[0].mxu0 %v9746
        %v9916 = vpop.f32.mrb[0].mxu0
        %v9917 = vadd.f32 0.0, %v9916
        %v9918 = vpop.f32.mrb[0].mxu0
        %v9919 = vpop.f32.mrb[0].mxu0
        %v9920 = vadd.f32 0.0, %v9919
        %v9921 = vpop.f32.mrb[0].mxu0
        %9922 = vmatprep.mubr.bf16.mxu0 0
        %9923 = vmatmul.mubr.bf16.gmra.mrb[0].mxu0 %v9747
        %v9924 = vpop.f32.mrb[0].mxu0
        %v9925 = vadd.f32 0.0, %v9924
        %v9926 = vpop.f32.mrb[0].mxu0
        %v9927 = vpop.f32.mrb[0].mxu0
        %v9928 = vadd.f32 0.0, %v9927
        %v9929 = vpop.f32.mrb[0].mxu0
        %9930 = vmatprep.mubr.bf16.mxu0 0
        %9931 = vmatmul.mubr.bf16.gmra.mrb[0].mxu0 %v9748
        %v9932 = vpop.f32.mrb[0].mxu0
        %v9933 = vadd.f32 0.0, %v9932
        %v9934 = vpop.f32.mrb[0].mxu0
        %v9935 = vpop.f32.mrb[0].mxu0
        %v9936 = vadd.f32 0.0, %v9935
        %v9937 = vpop.f32.mrb[0].mxu0
        %9938 = vmatprep.mubr.bf16.mxu0 0
        %9939 = vmatmul.mubr.bf16.gmra.mrb[0].mxu0 %v9749
        %v9940 = vpop.f32.mrb[0].mxu0
        %v9941 = vadd.f32 0.0, %v9940
        %v9942 = vpop.f32.mrb[0].mxu0
        %v9943 = vpop.f32.mrb[0].mxu0
        %v9944 = vadd.f32 0.0, %v9943
        %v9945 = vpop.f32.mrb[0].mxu0
        %9946 = vmatprep.mubr.bf16.mxu0 0
        %9947 = vmatmul.mubr.bf16.gmra.mrb[0].mxu0 %v9750
        %v9948 = vpop.f32.mrb[0].mxu0
        %v9949 = vadd.f32 0.0, %v9948
        %v9950 = vpop.f32.mrb[0].mxu0
        %v9951 = vpop.f32.mrb[0].mxu0
        %v9952 = vadd.f32 0.0, %v9951
        %v9953 = vpop.f32.mrb[0].mxu0
        %9954 = vmatprep.mubr.bf16.mxu0 0
        %9955 = vmatmul.mubr.bf16.gmra.mrb[0].mxu0 %v9751
        %v9956 = vpop.f32.mrb[0].mxu0
        %v9957 = vadd.f32 0.0, %v9956
        %v9958 = vpop.f32.mrb[0].mxu0
        %v9959 = vpop.f32.mrb[0].mxu0
        %v9960 = vadd.f32 0.0, %v9959
        %v9961 = vpop.f32.mrb[0].mxu0
        %9962 = vmatprep.mubr.bf16.mxu0 0
        %9963 = vmatmul.mubr.bf16.gmra.mrb[0].mxu0 %v9752
        %v9964 = vpop.f32.mrb[0].mxu0
        %v9965 = vadd.f32 0.0, %v9964
        %v9966 = vpop.f32.mrb[0].mxu0
        %v9967 = vpop.f32.mrb[0].mxu0
        %v9968 = vadd.f32 0.0, %v9967
        %v9969 = vpop.f32.mrb[0].mxu0
        %9970 = vmatprep.mubr.bf16.mxu0 0
        %9971 = vmatmul.mubr.bf16.gmra.mrb[0].mxu0 %v9753
        %v9972 = vpop.f32.mrb[0].mxu0
        %v9973 = vadd.f32 0.0, %v9972
        %v9974 = vpop.f32.mrb[0].mxu0
        %v9975 = vpop.f32.mrb[0].mxu0
        %v9976 = vadd.f32 0.0, %v9975
        %v9977 = vpop.f32.mrb[0].mxu0
        %9978 = vdwg.mxu0
        %v9979 = vadd.f32 %v9225, %v9853
        %v9980 = vadd.f32 %v9226, %v9856
        %v9981 = vadd.f32 %v9227, %v9861
        %v9982 = vadd.f32 %v9228, %v9864
        %v9983 = vadd.f32 %v9229, %v9869
        %v9984 = vadd.f32 %v9230, %v9872
        %v9985 = vadd.f32 %v9231, %v9877
        %v9986 = vadd.f32 %v9232, %v9880
        %v9987 = vadd.f32 %v9233, %v9885
        %v9988 = vadd.f32 %v9234, %v9888
        %v9989 = vadd.f32 %v9235, %v9893
        %v9990 = vadd.f32 %v9236, %v9896
        %v9991 = vadd.f32 %v9237, %v9901
        %v9992 = vadd.f32 %v9238, %v9904
        %v9993 = vadd.f32 %v9239, %v9909
        %v9994 = vadd.f32 %v9240, %v9912
        %v9995 = vadd.f32 %v9241, %v9917
        %v9996 = vadd.f32 %v9242, %v9920
        %v9997 = vadd.f32 %v9243, %v9925
        %v9998 = vadd.f32 %v9244, %v9928
        %v9999 = vadd.f32 %v9245, %v9933
        %v10000 = vadd.f32 %v9246, %v9936
        %v10001 = vadd.f32 %v9247, %v9941
        %v10002 = vadd.f32 %v9248, %v9944
        %v10003 = vadd.f32 %v9249, %v9949
        %v10004 = vadd.f32 %v9250, %v9952
        %v10005 = vadd.f32 %v9251, %v9957
        %v10006 = vadd.f32 %v9252, %v9960
        %v10007 = vadd.f32 %v9253, %v9965
        %v10008 = vadd.f32 %v9254, %v9968
        %v10009 = vadd.f32 %v9255, %v9973
        %v10010 = vadd.f32 %v9256, %v9976
        %v10011 = vld [vmem:[%s8870] sm:$0xe]
        %v10012 = vld [vmem:[%s8870 + $0xc] sm:$0xe]
        %v10013 = vld [vmem:[%s8870 + $0x18] sm:$0xe]
        %v10014 = vld [vmem:[%s8870 + $0x24] sm:$0xe]
        %v10015 = vld [vmem:[%s8870 + $0x30] sm:$0xe]
        %v10016 = vld [vmem:[%s8870 + $0x3c] sm:$0xe]
        %v10017 = vld [vmem:[%s8870 + $0x48] sm:$0xe]
        %v10018 = vld [vmem:[%s8870 + $0x54] sm:$0xe]
        %v10019 = vld [vmem:[%s8870 + $0x60] sm:$0xe]
        %v10020 = vld [vmem:[%s8870 + $0x6c] sm:$0xe]
        %v10021 = vld [vmem:[%s8870 + $0x78] sm:$0xe]
        %v10022 = vld [vmem:[%s8870 + $0x84] sm:$0xe]
        %v10023 = vld [vmem:[%s8870 + $0x90] sm:$0xe]
        %v10024 = vld [vmem:[%s8870 + $0x9c] sm:$0xe]
        %v10025 = vld [vmem:[%s8870 + $0xa8] sm:$0xe]
        %v10026 = vld [vmem:[%s8870 + $0xb4] sm:$0xe]
        %v10075 = vrot.slane %v10011, 5
        %v10076 = vrot.slane %v10075, 4
        %v10077 = vrot.slane %v9258, 5
        %v10078 = vsel %vm1283, %v10076, %v10077
        %v10079 = vrot.slane %v10077, 4
        %v10080 = vrot.slane %v9259, 5
        %v10081 = vsel %vm1283, %v10079, %v10080
        %v10082 = vrot.slane %v10012, 5
        %v10083 = vrot.slane %v10082, 4
        %v10084 = vrot.slane %v9261, 5
        %v10085 = vsel %vm1283, %v10083, %v10084
        %v10086 = vrot.slane %v10084, 4
        %v10087 = vrot.slane %v9262, 5
        %v10088 = vsel %vm1283, %v10086, %v10087
        %v10089 = vrot.slane %v10013, 5
        %v10090 = vrot.slane %v10089, 4
        %v10091 = vrot.slane %v9264, 5
        %v10092 = vsel %vm1283, %v10090, %v10091
        %v10093 = vrot.slane %v10091, 4
        %v10094 = vrot.slane %v9265, 5
        %v10095 = vsel %vm1283, %v10093, %v10094
        %v10096 = vrot.slane %v10014, 5
        %v10097 = vrot.slane %v10096, 4
        %v10098 = vrot.slane %v9267, 5
        %v10099 = vsel %vm1283, %v10097, %v10098
        %v10100 = vrot.slane %v10098, 4
        %v10101 = vrot.slane %v9268, 5
        %v10102 = vsel %vm1283, %v10100, %v10101
        %v10103 = vrot.slane %v10015, 5
        %v10104 = vrot.slane %v10103, 4
        %v10105 = vrot.slane %v9270, 5
        %v10106 = vsel %vm1283, %v10104, %v10105
        %v10107 = vrot.slane %v10105, 4
        %v10108 = vrot.slane %v9271, 5
        %v10109 = vsel %vm1283, %v10107, %v10108
        %v10110 = vrot.slane %v10016, 5
        %v10111 = vrot.slane %v10110, 4
        %v10112 = vrot.slane %v9273, 5
        %v10113 = vsel %vm1283, %v10111, %v10112
        %v10114 = vrot.slane %v10112, 4
        %v10115 = vrot.slane %v9274, 5
        %v10116 = vsel %vm1283, %v10114, %v10115
        %v10117 = vrot.slane %v10017, 5
        %v10118 = vrot.slane %v10117, 4
        %v10119 = vrot.slane %v9276, 5
        %v10120 = vsel %vm1283, %v10118, %v10119
        %v10121 = vrot.slane %v10119, 4
        %v10122 = vrot.slane %v9277, 5
        %v10123 = vsel %vm1283, %v10121, %v10122
        %v10124 = vrot.slane %v10018, 5
        %v10125 = vrot.slane %v10124, 4
        %v10126 = vrot.slane %v9279, 5
        %v10127 = vsel %vm1283, %v10125, %v10126
        %v10128 = vrot.slane %v10126, 4
        %v10129 = vrot.slane %v9280, 5
        %v10130 = vsel %vm1283, %v10128, %v10129
        %v10131 = vrot.slane %v10019, 5
        %v10132 = vrot.slane %v10131, 4
        %v10133 = vrot.slane %v9282, 5
        %v10134 = vsel %vm1283, %v10132, %v10133
        %v10135 = vrot.slane %v10133, 4
        %v10136 = vrot.slane %v9283, 5
        %v10137 = vsel %vm1283, %v10135, %v10136
        %v10138 = vrot.slane %v10020, 5
        %v10139 = vrot.slane %v10138, 4
        %v10140 = vrot.slane %v9285, 5
        %v10141 = vsel %vm1283, %v10139, %v10140
        %v10142 = vrot.slane %v10140, 4
        %v10143 = vrot.slane %v9286, 5
        %v10144 = vsel %vm1283, %v10142, %v10143
        %v10145 = vrot.slane %v10021, 5
        %v10146 = vrot.slane %v10145, 4
        %v10147 = vrot.slane %v9288, 5
        %v10148 = vsel %vm1283, %v10146, %v10147
        %v10149 = vrot.slane %v10147, 4
        %v10150 = vrot.slane %v9289, 5
        %v10151 = vsel %vm1283, %v10149, %v10150
        %v10152 = vrot.slane %v10022, 5
        %v10153 = vrot.slane %v10152, 4
        %v10154 = vrot.slane %v9291, 5
        %v10155 = vsel %vm1283, %v10153, %v10154
        %v10156 = vrot.slane %v10154, 4
        %v10157 = vrot.slane %v9292, 5
        %v10158 = vsel %vm1283, %v10156, %v10157
        %v10159 = vrot.slane %v10023, 5
        %v10160 = vrot.slane %v10159, 4
        %v10161 = vrot.slane %v9294, 5
        %v10162 = vsel %vm1283, %v10160, %v10161
        %v10163 = vrot.slane %v10161, 4
        %v10164 = vrot.slane %v9295, 5
        %v10165 = vsel %vm1283, %v10163, %v10164
        %v10166 = vrot.slane %v10024, 5
        %v10167 = vrot.slane %v10166, 4
        %v10168 = vrot.slane %v9297, 5
        %v10169 = vsel %vm1283, %v10167, %v10168
        %v10170 = vrot.slane %v10168, 4
        %v10171 = vrot.slane %v9298, 5
        %v10172 = vsel %vm1283, %v10170, %v10171
        %v10173 = vrot.slane %v10025, 5
        %v10174 = vrot.slane %v10173, 4
        %v10175 = vrot.slane %v9300, 5
        %v10176 = vsel %vm1283, %v10174, %v10175
        %v10177 = vrot.slane %v10175, 4
        %v10178 = vrot.slane %v9301, 5
        %v10179 = vsel %vm1283, %v10177, %v10178
        %v10180 = vrot.slane %v10026, 5
        %v10181 = vrot.slane %v10180, 4
        %v10182 = vrot.slane %v9303, 5
        %v10183 = vsel %vm1283, %v10181, %v10182
        %v10184 = vrot.slane %v10182, 4
        %v10185 = vrot.slane %v9304, 5
        %v10186 = vsel %vm1283, %v10184, %v10185
        %s10187 = scalar_lea.vmem [#allocation4], 512
        %v10188 = vld [vmem:[%s10187] sm:$0xf]
        %v10189 = vld [vmem:[%s10187 + $0x4] sm:$0xf]
        %v10190 = vld [vmem:[%s10187 + $0x8] sm:$0xf]
        %v10191 = vld [vmem:[%s10187 + $0xc] sm:$0xf]
        %v10192 = vld [vmem:[%s10187 + $0x10] sm:$0xf]
        %v10193 = vld [vmem:[%s10187 + $0x14] sm:$0xf]
        %v10194 = vld [vmem:[%s10187 + $0x18] sm:$0xf]
        %v10195 = vld [vmem:[%s10187 + $0x1c] sm:$0xf]
        %v10196 = vld [vmem:[%s10187 + $0x20] sm:$0xf]
        %v10197 = vld [vmem:[%s10187 + $0x24] sm:$0xf]
        %v10198 = vld [vmem:[%s10187 + $0x28] sm:$0xf]
        %v10199 = vld [vmem:[%s10187 + $0x2c] sm:$0xf]
        %v10200 = vld [vmem:[%s10187 + $0x30] sm:$0xf]
        %v10201 = vld [vmem:[%s10187 + $0x34] sm:$0xf]
        %v10202 = vld [vmem:[%s10187 + $0x38] sm:$0xf]
        %v10203 = vld [vmem:[%s10187 + $0x3c] sm:$0xf]
        %v10204 = vunpack.c.l.b16 %v10078
        %v10205 = vunpack.c.l.b16 %v10081
        %v10206 = vunpack.c.l.b16 %v10085
        %v10207 = vunpack.c.l.b16 %v10088
        %v10208 = vunpack.c.l.b16 %v10092
        %v10209 = vunpack.c.l.b16 %v10095
        %v10210 = vunpack.c.l.b16 %v10099
        %v10211 = vunpack.c.l.b16 %v10102
        %v10212 = vunpack.c.l.b16 %v10106
        %v10213 = vunpack.c.l.b16 %v10109
        %v10214 = vunpack.c.l.b16 %v10113
        %v10215 = vunpack.c.l.b16 %v10116
        %v10216 = vunpack.c.l.b16 %v10120
        %v10217 = vunpack.c.l.b16 %v10123
        %v10218 = vunpack.c.l.b16 %v10127
        %v10219 = vunpack.c.l.b16 %v10130
        %v10220 = vunpack.c.l.b16 %v10134
        %v10221 = vunpack.c.l.b16 %v10137
        %v10222 = vunpack.c.l.b16 %v10141
        %v10223 = vunpack.c.l.b16 %v10144
        %v10224 = vunpack.c.l.b16 %v10148
        %v10225 = vunpack.c.l.b16 %v10151
        %v10226 = vunpack.c.l.b16 %v10155
        %v10227 = vunpack.c.l.b16 %v10158
        %v10228 = vunpack.c.l.b16 %v10162
        %v10229 = vunpack.c.l.b16 %v10165
        %v10230 = vunpack.c.l.b16 %v10169
        %v10231 = vunpack.c.l.b16 %v10172
        %v10232 = vunpack.c.l.b16 %v10176
        %v10233 = vunpack.c.l.b16 %v10179
        %v10234 = vunpack.c.l.b16 %v10183
        %v10235 = vunpack.c.l.b16 %v10186
        %v10236 = vpack.c.b16 %v10205, %v10204
        %v10237 = vpack.c.b16 %v10207, %v10206
        %v10238 = vpack.c.b16 %v10209, %v10208
        %v10239 = vpack.c.b16 %v10211, %v10210
        %v10240 = vpack.c.b16 %v10213, %v10212
        %v10241 = vpack.c.b16 %v10215, %v10214
        %v10242 = vpack.c.b16 %v10217, %v10216
        %v10243 = vpack.c.b16 %v10219, %v10218
        %v10244 = vpack.c.b16 %v10221, %v10220
        %v10245 = vpack.c.b16 %v10223, %v10222
        %v10246 = vpack.c.b16 %v10225, %v10224
        %v10247 = vpack.c.b16 %v10227, %v10226
        %v10248 = vpack.c.b16 %v10229, %v10228
        %v10249 = vpack.c.b16 %v10231, %v10230
        %v10250 = vpack.c.b16 %v10233, %v10232
        %v10251 = vpack.c.b16 %v10235, %v10234
        %v10284 = vunpack.c.l.b16 %v10188
        %v10285 = vunpack.c.l.b16 %v10189
        %v10286 = vunpack.c.l.b16 %v10190
        %v10287 = vunpack.c.l.b16 %v10191
        %v10288 = vunpack.c.l.b16 %v10192
        %v10289 = vunpack.c.l.b16 %v10193
        %v10290 = vunpack.c.l.b16 %v10194
        %v10291 = vunpack.c.l.b16 %v10195
        %v10292 = vunpack.c.l.b16 %v10196
        %v10293 = vunpack.c.l.b16 %v10197
        %v10294 = vunpack.c.l.b16 %v10198
        %v10295 = vunpack.c.l.b16 %v10199
        %v10296 = vunpack.c.l.b16 %v10200
        %v10297 = vunpack.c.l.b16 %v10201
        %v10298 = vunpack.c.l.b16 %v10202
        %v10299 = vunpack.c.l.b16 %v10203
        %v10300 = vpack.c.b16 %v10285, %v10284
        %v10301 = vpack.c.b16 %v10287, %v10286
        %v10302 = vpack.c.b16 %v10289, %v10288
        %v10303 = vpack.c.b16 %v10291, %v10290
        %v10304 = vpack.c.b16 %v10293, %v10292
        %v10305 = vpack.c.b16 %v10295, %v10294
        %v10306 = vpack.c.b16 %v10297, %v10296
        %v10307 = vpack.c.b16 %v10299, %v10298
        %10316 = vmatprep.subr.bf16.mxu0 0
        %10317 = vmatpush1.bf16.msra.mxu0 %v10300
        %10318 = vmatprep.subr.bf16.mxu0 0
        %10319 = vmatpush1.bf16.msra.mxu0 %v10301
        %10320 = vmatprep.subr.bf16.mxu0 0
        %10321 = vmatpush1.bf16.msra.mxu0 %v10302
        %10322 = vmatprep.subr.bf16.mxu0 0
        %10323 = vmatpush1.bf16.msra.mxu0 %v10303
        %10324 = vmatprep.subr.bf16.mxu0 0
        %10325 = vmatpush1.bf16.msra.mxu0 %v10304
        %10326 = vmatprep.subr.bf16.mxu0 0
        %10327 = vmatpush1.bf16.msra.mxu0 %v10305
        %10328 = vmatprep.subr.bf16.mxu0 0
        %10329 = vmatpush1.bf16.msra.mxu0 %v10306
        %10330 = vmatprep.subr.bf16.mxu0 0
        %10331 = vmatpush1.bf16.msra.mxu0 %v10307
        %10332 = vmatprep.subr.bf16.mxu0 0
        %10333 = vmatpush1.bf16.msra.mxu0 0
        %10334 = vmatprep.subr.bf16.mxu0 0
        %10335 = vmatpush1.bf16.msra.mxu0 0
        %10336 = vmatprep.subr.bf16.mxu0 0
        %10337 = vmatpush1.bf16.msra.mxu0 0
        %10338 = vmatprep.subr.bf16.mxu0 0
        %10339 = vmatpush1.bf16.msra.mxu0 0
        %10340 = vmatprep.subr.bf16.mxu0 0
        %10341 = vmatpush1.bf16.msra.mxu0 0
        %10342 = vmatprep.subr.bf16.mxu0 0
        %10343 = vmatpush1.bf16.msra.mxu0 0
        %10344 = vmatprep.subr.bf16.mxu0 0
        %10345 = vmatpush1.bf16.msra.mxu0 0
        %10346 = vmatprep.subr.bf16.mxu0 0
        %10347 = vmatpush1.bf16.msra.mxu0 0
        %10348 = vmatprep.mubr.bf16.mxu0 0
        %10349 = vmatmul.mubr.bf16.gmra.mrb[0].mxu0 %v10236
        %v10350 = vpop.f32.mrb[0].mxu0
        %v10351 = vadd.f32 0.0, %v10350
        %v10352 = vpop.f32.mrb[0].mxu0
        %v10353 = vpop.f32.mrb[0].mxu0
        %v10354 = vadd.f32 0.0, %v10353
        %v10355 = vpop.f32.mrb[0].mxu0
        %10356 = vmatprep.mubr.bf16.mxu0 0
        %10357 = vmatmul.mubr.bf16.gmra.mrb[0].mxu0 %v10237
        %v10358 = vpop.f32.mrb[0].mxu0
        %v10359 = vadd.f32 0.0, %v10358
        %v10360 = vpop.f32.mrb[0].mxu0
        %v10361 = vpop.f32.mrb[0].mxu0
        %v10362 = vadd.f32 0.0, %v10361
        %v10363 = vpop.f32.mrb[0].mxu0
        %10364 = vmatprep.mubr.bf16.mxu0 0
        %10365 = vmatmul.mubr.bf16.gmra.mrb[0].mxu0 %v10238
        %v10366 = vpop.f32.mrb[0].mxu0
        %v10367 = vadd.f32 0.0, %v10366
        %v10368 = vpop.f32.mrb[0].mxu0
        %v10369 = vpop.f32.mrb[0].mxu0
        %v10370 = vadd.f32 0.0, %v10369
        %v10371 = vpop.f32.mrb[0].mxu0
        %10372 = vmatprep.mubr.bf16.mxu0 0
        %10373 = vmatmul.mubr.bf16.gmra.mrb[0].mxu0 %v10239
        %v10374 = vpop.f32.mrb[0].mxu0
        %v10375 = vadd.f32 0.0, %v10374
        %v10376 = vpop.f32.mrb[0].mxu0
        %v10377 = vpop.f32.mrb[0].mxu0
        %v10378 = vadd.f32 0.0, %v10377
        %v10379 = vpop.f32.mrb[0].mxu0
        %10380 = vmatprep.mubr.bf16.mxu0 0
        %10381 = vmatmul.mubr.bf16.gmra.mrb[0].mxu0 %v10240
        %v10382 = vpop.f32.mrb[0].mxu0
        %v10383 = vadd.f32 0.0, %v10382
        %v10384 = vpop.f32.mrb[0].mxu0
        %v10385 = vpop.f32.mrb[0].mxu0
        %v10386 = vadd.f32 0.0, %v10385
        %v10387 = vpop.f32.mrb[0].mxu0
        %10388 = vmatprep.mubr.bf16.mxu0 0
        %10389 = vmatmul.mubr.bf16.gmra.mrb[0].mxu0 %v10241
        %v10390 = vpop.f32.mrb[0].mxu0
        %v10391 = vadd.f32 0.0, %v10390
        %v10392 = vpop.f32.mrb[0].mxu0
        %v10393 = vpop.f32.mrb[0].mxu0
        %v10394 = vadd.f32 0.0, %v10393
        %v10395 = vpop.f32.mrb[0].mxu0
        %10396 = vmatprep.mubr.bf16.mxu0 0
        %10397 = vmatmul.mubr.bf16.gmra.mrb[0].mxu0 %v10242
        %v10398 = vpop.f32.mrb[0].mxu0
        %v10399 = vadd.f32 0.0, %v10398
        %v10400 = vpop.f32.mrb[0].mxu0
        %v10401 = vpop.f32.mrb[0].mxu0
        %v10402 = vadd.f32 0.0, %v10401
        %v10403 = vpop.f32.mrb[0].mxu0
        %10404 = vmatprep.mubr.bf16.mxu0 0
        %10405 = vmatmul.mubr.bf16.gmra.mrb[0].mxu0 %v10243
        %v10406 = vpop.f32.mrb[0].mxu0
        %v10407 = vadd.f32 0.0, %v10406
        %v10408 = vpop.f32.mrb[0].mxu0
        %v10409 = vpop.f32.mrb[0].mxu0
        %v10410 = vadd.f32 0.0, %v10409
        %v10411 = vpop.f32.mrb[0].mxu0
        %10412 = vmatprep.mubr.bf16.mxu0 0
        %10413 = vmatmul.mubr.bf16.gmra.mrb[0].mxu0 %v10244
        %v10414 = vpop.f32.mrb[0].mxu0
        %v10415 = vadd.f32 0.0, %v10414
        %v10416 = vpop.f32.mrb[0].mxu0
        %v10417 = vpop.f32.mrb[0].mxu0
        %v10418 = vadd.f32 0.0, %v10417
        %v10419 = vpop.f32.mrb[0].mxu0
        %10420 = vmatprep.mubr.bf16.mxu0 0
        %10421 = vmatmul.mubr.bf16.gmra.mrb[0].mxu0 %v10245
        %v10422 = vpop.f32.mrb[0].mxu0
        %v10423 = vadd.f32 0.0, %v10422
        %v10424 = vpop.f32.mrb[0].mxu0
        %v10425 = vpop.f32.mrb[0].mxu0
        %v10426 = vadd.f32 0.0, %v10425
        %v10427 = vpop.f32.mrb[0].mxu0
        %10428 = vmatprep.mubr.bf16.mxu0 0
        %10429 = vmatmul.mubr.bf16.gmra.mrb[0].mxu0 %v10246
        %v10430 = vpop.f32.mrb[0].mxu0
        %v10431 = vadd.f32 0.0, %v10430
        %v10432 = vpop.f32.mrb[0].mxu0
        %v10433 = vpop.f32.mrb[0].mxu0
        %v10434 = vadd.f32 0.0, %v10433
        %v10435 = vpop.f32.mrb[0].mxu0
        %10436 = vmatprep.mubr.bf16.mxu0 0
        %10437 = vmatmul.mubr.bf16.gmra.mrb[0].mxu0 %v10247
        %v10438 = vpop.f32.mrb[0].mxu0
        %v10439 = vadd.f32 0.0, %v10438
        %v10440 = vpop.f32.mrb[0].mxu0
        %v10441 = vpop.f32.mrb[0].mxu0
        %v10442 = vadd.f32 0.0, %v10441
        %v10443 = vpop.f32.mrb[0].mxu0
        %10444 = vmatprep.mubr.bf16.mxu0 0
        %10445 = vmatmul.mubr.bf16.gmra.mrb[0].mxu0 %v10248
        %v10446 = vpop.f32.mrb[0].mxu0
        %v10447 = vadd.f32 0.0, %v10446
        %v10448 = vpop.f32.mrb[0].mxu0
        %v10449 = vpop.f32.mrb[0].mxu0
        %v10450 = vadd.f32 0.0, %v10449
        %v10451 = vpop.f32.mrb[0].mxu0
        %10452 = vmatprep.mubr.bf16.mxu0 0
        %10453 = vmatmul.mubr.bf16.gmra.mrb[0].mxu0 %v10249
        %v10454 = vpop.f32.mrb[0].mxu0
        %v10455 = vadd.f32 0.0, %v10454
        %v10456 = vpop.f32.mrb[0].mxu0
        %v10457 = vpop.f32.mrb[0].mxu0
        %v10458 = vadd.f32 0.0, %v10457
        %v10459 = vpop.f32.mrb[0].mxu0
        %10460 = vmatprep.mubr.bf16.mxu0 0
        %10461 = vmatmul.mubr.bf16.gmra.mrb[0].mxu0 %v10250
        %v10462 = vpop.f32.mrb[0].mxu0
        %v10463 = vadd.f32 0.0, %v10462
        %v10464 = vpop.f32.mrb[0].mxu0
        %v10465 = vpop.f32.mrb[0].mxu0
        %v10466 = vadd.f32 0.0, %v10465
        %v10467 = vpop.f32.mrb[0].mxu0
        %10468 = vmatprep.mubr.bf16.mxu0 0
        %10469 = vmatmul.mubr.bf16.gmra.mrb[0].mxu0 %v10251
        %v10470 = vpop.f32.mrb[0].mxu0
        %v10471 = vadd.f32 0.0, %v10470
        %v10472 = vpop.f32.mrb[0].mxu0
        %v10473 = vpop.f32.mrb[0].mxu0
        %v10474 = vadd.f32 0.0, %v10473
        %v10475 = vpop.f32.mrb[0].mxu0
        %10476 = vdwg.mxu0
        %v10477 = vadd.f32 %v9979, %v10351
        %v10478 = vadd.f32 %v9980, %v10354
        %v10479 = vadd.f32 %v9981, %v10359
        %v10480 = vadd.f32 %v9982, %v10362
        %v10481 = vadd.f32 %v9983, %v10367
        %v10482 = vadd.f32 %v9984, %v10370
        %v10483 = vadd.f32 %v9985, %v10375
        %v10484 = vadd.f32 %v9986, %v10378
        %v10485 = vadd.f32 %v9987, %v10383
        %v10486 = vadd.f32 %v9988, %v10386
        %v10487 = vadd.f32 %v9989, %v10391
        %v10488 = vadd.f32 %v9990, %v10394
        %v10489 = vadd.f32 %v9991, %v10399
        %v10490 = vadd.f32 %v9992, %v10402
        %v10491 = vadd.f32 %v9993, %v10407
        %v10492 = vadd.f32 %v9994, %v10410
        %v10493 = vadd.f32 %v9995, %v10415
        %v10494 = vadd.f32 %v9996, %v10418
        %v10495 = vadd.f32 %v9997, %v10423
        %v10496 = vadd.f32 %v9998, %v10426
        %v10497 = vadd.f32 %v9999, %v10431
        %v10498 = vadd.f32 %v10000, %v10434
        %v10499 = vadd.f32 %v10001, %v10439
        %v10500 = vadd.f32 %v10002, %v10442
        %v10501 = vadd.f32 %v10003, %v10447
        %v10502 = vadd.f32 %v10004, %v10450
        %v10503 = vadd.f32 %v10005, %v10455
        %v10504 = vadd.f32 %v10006, %v10458
        %v10505 = vadd.f32 %v10007, %v10463
        %v10506 = vadd.f32 %v10008, %v10466
        %v10507 = vadd.f32 %v10009, %v10471
        %v10508 = vadd.f32 %v10010, %v10474
        %v10509 = vadd.f32 %v10477, %v10478
        %v10510 = vadd.f32 %v10509, %v10479
        %v10511 = vadd.f32 %v10510, %v10480
        %v10512 = vadd.f32 %v10511, %v10481
        %v10513 = vadd.f32 %v10512, %v10482
        %v10514 = vadd.f32 %v10513, %v10483
        %v10515 = vadd.f32 %v10514, %v10484
        %v10516 = vadd.f32 %v10515, %v10485
        %v10517 = vadd.f32 %v10516, %v10486
        %v10518 = vadd.f32 %v10517, %v10487
        %v10519 = vadd.f32 %v10518, %v10488
        %v10520 = vadd.f32 %v10519, %v10489
        %v10521 = vadd.f32 %v10520, %v10490
        %v10522 = vadd.f32 %v10521, %v10491
        %v10523 = vadd.f32 %v10522, %v10492
        %v10524 = vadd.f32 %v10523, %v10493
        %v10525 = vadd.f32 %v10524, %v10494
        %v10526 = vadd.f32 %v10525, %v10495
        %v10527 = vadd.f32 %v10526, %v10496
        %v10528 = vadd.f32 %v10527, %v10497
        %v10529 = vadd.f32 %v10528, %v10498
        %v10530 = vadd.f32 %v10529, %v10499
        %v10531 = vadd.f32 %v10530, %v10500
        %v10532 = vadd.f32 %v10531, %v10501
        %v10533 = vadd.f32 %v10532, %v10502
        %v10534 = vadd.f32 %v10533, %v10503
        %v10535 = vadd.f32 %v10534, %v10504
        %v10536 = vadd.f32 %v10535, %v10505
        %v10537 = vadd.f32 %v10536, %v10506
        %v10538 = vadd.f32 %v10537, %v10507
        %v10539 = vadd.f32 %v10538, %v10508
        %v10540 = vrot.slane %v10539, 4
        %v10541 = vadd.f32 %v10539, %v10540
        %v10542 = vrot.slane %v10541, 2
        %v10543 = vadd.f32 %v10541, %v10542
        %v10544 = vrot.slane %v10543, 1
        %v10545 = vadd.f32 %v10543, %v10544
        %v10546 = vmul.f32 %v10545, %v4837
        %v10547 = vsub.f32 %v10477, %v10546
        %v10548 = vsub.f32 %v10478, %v10546
        %v10549 = vsub.f32 %v10479, %v10546
        %v10550 = vsub.f32 %v10480, %v10546
        %v10551 = vsub.f32 %v10481, %v10546
        %v10552 = vsub.f32 %v10482, %v10546
        %v10553 = vsub.f32 %v10483, %v10546
        %v10554 = vsub.f32 %v10484, %v10546
        %v10555 = vsub.f32 %v10485, %v10546
        %v10556 = vsub.f32 %v10486, %v10546
        %v10557 = vsub.f32 %v10487, %v10546
        %v10558 = vsub.f32 %v10488, %v10546
        %v10559 = vsub.f32 %v10489, %v10546
        %v10560 = vsub.f32 %v10490, %v10546
        %v10561 = vsub.f32 %v10491, %v10546
        %v10562 = vsub.f32 %v10492, %v10546
        %v10563 = vsub.f32 %v10493, %v10546
        %v10564 = vsub.f32 %v10494, %v10546
        %v10565 = vsub.f32 %v10495, %v10546
        %v10566 = vsub.f32 %v10496, %v10546
        %v10567 = vsub.f32 %v10497, %v10546
        %v10568 = vsub.f32 %v10498, %v10546
        %v10569 = vsub.f32 %v10499, %v10546
        %v10570 = vsub.f32 %v10500, %v10546
        %v10571 = vsub.f32 %v10501, %v10546
        %v10572 = vsub.f32 %v10502, %v10546
        %v10573 = vsub.f32 %v10503, %v10546
        %v10574 = vsub.f32 %v10504, %v10546
        %v10575 = vsub.f32 %v10505, %v10546
        %v10576 = vsub.f32 %v10506, %v10546
        %v10577 = vsub.f32 %v10507, %v10546
        %v10578 = vsub.f32 %v10508, %v10546
        %v10579 = vmul.f32 %v10547, %v10547
        %v10580 = vmul.f32 %v10548, %v10548
        %v10581 = vmul.f32 %v10549, %v10549
        %v10582 = vmul.f32 %v10550, %v10550
        %v10583 = vmul.f32 %v10551, %v10551
        %v10584 = vmul.f32 %v10552, %v10552
        %v10585 = vmul.f32 %v10553, %v10553
        %v10586 = vmul.f32 %v10554, %v10554
        %v10587 = vmul.f32 %v10555, %v10555
        %v10588 = vmul.f32 %v10556, %v10556
        %v10589 = vmul.f32 %v10557, %v10557
        %v10590 = vmul.f32 %v10558, %v10558
        %v10591 = vmul.f32 %v10559, %v10559
        %v10592 = vmul.f32 %v10560, %v10560
        %v10593 = vmul.f32 %v10561, %v10561
        %v10594 = vmul.f32 %v10562, %v10562
        %v10595 = vmul.f32 %v10563, %v10563
        %v10596 = vmul.f32 %v10564, %v10564
        %v10597 = vmul.f32 %v10565, %v10565
        %v10598 = vmul.f32 %v10566, %v10566
        %v10599 = vmul.f32 %v10567, %v10567
        %v10600 = vmul.f32 %v10568, %v10568
        %v10601 = vmul.f32 %v10569, %v10569
        %v10602 = vmul.f32 %v10570, %v10570
        %v10603 = vmul.f32 %v10571, %v10571
        %v10604 = vmul.f32 %v10572, %v10572
        %v10605 = vmul.f32 %v10573, %v10573
        %v10606 = vmul.f32 %v10574, %v10574
        %v10607 = vmul.f32 %v10575, %v10575
        %v10608 = vmul.f32 %v10576, %v10576
        %v10609 = vmul.f32 %v10577, %v10577
        %v10610 = vmul.f32 %v10578, %v10578
        %v10611 = vadd.f32 %v10579, %v10580
        %v10612 = vadd.f32 %v10611, %v10581
        %v10613 = vadd.f32 %v10612, %v10582
        %v10614 = vadd.f32 %v10613, %v10583
        %v10615 = vadd.f32 %v10614, %v10584
        %v10616 = vadd.f32 %v10615, %v10585
        %v10617 = vadd.f32 %v10616, %v10586
        %v10618 = vadd.f32 %v10617, %v10587
        %v10619 = vadd.f32 %v10618, %v10588
        %v10620 = vadd.f32 %v10619, %v10589
        %v10621 = vadd.f32 %v10620, %v10590
        %v10622 = vadd.f32 %v10621, %v10591
        %v10623 = vadd.f32 %v10622, %v10592
        %v10624 = vadd.f32 %v10623, %v10593
        %v10625 = vadd.f32 %v10624, %v10594
        %v10626 = vadd.f32 %v10625, %v10595
        %v10627 = vadd.f32 %v10626, %v10596
        %v10628 = vadd.f32 %v10627, %v10597
        %v10629 = vadd.f32 %v10628, %v10598
        %v10630 = vadd.f32 %v10629, %v10599
        %v10631 = vadd.f32 %v10630, %v10600
        %v10632 = vadd.f32 %v10631, %v10601
        %v10633 = vadd.f32 %v10632, %v10602
        %v10634 = vadd.f32 %v10633, %v10603
        %v10635 = vadd.f32 %v10634, %v10604
        %v10636 = vadd.f32 %v10635, %v10605
        %v10637 = vadd.f32 %v10636, %v10606
        %v10638 = vadd.f32 %v10637, %v10607
        %v10639 = vadd.f32 %v10638, %v10608
        %v10640 = vadd.f32 %v10639, %v10609
        %v10641 = vadd.f32 %v10640, %v10610
        %v10642 = vrot.slane %v10641, 4
        %v10643 = vadd.f32 %v10641, %v10642
        %v10644 = vrot.slane %v10643, 2
        %v10645 = vadd.f32 %v10643, %v10644
        %v10646 = vrot.slane %v10645, 1
        %v10647 = vadd.f32 %v10645, %v10646
        %v10648 = vmul.f32 %v10647, %v4837
        %v10649 = vadd.f32 %v10648, 1e-05
        %v10650 = vrsqrt.pop %v10649
        %v10651 = vmul.f32 %v239, %v10650
        %v10652 = vmul.f32 %v10546, %v10651
        %v10653 = vsub.f32 %v240, %v10652
        %v10655 = vlaneseq
        %v10656 = vshrl.u32 %v10655, 7
        %v10657 = vsub.s32 0, %v10656
        %v10658 = vrot.slane %v10651, %v10657
        %v10660 = vmul.f32 %v10477, %v10658
        %v10661 = vmul.f32 %v10478, %v10658
        %v10662 = vmul.f32 %v10479, %v10658
        %v10663 = vmul.f32 %v10480, %v10658
        %v10664 = vmul.f32 %v10481, %v10658
        %v10665 = vmul.f32 %v10482, %v10658
        %v10666 = vmul.f32 %v10483, %v10658
        %v10667 = vmul.f32 %v10484, %v10658
        %v10668 = vmul.f32 %v10485, %v10658
        %v10669 = vmul.f32 %v10486, %v10658
        %v10670 = vmul.f32 %v10487, %v10658
        %v10671 = vmul.f32 %v10488, %v10658
        %v10672 = vmul.f32 %v10489, %v10658
        %v10673 = vmul.f32 %v10490, %v10658
        %v10674 = vmul.f32 %v10491, %v10658
        %v10675 = vmul.f32 %v10492, %v10658
        %v10676 = vmul.f32 %v10493, %v10658
        %v10677 = vmul.f32 %v10494, %v10658
        %v10678 = vmul.f32 %v10495, %v10658
        %v10679 = vmul.f32 %v10496, %v10658
        %v10680 = vmul.f32 %v10497, %v10658
        %v10681 = vmul.f32 %v10498, %v10658
        %v10682 = vmul.f32 %v10499, %v10658
        %v10683 = vmul.f32 %v10500, %v10658
        %v10684 = vmul.f32 %v10501, %v10658
        %v10685 = vmul.f32 %v10502, %v10658
        %v10686 = vmul.f32 %v10503, %v10658
        %v10687 = vmul.f32 %v10504, %v10658
        %v10688 = vmul.f32 %v10505, %v10658
        %v10689 = vmul.f32 %v10506, %v10658
        %v10690 = vmul.f32 %v10507, %v10658
        %v10691 = vmul.f32 %v10508, %v10658
        %v10693 = vlaneseq
        %v10694 = vshrl.u32 %v10693, 7
        %v10695 = vsub.s32 0, %v10694
        %v10696 = vrot.slane %v10653, %v10695
        %v10698 = vadd.f32 %v10660, %v10696
        %v10699 = vadd.f32 %v10661, %v10696
        %v10700 = vadd.f32 %v10662, %v10696
        %v10701 = vadd.f32 %v10663, %v10696
        %v10702 = vadd.f32 %v10664, %v10696
        %v10703 = vadd.f32 %v10665, %v10696
        %v10704 = vadd.f32 %v10666, %v10696
        %v10705 = vadd.f32 %v10667, %v10696
        %v10706 = vadd.f32 %v10668, %v10696
        %v10707 = vadd.f32 %v10669, %v10696
        %v10708 = vadd.f32 %v10670, %v10696
        %v10709 = vadd.f32 %v10671, %v10696
        %v10710 = vadd.f32 %v10672, %v10696
        %v10711 = vadd.f32 %v10673, %v10696
        %v10712 = vadd.f32 %v10674, %v10696
        %v10713 = vadd.f32 %v10675, %v10696
        %v10714 = vadd.f32 %v10676, %v10696
        %v10715 = vadd.f32 %v10677, %v10696
        %v10716 = vadd.f32 %v10678, %v10696
        %v10717 = vadd.f32 %v10679, %v10696
        %v10718 = vadd.f32 %v10680, %v10696
        %v10719 = vadd.f32 %v10681, %v10696
        %v10720 = vadd.f32 %v10682, %v10696
        %v10721 = vadd.f32 %v10683, %v10696
        %v10722 = vadd.f32 %v10684, %v10696
        %v10723 = vadd.f32 %v10685, %v10696
        %v10724 = vadd.f32 %v10686, %v10696
        %v10725 = vadd.f32 %v10687, %v10696
        %v10726 = vadd.f32 %v10688, %v10696
        %v10727 = vadd.f32 %v10689, %v10696
        %v10728 = vadd.f32 %v10690, %v10696
        %v10729 = vadd.f32 %v10691, %v10696
        %v10730 = vmax.f32 %v10698, 0.0
        %v10731 = vmax.f32 %v10699, 0.0
        %v10732 = vmax.f32 %v10700, 0.0
        %v10733 = vmax.f32 %v10701, 0.0
        %v10734 = vmax.f32 %v10702, 0.0
        %v10735 = vmax.f32 %v10703, 0.0
        %v10736 = vmax.f32 %v10704, 0.0
        %v10737 = vmax.f32 %v10705, 0.0
        %v10738 = vmax.f32 %v10706, 0.0
        %v10739 = vmax.f32 %v10707, 0.0
        %v10740 = vmax.f32 %v10708, 0.0
        %v10741 = vmax.f32 %v10709, 0.0
        %v10742 = vmax.f32 %v10710, 0.0
        %v10743 = vmax.f32 %v10711, 0.0
        %v10744 = vmax.f32 %v10712, 0.0
        %v10745 = vmax.f32 %v10713, 0.0
        %v10746 = vmax.f32 %v10714, 0.0
        %v10747 = vmax.f32 %v10715, 0.0
        %v10748 = vmax.f32 %v10716, 0.0
        %v10749 = vmax.f32 %v10717, 0.0
        %v10750 = vmax.f32 %v10718, 0.0
        %v10751 = vmax.f32 %v10719, 0.0
        %v10752 = vmax.f32 %v10720, 0.0
        %v10753 = vmax.f32 %v10721, 0.0
        %v10754 = vmax.f32 %v10722, 0.0
        %v10755 = vmax.f32 %v10723, 0.0
        %v10756 = vmax.f32 %v10724, 0.0
        %v10757 = vmax.f32 %v10725, 0.0
        %v10758 = vmax.f32 %v10726, 0.0
        %v10759 = vmax.f32 %v10727, 0.0
        %v10760 = vmax.f32 %v10728, 0.0
        %v10761 = vmax.f32 %v10729, 0.0
        %v10762 = vmax.f32 %v10730, %v10732
        %v10763 = vmax.f32 %v10731, %v10733
        %v10764 = vmax.f32 %v10734, %v10736
        %v10765 = vmax.f32 %v10735, %v10737
        %v10766 = vmax.f32 %v10738, %v10740
        %v10767 = vmax.f32 %v10739, %v10741
        %v10768 = vmax.f32 %v10742, %v10744
        %v10769 = vmax.f32 %v10743, %v10745
        %v10770 = vmax.f32 %v10746, %v10748
        %v10771 = vmax.f32 %v10747, %v10749
        %v10772 = vmax.f32 %v10750, %v10752
        %v10773 = vmax.f32 %v10751, %v10753
        %v10774 = vmax.f32 %v10754, %v10756
        %v10775 = vmax.f32 %v10755, %v10757
        %v10776 = vmax.f32 %v10758, %v10760
        %v10777 = vmax.f32 %v10759, %v10761
        %10778 = vst [vmem:[#allocation3] sm:$0xff] %v10762
        %10779 = vst [vmem:[#allocation3 + $0x8] sm:$0xff] %v10763
        %10780 = vst [vmem:[#allocation3 + $0x10] sm:$0xff] %v10764
        %10781 = vst [vmem:[#allocation3 + $0x18] sm:$0xff] %v10765
        %10782 = vst [vmem:[#allocation3 + $0x20] sm:$0xff] %v10766
        %10783 = vst [vmem:[#allocation3 + $0x28] sm:$0xff] %v10767
        %10784 = vst [vmem:[#allocation3 + $0x30] sm:$0xff] %v10768
        %10785 = vst [vmem:[#allocation3 + $0x38] sm:$0xff] %v10769
        %10786 = vst [vmem:[#allocation3 + $0x40] sm:$0xff] %v10770
        %10787 = vst [vmem:[#allocation3 + $0x48] sm:$0xff] %v10771
        %10788 = vst [vmem:[#allocation3 + $0x50] sm:$0xff] %v10772
        %10789 = vst [vmem:[#allocation3 + $0x58] sm:$0xff] %v10773
        %10790 = vst [vmem:[#allocation3 + $0x60] sm:$0xff] %v10774
        %10791 = vst [vmem:[#allocation3 + $0x68] sm:$0xff] %v10775
        %10792 = vst [vmem:[#allocation3 + $0x70] sm:$0xff] %v10776
        %10793 = vst [vmem:[#allocation3 + $0x78] sm:$0xff] %v10777
        %v10794 = vld [vmem:[#allocation3] ss:$2 sm:$0xff]
        %s10795 = scalar_lea.vmem [#allocation3], 16
        %v10796 = vld [vmem:[%s10795] ss:$2 sm:$0xff]
        %s10797 = scalar_lea.vmem [#allocation3], 32
        %v10798 = vld [vmem:[%s10797] ss:$2 sm:$0xff]
        %s10799 = scalar_lea.vmem [#allocation3], 48
        %v10800 = vld [vmem:[%s10799] ss:$2 sm:$0xff]
        %s10801 = scalar_lea.vmem [#allocation3], 64
        %v10802 = vld [vmem:[%s10801] ss:$2 sm:$0xff]
        %s10803 = scalar_lea.vmem [#allocation3], 80
        %v10804 = vld [vmem:[%s10803] ss:$2 sm:$0xff]
        %s10805 = scalar_lea.vmem [#allocation3], 96
        %v10806 = vld [vmem:[%s10805] ss:$2 sm:$0xff]
        %s10807 = scalar_lea.vmem [#allocation3], 112
        %v10808 = vld [vmem:[%s10807] ss:$2 sm:$0xff]
        %s10809 = scalar_lea.vmem [#allocation3], 1
        %v10810 = vld [vmem:[%s10809] ss:$2 sm:$0xff]
        %s10811 = scalar_lea.vmem [#allocation3], 17
        %v10812 = vld [vmem:[%s10811] ss:$2 sm:$0xff]
        %s10813 = scalar_lea.vmem [#allocation3], 33
        %v10814 = vld [vmem:[%s10813] ss:$2 sm:$0xff]
        %s10815 = scalar_lea.vmem [#allocation3], 49
        %v10816 = vld [vmem:[%s10815] ss:$2 sm:$0xff]
        %s10817 = scalar_lea.vmem [#allocation3], 65
        %v10818 = vld [vmem:[%s10817] ss:$2 sm:$0xff]
        %s10819 = scalar_lea.vmem [#allocation3], 81
        %v10820 = vld [vmem:[%s10819] ss:$2 sm:$0xff]
        %s10821 = scalar_lea.vmem [#allocation3], 97
        %v10822 = vld [vmem:[%s10821] ss:$2 sm:$0xff]
        %s10823 = scalar_lea.vmem [#allocation3], 113
        %v10824 = vld [vmem:[%s10823] ss:$2 sm:$0xff]
        %v10825 = vmax.f32 %v10794, %v10810
        %v10826 = vmax.f32 %v10796, %v10812
        %v10827 = vmax.f32 %v10798, %v10814
        %v10828 = vmax.f32 %v10800, %v10816
        %v10829 = vmax.f32 %v10802, %v10818
        %v10830 = vmax.f32 %v10804, %v10820
        %v10831 = vmax.f32 %v10806, %v10822
        %v10832 = vmax.f32 %v10808, %v10824
        %10833 = vst [vmem:[%s232] sm:$0xff] %v10825
        %10834 = vst [vmem:[%s232 + $0x8] sm:$0xff] %v10826
        %10835 = vst [vmem:[%s232 + $0x10] sm:$0xff] %v10827
        %10836 = vst [vmem:[%s232 + $0x18] sm:$0xff] %v10828
        %10837 = vst [vmem:[%s232 + $0x20] sm:$0xff] %v10829
        %10838 = vst [vmem:[%s232 + $0x28] sm:$0xff] %v10830
        %10839 = vst [vmem:[%s232 + $0x30] sm:$0xff] %v10831
        %10840 = vst [vmem:[%s232 + $0x38] sm:$0xff] %v10832
        %s10841 = sand.u32 %s138, 1
        %s10842 = scalar_lea.sflag [#allocation6], %s10841
        %s10843 = sand.u32 %s138, 1
        %s10844 = smul.addr %s10843, 64
        %s10845 = scalar_lea.vmem [#allocation7], %s10844
        // Predicated region
        $region45: #{tpu_custom_call.1} parent=39 // pred_check
          %p10846 = pneg %p148
        $region46: #{tpu_custom_call.1} parent=39 // pred_check_branch
          %10848 = sbr.rel (%p10846) target = $region48
        $region47: #{tpu_custom_call.1} parent=39 // pred_region
          %s10850 = ssub.s32 1024, 1024
          %10851 = vsyncadd %s10842, %s10850
          %s10852 = smul.addr %s20, 8
          %s10853 = smul.addr %s10852, 128
          %s10854 = scalar_lea.hbm %s5, %s10853
          %s10855 = sshll.u32 %s10845, 4
          %s10856 = int_to_ptr.vmem [resolvable:$true] %s10855
          %10861 = dma.vmem_to_hbm [thread:$0]  %s10856, 1024, %s10854, %s10842, 128, 128, 8
        $region48: #{tpu_custom_call.1} parent=39 // pred_fallthru
          _
      $region40: #{tpu_custom_call.1} parent=5 // pred_fallthru
        _
      %p10862 = scmp.le.s32.totalorder 2, %s15
      // Predicated region
      $region49: #{tpu_custom_call.1} parent=5 // pred_check
        %p10863 = pneg %p10862
      $region50: #{tpu_custom_call.1} parent=5 // pred_check_branch
        %10865 = sbr.rel (%p10863) target = $region52
      $region51: #{tpu_custom_call.1} parent=5 // pred_region
        %s10866 = ssub.s32 %s15, 2
        // Predicated region
        $region53: #{tpu_custom_call.1} parent=51 // pred_check
          %p10867 = pneg %p154
        $region54: #{tpu_custom_call.1} parent=51 // pred_check_branch
          %10869 = sbr.rel (%p10867) target = $region56
        $region55: #{tpu_custom_call.1} parent=51 // pred_region
          %s10870 = sand.u32 %s139, 1
          %s10871 = scalar_lea.sflag [#allocation6], %s10870
          %s10872 = sand.u32 %s139, 1
          %s10873 = smul.addr %s10872, 64
          %s10874 = scalar_lea.vmem [#allocation7], %s10873
          %10875 = dma.done %s10871, 1024
        $region56: #{tpu_custom_call.1} parent=51 // pred_fallthru
          _
      $region52: #{tpu_custom_call.1} parent=5 // pred_fallthru
        _
    $region6: #{tpu_custom_call.1} parent=1 // loop_footer
      %s19 = sadd.s32 1, %s15
    $region7: #{tpu_custom_call.1} parent=1 // loop_footer_branch
      %14 = sbr.rel target = $region3
    $region8: #{tpu_custom_call.1} parent=1 // loop_exit
      _
    %10876 = vsyncpa [#allocation5], 1
    %s10877 = scalar_lea.sflag [#allocation5], 1
    %10878 = vsyncpa %s10877, 1
    %10879 = vsyncpa [#allocation6], 1
    %s10880 = scalar_lea.sflag [#allocation6], 1
    %10881 = vsyncpa %s10880, 1

</llo_original>
